<compile_context>
chip_gen: v6e
topology: v6e:2x2x1
jax: 0.10.0
libtpu: 0.0.40
codegen_flags: <defaults>
</compile_context>

<pallas_src>
import functools

import jax
import jax.numpy as jnp
import numpy as np
from jax.experimental import pallas as pl
from jax.experimental.pallas import tpu as pltpu


def _round_up(x, m):
    return (x + m - 1) // m * m


# ----------------------------------------------------------------------------
# Hardware-aware helpers
# ----------------------------------------------------------------------------
def _vmem_budget_bytes():
    """Scoped-VMEM budget derived from the chip's physical VMEM capacity."""
    cap = 64 * 1024 * 1024
    try:
        info = pltpu.get_tpu_info()
        cap = int(getattr(info, "vmem_capacity_bytes", cap)) or cap
    except Exception:
        pass
    # Leave ~24 MiB headroom for Mosaic internal scratch; cap at 100 MiB.
    return max(min(cap - 24 * 1024 * 1024, 100 * 1024 * 1024), 32 * 1024 * 1024)


def _tensorcores_per_chip():
    """Best-effort detection of multi-TensorCore chips (v4/v5p megacore, v7x)."""
    try:
        kind = jax.devices()[0].device_kind.lower()
    except Exception:
        return 1
    for tag in ("v4", "v5p", "v7", "7x"):
        if tag in kind:
            return 2
    return 1


_BUFFERED_OK = None


def _buffered_supported():
    """Eagerly probe pl.Buffered(1) (single-buffered resident blocks) once."""
    global _BUFFERED_OK
    if _BUFFERED_OK is None:
        try:
            def _k(x_ref, o_ref):
                o_ref[...] = x_ref[...]

            f = pl.pallas_call(
                _k,
                out_shape=jax.ShapeDtypeStruct((8, 128), jnp.float32),
                grid=(1,),
                in_specs=[pl.BlockSpec((8, 128), lambda i: (0, 0),
                                       pipeline_mode=pl.Buffered(1))],
                out_specs=pl.BlockSpec((8, 128), lambda i: (0, 0)),
            )
            xin = jnp.ones((8, 128), jnp.float32)
            out = jax.block_until_ready(f(xin))
            _BUFFERED_OK = bool(jnp.allclose(out, xin))
        except Exception:
            _BUFFERED_OK = False
    return _BUFFERED_OK


def _resident_spec(block_shape, index_map):
    """BlockSpec for a block whose index map is constant over the whole grid.

    Single-buffered when supported: saves VMEM (no second buffer) and the
    redundant per-grid-step DMA of a never-changing block."""
    if _buffered_supported():
        return pl.BlockSpec(block_shape, index_map, pipeline_mode=pl.Buffered(1))
    return pl.BlockSpec(block_shape, index_map)


def _largest_tile(n, unit, cap):
    """Largest multiple of `unit` that divides `n` and is <= min(cap, n)."""
    best = unit
    t = unit
    lim = min(cap, n)
    while t <= lim:
        if n % t == 0:
            best = t
        t += unit
    return best


# ----------------------------------------------------------------------------
# Row-tiled matmul + bias kernel (used for the final FC layer).
# ----------------------------------------------------------------------------
def _matmul_bias_kernel(x_ref, w_ref, b_ref, o_ref):
    o_ref[...] = (
        jnp.dot(x_ref[...], w_ref[...], preferred_element_type=jnp.float32)
        + b_ref[...]
    ).astype(o_ref.dtype)


def matmul_bias_pallas(x, w, b, vmem_budget):
    """x: (M, K) f32, w: (K, N) f32, b: (1, N) f32 -> (M, N) f32.
    N must be a multiple of 128."""
    M, K = x.shape
    N = w.shape[1]

    tn = _largest_tile(N, 128, 512)            # tile output columns
    tm = min(512, _round_up(M, 8))             # big row tiles: bandwidth roofline

    def _tile_bytes(tm_, tn_):
        # conservative: everything double-buffered
        return 4 * (2 * tm_ * K + 2 * tm_ * tn_ + 2 * K * tn_ + 2 * tn_)

    while tm > 8 and _tile_bytes(tm, tn) > vmem_budget:
        tm = max(_round_up(tm // 2, 8), 8)

    Mp = _round_up(M, tm)
    if Mp != M:
        x = jnp.pad(x, ((0, Mp - M), (0, 0)))
    nj = N // tn

    if nj == 1:   # weight/bias index maps constant over the grid -> resident
        w_spec = _resident_spec((K, tn), lambda i, j: (0, j))
        b_spec = _resident_spec((1, tn), lambda i, j: (0, j))
    else:
        w_spec = pl.BlockSpec((K, tn), lambda i, j: (0, j))
        b_spec = pl.BlockSpec((1, tn), lambda i, j: (0, j))

    out = pl.pallas_call(
        _matmul_bias_kernel,
        out_shape=jax.ShapeDtypeStruct((Mp, N), jnp.float32),
        grid_spec=pltpu.PrefetchScalarGridSpec(
            num_scalar_prefetch=0,
            grid=(Mp // tm, nj),
            in_specs=[
                pl.BlockSpec((tm, K), lambda i, j: (i, 0)),   # X row tile
                w_spec,                                       # W column tile
                b_spec,                                       # bias tile
            ],
            out_specs=pl.BlockSpec((tm, tn), lambda i, j: (i, j)),
        ),
        compiler_params=pltpu.CompilerParams(
            dimension_semantics=("parallel", "parallel"),
            vmem_limit_bytes=vmem_budget,
        ),
    )(x, w, b)
    return out if Mp == M else out[:M]


# ----------------------------------------------------------------------------
# Fused LSTM layer kernel: per grid step, one chunk-wide input-projection
# matmul into VMEM scratch, then the serial recurrence over TC timesteps.
# Grid = (batch_block [parallel], time_chunk [arbitrary]); h/c persist in
# VMEM scratch across the time-chunk axis.
# ----------------------------------------------------------------------------
def _lstm_layer_kernel(x_ref, w_ih_ref, w_hh_ref, b_ref, hseq_ref,
                       h_scr, c_scr, gx_scr, *, bb):
    tc = x_ref.shape[0] // bb      # timesteps in this chunk (static)
    hp = h_scr.shape[-1]           # padded hidden size (multiple of 128)

    @pl.when(pl.program_id(1) == 0)
    def _():
        h_scr[...] = jnp.zeros_like(h_scr)
        c_scr[...] = jnp.zeros_like(c_scr)

    # Hoisted input projection for the whole chunk: ONE (TC*BB, F) @ (F, 4Hp)
    # MXU matmul (no gates_x HBM round trip).
    gx_scr[...] = (
        jnp.dot(x_ref[...], w_ih_ref[...], preferred_element_type=jnp.float32)
        + b_ref[...]
    )

    def step(i, carry):
        h_prev = h_scr[...]                    # (BB, Hp)
        c_prev = c_scr[...]
        row = pl.multiple_of(i * bb, bb)
        # gates: (BB, 4*Hp); PyTorch gate order i, f, g, o; each gate block is
        # Hp (multiple of 128) wide so the slices below are lane-aligned.
        gates = gx_scr[pl.ds(row, bb), :] + jnp.dot(
            h_prev, w_hh_ref[...], preferred_element_type=jnp.float32
        )
        i_g = jax.nn.sigmoid(gates[:, 0 * hp:1 * hp])
        f_g = jax.nn.sigmoid(gates[:, 1 * hp:2 * hp])
        g_g = jnp.tanh(gates[:, 2 * hp:3 * hp])
        o_g = jax.nn.sigmoid(gates[:, 3 * hp:4 * hp])
        c_new = f_g * c_prev + i_g * g_g
        h_new = o_g * jnp.tanh(c_new)
        c_scr[...] = c_new
        h_scr[...] = h_new
        hseq_ref[pl.ds(row, bb), :] = h_new.astype(hseq_ref.dtype)
        return carry

    # Capped unroll: the h/c dependence chain gives no extra ILP beyond a few
    # steps; deeper unrolling only bloats code / risks vreg spills.
    jax.lax.fori_loop(0, tc, step, 0, unroll=min(tc, 8))


def _pick_time_chunk(T, BB, F, Hp, budget, buffered, cap=128):
    """VMEM-aware time-chunk size: largest divisor of T whose chunk fits."""
    G4 = 4 * Hp
    wbuf = 1 if buffered else 2
    fixed = 4 * (wbuf * (F * G4 + Hp * G4 + G4) + 2 * BB * Hp)  # weights + h/c
    head = 4 * 1024 * 1024
    per_t = 4 * BB * (2 * F + 2 * Hp + G4)   # x(x2 buf) + out(x2 buf) + gx scratch
    avail = max(budget - fixed - head, per_t)
    tc_max = max(int(min(avail // per_t, cap, T)), 1)
    for tc in range(tc_max, 0, -1):
        if T % tc == 0:
            return tc
    return 1


def lstm_layer_pallas(x_blocks, w_ih_t, w_hh_t, b, T, BB, vmem_budget):
    """One LSTM layer.

    x_blocks: (NBB, T*BB, F) — batch-block-major, time-major within a block,
              BB consecutive batch rows per timestep group.
    Returns the hidden sequence in the same layout: (NBB, T*BB, Hp)."""
    NBB, _, F = x_blocks.shape
    Hp = w_hh_t.shape[0]
    G4 = 4 * Hp
    buffered = _buffered_supported()
    TC = _pick_time_chunk(T, BB, F, Hp, vmem_budget, buffered)

    kernel = functools.partial(_lstm_layer_kernel, bb=BB)

    return pl.pallas_call(
        kernel,
        out_shape=jax.ShapeDtypeStruct((NBB, T * BB, Hp), jnp.float32),
        grid_spec=pltpu.PrefetchScalarGridSpec(
            num_scalar_prefetch=0,
            grid=(NBB, T // TC),
            in_specs=[
                pl.BlockSpec((None, TC * BB, F), lambda bk, c: (bk, c, 0)),
                _resident_spec((F, G4), lambda bk, c: (0, 0)),    # W_ih^T
                _resident_spec((Hp, G4), lambda bk, c: (0, 0)),   # W_hh^T
                _resident_spec((1, G4), lambda bk, c: (0, 0)),    # bias
            ],
            out_specs=pl.BlockSpec((None, TC * BB, Hp), lambda bk, c: (bk, c, 0)),
            scratch_shapes=[
                pltpu.VMEM((BB, Hp), jnp.float32),        # h state (per batch block)
                pltpu.VMEM((BB, Hp), jnp.float32),        # c state
                pltpu.VMEM((TC * BB, G4), jnp.float32),   # chunk input-projection
            ],
        ),
        compiler_params=pltpu.CompilerParams(
            # Batch-block axis is "parallel" (v7x 2-TC sharding; each core gets
            # its own h/c scratch).  Time axis MUST stay "arbitrary": the h/c
            # scratch carries the recurrence across grid steps.
            dimension_semantics=("parallel", "arbitrary"),
            vmem_limit_bytes=vmem_budget,
        ),
    )(x_blocks, w_ih_t, w_hh_t, b)


# ----------------------------------------------------------------------------
# Full module forward (LSTM stack + FC), matching LSTM_Layer.forward
# ----------------------------------------------------------------------------
@functools.partial(jax.jit, static_argnames=("num_layers", "num_class"))
def _forward_jit(x_btf, params, num_layers, num_class):
    B, T, F0 = x_btf.shape
    Bp = _round_up(B, 8)                     # pad batch to sublanes
    cores = _tensorcores_per_chip()
    NBB = 2 if (cores >= 2 and Bp >= 16 and Bp % 16 == 0) else 1
    BB = Bp // NBB
    vmem_budget = _vmem_budget_bytes()

    # (B, T, F) -> time-major, batch padded -> batch-block layout (NBB, T*BB, F)
    h = jnp.transpose(x_btf, (1, 0, 2))                      # (T, B, F)
    if Bp != B:
        h = jnp.pad(h, ((0, 0), (0, Bp - B), (0, 0)))        # (T, Bp, F)
    h = h.reshape(T, NBB, BB, F0).transpose(1, 0, 2, 3).reshape(NBB, T * BB, F0)

    for layer in range(num_layers):
        w_ih_t, w_hh_t, b = params["lstm"][layer]
        h = lstm_layer_pallas(h, w_ih_t, w_hh_t, b, T, BB, vmem_budget)

    Hp = h.shape[-1]
    y = matmul_bias_pallas(h.reshape(NBB * T * BB, Hp),
                           params["fc_w_t"], params["fc_b"], vmem_budget)
    Cp = y.shape[-1]
    y = y.reshape(NBB, T, BB, Cp).transpose(1, 0, 2, 3).reshape(T, Bp, Cp)
    y = y[:, :B, :num_class]                                 # drop padding
    return jnp.transpose(y, (1, 0, 2))                       # back to (B, T, C)


def lstm_layer_forward(x_btf, params, num_layers, num_class):
    _buffered_supported()   # run the eager Buffered(1) probe outside of jit
    return _forward_jit(x_btf, params, num_layers, num_class)


# ----------------------------------------------------------------------------
# Parameter init: same shapes / init range as nn.LSTM + nn.Linear.
# Returns (padded/pre-transposed kernel params, raw params for the reference).
# Padding with zeros is mathematically exact (padded hidden units stay 0).
# ----------------------------------------------------------------------------
def init_params(key, input_size, hidden_size, num_class, num_layers):
    H = hidden_size
    Hp = _round_up(H, 128)
    Cp = _round_up(num_class, 128)
    bound = 1.0 / np.sqrt(H)

    params = {"lstm": []}
    raw = {"lstm": []}
    for layer in range(num_layers):
        in_sz = input_size if layer == 0 else H
        in_sz_p = input_size if layer == 0 else Hp
        key, k1, k2, k3, k4 = jax.random.split(key, 5)
        w_ih = jax.random.uniform(k1, (4 * H, in_sz), jnp.float32, -bound, bound)
        w_hh = jax.random.uniform(k2, (4 * H, H), jnp.float32, -bound, bound)
        b_ih = jax.random.uniform(k3, (4 * H,), jnp.float32, -bound, bound)
        b_hh = jax.random.uniform(k4, (4 * H,), jnp.float32, -bound, bound)
        raw["lstm"].append((w_ih, w_hh, b_ih, b_hh))

        # Pad each gate block to Hp (zeros) and the hidden-input dim to Hp,
        # then pre-transpose for (rows, F) @ (F, 4Hp) MXU matmuls.
        w_ih_p = jnp.zeros((4, Hp, in_sz_p), jnp.float32)
        w_ih_p = w_ih_p.at[:, :H, :in_sz].set(w_ih.reshape(4, H, in_sz))
        w_hh_p = jnp.zeros((4, Hp, Hp), jnp.float32)
        w_hh_p = w_hh_p.at[:, :H, :H].set(w_hh.reshape(4, H, H))
        b_p = jnp.zeros((4, Hp), jnp.float32)
        b_p = b_p.at[:, :H].set((b_ih + b_hh).reshape(4, H))
        params["lstm"].append((
            w_ih_p.reshape(4 * Hp, in_sz_p).T,   # (in_sz_p, 4Hp)
            w_hh_p.reshape(4 * Hp, Hp).T,        # (Hp, 4Hp)
            b_p.reshape(1, 4 * Hp),
        ))

    key, k5, k6 = jax.random.split(key, 3)
    fc_bound = 1.0 / np.sqrt(H)
    fc_w = jax.random.uniform(k5, (num_class, H), jnp.float32, -fc_bound, fc_bound)
    fc_b = jax.random.uniform(k6, (num_class,), jnp.float32, -fc_bound, fc_bound)
    raw["fc_w"] = fc_w
    raw["fc_b"] = fc_b

    fc_w_p = jnp.zeros((Cp, Hp), jnp.float32).at[:num_class, :H].set(fc_w)
    fc_b_p = jnp.zeros((Cp,), jnp.float32).at[:num_class].set(fc_b)
    params["fc_w_t"] = fc_w_p.T                  # (Hp, Cp)
    params["fc_b"] = fc_b_p[None, :]             # (1, Cp)
    return params, raw


# ----------------------------------------------------------------------------
# Pure-JAX reference (unpadded lax.scan LSTM) for the correctness check.
# ----------------------------------------------------------------------------
def reference_forward(x_btf, raw, num_layers):
    B = x_btf.shape[0]
    h_seq = jnp.transpose(x_btf, (1, 0, 2))
    for layer in range(num_layers):
        w_ih, w_hh, b_ih, b_hh = raw["lstm"][layer]
        H = w_hh.shape[1]

        def step(carry, x_t, w_ih=w_ih, w_hh=w_hh, b_ih=b_ih, b_hh=b_hh, H=H):
            h_p, c_p = carry
            gates = x_t @ w_ih.T + h_p @ w_hh.T + b_ih + b_hh
            i = jax.nn.sigmoid(gates[:, 0 * H:1 * H])
            f = jax.nn.sigmoid(gates[:, 1 * H:2 * H])
            g = jnp.tanh(gates[:, 2 * H:3 * H])
            o = jax.nn.sigmoid(gates[:, 3 * H:4 * H])
            c = f * c_p + i * g
            h = o * jnp.tanh(c)
            return (h, c), h

        init = (jnp.zeros((B, H), jnp.float32), jnp.zeros((B, H), jnp.float32))
        _, h_seq = jax.lax.scan(step, init, h_seq)
    y = h_seq @ raw["fc_w"].T + raw["fc_b"]
    return jnp.transpose(y, (1, 0, 2))


if __name__ == "__main__":
    # Small shapes consistent with LSTM_Layer(input_size, num_class, hidden_size, num_layers, ...)
    B, T = 2, 8
    INPUT_SIZE = 16
    HIDDEN_SIZE = 32
    NUM_CLASS = 16
    NUM_LAYERS = 2

    key = jax.random.PRNGKey(0)
    key, kx = jax.random.split(key)
    x = jax.random.normal(kx, (B, T, INPUT_SIZE), jnp.float32)

    params, raw = init_params(key, INPUT_SIZE, HIDDEN_SIZE, NUM_CLASS, NUM_LAYERS)

    y = lstm_layer_forward(x, params, NUM_LAYERS, NUM_CLASS)
    y = jax.block_until_ready(y)

    y_ref = jax.block_until_ready(reference_forward(x, raw, NUM_LAYERS))
    assert y.shape == (B, T, NUM_CLASS)
    np.testing.assert_allclose(np.asarray(y), np.asarray(y_ref), rtol=1e-4, atol=1e-4)

    print("KERNEL_OK")
</pallas_src>

<mosaic_0001>
module attributes {stable_mosaic.version = 11 : i64} {
  func.func @_k(%arg0: i32, %arg1: memref<8x128xf32, #tpu.memory_space<vmem>>, %arg2: memref<8x128xf32, #tpu.memory_space<vmem>>) attributes {dimension_semantics = [#tpu.dimension_semantics<arbitrary>], iteration_bounds = array<i64: 1>, scalar_prefetch = 0 : i64, scratch_operands = 0 : i64, tpu.core_type = #tpu.core_type<tc>, window_params = [{pipeline_mode = #tpu.pipeline_mode<synchronous>, transform_indices = @transform_0, window_bounds = array<i64: 8, 128>}, {pipeline_mode = #tpu.pipeline_mode<synchronous>, transform_indices = @transform_1, window_bounds = array<i64: 8, 128>}]} {
    %c0 = arith.constant 0 : index
    %c0_0 = arith.constant 0 : index
    %0 = vector.load %arg1[%c0, %c0_0] : memref<8x128xf32, #tpu.memory_space<vmem>>, vector<8x128xf32>
    %c0_1 = arith.constant 0 : index
    %c0_2 = arith.constant 0 : index
    %1 = vector.load %arg2[%c0_1, %c0_2] : memref<8x128xf32, #tpu.memory_space<vmem>>, vector<8x128xf32>
    tpu.vector_store %arg2[%c0_1, %c0_2], %0 {strides = array<i32>} : memref<8x128xf32, #tpu.memory_space<vmem>>, vector<8x128xf32>,
    return
  }
  func.func @transform_0(%arg0: i32) -> (i32, i32) {
    %c0_i32 = arith.constant 0 : i32
    %c0_i32_0 = arith.constant 0 : i32
    %c0_i32_1 = arith.constant 0 : i32
    return %c0_i32, %c0_i32_0 : i32, i32
  }
  func.func @transform_1(%arg0: i32) -> (i32, i32) {
    %c0_i32 = arith.constant 0 : i32
    %c0_i32_0 = arith.constant 0 : i32
    %c0_i32_1 = arith.constant 0 : i32
    return %c0_i32, %c0_i32_0 : i32, i32
  }
}

module attributes {stable_mosaic.version = 11 : i64} {
  func.func @_lstm_layer_kernel(%arg0: i32, %arg1: i32, %arg2: memref<1x64x128xf32, #tpu.memory_space<vmem>>, %arg3: memref<128x512xf32, #tpu.memory_space<vmem>>, %arg4: memref<128x512xf32, #tpu.memory_space<vmem>>, %arg5: memref<1x512xf32, #tpu.memory_space<vmem>>, %arg6: memref<1x64x128xf32, #tpu.memory_space<vmem>>, %arg7: memref<8x128xf32, #tpu.memory_space<vmem>>, %arg8: memref<8x128xf32, #tpu.memory_space<vmem>>, %arg9: memref<64x512xf32, #tpu.memory_space<vmem>>) attributes {dimension_semantics = [#tpu.dimension_semantics<parallel>, #tpu.dimension_semantics<arbitrary>], iteration_bounds = array<i64: 1, 1>, scalar_prefetch = 0 : i64, scratch_operands = 3 : i64, tpu.core_type = #tpu.core_type<tc>, window_params = [{transform_indices = @transform_0, window_bounds = array<i64: 1, 64, 128>}, {pipeline_mode = #tpu.pipeline_mode<synchronous>, transform_indices = @transform_1, window_bounds = array<i64: 128, 512>}, {pipeline_mode = #tpu.pipeline_mode<synchronous>, transform_indices = @transform_2, window_bounds = array<i64: 128, 512>}, {pipeline_mode = #tpu.pipeline_mode<synchronous>, transform_indices = @transform_3, window_bounds = array<i64: 1, 512>}, {transform_indices = @transform_4, window_bounds = array<i64: 1, 64, 128>}]} {
    %c0_i32 = arith.constant 0 : i32
    %0 = arith.cmpi eq, %arg1, %c0_i32 : i32
    %1 = arith.extui %0 : i1 to i32
    %c0_i32_0 = arith.constant 0 : i32
    %2 = arith.cmpi ne, %1, %c0_i32_0 : i32
    scf.if %2 {
      %cst_154 = arith.constant 0.000000e+00 : f32
      %331 = vector.broadcast %cst_154 : f32 to vector<8x128xf32>
      %c0_155 = arith.constant 0 : index
      %c0_156 = arith.constant 0 : index
      %332 = vector.load %arg7[%c0_155, %c0_156] : memref<8x128xf32, #tpu.memory_space<vmem>>, vector<8x128xf32>
      tpu.vector_store %arg7[%c0_155, %c0_156], %331 {strides = array<i32>} : memref<8x128xf32, #tpu.memory_space<vmem>>, vector<8x128xf32>,
      %cst_157 = arith.constant 0.000000e+00 : f32
      %333 = vector.broadcast %cst_157 : f32 to vector<8x128xf32>
      %c0_158 = arith.constant 0 : index
      %c0_159 = arith.constant 0 : index
      %334 = vector.load %arg8[%c0_158, %c0_159] : memref<8x128xf32, #tpu.memory_space<vmem>>, vector<8x128xf32>
      tpu.vector_store %arg8[%c0_158, %c0_159], %333 {strides = array<i32>} : memref<8x128xf32, #tpu.memory_space<vmem>>, vector<8x128xf32>,
    } else {
    }
    %c0 = arith.constant 0 : index
    %c0_1 = arith.constant 0 : index
    %c0_2 = arith.constant 0 : index
    %3 = vector.load %arg2[%c0, %c0_1, %c0_2] : memref<1x64x128xf32, #tpu.memory_space<vmem>>, vector<1x64x128xf32>
    %4 = vector.shape_cast %3 : vector<1x64x128xf32> to vector<64x128xf32>
    %c0_3 = arith.constant 0 : index
    %c0_4 = arith.constant 0 : index
    %5 = vector.load %arg3[%c0_3, %c0_4] : memref<128x512xf32, #tpu.memory_space<vmem>>, vector<128x512xf32>
    %cst = arith.constant dense<0.000000e+00> : vector<64x512xf32>
    %6 = tpu.matmul %4, %5, %cst {dimension_numbers = #tpu.dot_dimension_numbers<[1], [0], [0], [1], [0, 0, 1, 1], [], []>} : vector<64x128xf32>, vector<128x512xf32>, vector<64x512xf32> -> vector<64x512xf32>
    %c0_5 = arith.constant 0 : index
    %c0_6 = arith.constant 0 : index
    %7 = vector.load %arg5[%c0_5, %c0_6] : memref<1x512xf32, #tpu.memory_space<vmem>>, vector<1x512xf32>
    %8 = vector.broadcast %7 : vector<1x512xf32> to vector<64x512xf32>
    %9 = arith.addf %6, %8 : vector<64x512xf32>
    %c0_7 = arith.constant 0 : index
    %c0_8 = arith.constant 0 : index
    %10 = vector.load %arg9[%c0_7, %c0_8] : memref<64x512xf32, #tpu.memory_space<vmem>>, vector<64x512xf32>
    tpu.vector_store %arg9[%c0_7, %c0_8], %9 {strides = array<i32>} : memref<64x512xf32, #tpu.memory_space<vmem>>, vector<64x512xf32>,
    %c0_i32_9 = arith.constant 0 : i32
    %c0_10 = arith.constant 0 : index
    %c0_11 = arith.constant 0 : index
    %11 = vector.load %arg7[%c0_10, %c0_11] : memref<8x128xf32, #tpu.memory_space<vmem>>, vector<8x128xf32>
    %c0_12 = arith.constant 0 : index
    %c0_13 = arith.constant 0 : index
    %12 = vector.load %arg8[%c0_12, %c0_13] : memref<8x128xf32, #tpu.memory_space<vmem>>, vector<8x128xf32>
    %c8_i32 = arith.constant 8 : i32
    %13 = arith.muli %c0_i32_9, %c8_i32 : i32
    %14 = tpu.assume_multiple %13, 8 : i32
    %15 = arith.index_cast %14 : i32 to index
    %c0_14 = arith.constant 0 : index
    %16 = vector.load %arg9[%15, %c0_14] : memref<64x512xf32, #tpu.memory_space<vmem>>, vector<8x512xf32>
    %c0_15 = arith.constant 0 : index
    %c0_16 = arith.constant 0 : index
    %17 = vector.load %arg4[%c0_15, %c0_16] : memref<128x512xf32, #tpu.memory_space<vmem>>, vector<128x512xf32>
    %cst_17 = arith.constant dense<0.000000e+00> : vector<8x512xf32>
    %18 = tpu.matmul %11, %17, %cst_17 {dimension_numbers = #tpu.dot_dimension_numbers<[1], [0], [0], [1], [0, 0, 1, 1], [], []>} : vector<8x128xf32>, vector<128x512xf32>, vector<8x512xf32> -> vector<8x512xf32>
    %19 = arith.addf %16, %18 : vector<8x512xf32>
    %20 = vector.extract_strided_slice %19 {offsets = [0, 0], sizes = [8, 128], strides = [1, 1]} : vector<8x512xf32> to vector<8x128xf32>
    %21 = arith.negf %20 : vector<8x128xf32>
    %22 = math.exp %21 : vector<8x128xf32>
    %cst_18 = arith.constant 1.000000e+00 : f32
    %23 = vector.broadcast %cst_18 : f32 to vector<8x128xf32>
    %24 = arith.addf %23, %22 : vector<8x128xf32>
    %25 = arith.divf %23, %24 : vector<8x128xf32>
    %26 = vector.extract_strided_slice %19 {offsets = [0, 128], sizes = [8, 128], strides = [1, 1]} : vector<8x512xf32> to vector<8x128xf32>
    %27 = arith.negf %26 : vector<8x128xf32>
    %28 = math.exp %27 : vector<8x128xf32>
    %cst_19 = arith.constant 1.000000e+00 : f32
    %29 = vector.broadcast %cst_19 : f32 to vector<8x128xf32>
    %30 = arith.addf %29, %28 : vector<8x128xf32>
    %31 = arith.divf %29, %30 : vector<8x128xf32>
    %32 = vector.extract_strided_slice %19 {offsets = [0, 256], sizes = [8, 128], strides = [1, 1]} : vector<8x512xf32> to vector<8x128xf32>
    %33 = math.tanh %32 : vector<8x128xf32>
    %34 = vector.extract_strided_slice %19 {offsets = [0, 384], sizes = [8, 128], strides = [1, 1]} : vector<8x512xf32> to vector<8x128xf32>
    %35 = arith.negf %34 : vector<8x128xf32>
    %36 = math.exp %35 : vector<8x128xf32>
    %cst_20 = arith.constant 1.000000e+00 : f32
    %37 = vector.broadcast %cst_20 : f32 to vector<8x128xf32>
    %38 = arith.addf %37, %36 : vector<8x128xf32>
    %39 = arith.divf %37, %38 : vector<8x128xf32>
    %40 = arith.mulf %31, %12 : vector<8x128xf32>
    %41 = arith.mulf %25, %33 : vector<8x128xf32>
    %42 = arith.addf %40, %41 : vector<8x128xf32>
    %43 = math.tanh %42 : vector<8x128xf32>
    %44 = arith.mulf %39, %43 : vector<8x128xf32>
    %c0_21 = arith.constant 0 : index
    %c0_22 = arith.constant 0 : index
    %45 = vector.load %arg8[%c0_21, %c0_22] : memref<8x128xf32, #tpu.memory_space<vmem>>, vector<8x128xf32>
    tpu.vector_store %arg8[%c0_21, %c0_22], %42 {strides = array<i32>} : memref<8x128xf32, #tpu.memory_space<vmem>>, vector<8x128xf32>,
    %c0_23 = arith.constant 0 : index
    %c0_24 = arith.constant 0 : index
    %46 = vector.load %arg7[%c0_23, %c0_24] : memref<8x128xf32, #tpu.memory_space<vmem>>, vector<8x128xf32>
    tpu.vector_store %arg7[%c0_23, %c0_24], %44 {strides = array<i32>} : memref<8x128xf32, #tpu.memory_space<vmem>>, vector<8x128xf32>,
    %c0_25 = arith.constant 0 : index
    %47 = arith.index_cast %14 : i32 to index
    %c0_26 = arith.constant 0 : index
    %48 = vector.load %arg6[%c0_25, %47, %c0_26] : memref<1x64x128xf32, #tpu.memory_space<vmem>>, vector<1x8x128xf32>
    %49 = vector.shape_cast %48 : vector<1x8x128xf32> to vector<8x128xf32>
    %50 = vector.shape_cast %44 : vector<8x128xf32> to vector<1x8x128xf32>
    tpu.vector_store %arg6[%c0_25, %47, %c0_26], %50 {strides = array<i32>} : memref<1x64x128xf32, #tpu.memory_space<vmem>>, vector<1x8x128xf32>,
    %c1_i32 = arith.constant 1 : i32
    %c0_27 = arith.constant 0 : index
    %c0_28 = arith.constant 0 : index
    %51 = vector.load %arg7[%c0_27, %c0_28] : memref<8x128xf32, #tpu.memory_space<vmem>>, vector<8x128xf32>
    %c0_29 = arith.constant 0 : index
    %c0_30 = arith.constant 0 : index
    %52 = vector.load %arg8[%c0_29, %c0_30] : memref<8x128xf32, #tpu.memory_space<vmem>>, vector<8x128xf32>
    %c8_i32_31 = arith.constant 8 : i32
    %53 = arith.muli %c1_i32, %c8_i32_31 : i32
    %54 = tpu.assume_multiple %53, 8 : i32
    %55 = arith.index_cast %54 : i32 to index
    %c0_32 = arith.constant 0 : index
    %56 = vector.load %arg9[%55, %c0_32] : memref<64x512xf32, #tpu.memory_space<vmem>>, vector<8x512xf32>
    %c0_33 = arith.constant 0 : index
    %c0_34 = arith.constant 0 : index
    %57 = vector.load %arg4[%c0_33, %c0_34] : memref<128x512xf32, #tpu.memory_space<vmem>>, vector<128x512xf32>
    %cst_35 = arith.constant dense<0.000000e+00> : vector<8x512xf32>
    %58 = tpu.matmul %51, %57, %cst_35 {dimension_numbers = #tpu.dot_dimension_numbers<[1], [0], [0], [1], [0, 0, 1, 1], [], []>} : vector<8x128xf32>, vector<128x512xf32>, vector<8x512xf32> -> vector<8x512xf32>
    %59 = arith.addf %56, %58 : vector<8x512xf32>
    %60 = vector.extract_strided_slice %59 {offsets = [0, 0], sizes = [8, 128], strides = [1, 1]} : vector<8x512xf32> to vector<8x128xf32>
    %61 = arith.negf %60 : vector<8x128xf32>
    %62 = math.exp %61 : vector<8x128xf32>
    %cst_36 = arith.constant 1.000000e+00 : f32
    %63 = vector.broadcast %cst_36 : f32 to vector<8x128xf32>
    %64 = arith.addf %63, %62 : vector<8x128xf32>
    %65 = arith.divf %63, %64 : vector<8x128xf32>
    %66 = vector.extract_strided_slice %59 {offsets = [0, 128], sizes = [8, 128], strides = [1, 1]} : vector<8x512xf32> to vector<8x128xf32>
    %67 = arith.negf %66 : vector<8x128xf32>
    %68 = math.exp %67 : vector<8x128xf32>
    %cst_37 = arith.constant 1.000000e+00 : f32
    %69 = vector.broadcast %cst_37 : f32 to vector<8x128xf32>
    %70 = arith.addf %69, %68 : vector<8x128xf32>
    %71 = arith.divf %69, %70 : vector<8x128xf32>
    %72 = vector.extract_strided_slice %59 {offsets = [0, 256], sizes = [8, 128], strides = [1, 1]} : vector<8x512xf32> to vector<8x128xf32>
    %73 = math.tanh %72 : vector<8x128xf32>
    %74 = vector.extract_strided_slice %59 {offsets = [0, 384], sizes = [8, 128], strides = [1, 1]} : vector<8x512xf32> to vector<8x128xf32>
    %75 = arith.negf %74 : vector<8x128xf32>
    %76 = math.exp %75 : vector<8x128xf32>
    %cst_38 = arith.constant 1.000000e+00 : f32
    %77 = vector.broadcast %cst_38 : f32 to vector<8x128xf32>
    %78 = arith.addf %77, %76 : vector<8x128xf32>
    %79 = arith.divf %77, %78 : vector<8x128xf32>
    %80 = arith.mulf %71, %52 : vector<8x128xf32>
    %81 = arith.mulf %65, %73 : vector<8x128xf32>
    %82 = arith.addf %80, %81 : vector<8x128xf32>
    %83 = math.tanh %82 : vector<8x128xf32>
    %84 = arith.mulf %79, %83 : vector<8x128xf32>
    %c0_39 = arith.constant 0 : index
    %c0_40 = arith.constant 0 : index
    %85 = vector.load %arg8[%c0_39, %c0_40] : memref<8x128xf32, #tpu.memory_space<vmem>>, vector<8x128xf32>
    tpu.vector_store %arg8[%c0_39, %c0_40], %82 {strides = array<i32>} : memref<8x128xf32, #tpu.memory_space<vmem>>, vector<8x128xf32>,
    %c0_41 = arith.constant 0 : index
    %c0_42 = arith.constant 0 : index
    %86 = vector.load %arg7[%c0_41, %c0_42] : memref<8x128xf32, #tpu.memory_space<vmem>>, vector<8x128xf32>
    tpu.vector_store %arg7[%c0_41, %c0_42], %84 {strides = array<i32>} : memref<8x128xf32, #tpu.memory_space<vmem>>, vector<8x128xf32>,
    %c0_43 = arith.constant 0 : index
    %87 = arith.index_cast %54 : i32 to index
    %c0_44 = arith.constant 0 : index
    %88 = vector.load %arg6[%c0_43, %87, %c0_44] : memref<1x64x128xf32, #tpu.memory_space<vmem>>, vector<1x8x128xf32>
    %89 = vector.shape_cast %88 : vector<1x8x128xf32> to vector<8x128xf32>
    %90 = vector.shape_cast %84 : vector<8x128xf32> to vector<1x8x128xf32>
    tpu.vector_store %arg6[%c0_43, %87, %c0_44], %90 {strides = array<i32>} : memref<1x64x128xf32, #tpu.memory_space<vmem>>, vector<1x8x128xf32>,
    %c2_i32 = arith.constant 2 : i32
    %c0_45 = arith.constant 0 : index
    %c0_46 = arith.constant 0 : index
    %91 = vector.load %arg7[%c0_45, %c0_46] : memref<8x128xf32, #tpu.memory_space<vmem>>, vector<8x128xf32>
    %c0_47 = arith.constant 0 : index
    %c0_48 = arith.constant 0 : index
    %92 = vector.load %arg8[%c0_47, %c0_48] : memref<8x128xf32, #tpu.memory_space<vmem>>, vector<8x128xf32>
    %c8_i32_49 = arith.constant 8 : i32
    %93 = arith.muli %c2_i32, %c8_i32_49 : i32
    %94 = tpu.assume_multiple %93, 8 : i32
    %95 = arith.index_cast %94 : i32 to index
    %c0_50 = arith.constant 0 : index
    %96 = vector.load %arg9[%95, %c0_50] : memref<64x512xf32, #tpu.memory_space<vmem>>, vector<8x512xf32>
    %c0_51 = arith.constant 0 : index
    %c0_52 = arith.constant 0 : index
    %97 = vector.load %arg4[%c0_51, %c0_52] : memref<128x512xf32, #tpu.memory_space<vmem>>, vector<128x512xf32>
    %cst_53 = arith.constant dense<0.000000e+00> : vector<8x512xf32>
    %98 = tpu.matmul %91, %97, %cst_53 {dimension_numbers = #tpu.dot_dimension_numbers<[1], [0], [0], [1], [0, 0, 1, 1], [], []>} : vector<8x128xf32>, vector<128x512xf32>, vector<8x512xf32> -> vector<8x512xf32>
    %99 = arith.addf %96, %98 : vector<8x512xf32>
    %100 = vector.extract_strided_slice %99 {offsets = [0, 0], sizes = [8, 128], strides = [1, 1]} : vector<8x512xf32> to vector<8x128xf32>
    %101 = arith.negf %100 : vector<8x128xf32>
    %102 = math.exp %101 : vector<8x128xf32>
    %cst_54 = arith.constant 1.000000e+00 : f32
    %103 = vector.broadcast %cst_54 : f32 to vector<8x128xf32>
    %104 = arith.addf %103, %102 : vector<8x128xf32>
    %105 = arith.divf %103, %104 : vector<8x128xf32>
    %106 = vector.extract_strided_slice %99 {offsets = [0, 128], sizes = [8, 128], strides = [1, 1]} : vector<8x512xf32> to vector<8x128xf32>
    %107 = arith.negf %106 : vector<8x128xf32>
    %108 = math.exp %107 : vector<8x128xf32>
    %cst_55 = arith.constant 1.000000e+00 : f32
    %109 = vector.broadcast %cst_55 : f32 to vector<8x128xf32>
    %110 = arith.addf %109, %108 : vector<8x128xf32>
    %111 = arith.divf %109, %110 : vector<8x128xf32>
    %112 = vector.extract_strided_slice %99 {offsets = [0, 256], sizes = [8, 128], strides = [1, 1]} : vector<8x512xf32> to vector<8x128xf32>
    %113 = math.tanh %112 : vector<8x128xf32>
    %114 = vector.extract_strided_slice %99 {offsets = [0, 384], sizes = [8, 128], strides = [1, 1]} : vector<8x512xf32> to vector<8x128xf32>
    %115 = arith.negf %114 : vector<8x128xf32>
    %116 = math.exp %115 : vector<8x128xf32>
    %cst_56 = arith.constant 1.000000e+00 : f32
    %117 = vector.broadcast %cst_56 : f32 to vector<8x128xf32>
    %118 = arith.addf %117, %116 : vector<8x128xf32>
    %119 = arith.divf %117, %118 : vector<8x128xf32>
    %120 = arith.mulf %111, %92 : vector<8x128xf32>
    %121 = arith.mulf %105, %113 : vector<8x128xf32>
    %122 = arith.addf %120, %121 : vector<8x128xf32>
    %123 = math.tanh %122 : vector<8x128xf32>
    %124 = arith.mulf %119, %123 : vector<8x128xf32>
    %c0_57 = arith.constant 0 : index
    %c0_58 = arith.constant 0 : index
    %125 = vector.load %arg8[%c0_57, %c0_58] : memref<8x128xf32, #tpu.memory_space<vmem>>, vector<8x128xf32>
    tpu.vector_store %arg8[%c0_57, %c0_58], %122 {strides = array<i32>} : memref<8x128xf32, #tpu.memory_space<vmem>>, vector<8x128xf32>,
    %c0_59 = arith.constant 0 : index
    %c0_60 = arith.constant 0 : index
    %126 = vector.load %arg7[%c0_59, %c0_60] : memref<8x128xf32, #tpu.memory_space<vmem>>, vector<8x128xf32>
    tpu.vector_store %arg7[%c0_59, %c0_60], %124 {strides = array<i32>} : memref<8x128xf32, #tpu.memory_space<vmem>>, vector<8x128xf32>,
    %c0_61 = arith.constant 0 : index
    %127 = arith.index_cast %94 : i32 to index
    %c0_62 = arith.constant 0 : index
    %128 = vector.load %arg6[%c0_61, %127, %c0_62] : memref<1x64x128xf32, #tpu.memory_space<vmem>>, vector<1x8x128xf32>
    %129 = vector.shape_cast %128 : vector<1x8x128xf32> to vector<8x128xf32>
    %130 = vector.shape_cast %124 : vector<8x128xf32> to vector<1x8x128xf32>
    tpu.vector_store %arg6[%c0_61, %127, %c0_62], %130 {strides = array<i32>} : memref<1x64x128xf32, #tpu.memory_space<vmem>>, vector<1x8x128xf32>,
    %c3_i32 = arith.constant 3 : i32
    %c0_63 = arith.constant 0 : index
    %c0_64 = arith.constant 0 : index
    %131 = vector.load %arg7[%c0_63, %c0_64] : memref<8x128xf32, #tpu.memory_space<vmem>>, vector<8x128xf32>
    %c0_65 = arith.constant 0 : index
    %c0_66 = arith.constant 0 : index
    %132 = vector.load %arg8[%c0_65, %c0_66] : memref<8x128xf32, #tpu.memory_space<vmem>>, vector<8x128xf32>
    %c8_i32_67 = arith.constant 8 : i32
    %133 = arith.muli %c3_i32, %c8_i32_67 : i32
    %134 = tpu.assume_multiple %133, 8 : i32
    %135 = arith.index_cast %134 : i32 to index
    %c0_68 = arith.constant 0 : index
    %136 = vector.load %arg9[%135, %c0_68] : memref<64x512xf32, #tpu.memory_space<vmem>>, vector<8x512xf32>
    %c0_69 = arith.constant 0 : index
    %c0_70 = arith.constant 0 : index
    %137 = vector.load %arg4[%c0_69, %c0_70] : memref<128x512xf32, #tpu.memory_space<vmem>>, vector<128x512xf32>
    %cst_71 = arith.constant dense<0.000000e+00> : vector<8x512xf32>
    %138 = tpu.matmul %131, %137, %cst_71 {dimension_numbers = #tpu.dot_dimension_numbers<[1], [0], [0], [1], [0, 0, 1, 1], [], []>} : vector<8x128xf32>, vector<128x512xf32>, vector<8x512xf32> -> vector<8x512xf32>
    %139 = arith.addf %136, %138 : vector<8x512xf32>
    %140 = vector.extract_strided_slice %139 {offsets = [0, 0], sizes = [8, 128], strides = [1, 1]} : vector<8x512xf32> to vector<8x128xf32>
    %141 = arith.negf %140 : vector<8x128xf32>
    %142 = math.exp %141 : vector<8x128xf32>
    %cst_72 = arith.constant 1.000000e+00 : f32
    %143 = vector.broadcast %cst_72 : f32 to vector<8x128xf32>
    %144 = arith.addf %143, %142 : vector<8x128xf32>
    %145 = arith.divf %143, %144 : vector<8x128xf32>
    %146 = vector.extract_strided_slice %139 {offsets = [0, 128], sizes = [8, 128], strides = [1, 1]} : vector<8x512xf32> to vector<8x128xf32>
    %147 = arith.negf %146 : vector<8x128xf32>
    %148 = math.exp %147 : vector<8x128xf32>
    %cst_73 = arith.constant 1.000000e+00 : f32
    %149 = vector.broadcast %cst_73 : f32 to vector<8x128xf32>
    %150 = arith.addf %149, %148 : vector<8x128xf32>
    %151 = arith.divf %149, %150 : vector<8x128xf32>
    %152 = vector.extract_strided_slice %139 {offsets = [0, 256], sizes = [8, 128], strides = [1, 1]} : vector<8x512xf32> to vector<8x128xf32>
    %153 = math.tanh %152 : vector<8x128xf32>
    %154 = vector.extract_strided_slice %139 {offsets = [0, 384], sizes = [8, 128], strides = [1, 1]} : vector<8x512xf32> to vector<8x128xf32>
    %155 = arith.negf %154 : vector<8x128xf32>
    %156 = math.exp %155 : vector<8x128xf32>
    %cst_74 = arith.constant 1.000000e+00 : f32
    %157 = vector.broadcast %cst_74 : f32 to vector<8x128xf32>
    %158 = arith.addf %157, %156 : vector<8x128xf32>
    %159 = arith.divf %157, %158 : vector<8x128xf32>
    %160 = arith.mulf %151, %132 : vector<8x128xf32>
    %161 = arith.mulf %145, %153 : vector<8x128xf32>
    %162 = arith.addf %160, %161 : vector<8x128xf32>
    %163 = math.tanh %162 : vector<8x128xf32>
    %164 = arith.mulf %159, %163 : vector<8x128xf32>
    %c0_75 = arith.constant 0 : index
    %c0_76 = arith.constant 0 : index
    %165 = vector.load %arg8[%c0_75, %c0_76] : memref<8x128xf32, #tpu.memory_space<vmem>>, vector<8x128xf32>
    tpu.vector_store %arg8[%c0_75, %c0_76], %162 {strides = array<i32>} : memref<8x128xf32, #tpu.memory_space<vmem>>, vector<8x128xf32>,
    %c0_77 = arith.constant 0 : index
    %c0_78 = arith.constant 0 : index
    %166 = vector.load %arg7[%c0_77, %c0_78] : memref<8x128xf32, #tpu.memory_space<vmem>>, vector<8x128xf32>
    tpu.vector_store %arg7[%c0_77, %c0_78], %164 {strides = array<i32>} : memref<8x128xf32, #tpu.memory_space<vmem>>, vector<8x128xf32>,
    %c0_79 = arith.constant 0 : index
    %167 = arith.index_cast %134 : i32 to index
    %c0_80 = arith.constant 0 : index
    %168 = vector.load %arg6[%c0_79, %167, %c0_80] : memref<1x64x128xf32, #tpu.memory_space<vmem>>, vector<1x8x128xf32>
    %169 = vector.shape_cast %168 : vector<1x8x128xf32> to vector<8x128xf32>
    %170 = vector.shape_cast %164 : vector<8x128xf32> to vector<1x8x128xf32>
    tpu.vector_store %arg6[%c0_79, %167, %c0_80], %170 {strides = array<i32>} : memref<1x64x128xf32, #tpu.memory_space<vmem>>, vector<1x8x128xf32>,
    %c4_i32 = arith.constant 4 : i32
    %c0_81 = arith.constant 0 : index
    %c0_82 = arith.constant 0 : index
    %171 = vector.load %arg7[%c0_81, %c0_82] : memref<8x128xf32, #tpu.memory_space<vmem>>, vector<8x128xf32>
    %c0_83 = arith.constant 0 : index
    %c0_84 = arith.constant 0 : index
    %172 = vector.load %arg8[%c0_83, %c0_84] : memref<8x128xf32, #tpu.memory_space<vmem>>, vector<8x128xf32>
    %c8_i32_85 = arith.constant 8 : i32
    %173 = arith.muli %c4_i32, %c8_i32_85 : i32
    %174 = tpu.assume_multiple %173, 8 : i32
    %175 = arith.index_cast %174 : i32 to index
    %c0_86 = arith.constant 0 : index
    %176 = vector.load %arg9[%175, %c0_86] : memref<64x512xf32, #tpu.memory_space<vmem>>, vector<8x512xf32>
    %c0_87 = arith.constant 0 : index
    %c0_88 = arith.constant 0 : index
    %177 = vector.load %arg4[%c0_87, %c0_88] : memref<128x512xf32, #tpu.memory_space<vmem>>, vector<128x512xf32>
    %cst_89 = arith.constant dense<0.000000e+00> : vector<8x512xf32>
    %178 = tpu.matmul %171, %177, %cst_89 {dimension_numbers = #tpu.dot_dimension_numbers<[1], [0], [0], [1], [0, 0, 1, 1], [], []>} : vector<8x128xf32>, vector<128x512xf32>, vector<8x512xf32> -> vector<8x512xf32>
    %179 = arith.addf %176, %178 : vector<8x512xf32>
    %180 = vector.extract_strided_slice %179 {offsets = [0, 0], sizes = [8, 128], strides = [1, 1]} : vector<8x512xf32> to vector<8x128xf32>
    %181 = arith.negf %180 : vector<8x128xf32>
    %182 = math.exp %181 : vector<8x128xf32>
    %cst_90 = arith.constant 1.000000e+00 : f32
    %183 = vector.broadcast %cst_90 : f32 to vector<8x128xf32>
    %184 = arith.addf %183, %182 : vector<8x128xf32>
    %185 = arith.divf %183, %184 : vector<8x128xf32>
    %186 = vector.extract_strided_slice %179 {offsets = [0, 128], sizes = [8, 128], strides = [1, 1]} : vector<8x512xf32> to vector<8x128xf32>
    %187 = arith.negf %186 : vector<8x128xf32>
    %188 = math.exp %187 : vector<8x128xf32>
    %cst_91 = arith.constant 1.000000e+00 : f32
    %189 = vector.broadcast %cst_91 : f32 to vector<8x128xf32>
    %190 = arith.addf %189, %188 : vector<8x128xf32>
    %191 = arith.divf %189, %190 : vector<8x128xf32>
    %192 = vector.extract_strided_slice %179 {offsets = [0, 256], sizes = [8, 128], strides = [1, 1]} : vector<8x512xf32> to vector<8x128xf32>
    %193 = math.tanh %192 : vector<8x128xf32>
    %194 = vector.extract_strided_slice %179 {offsets = [0, 384], sizes = [8, 128], strides = [1, 1]} : vector<8x512xf32> to vector<8x128xf32>
    %195 = arith.negf %194 : vector<8x128xf32>
    %196 = math.exp %195 : vector<8x128xf32>
    %cst_92 = arith.constant 1.000000e+00 : f32
    %197 = vector.broadcast %cst_92 : f32 to vector<8x128xf32>
    %198 = arith.addf %197, %196 : vector<8x128xf32>
    %199 = arith.divf %197, %198 : vector<8x128xf32>
    %200 = arith.mulf %191, %172 : vector<8x128xf32>
    %201 = arith.mulf %185, %193 : vector<8x128xf32>
    %202 = arith.addf %200, %201 : vector<8x128xf32>
    %203 = math.tanh %202 : vector<8x128xf32>
    %204 = arith.mulf %199, %203 : vector<8x128xf32>
    %c0_93 = arith.constant 0 : index
    %c0_94 = arith.constant 0 : index
    %205 = vector.load %arg8[%c0_93, %c0_94] : memref<8x128xf32, #tpu.memory_space<vmem>>, vector<8x128xf32>
    tpu.vector_store %arg8[%c0_93, %c0_94], %202 {strides = array<i32>} : memref<8x128xf32, #tpu.memory_space<vmem>>, vector<8x128xf32>,
    %c0_95 = arith.constant 0 : index
    %c0_96 = arith.constant 0 : index
    %206 = vector.load %arg7[%c0_95, %c0_96] : memref<8x128xf32, #tpu.memory_space<vmem>>, vector<8x128xf32>
    tpu.vector_store %arg7[%c0_95, %c0_96], %204 {strides = array<i32>} : memref<8x128xf32, #tpu.memory_space<vmem>>, vector<8x128xf32>,
    %c0_97 = arith.constant 0 : index
    %207 = arith.index_cast %174 : i32 to index
    %c0_98 = arith.constant 0 : index
    %208 = vector.load %arg6[%c0_97, %207, %c0_98] : memref<1x64x128xf32, #tpu.memory_space<vmem>>, vector<1x8x128xf32>
    %209 = vector.shape_cast %208 : vector<1x8x128xf32> to vector<8x128xf32>
    %210 = vector.shape_cast %204 : vector<8x128xf32> to vector<1x8x128xf32>
    tpu.vector_store %arg6[%c0_97, %207, %c0_98], %210 {strides = array<i32>} : memref<1x64x128xf32, #tpu.memory_space<vmem>>, vector<1x8x128xf32>,
    %c5_i32 = arith.constant 5 : i32
    %c0_99 = arith.constant 0 : index
    %c0_100 = arith.constant 0 : index
    %211 = vector.load %arg7[%c0_99, %c0_100] : memref<8x128xf32, #tpu.memory_space<vmem>>, vector<8x128xf32>
    %c0_101 = arith.constant 0 : index
    %c0_102 = arith.constant 0 : index
    %212 = vector.load %arg8[%c0_101, %c0_102] : memref<8x128xf32, #tpu.memory_space<vmem>>, vector<8x128xf32>
    %c8_i32_103 = arith.constant 8 : i32
    %213 = arith.muli %c5_i32, %c8_i32_103 : i32
    %214 = tpu.assume_multiple %213, 8 : i32
    %215 = arith.index_cast %214 : i32 to index
    %c0_104 = arith.constant 0 : index
    %216 = vector.load %arg9[%215, %c0_104] : memref<64x512xf32, #tpu.memory_space<vmem>>, vector<8x512xf32>
    %c0_105 = arith.constant 0 : index
    %c0_106 = arith.constant 0 : index
    %217 = vector.load %arg4[%c0_105, %c0_106] : memref<128x512xf32, #tpu.memory_space<vmem>>, vector<128x512xf32>
    %cst_107 = arith.constant dense<0.000000e+00> : vector<8x512xf32>
    %218 = tpu.matmul %211, %217, %cst_107 {dimension_numbers = #tpu.dot_dimension_numbers<[1], [0], [0], [1], [0, 0, 1, 1], [], []>} : vector<8x128xf32>, vector<128x512xf32>, vector<8x512xf32> -> vector<8x512xf32>
    %219 = arith.addf %216, %218 : vector<8x512xf32>
    %220 = vector.extract_strided_slice %219 {offsets = [0, 0], sizes = [8, 128], strides = [1, 1]} : vector<8x512xf32> to vector<8x128xf32>
    %221 = arith.negf %220 : vector<8x128xf32>
    %222 = math.exp %221 : vector<8x128xf32>
    %cst_108 = arith.constant 1.000000e+00 : f32
    %223 = vector.broadcast %cst_108 : f32 to vector<8x128xf32>
    %224 = arith.addf %223, %222 : vector<8x128xf32>
    %225 = arith.divf %223, %224 : vector<8x128xf32>
    %226 = vector.extract_strided_slice %219 {offsets = [0, 128], sizes = [8, 128], strides = [1, 1]} : vector<8x512xf32> to vector<8x128xf32>
    %227 = arith.negf %226 : vector<8x128xf32>
    %228 = math.exp %227 : vector<8x128xf32>
    %cst_109 = arith.constant 1.000000e+00 : f32
    %229 = vector.broadcast %cst_109 : f32 to vector<8x128xf32>
    %230 = arith.addf %229, %228 : vector<8x128xf32>
    %231 = arith.divf %229, %230 : vector<8x128xf32>
    %232 = vector.extract_strided_slice %219 {offsets = [0, 256], sizes = [8, 128], strides = [1, 1]} : vector<8x512xf32> to vector<8x128xf32>
    %233 = math.tanh %232 : vector<8x128xf32>
    %234 = vector.extract_strided_slice %219 {offsets = [0, 384], sizes = [8, 128], strides = [1, 1]} : vector<8x512xf32> to vector<8x128xf32>
    %235 = arith.negf %234 : vector<8x128xf32>
    %236 = math.exp %235 : vector<8x128xf32>
    %cst_110 = arith.constant 1.000000e+00 : f32
    %237 = vector.broadcast %cst_110 : f32 to vector<8x128xf32>
    %238 = arith.addf %237, %236 : vector<8x128xf32>
    %239 = arith.divf %237, %238 : vector<8x128xf32>
    %240 = arith.mulf %231, %212 : vector<8x128xf32>
    %241 = arith.mulf %225, %233 : vector<8x128xf32>
    %242 = arith.addf %240, %241 : vector<8x128xf32>
    %243 = math.tanh %242 : vector<8x128xf32>
    %244 = arith.mulf %239, %243 : vector<8x128xf32>
    %c0_111 = arith.constant 0 : index
    %c0_112 = arith.constant 0 : index
    %245 = vector.load %arg8[%c0_111, %c0_112] : memref<8x128xf32, #tpu.memory_space<vmem>>, vector<8x128xf32>
    tpu.vector_store %arg8[%c0_111, %c0_112], %242 {strides = array<i32>} : memref<8x128xf32, #tpu.memory_space<vmem>>, vector<8x128xf32>,
    %c0_113 = arith.constant 0 : index
    %c0_114 = arith.constant 0 : index
    %246 = vector.load %arg7[%c0_113, %c0_114] : memref<8x128xf32, #tpu.memory_space<vmem>>, vector<8x128xf32>
    tpu.vector_store %arg7[%c0_113, %c0_114], %244 {strides = array<i32>} : memref<8x128xf32, #tpu.memory_space<vmem>>, vector<8x128xf32>,
    %c0_115 = arith.constant 0 : index
    %247 = arith.index_cast %214 : i32 to index
    %c0_116 = arith.constant 0 : index
    %248 = vector.load %arg6[%c0_115, %247, %c0_116] : memref<1x64x128xf32, #tpu.memory_space<vmem>>, vector<1x8x128xf32>
    %249 = vector.shape_cast %248 : vector<1x8x128xf32> to vector<8x128xf32>
    %250 = vector.shape_cast %244 : vector<8x128xf32> to vector<1x8x128xf32>
    tpu.vector_store %arg6[%c0_115, %247, %c0_116], %250 {strides = array<i32>} : memref<1x64x128xf32, #tpu.memory_space<vmem>>, vector<1x8x128xf32>,
    %c6_i32 = arith.constant 6 : i32
    %c0_117 = arith.constant 0 : index
    %c0_118 = arith.constant 0 : index
    %251 = vector.load %arg7[%c0_117, %c0_118] : memref<8x128xf32, #tpu.memory_space<vmem>>, vector<8x128xf32>
    %c0_119 = arith.constant 0 : index
    %c0_120 = arith.constant 0 : index
    %252 = vector.load %arg8[%c0_119, %c0_120] : memref<8x128xf32, #tpu.memory_space<vmem>>, vector<8x128xf32>
    %c8_i32_121 = arith.constant 8 : i32
    %253 = arith.muli %c6_i32, %c8_i32_121 : i32
    %254 = tpu.assume_multiple %253, 8 : i32
    %255 = arith.index_cast %254 : i32 to index
    %c0_122 = arith.constant 0 : index
    %256 = vector.load %arg9[%255, %c0_122] : memref<64x512xf32, #tpu.memory_space<vmem>>, vector<8x512xf32>
    %c0_123 = arith.constant 0 : index
    %c0_124 = arith.constant 0 : index
    %257 = vector.load %arg4[%c0_123, %c0_124] : memref<128x512xf32, #tpu.memory_space<vmem>>, vector<128x512xf32>
    %cst_125 = arith.constant dense<0.000000e+00> : vector<8x512xf32>
    %258 = tpu.matmul %251, %257, %cst_125 {dimension_numbers = #tpu.dot_dimension_numbers<[1], [0], [0], [1], [0, 0, 1, 1], [], []>} : vector<8x128xf32>, vector<128x512xf32>, vector<8x512xf32> -> vector<8x512xf32>
    %259 = arith.addf %256, %258 : vector<8x512xf32>
    %260 = vector.extract_strided_slice %259 {offsets = [0, 0], sizes = [8, 128], strides = [1, 1]} : vector<8x512xf32> to vector<8x128xf32>
    %261 = arith.negf %260 : vector<8x128xf32>
    %262 = math.exp %261 : vector<8x128xf32>
    %cst_126 = arith.constant 1.000000e+00 : f32
    %263 = vector.broadcast %cst_126 : f32 to vector<8x128xf32>
    %264 = arith.addf %263, %262 : vector<8x128xf32>
    %265 = arith.divf %263, %264 : vector<8x128xf32>
    %266 = vector.extract_strided_slice %259 {offsets = [0, 128], sizes = [8, 128], strides = [1, 1]} : vector<8x512xf32> to vector<8x128xf32>
    %267 = arith.negf %266 : vector<8x128xf32>
    %268 = math.exp %267 : vector<8x128xf32>
    %cst_127 = arith.constant 1.000000e+00 : f32
    %269 = vector.broadcast %cst_127 : f32 to vector<8x128xf32>
    %270 = arith.addf %269, %268 : vector<8x128xf32>
    %271 = arith.divf %269, %270 : vector<8x128xf32>
    %272 = vector.extract_strided_slice %259 {offsets = [0, 256], sizes = [8, 128], strides = [1, 1]} : vector<8x512xf32> to vector<8x128xf32>
    %273 = math.tanh %272 : vector<8x128xf32>
    %274 = vector.extract_strided_slice %259 {offsets = [0, 384], sizes = [8, 128], strides = [1, 1]} : vector<8x512xf32> to vector<8x128xf32>
    %275 = arith.negf %274 : vector<8x128xf32>
    %276 = math.exp %275 : vector<8x128xf32>
    %cst_128 = arith.constant 1.000000e+00 : f32
    %277 = vector.broadcast %cst_128 : f32 to vector<8x128xf32>
    %278 = arith.addf %277, %276 : vector<8x128xf32>
    %279 = arith.divf %277, %278 : vector<8x128xf32>
    %280 = arith.mulf %271, %252 : vector<8x128xf32>
    %281 = arith.mulf %265, %273 : vector<8x128xf32>
    %282 = arith.addf %280, %281 : vector<8x128xf32>
    %283 = math.tanh %282 : vector<8x128xf32>
    %284 = arith.mulf %279, %283 : vector<8x128xf32>
    %c0_129 = arith.constant 0 : index
    %c0_130 = arith.constant 0 : index
    %285 = vector.load %arg8[%c0_129, %c0_130] : memref<8x128xf32, #tpu.memory_space<vmem>>, vector<8x128xf32>
    tpu.vector_store %arg8[%c0_129, %c0_130], %282 {strides = array<i32>} : memref<8x128xf32, #tpu.memory_space<vmem>>, vector<8x128xf32>,
    %c0_131 = arith.constant 0 : index
    %c0_132 = arith.constant 0 : index
    %286 = vector.load %arg7[%c0_131, %c0_132] : memref<8x128xf32, #tpu.memory_space<vmem>>, vector<8x128xf32>
    tpu.vector_store %arg7[%c0_131, %c0_132], %284 {strides = array<i32>} : memref<8x128xf32, #tpu.memory_space<vmem>>, vector<8x128xf32>,
    %c0_133 = arith.constant 0 : index
    %287 = arith.index_cast %254 : i32 to index
    %c0_134 = arith.constant 0 : index
    %288 = vector.load %arg6[%c0_133, %287, %c0_134] : memref<1x64x128xf32, #tpu.memory_space<vmem>>, vector<1x8x128xf32>
    %289 = vector.shape_cast %288 : vector<1x8x128xf32> to vector<8x128xf32>
    %290 = vector.shape_cast %284 : vector<8x128xf32> to vector<1x8x128xf32>
    tpu.vector_store %arg6[%c0_133, %287, %c0_134], %290 {strides = array<i32>} : memref<1x64x128xf32, #tpu.memory_space<vmem>>, vector<1x8x128xf32>,
    %c7_i32 = arith.constant 7 : i32
    %c0_135 = arith.constant 0 : index
    %c0_136 = arith.constant 0 : index
    %291 = vector.load %arg7[%c0_135, %c0_136] : memref<8x128xf32, #tpu.memory_space<vmem>>, vector<8x128xf32>
    %c0_137 = arith.constant 0 : index
    %c0_138 = arith.constant 0 : index
    %292 = vector.load %arg8[%c0_137, %c0_138] : memref<8x128xf32, #tpu.memory_space<vmem>>, vector<8x128xf32>
    %c8_i32_139 = arith.constant 8 : i32
    %293 = arith.muli %c7_i32, %c8_i32_139 : i32
    %294 = tpu.assume_multiple %293, 8 : i32
    %295 = arith.index_cast %294 : i32 to index
    %c0_140 = arith.constant 0 : index
    %296 = vector.load %arg9[%295, %c0_140] : memref<64x512xf32, #tpu.memory_space<vmem>>, vector<8x512xf32>
    %c0_141 = arith.constant 0 : index
    %c0_142 = arith.constant 0 : index
    %297 = vector.load %arg4[%c0_141, %c0_142] : memref<128x512xf32, #tpu.memory_space<vmem>>, vector<128x512xf32>
    %cst_143 = arith.constant dense<0.000000e+00> : vector<8x512xf32>
    %298 = tpu.matmul %291, %297, %cst_143 {dimension_numbers = #tpu.dot_dimension_numbers<[1], [0], [0], [1], [0, 0, 1, 1], [], []>} : vector<8x128xf32>, vector<128x512xf32>, vector<8x512xf32> -> vector<8x512xf32>
    %299 = arith.addf %296, %298 : vector<8x512xf32>
    %300 = vector.extract_strided_slice %299 {offsets = [0, 0], sizes = [8, 128], strides = [1, 1]} : vector<8x512xf32> to vector<8x128xf32>
    %301 = arith.negf %300 : vector<8x128xf32>
    %302 = math.exp %301 : vector<8x128xf32>
    %cst_144 = arith.constant 1.000000e+00 : f32
    %303 = vector.broadcast %cst_144 : f32 to vector<8x128xf32>
    %304 = arith.addf %303, %302 : vector<8x128xf32>
    %305 = arith.divf %303, %304 : vector<8x128xf32>
    %306 = vector.extract_strided_slice %299 {offsets = [0, 128], sizes = [8, 128], strides = [1, 1]} : vector<8x512xf32> to vector<8x128xf32>
    %307 = arith.negf %306 : vector<8x128xf32>
    %308 = math.exp %307 : vector<8x128xf32>
    %cst_145 = arith.constant 1.000000e+00 : f32
    %309 = vector.broadcast %cst_145 : f32 to vector<8x128xf32>
    %310 = arith.addf %309, %308 : vector<8x128xf32>
    %311 = arith.divf %309, %310 : vector<8x128xf32>
    %312 = vector.extract_strided_slice %299 {offsets = [0, 256], sizes = [8, 128], strides = [1, 1]} : vector<8x512xf32> to vector<8x128xf32>
    %313 = math.tanh %312 : vector<8x128xf32>
    %314 = vector.extract_strided_slice %299 {offsets = [0, 384], sizes = [8, 128], strides = [1, 1]} : vector<8x512xf32> to vector<8x128xf32>
    %315 = arith.negf %314 : vector<8x128xf32>
    %316 = math.exp %315 : vector<8x128xf32>
    %cst_146 = arith.constant 1.000000e+00 : f32
    %317 = vector.broadcast %cst_146 : f32 to vector<8x128xf32>
    %318 = arith.addf %317, %316 : vector<8x128xf32>
    %319 = arith.divf %317, %318 : vector<8x128xf32>
    %320 = arith.mulf %311, %292 : vector<8x128xf32>
    %321 = arith.mulf %305, %313 : vector<8x128xf32>
    %322 = arith.addf %320, %321 : vector<8x128xf32>
    %323 = math.tanh %322 : vector<8x128xf32>
    %324 = arith.mulf %319, %323 : vector<8x128xf32>
    %c0_147 = arith.constant 0 : index
    %c0_148 = arith.constant 0 : index
    %325 = vector.load %arg8[%c0_147, %c0_148] : memref<8x128xf32, #tpu.memory_space<vmem>>, vector<8x128xf32>
    tpu.vector_store %arg8[%c0_147, %c0_148], %322 {strides = array<i32>} : memref<8x128xf32, #tpu.memory_space<vmem>>, vector<8x128xf32>,
    %c0_149 = arith.constant 0 : index
    %c0_150 = arith.constant 0 : index
    %326 = vector.load %arg7[%c0_149, %c0_150] : memref<8x128xf32, #tpu.memory_space<vmem>>, vector<8x128xf32>
    tpu.vector_store %arg7[%c0_149, %c0_150], %324 {strides = array<i32>} : memref<8x128xf32, #tpu.memory_space<vmem>>, vector<8x128xf32>,
    %c0_151 = arith.constant 0 : index
    %327 = arith.index_cast %294 : i32 to index
    %c0_152 = arith.constant 0 : index
    %328 = vector.load %arg6[%c0_151, %327, %c0_152] : memref<1x64x128xf32, #tpu.memory_space<vmem>>, vector<1x8x128xf32>
    %329 = vector.shape_cast %328 : vector<1x8x128xf32> to vector<8x128xf32>
    %330 = vector.shape_cast %324 : vector<8x128xf32> to vector<1x8x128xf32>
    tpu.vector_store %arg6[%c0_151, %327, %c0_152], %330 {strides = array<i32>} : memref<1x64x128xf32, #tpu.memory_space<vmem>>, vector<1x8x128xf32>,
    %c8_i32_153 = arith.constant 8 : i32
    return
  }
  func.func @transform_0(%arg0: i32, %arg1: i32) -> (i32, i32, i32) {
    %c0_i32 = arith.constant 0 : i32
    %c0_i32_0 = arith.constant 0 : i32
    return %arg0, %arg1, %c0_i32 : i32, i32, i32
  }
  func.func @transform_1(%arg0: i32, %arg1: i32) -> (i32, i32) {
    %c0_i32 = arith.constant 0 : i32
    %c0_i32_0 = arith.constant 0 : i32
    %c0_i32_1 = arith.constant 0 : i32
    return %c0_i32, %c0_i32_0 : i32, i32
  }
  func.func @transform_2(%arg0: i32, %arg1: i32) -> (i32, i32) {
    %c0_i32 = arith.constant 0 : i32
    %c0_i32_0 = arith.constant 0 : i32
    %c0_i32_1 = arith.constant 0 : i32
    return %c0_i32, %c0_i32_0 : i32, i32
  }
  func.func @transform_3(%arg0: i32, %arg1: i32) -> (i32, i32) {
    %c0_i32 = arith.constant 0 : i32
    %c0_i32_0 = arith.constant 0 : i32
    %c0_i32_1 = arith.constant 0 : i32
    return %c0_i32, %c0_i32_0 : i32, i32
  }
  func.func @transform_4(%arg0: i32, %arg1: i32) -> (i32, i32, i32) {
    %c0_i32 = arith.constant 0 : i32
    %c0_i32_0 = arith.constant 0 : i32
    return %arg0, %arg1, %c0_i32 : i32, i32, i32
  }
}

module attributes {stable_mosaic.version = 11 : i64} {
  func.func @_lstm_layer_kernel(%arg0: i32, %arg1: i32, %arg2: memref<1x64x16xf32, #tpu.memory_space<vmem>>, %arg3: memref<16x512xf32, #tpu.memory_space<vmem>>, %arg4: memref<128x512xf32, #tpu.memory_space<vmem>>, %arg5: memref<1x512xf32, #tpu.memory_space<vmem>>, %arg6: memref<1x64x128xf32, #tpu.memory_space<vmem>>, %arg7: memref<8x128xf32, #tpu.memory_space<vmem>>, %arg8: memref<8x128xf32, #tpu.memory_space<vmem>>, %arg9: memref<64x512xf32, #tpu.memory_space<vmem>>) attributes {dimension_semantics = [#tpu.dimension_semantics<parallel>, #tpu.dimension_semantics<arbitrary>], iteration_bounds = array<i64: 1, 1>, scalar_prefetch = 0 : i64, scratch_operands = 3 : i64, tpu.core_type = #tpu.core_type<tc>, window_params = [{transform_indices = @transform_0, window_bounds = array<i64: 1, 64, 16>}, {pipeline_mode = #tpu.pipeline_mode<synchronous>, transform_indices = @transform_1, window_bounds = array<i64: 16, 512>}, {pipeline_mode = #tpu.pipeline_mode<synchronous>, transform_indices = @transform_2, window_bounds = array<i64: 128, 512>}, {pipeline_mode = #tpu.pipeline_mode<synchronous>, transform_indices = @transform_3, window_bounds = array<i64: 1, 512>}, {transform_indices = @transform_4, window_bounds = array<i64: 1, 64, 128>}]} {
    %c0_i32 = arith.constant 0 : i32
    %0 = arith.cmpi eq, %arg1, %c0_i32 : i32
    %1 = arith.extui %0 : i1 to i32
    %c0_i32_0 = arith.constant 0 : i32
    %2 = arith.cmpi ne, %1, %c0_i32_0 : i32
    scf.if %2 {
      %cst_154 = arith.constant 0.000000e+00 : f32
      %331 = vector.broadcast %cst_154 : f32 to vector<8x128xf32>
      %c0_155 = arith.constant 0 : index
      %c0_156 = arith.constant 0 : index
      %332 = vector.load %arg7[%c0_155, %c0_156] : memref<8x128xf32, #tpu.memory_space<vmem>>, vector<8x128xf32>
      tpu.vector_store %arg7[%c0_155, %c0_156], %331 {strides = array<i32>} : memref<8x128xf32, #tpu.memory_space<vmem>>, vector<8x128xf32>,
      %cst_157 = arith.constant 0.000000e+00 : f32
      %333 = vector.broadcast %cst_157 : f32 to vector<8x128xf32>
      %c0_158 = arith.constant 0 : index
      %c0_159 = arith.constant 0 : index
      %334 = vector.load %arg8[%c0_158, %c0_159] : memref<8x128xf32, #tpu.memory_space<vmem>>, vector<8x128xf32>
      tpu.vector_store %arg8[%c0_158, %c0_159], %333 {strides = array<i32>} : memref<8x128xf32, #tpu.memory_space<vmem>>, vector<8x128xf32>,
    } else {
    }
    %c0 = arith.constant 0 : index
    %c0_1 = arith.constant 0 : index
    %c0_2 = arith.constant 0 : index
    %3 = vector.load %arg2[%c0, %c0_1, %c0_2] : memref<1x64x16xf32, #tpu.memory_space<vmem>>, vector<1x64x16xf32>
    %4 = vector.shape_cast %3 : vector<1x64x16xf32> to vector<64x16xf32>
    %c0_3 = arith.constant 0 : index
    %c0_4 = arith.constant 0 : index
    %5 = vector.load %arg3[%c0_3, %c0_4] : memref<16x512xf32, #tpu.memory_space<vmem>>, vector<16x512xf32>
    %cst = arith.constant dense<0.000000e+00> : vector<64x512xf32>
    %6 = tpu.matmul %4, %5, %cst {dimension_numbers = #tpu.dot_dimension_numbers<[1], [0], [0], [1], [0, 0, 1, 1], [], []>} : vector<64x16xf32>, vector<16x512xf32>, vector<64x512xf32> -> vector<64x512xf32>
    %c0_5 = arith.constant 0 : index
    %c0_6 = arith.constant 0 : index
    %7 = vector.load %arg5[%c0_5, %c0_6] : memref<1x512xf32, #tpu.memory_space<vmem>>, vector<1x512xf32>
    %8 = vector.broadcast %7 : vector<1x512xf32> to vector<64x512xf32>
    %9 = arith.addf %6, %8 : vector<64x512xf32>
    %c0_7 = arith.constant 0 : index
    %c0_8 = arith.constant 0 : index
    %10 = vector.load %arg9[%c0_7, %c0_8] : memref<64x512xf32, #tpu.memory_space<vmem>>, vector<64x512xf32>
    tpu.vector_store %arg9[%c0_7, %c0_8], %9 {strides = array<i32>} : memref<64x512xf32, #tpu.memory_space<vmem>>, vector<64x512xf32>,
    %c0_i32_9 = arith.constant 0 : i32
    %c0_10 = arith.constant 0 : index
    %c0_11 = arith.constant 0 : index
    %11 = vector.load %arg7[%c0_10, %c0_11] : memref<8x128xf32, #tpu.memory_space<vmem>>, vector<8x128xf32>
    %c0_12 = arith.constant 0 : index
    %c0_13 = arith.constant 0 : index
    %12 = vector.load %arg8[%c0_12, %c0_13] : memref<8x128xf32, #tpu.memory_space<vmem>>, vector<8x128xf32>
    %c8_i32 = arith.constant 8 : i32
    %13 = arith.muli %c0_i32_9, %c8_i32 : i32
    %14 = tpu.assume_multiple %13, 8 : i32
    %15 = arith.index_cast %14 : i32 to index
    %c0_14 = arith.constant 0 : index
    %16 = vector.load %arg9[%15, %c0_14] : memref<64x512xf32, #tpu.memory_space<vmem>>, vector<8x512xf32>
    %c0_15 = arith.constant 0 : index
    %c0_16 = arith.constant 0 : index
    %17 = vector.load %arg4[%c0_15, %c0_16] : memref<128x512xf32, #tpu.memory_space<vmem>>, vector<128x512xf32>
    %cst_17 = arith.constant dense<0.000000e+00> : vector<8x512xf32>
    %18 = tpu.matmul %11, %17, %cst_17 {dimension_numbers = #tpu.dot_dimension_numbers<[1], [0], [0], [1], [0, 0, 1, 1], [], []>} : vector<8x128xf32>, vector<128x512xf32>, vector<8x512xf32> -> vector<8x512xf32>
    %19 = arith.addf %16, %18 : vector<8x512xf32>
    %20 = vector.extract_strided_slice %19 {offsets = [0, 0], sizes = [8, 128], strides = [1, 1]} : vector<8x512xf32> to vector<8x128xf32>
    %21 = arith.negf %20 : vector<8x128xf32>
    %22 = math.exp %21 : vector<8x128xf32>
    %cst_18 = arith.constant 1.000000e+00 : f32
    %23 = vector.broadcast %cst_18 : f32 to vector<8x128xf32>
    %24 = arith.addf %23, %22 : vector<8x128xf32>
    %25 = arith.divf %23, %24 : vector<8x128xf32>
    %26 = vector.extract_strided_slice %19 {offsets = [0, 128], sizes = [8, 128], strides = [1, 1]} : vector<8x512xf32> to vector<8x128xf32>
    %27 = arith.negf %26 : vector<8x128xf32>
    %28 = math.exp %27 : vector<8x128xf32>
    %cst_19 = arith.constant 1.000000e+00 : f32
    %29 = vector.broadcast %cst_19 : f32 to vector<8x128xf32>
    %30 = arith.addf %29, %28 : vector<8x128xf32>
    %31 = arith.divf %29, %30 : vector<8x128xf32>
    %32 = vector.extract_strided_slice %19 {offsets = [0, 256], sizes = [8, 128], strides = [1, 1]} : vector<8x512xf32> to vector<8x128xf32>
    %33 = math.tanh %32 : vector<8x128xf32>
    %34 = vector.extract_strided_slice %19 {offsets = [0, 384], sizes = [8, 128], strides = [1, 1]} : vector<8x512xf32> to vector<8x128xf32>
    %35 = arith.negf %34 : vector<8x128xf32>
    %36 = math.exp %35 : vector<8x128xf32>
    %cst_20 = arith.constant 1.000000e+00 : f32
    %37 = vector.broadcast %cst_20 : f32 to vector<8x128xf32>
    %38 = arith.addf %37, %36 : vector<8x128xf32>
    %39 = arith.divf %37, %38 : vector<8x128xf32>
    %40 = arith.mulf %31, %12 : vector<8x128xf32>
    %41 = arith.mulf %25, %33 : vector<8x128xf32>
    %42 = arith.addf %40, %41 : vector<8x128xf32>
    %43 = math.tanh %42 : vector<8x128xf32>
    %44 = arith.mulf %39, %43 : vector<8x128xf32>
    %c0_21 = arith.constant 0 : index
    %c0_22 = arith.constant 0 : index
    %45 = vector.load %arg8[%c0_21, %c0_22] : memref<8x128xf32, #tpu.memory_space<vmem>>, vector<8x128xf32>
    tpu.vector_store %arg8[%c0_21, %c0_22], %42 {strides = array<i32>} : memref<8x128xf32, #tpu.memory_space<vmem>>, vector<8x128xf32>,
    %c0_23 = arith.constant 0 : index
    %c0_24 = arith.constant 0 : index
    %46 = vector.load %arg7[%c0_23, %c0_24] : memref<8x128xf32, #tpu.memory_space<vmem>>, vector<8x128xf32>
    tpu.vector_store %arg7[%c0_23, %c0_24], %44 {strides = array<i32>} : memref<8x128xf32, #tpu.memory_space<vmem>>, vector<8x128xf32>,
    %c0_25 = arith.constant 0 : index
    %47 = arith.index_cast %14 : i32 to index
    %c0_26 = arith.constant 0 : index
    %48 = vector.load %arg6[%c0_25, %47, %c0_26] : memref<1x64x128xf32, #tpu.memory_space<vmem>>, vector<1x8x128xf32>
    %49 = vector.shape_cast %48 : vector<1x8x128xf32> to vector<8x128xf32>
    %50 = vector.shape_cast %44 : vector<8x128xf32> to vector<1x8x128xf32>
    tpu.vector_store %arg6[%c0_25, %47, %c0_26], %50 {strides = array<i32>} : memref<1x64x128xf32, #tpu.memory_space<vmem>>, vector<1x8x128xf32>,
    %c1_i32 = arith.constant 1 : i32
    %c0_27 = arith.constant 0 : index
    %c0_28 = arith.constant 0 : index
    %51 = vector.load %arg7[%c0_27, %c0_28] : memref<8x128xf32, #tpu.memory_space<vmem>>, vector<8x128xf32>
    %c0_29 = arith.constant 0 : index
    %c0_30 = arith.constant 0 : index
    %52 = vector.load %arg8[%c0_29, %c0_30] : memref<8x128xf32, #tpu.memory_space<vmem>>, vector<8x128xf32>
    %c8_i32_31 = arith.constant 8 : i32
    %53 = arith.muli %c1_i32, %c8_i32_31 : i32
    %54 = tpu.assume_multiple %53, 8 : i32
    %55 = arith.index_cast %54 : i32 to index
    %c0_32 = arith.constant 0 : index
    %56 = vector.load %arg9[%55, %c0_32] : memref<64x512xf32, #tpu.memory_space<vmem>>, vector<8x512xf32>
    %c0_33 = arith.constant 0 : index
    %c0_34 = arith.constant 0 : index
    %57 = vector.load %arg4[%c0_33, %c0_34] : memref<128x512xf32, #tpu.memory_space<vmem>>, vector<128x512xf32>
    %cst_35 = arith.constant dense<0.000000e+00> : vector<8x512xf32>
    %58 = tpu.matmul %51, %57, %cst_35 {dimension_numbers = #tpu.dot_dimension_numbers<[1], [0], [0], [1], [0, 0, 1, 1], [], []>} : vector<8x128xf32>, vector<128x512xf32>, vector<8x512xf32> -> vector<8x512xf32>
    %59 = arith.addf %56, %58 : vector<8x512xf32>
    %60 = vector.extract_strided_slice %59 {offsets = [0, 0], sizes = [8, 128], strides = [1, 1]} : vector<8x512xf32> to vector<8x128xf32>
    %61 = arith.negf %60 : vector<8x128xf32>
    %62 = math.exp %61 : vector<8x128xf32>
    %cst_36 = arith.constant 1.000000e+00 : f32
    %63 = vector.broadcast %cst_36 : f32 to vector<8x128xf32>
    %64 = arith.addf %63, %62 : vector<8x128xf32>
    %65 = arith.divf %63, %64 : vector<8x128xf32>
    %66 = vector.extract_strided_slice %59 {offsets = [0, 128], sizes = [8, 128], strides = [1, 1]} : vector<8x512xf32> to vector<8x128xf32>
    %67 = arith.negf %66 : vector<8x128xf32>
    %68 = math.exp %67 : vector<8x128xf32>
    %cst_37 = arith.constant 1.000000e+00 : f32
    %69 = vector.broadcast %cst_37 : f32 to vector<8x128xf32>
    %70 = arith.addf %69, %68 : vector<8x128xf32>
    %71 = arith.divf %69, %70 : vector<8x128xf32>
    %72 = vector.extract_strided_slice %59 {offsets = [0, 256], sizes = [8, 128], strides = [1, 1]} : vector<8x512xf32> to vector<8x128xf32>
    %73 = math.tanh %72 : vector<8x128xf32>
    %74 = vector.extract_strided_slice %59 {offsets = [0, 384], sizes = [8, 128], strides = [1, 1]} : vector<8x512xf32> to vector<8x128xf32>
    %75 = arith.negf %74 : vector<8x128xf32>
    %76 = math.exp %75 : vector<8x128xf32>
    %cst_38 = arith.constant 1.000000e+00 : f32
    %77 = vector.broadcast %cst_38 : f32 to vector<8x128xf32>
    %78 = arith.addf %77, %76 : vector<8x128xf32>
    %79 = arith.divf %77, %78 : vector<8x128xf32>
    %80 = arith.mulf %71, %52 : vector<8x128xf32>
    %81 = arith.mulf %65, %73 : vector<8x128xf32>
    %82 = arith.addf %80, %81 : vector<8x128xf32>
    %83 = math.tanh %82 : vector<8x128xf32>
    %84 = arith.mulf %79, %83 : vector<8x128xf32>
    %c0_39 = arith.constant 0 : index
    %c0_40 = arith.constant 0 : index
    %85 = vector.load %arg8[%c0_39, %c0_40] : memref<8x128xf32, #tpu.memory_space<vmem>>, vector<8x128xf32>
    tpu.vector_store %arg8[%c0_39, %c0_40], %82 {strides = array<i32>} : memref<8x128xf32, #tpu.memory_space<vmem>>, vector<8x128xf32>,
    %c0_41 = arith.constant 0 : index
    %c0_42 = arith.constant 0 : index
    %86 = vector.load %arg7[%c0_41, %c0_42] : memref<8x128xf32, #tpu.memory_space<vmem>>, vector<8x128xf32>
    tpu.vector_store %arg7[%c0_41, %c0_42], %84 {strides = array<i32>} : memref<8x128xf32, #tpu.memory_space<vmem>>, vector<8x128xf32>,
    %c0_43 = arith.constant 0 : index
    %87 = arith.index_cast %54 : i32 to index
    %c0_44 = arith.constant 0 : index
    %88 = vector.load %arg6[%c0_43, %87, %c0_44] : memref<1x64x128xf32, #tpu.memory_space<vmem>>, vector<1x8x128xf32>
    %89 = vector.shape_cast %88 : vector<1x8x128xf32> to vector<8x128xf32>
    %90 = vector.shape_cast %84 : vector<8x128xf32> to vector<1x8x128xf32>
    tpu.vector_store %arg6[%c0_43, %87, %c0_44], %90 {strides = array<i32>} : memref<1x64x128xf32, #tpu.memory_space<vmem>>, vector<1x8x128xf32>,
    %c2_i32 = arith.constant 2 : i32
    %c0_45 = arith.constant 0 : index
    %c0_46 = arith.constant 0 : index
    %91 = vector.load %arg7[%c0_45, %c0_46] : memref<8x128xf32, #tpu.memory_space<vmem>>, vector<8x128xf32>
    %c0_47 = arith.constant 0 : index
    %c0_48 = arith.constant 0 : index
    %92 = vector.load %arg8[%c0_47, %c0_48] : memref<8x128xf32, #tpu.memory_space<vmem>>, vector<8x128xf32>
    %c8_i32_49 = arith.constant 8 : i32
    %93 = arith.muli %c2_i32, %c8_i32_49 : i32
    %94 = tpu.assume_multiple %93, 8 : i32
    %95 = arith.index_cast %94 : i32 to index
    %c0_50 = arith.constant 0 : index
    %96 = vector.load %arg9[%95, %c0_50] : memref<64x512xf32, #tpu.memory_space<vmem>>, vector<8x512xf32>
    %c0_51 = arith.constant 0 : index
    %c0_52 = arith.constant 0 : index
    %97 = vector.load %arg4[%c0_51, %c0_52] : memref<128x512xf32, #tpu.memory_space<vmem>>, vector<128x512xf32>
    %cst_53 = arith.constant dense<0.000000e+00> : vector<8x512xf32>
    %98 = tpu.matmul %91, %97, %cst_53 {dimension_numbers = #tpu.dot_dimension_numbers<[1], [0], [0], [1], [0, 0, 1, 1], [], []>} : vector<8x128xf32>, vector<128x512xf32>, vector<8x512xf32> -> vector<8x512xf32>
    %99 = arith.addf %96, %98 : vector<8x512xf32>
    %100 = vector.extract_strided_slice %99 {offsets = [0, 0], sizes = [8, 128], strides = [1, 1]} : vector<8x512xf32> to vector<8x128xf32>
    %101 = arith.negf %100 : vector<8x128xf32>
    %102 = math.exp %101 : vector<8x128xf32>
    %cst_54 = arith.constant 1.000000e+00 : f32
    %103 = vector.broadcast %cst_54 : f32 to vector<8x128xf32>
    %104 = arith.addf %103, %102 : vector<8x128xf32>
    %105 = arith.divf %103, %104 : vector<8x128xf32>
    %106 = vector.extract_strided_slice %99 {offsets = [0, 128], sizes = [8, 128], strides = [1, 1]} : vector<8x512xf32> to vector<8x128xf32>
    %107 = arith.negf %106 : vector<8x128xf32>
    %108 = math.exp %107 : vector<8x128xf32>
    %cst_55 = arith.constant 1.000000e+00 : f32
    %109 = vector.broadcast %cst_55 : f32 to vector<8x128xf32>
    %110 = arith.addf %109, %108 : vector<8x128xf32>
    %111 = arith.divf %109, %110 : vector<8x128xf32>
    %112 = vector.extract_strided_slice %99 {offsets = [0, 256], sizes = [8, 128], strides = [1, 1]} : vector<8x512xf32> to vector<8x128xf32>
    %113 = math.tanh %112 : vector<8x128xf32>
    %114 = vector.extract_strided_slice %99 {offsets = [0, 384], sizes = [8, 128], strides = [1, 1]} : vector<8x512xf32> to vector<8x128xf32>
    %115 = arith.negf %114 : vector<8x128xf32>
    %116 = math.exp %115 : vector<8x128xf32>
    %cst_56 = arith.constant 1.000000e+00 : f32
    %117 = vector.broadcast %cst_56 : f32 to vector<8x128xf32>
    %118 = arith.addf %117, %116 : vector<8x128xf32>
    %119 = arith.divf %117, %118 : vector<8x128xf32>
    %120 = arith.mulf %111, %92 : vector<8x128xf32>
    %121 = arith.mulf %105, %113 : vector<8x128xf32>
    %122 = arith.addf %120, %121 : vector<8x128xf32>
    %123 = math.tanh %122 : vector<8x128xf32>
    %124 = arith.mulf %119, %123 : vector<8x128xf32>
    %c0_57 = arith.constant 0 : index
    %c0_58 = arith.constant 0 : index
    %125 = vector.load %arg8[%c0_57, %c0_58] : memref<8x128xf32, #tpu.memory_space<vmem>>, vector<8x128xf32>
    tpu.vector_store %arg8[%c0_57, %c0_58], %122 {strides = array<i32>} : memref<8x128xf32, #tpu.memory_space<vmem>>, vector<8x128xf32>,
    %c0_59 = arith.constant 0 : index
    %c0_60 = arith.constant 0 : index
    %126 = vector.load %arg7[%c0_59, %c0_60] : memref<8x128xf32, #tpu.memory_space<vmem>>, vector<8x128xf32>
    tpu.vector_store %arg7[%c0_59, %c0_60], %124 {strides = array<i32>} : memref<8x128xf32, #tpu.memory_space<vmem>>, vector<8x128xf32>,
    %c0_61 = arith.constant 0 : index
    %127 = arith.index_cast %94 : i32 to index
    %c0_62 = arith.constant 0 : index
    %128 = vector.load %arg6[%c0_61, %127, %c0_62] : memref<1x64x128xf32, #tpu.memory_space<vmem>>, vector<1x8x128xf32>
    %129 = vector.shape_cast %128 : vector<1x8x128xf32> to vector<8x128xf32>
    %130 = vector.shape_cast %124 : vector<8x128xf32> to vector<1x8x128xf32>
    tpu.vector_store %arg6[%c0_61, %127, %c0_62], %130 {strides = array<i32>} : memref<1x64x128xf32, #tpu.memory_space<vmem>>, vector<1x8x128xf32>,
    %c3_i32 = arith.constant 3 : i32
    %c0_63 = arith.constant 0 : index
    %c0_64 = arith.constant 0 : index
    %131 = vector.load %arg7[%c0_63, %c0_64] : memref<8x128xf32, #tpu.memory_space<vmem>>, vector<8x128xf32>
    %c0_65 = arith.constant 0 : index
    %c0_66 = arith.constant 0 : index
    %132 = vector.load %arg8[%c0_65, %c0_66] : memref<8x128xf32, #tpu.memory_space<vmem>>, vector<8x128xf32>
    %c8_i32_67 = arith.constant 8 : i32
    %133 = arith.muli %c3_i32, %c8_i32_67 : i32
    %134 = tpu.assume_multiple %133, 8 : i32
    %135 = arith.index_cast %134 : i32 to index
    %c0_68 = arith.constant 0 : index
    %136 = vector.load %arg9[%135, %c0_68] : memref<64x512xf32, #tpu.memory_space<vmem>>, vector<8x512xf32>
    %c0_69 = arith.constant 0 : index
    %c0_70 = arith.constant 0 : index
    %137 = vector.load %arg4[%c0_69, %c0_70] : memref<128x512xf32, #tpu.memory_space<vmem>>, vector<128x512xf32>
    %cst_71 = arith.constant dense<0.000000e+00> : vector<8x512xf32>
    %138 = tpu.matmul %131, %137, %cst_71 {dimension_numbers = #tpu.dot_dimension_numbers<[1], [0], [0], [1], [0, 0, 1, 1], [], []>} : vector<8x128xf32>, vector<128x512xf32>, vector<8x512xf32> -> vector<8x512xf32>
    %139 = arith.addf %136, %138 : vector<8x512xf32>
    %140 = vector.extract_strided_slice %139 {offsets = [0, 0], sizes = [8, 128], strides = [1, 1]} : vector<8x512xf32> to vector<8x128xf32>
    %141 = arith.negf %140 : vector<8x128xf32>
    %142 = math.exp %141 : vector<8x128xf32>
    %cst_72 = arith.constant 1.000000e+00 : f32
    %143 = vector.broadcast %cst_72 : f32 to vector<8x128xf32>
    %144 = arith.addf %143, %142 : vector<8x128xf32>
    %145 = arith.divf %143, %144 : vector<8x128xf32>
    %146 = vector.extract_strided_slice %139 {offsets = [0, 128], sizes = [8, 128], strides = [1, 1]} : vector<8x512xf32> to vector<8x128xf32>
    %147 = arith.negf %146 : vector<8x128xf32>
    %148 = math.exp %147 : vector<8x128xf32>
    %cst_73 = arith.constant 1.000000e+00 : f32
    %149 = vector.broadcast %cst_73 : f32 to vector<8x128xf32>
    %150 = arith.addf %149, %148 : vector<8x128xf32>
    %151 = arith.divf %149, %150 : vector<8x128xf32>
    %152 = vector.extract_strided_slice %139 {offsets = [0, 256], sizes = [8, 128], strides = [1, 1]} : vector<8x512xf32> to vector<8x128xf32>
    %153 = math.tanh %152 : vector<8x128xf32>
    %154 = vector.extract_strided_slice %139 {offsets = [0, 384], sizes = [8, 128], strides = [1, 1]} : vector<8x512xf32> to vector<8x128xf32>
    %155 = arith.negf %154 : vector<8x128xf32>
    %156 = math.exp %155 : vector<8x128xf32>
    %cst_74 = arith.constant 1.000000e+00 : f32
    %157 = vector.broadcast %cst_74 : f32 to vector<8x128xf32>
    %158 = arith.addf %157, %156 : vector<8x128xf32>
    %159 = arith.divf %157, %158 : vector<8x128xf32>
    %160 = arith.mulf %151, %132 : vector<8x128xf32>
    %161 = arith.mulf %145, %153 : vector<8x128xf32>
    %162 = arith.addf %160, %161 : vector<8x128xf32>
    %163 = math.tanh %162 : vector<8x128xf32>
    %164 = arith.mulf %159, %163 : vector<8x128xf32>
    %c0_75 = arith.constant 0 : index
    %c0_76 = arith.constant 0 : index
    %165 = vector.load %arg8[%c0_75, %c0_76] : memref<8x128xf32, #tpu.memory_space<vmem>>, vector<8x128xf32>
    tpu.vector_store %arg8[%c0_75, %c0_76], %162 {strides = array<i32>} : memref<8x128xf32, #tpu.memory_space<vmem>>, vector<8x128xf32>,
    %c0_77 = arith.constant 0 : index
    %c0_78 = arith.constant 0 : index
    %166 = vector.load %arg7[%c0_77, %c0_78] : memref<8x128xf32, #tpu.memory_space<vmem>>, vector<8x128xf32>
    tpu.vector_store %arg7[%c0_77, %c0_78], %164 {strides = array<i32>} : memref<8x128xf32, #tpu.memory_space<vmem>>, vector<8x128xf32>,
    %c0_79 = arith.constant 0 : index
    %167 = arith.index_cast %134 : i32 to index
    %c0_80 = arith.constant 0 : index
    %168 = vector.load %arg6[%c0_79, %167, %c0_80] : memref<1x64x128xf32, #tpu.memory_space<vmem>>, vector<1x8x128xf32>
    %169 = vector.shape_cast %168 : vector<1x8x128xf32> to vector<8x128xf32>
    %170 = vector.shape_cast %164 : vector<8x128xf32> to vector<1x8x128xf32>
    tpu.vector_store %arg6[%c0_79, %167, %c0_80], %170 {strides = array<i32>} : memref<1x64x128xf32, #tpu.memory_space<vmem>>, vector<1x8x128xf32>,
    %c4_i32 = arith.constant 4 : i32
    %c0_81 = arith.constant 0 : index
    %c0_82 = arith.constant 0 : index
    %171 = vector.load %arg7[%c0_81, %c0_82] : memref<8x128xf32, #tpu.memory_space<vmem>>, vector<8x128xf32>
    %c0_83 = arith.constant 0 : index
    %c0_84 = arith.constant 0 : index
    %172 = vector.load %arg8[%c0_83, %c0_84] : memref<8x128xf32, #tpu.memory_space<vmem>>, vector<8x128xf32>
    %c8_i32_85 = arith.constant 8 : i32
    %173 = arith.muli %c4_i32, %c8_i32_85 : i32
    %174 = tpu.assume_multiple %173, 8 : i32
    %175 = arith.index_cast %174 : i32 to index
    %c0_86 = arith.constant 0 : index
    %176 = vector.load %arg9[%175, %c0_86] : memref<64x512xf32, #tpu.memory_space<vmem>>, vector<8x512xf32>
    %c0_87 = arith.constant 0 : index
    %c0_88 = arith.constant 0 : index
    %177 = vector.load %arg4[%c0_87, %c0_88] : memref<128x512xf32, #tpu.memory_space<vmem>>, vector<128x512xf32>
    %cst_89 = arith.constant dense<0.000000e+00> : vector<8x512xf32>
    %178 = tpu.matmul %171, %177, %cst_89 {dimension_numbers = #tpu.dot_dimension_numbers<[1], [0], [0], [1], [0, 0, 1, 1], [], []>} : vector<8x128xf32>, vector<128x512xf32>, vector<8x512xf32> -> vector<8x512xf32>
    %179 = arith.addf %176, %178 : vector<8x512xf32>
    %180 = vector.extract_strided_slice %179 {offsets = [0, 0], sizes = [8, 128], strides = [1, 1]} : vector<8x512xf32> to vector<8x128xf32>
    %181 = arith.negf %180 : vector<8x128xf32>
    %182 = math.exp %181 : vector<8x128xf32>
    %cst_90 = arith.constant 1.000000e+00 : f32
    %183 = vector.broadcast %cst_90 : f32 to vector<8x128xf32>
    %184 = arith.addf %183, %182 : vector<8x128xf32>
    %185 = arith.divf %183, %184 : vector<8x128xf32>
    %186 = vector.extract_strided_slice %179 {offsets = [0, 128], sizes = [8, 128], strides = [1, 1]} : vector<8x512xf32> to vector<8x128xf32>
    %187 = arith.negf %186 : vector<8x128xf32>
    %188 = math.exp %187 : vector<8x128xf32>
    %cst_91 = arith.constant 1.000000e+00 : f32
    %189 = vector.broadcast %cst_91 : f32 to vector<8x128xf32>
    %190 = arith.addf %189, %188 : vector<8x128xf32>
    %191 = arith.divf %189, %190 : vector<8x128xf32>
    %192 = vector.extract_strided_slice %179 {offsets = [0, 256], sizes = [8, 128], strides = [1, 1]} : vector<8x512xf32> to vector<8x128xf32>
    %193 = math.tanh %192 : vector<8x128xf32>
    %194 = vector.extract_strided_slice %179 {offsets = [0, 384], sizes = [8, 128], strides = [1, 1]} : vector<8x512xf32> to vector<8x128xf32>
    %195 = arith.negf %194 : vector<8x128xf32>
    %196 = math.exp %195 : vector<8x128xf32>
    %cst_92 = arith.constant 1.000000e+00 : f32
    %197 = vector.broadcast %cst_92 : f32 to vector<8x128xf32>
    %198 = arith.addf %197, %196 : vector<8x128xf32>
    %199 = arith.divf %197, %198 : vector<8x128xf32>
    %200 = arith.mulf %191, %172 : vector<8x128xf32>
    %201 = arith.mulf %185, %193 : vector<8x128xf32>
    %202 = arith.addf %200, %201 : vector<8x128xf32>
    %203 = math.tanh %202 : vector<8x128xf32>
    %204 = arith.mulf %199, %203 : vector<8x128xf32>
    %c0_93 = arith.constant 0 : index
    %c0_94 = arith.constant 0 : index
    %205 = vector.load %arg8[%c0_93, %c0_94] : memref<8x128xf32, #tpu.memory_space<vmem>>, vector<8x128xf32>
    tpu.vector_store %arg8[%c0_93, %c0_94], %202 {strides = array<i32>} : memref<8x128xf32, #tpu.memory_space<vmem>>, vector<8x128xf32>,
    %c0_95 = arith.constant 0 : index
    %c0_96 = arith.constant 0 : index
    %206 = vector.load %arg7[%c0_95, %c0_96] : memref<8x128xf32, #tpu.memory_space<vmem>>, vector<8x128xf32>
    tpu.vector_store %arg7[%c0_95, %c0_96], %204 {strides = array<i32>} : memref<8x128xf32, #tpu.memory_space<vmem>>, vector<8x128xf32>,
    %c0_97 = arith.constant 0 : index
    %207 = arith.index_cast %174 : i32 to index
    %c0_98 = arith.constant 0 : index
    %208 = vector.load %arg6[%c0_97, %207, %c0_98] : memref<1x64x128xf32, #tpu.memory_space<vmem>>, vector<1x8x128xf32>
    %209 = vector.shape_cast %208 : vector<1x8x128xf32> to vector<8x128xf32>
    %210 = vector.shape_cast %204 : vector<8x128xf32> to vector<1x8x128xf32>
    tpu.vector_store %arg6[%c0_97, %207, %c0_98], %210 {strides = array<i32>} : memref<1x64x128xf32, #tpu.memory_space<vmem>>, vector<1x8x128xf32>,
    %c5_i32 = arith.constant 5 : i32
    %c0_99 = arith.constant 0 : index
    %c0_100 = arith.constant 0 : index
    %211 = vector.load %arg7[%c0_99, %c0_100] : memref<8x128xf32, #tpu.memory_space<vmem>>, vector<8x128xf32>
    %c0_101 = arith.constant 0 : index
    %c0_102 = arith.constant 0 : index
    %212 = vector.load %arg8[%c0_101, %c0_102] : memref<8x128xf32, #tpu.memory_space<vmem>>, vector<8x128xf32>
    %c8_i32_103 = arith.constant 8 : i32
    %213 = arith.muli %c5_i32, %c8_i32_103 : i32
    %214 = tpu.assume_multiple %213, 8 : i32
    %215 = arith.index_cast %214 : i32 to index
    %c0_104 = arith.constant 0 : index
    %216 = vector.load %arg9[%215, %c0_104] : memref<64x512xf32, #tpu.memory_space<vmem>>, vector<8x512xf32>
    %c0_105 = arith.constant 0 : index
    %c0_106 = arith.constant 0 : index
    %217 = vector.load %arg4[%c0_105, %c0_106] : memref<128x512xf32, #tpu.memory_space<vmem>>, vector<128x512xf32>
    %cst_107 = arith.constant dense<0.000000e+00> : vector<8x512xf32>
    %218 = tpu.matmul %211, %217, %cst_107 {dimension_numbers = #tpu.dot_dimension_numbers<[1], [0], [0], [1], [0, 0, 1, 1], [], []>} : vector<8x128xf32>, vector<128x512xf32>, vector<8x512xf32> -> vector<8x512xf32>
    %219 = arith.addf %216, %218 : vector<8x512xf32>
    %220 = vector.extract_strided_slice %219 {offsets = [0, 0], sizes = [8, 128], strides = [1, 1]} : vector<8x512xf32> to vector<8x128xf32>
    %221 = arith.negf %220 : vector<8x128xf32>
    %222 = math.exp %221 : vector<8x128xf32>
    %cst_108 = arith.constant 1.000000e+00 : f32
    %223 = vector.broadcast %cst_108 : f32 to vector<8x128xf32>
    %224 = arith.addf %223, %222 : vector<8x128xf32>
    %225 = arith.divf %223, %224 : vector<8x128xf32>
    %226 = vector.extract_strided_slice %219 {offsets = [0, 128], sizes = [8, 128], strides = [1, 1]} : vector<8x512xf32> to vector<8x128xf32>
    %227 = arith.negf %226 : vector<8x128xf32>
    %228 = math.exp %227 : vector<8x128xf32>
    %cst_109 = arith.constant 1.000000e+00 : f32
    %229 = vector.broadcast %cst_109 : f32 to vector<8x128xf32>
    %230 = arith.addf %229, %228 : vector<8x128xf32>
    %231 = arith.divf %229, %230 : vector<8x128xf32>
    %232 = vector.extract_strided_slice %219 {offsets = [0, 256], sizes = [8, 128], strides = [1, 1]} : vector<8x512xf32> to vector<8x128xf32>
    %233 = math.tanh %232 : vector<8x128xf32>
    %234 = vector.extract_strided_slice %219 {offsets = [0, 384], sizes = [8, 128], strides = [1, 1]} : vector<8x512xf32> to vector<8x128xf32>
    %235 = arith.negf %234 : vector<8x128xf32>
    %236 = math.exp %235 : vector<8x128xf32>
    %cst_110 = arith.constant 1.000000e+00 : f32
    %237 = vector.broadcast %cst_110 : f32 to vector<8x128xf32>
    %238 = arith.addf %237, %236 : vector<8x128xf32>
    %239 = arith.divf %237, %238 : vector<8x128xf32>
    %240 = arith.mulf %231, %212 : vector<8x128xf32>
    %241 = arith.mulf %225, %233 : vector<8x128xf32>
    %242 = arith.addf %240, %241 : vector<8x128xf32>
    %243 = math.tanh %242 : vector<8x128xf32>
    %244 = arith.mulf %239, %243 : vector<8x128xf32>
    %c0_111 = arith.constant 0 : index
    %c0_112 = arith.constant 0 : index
    %245 = vector.load %arg8[%c0_111, %c0_112] : memref<8x128xf32, #tpu.memory_space<vmem>>, vector<8x128xf32>
    tpu.vector_store %arg8[%c0_111, %c0_112], %242 {strides = array<i32>} : memref<8x128xf32, #tpu.memory_space<vmem>>, vector<8x128xf32>,
    %c0_113 = arith.constant 0 : index
    %c0_114 = arith.constant 0 : index
    %246 = vector.load %arg7[%c0_113, %c0_114] : memref<8x128xf32, #tpu.memory_space<vmem>>, vector<8x128xf32>
    tpu.vector_store %arg7[%c0_113, %c0_114], %244 {strides = array<i32>} : memref<8x128xf32, #tpu.memory_space<vmem>>, vector<8x128xf32>,
    %c0_115 = arith.constant 0 : index
    %247 = arith.index_cast %214 : i32 to index
    %c0_116 = arith.constant 0 : index
    %248 = vector.load %arg6[%c0_115, %247, %c0_116] : memref<1x64x128xf32, #tpu.memory_space<vmem>>, vector<1x8x128xf32>
    %249 = vector.shape_cast %248 : vector<1x8x128xf32> to vector<8x128xf32>
    %250 = vector.shape_cast %244 : vector<8x128xf32> to vector<1x8x128xf32>
    tpu.vector_store %arg6[%c0_115, %247, %c0_116], %250 {strides = array<i32>} : memref<1x64x128xf32, #tpu.memory_space<vmem>>, vector<1x8x128xf32>,
    %c6_i32 = arith.constant 6 : i32
    %c0_117 = arith.constant 0 : index
    %c0_118 = arith.constant 0 : index
    %251 = vector.load %arg7[%c0_117, %c0_118] : memref<8x128xf32, #tpu.memory_space<vmem>>, vector<8x128xf32>
    %c0_119 = arith.constant 0 : index
    %c0_120 = arith.constant 0 : index
    %252 = vector.load %arg8[%c0_119, %c0_120] : memref<8x128xf32, #tpu.memory_space<vmem>>, vector<8x128xf32>
    %c8_i32_121 = arith.constant 8 : i32
    %253 = arith.muli %c6_i32, %c8_i32_121 : i32
    %254 = tpu.assume_multiple %253, 8 : i32
    %255 = arith.index_cast %254 : i32 to index
    %c0_122 = arith.constant 0 : index
    %256 = vector.load %arg9[%255, %c0_122] : memref<64x512xf32, #tpu.memory_space<vmem>>, vector<8x512xf32>
    %c0_123 = arith.constant 0 : index
    %c0_124 = arith.constant 0 : index
    %257 = vector.load %arg4[%c0_123, %c0_124] : memref<128x512xf32, #tpu.memory_space<vmem>>, vector<128x512xf32>
    %cst_125 = arith.constant dense<0.000000e+00> : vector<8x512xf32>
    %258 = tpu.matmul %251, %257, %cst_125 {dimension_numbers = #tpu.dot_dimension_numbers<[1], [0], [0], [1], [0, 0, 1, 1], [], []>} : vector<8x128xf32>, vector<128x512xf32>, vector<8x512xf32> -> vector<8x512xf32>
    %259 = arith.addf %256, %258 : vector<8x512xf32>
    %260 = vector.extract_strided_slice %259 {offsets = [0, 0], sizes = [8, 128], strides = [1, 1]} : vector<8x512xf32> to vector<8x128xf32>
    %261 = arith.negf %260 : vector<8x128xf32>
    %262 = math.exp %261 : vector<8x128xf32>
    %cst_126 = arith.constant 1.000000e+00 : f32
    %263 = vector.broadcast %cst_126 : f32 to vector<8x128xf32>
    %264 = arith.addf %263, %262 : vector<8x128xf32>
    %265 = arith.divf %263, %264 : vector<8x128xf32>
    %266 = vector.extract_strided_slice %259 {offsets = [0, 128], sizes = [8, 128], strides = [1, 1]} : vector<8x512xf32> to vector<8x128xf32>
    %267 = arith.negf %266 : vector<8x128xf32>
    %268 = math.exp %267 : vector<8x128xf32>
    %cst_127 = arith.constant 1.000000e+00 : f32
    %269 = vector.broadcast %cst_127 : f32 to vector<8x128xf32>
    %270 = arith.addf %269, %268 : vector<8x128xf32>
    %271 = arith.divf %269, %270 : vector<8x128xf32>
    %272 = vector.extract_strided_slice %259 {offsets = [0, 256], sizes = [8, 128], strides = [1, 1]} : vector<8x512xf32> to vector<8x128xf32>
    %273 = math.tanh %272 : vector<8x128xf32>
    %274 = vector.extract_strided_slice %259 {offsets = [0, 384], sizes = [8, 128], strides = [1, 1]} : vector<8x512xf32> to vector<8x128xf32>
    %275 = arith.negf %274 : vector<8x128xf32>
    %276 = math.exp %275 : vector<8x128xf32>
    %cst_128 = arith.constant 1.000000e+00 : f32
    %277 = vector.broadcast %cst_128 : f32 to vector<8x128xf32>
    %278 = arith.addf %277, %276 : vector<8x128xf32>
    %279 = arith.divf %277, %278 : vector<8x128xf32>
    %280 = arith.mulf %271, %252 : vector<8x128xf32>
    %281 = arith.mulf %265, %273 : vector<8x128xf32>
    %282 = arith.addf %280, %281 : vector<8x128xf32>
    %283 = math.tanh %282 : vector<8x128xf32>
    %284 = arith.mulf %279, %283 : vector<8x128xf32>
    %c0_129 = arith.constant 0 : index
    %c0_130 = arith.constant 0 : index
    %285 = vector.load %arg8[%c0_129, %c0_130] : memref<8x128xf32, #tpu.memory_space<vmem>>, vector<8x128xf32>
    tpu.vector_store %arg8[%c0_129, %c0_130], %282 {strides = array<i32>} : memref<8x128xf32, #tpu.memory_space<vmem>>, vector<8x128xf32>,
    %c0_131 = arith.constant 0 : index
    %c0_132 = arith.constant 0 : index
    %286 = vector.load %arg7[%c0_131, %c0_132] : memref<8x128xf32, #tpu.memory_space<vmem>>, vector<8x128xf32>
    tpu.vector_store %arg7[%c0_131, %c0_132], %284 {strides = array<i32>} : memref<8x128xf32, #tpu.memory_space<vmem>>, vector<8x128xf32>,
    %c0_133 = arith.constant 0 : index
    %287 = arith.index_cast %254 : i32 to index
    %c0_134 = arith.constant 0 : index
    %288 = vector.load %arg6[%c0_133, %287, %c0_134] : memref<1x64x128xf32, #tpu.memory_space<vmem>>, vector<1x8x128xf32>
    %289 = vector.shape_cast %288 : vector<1x8x128xf32> to vector<8x128xf32>
    %290 = vector.shape_cast %284 : vector<8x128xf32> to vector<1x8x128xf32>
    tpu.vector_store %arg6[%c0_133, %287, %c0_134], %290 {strides = array<i32>} : memref<1x64x128xf32, #tpu.memory_space<vmem>>, vector<1x8x128xf32>,
    %c7_i32 = arith.constant 7 : i32
    %c0_135 = arith.constant 0 : index
    %c0_136 = arith.constant 0 : index
    %291 = vector.load %arg7[%c0_135, %c0_136] : memref<8x128xf32, #tpu.memory_space<vmem>>, vector<8x128xf32>
    %c0_137 = arith.constant 0 : index
    %c0_138 = arith.constant 0 : index
    %292 = vector.load %arg8[%c0_137, %c0_138] : memref<8x128xf32, #tpu.memory_space<vmem>>, vector<8x128xf32>
    %c8_i32_139 = arith.constant 8 : i32
    %293 = arith.muli %c7_i32, %c8_i32_139 : i32
    %294 = tpu.assume_multiple %293, 8 : i32
    %295 = arith.index_cast %294 : i32 to index
    %c0_140 = arith.constant 0 : index
    %296 = vector.load %arg9[%295, %c0_140] : memref<64x512xf32, #tpu.memory_space<vmem>>, vector<8x512xf32>
    %c0_141 = arith.constant 0 : index
    %c0_142 = arith.constant 0 : index
    %297 = vector.load %arg4[%c0_141, %c0_142] : memref<128x512xf32, #tpu.memory_space<vmem>>, vector<128x512xf32>
    %cst_143 = arith.constant dense<0.000000e+00> : vector<8x512xf32>
    %298 = tpu.matmul %291, %297, %cst_143 {dimension_numbers = #tpu.dot_dimension_numbers<[1], [0], [0], [1], [0, 0, 1, 1], [], []>} : vector<8x128xf32>, vector<128x512xf32>, vector<8x512xf32> -> vector<8x512xf32>
    %299 = arith.addf %296, %298 : vector<8x512xf32>
    %300 = vector.extract_strided_slice %299 {offsets = [0, 0], sizes = [8, 128], strides = [1, 1]} : vector<8x512xf32> to vector<8x128xf32>
    %301 = arith.negf %300 : vector<8x128xf32>
    %302 = math.exp %301 : vector<8x128xf32>
    %cst_144 = arith.constant 1.000000e+00 : f32
    %303 = vector.broadcast %cst_144 : f32 to vector<8x128xf32>
    %304 = arith.addf %303, %302 : vector<8x128xf32>
    %305 = arith.divf %303, %304 : vector<8x128xf32>
    %306 = vector.extract_strided_slice %299 {offsets = [0, 128], sizes = [8, 128], strides = [1, 1]} : vector<8x512xf32> to vector<8x128xf32>
    %307 = arith.negf %306 : vector<8x128xf32>
    %308 = math.exp %307 : vector<8x128xf32>
    %cst_145 = arith.constant 1.000000e+00 : f32
    %309 = vector.broadcast %cst_145 : f32 to vector<8x128xf32>
    %310 = arith.addf %309, %308 : vector<8x128xf32>
    %311 = arith.divf %309, %310 : vector<8x128xf32>
    %312 = vector.extract_strided_slice %299 {offsets = [0, 256], sizes = [8, 128], strides = [1, 1]} : vector<8x512xf32> to vector<8x128xf32>
    %313 = math.tanh %312 : vector<8x128xf32>
    %314 = vector.extract_strided_slice %299 {offsets = [0, 384], sizes = [8, 128], strides = [1, 1]} : vector<8x512xf32> to vector<8x128xf32>
    %315 = arith.negf %314 : vector<8x128xf32>
    %316 = math.exp %315 : vector<8x128xf32>
    %cst_146 = arith.constant 1.000000e+00 : f32
    %317 = vector.broadcast %cst_146 : f32 to vector<8x128xf32>
    %318 = arith.addf %317, %316 : vector<8x128xf32>
    %319 = arith.divf %317, %318 : vector<8x128xf32>
    %320 = arith.mulf %311, %292 : vector<8x128xf32>
    %321 = arith.mulf %305, %313 : vector<8x128xf32>
    %322 = arith.addf %320, %321 : vector<8x128xf32>
    %323 = math.tanh %322 : vector<8x128xf32>
    %324 = arith.mulf %319, %323 : vector<8x128xf32>
    %c0_147 = arith.constant 0 : index
    %c0_148 = arith.constant 0 : index
    %325 = vector.load %arg8[%c0_147, %c0_148] : memref<8x128xf32, #tpu.memory_space<vmem>>, vector<8x128xf32>
    tpu.vector_store %arg8[%c0_147, %c0_148], %322 {strides = array<i32>} : memref<8x128xf32, #tpu.memory_space<vmem>>, vector<8x128xf32>,
    %c0_149 = arith.constant 0 : index
    %c0_150 = arith.constant 0 : index
    %326 = vector.load %arg7[%c0_149, %c0_150] : memref<8x128xf32, #tpu.memory_space<vmem>>, vector<8x128xf32>
    tpu.vector_store %arg7[%c0_149, %c0_150], %324 {strides = array<i32>} : memref<8x128xf32, #tpu.memory_space<vmem>>, vector<8x128xf32>,
    %c0_151 = arith.constant 0 : index
    %327 = arith.index_cast %294 : i32 to index
    %c0_152 = arith.constant 0 : index
    %328 = vector.load %arg6[%c0_151, %327, %c0_152] : memref<1x64x128xf32, #tpu.memory_space<vmem>>, vector<1x8x128xf32>
    %329 = vector.shape_cast %328 : vector<1x8x128xf32> to vector<8x128xf32>
    %330 = vector.shape_cast %324 : vector<8x128xf32> to vector<1x8x128xf32>
    tpu.vector_store %arg6[%c0_151, %327, %c0_152], %330 {strides = array<i32>} : memref<1x64x128xf32, #tpu.memory_space<vmem>>, vector<1x8x128xf32>,
    %c8_i32_153 = arith.constant 8 : i32
    return
  }
  func.func @transform_0(%arg0: i32, %arg1: i32) -> (i32, i32, i32) {
    %c0_i32 = arith.constant 0 : i32
    %c0_i32_0 = arith.constant 0 : i32
    return %arg0, %arg1, %c0_i32 : i32, i32, i32
  }
  func.func @transform_1(%arg0: i32, %arg1: i32) -> (i32, i32) {
    %c0_i32 = arith.constant 0 : i32
    %c0_i32_0 = arith.constant 0 : i32
    %c0_i32_1 = arith.constant 0 : i32
    return %c0_i32, %c0_i32_0 : i32, i32
  }
  func.func @transform_2(%arg0: i32, %arg1: i32) -> (i32, i32) {
    %c0_i32 = arith.constant 0 : i32
    %c0_i32_0 = arith.constant 0 : i32
    %c0_i32_1 = arith.constant 0 : i32
    return %c0_i32, %c0_i32_0 : i32, i32
  }
  func.func @transform_3(%arg0: i32, %arg1: i32) -> (i32, i32) {
    %c0_i32 = arith.constant 0 : i32
    %c0_i32_0 = arith.constant 0 : i32
    %c0_i32_1 = arith.constant 0 : i32
    return %c0_i32, %c0_i32_0 : i32, i32
  }
  func.func @transform_4(%arg0: i32, %arg1: i32) -> (i32, i32, i32) {
    %c0_i32 = arith.constant 0 : i32
    %c0_i32_0 = arith.constant 0 : i32
    return %arg0, %arg1, %c0_i32 : i32, i32, i32
  }
}

module attributes {stable_mosaic.version = 11 : i64} {
  func.func @_matmul_bias_kernel(%arg0: i32, %arg1: i32, %arg2: memref<64x128xf32, #tpu.memory_space<vmem>>, %arg3: memref<128x128xf32, #tpu.memory_space<vmem>>, %arg4: memref<1x128xf32, #tpu.memory_space<vmem>>, %arg5: memref<64x128xf32, #tpu.memory_space<vmem>>) attributes {dimension_semantics = [#tpu.dimension_semantics<parallel>, #tpu.dimension_semantics<parallel>], iteration_bounds = array<i64: 1, 1>, scalar_prefetch = 0 : i64, scratch_operands = 0 : i64, tpu.core_type = #tpu.core_type<tc>, window_params = [{transform_indices = @transform_0, window_bounds = array<i64: 64, 128>}, {transform_indices = @transform_1, window_bounds = array<i64: 128, 128>}, {transform_indices = @transform_2, window_bounds = array<i64: 1, 128>}, {transform_indices = @transform_3, window_bounds = array<i64: 64, 128>}]} {
    %c0 = arith.constant 0 : index
    %c0_0 = arith.constant 0 : index
    %0 = vector.load %arg2[%c0, %c0_0] : memref<64x128xf32, #tpu.memory_space<vmem>>, vector<64x128xf32>
    %c0_1 = arith.constant 0 : index
    %c0_2 = arith.constant 0 : index
    %1 = vector.load %arg3[%c0_1, %c0_2] : memref<128x128xf32, #tpu.memory_space<vmem>>, vector<128x128xf32>
    %cst = arith.constant dense<0.000000e+00> : vector<64x128xf32>
    %2 = tpu.matmul %0, %1, %cst {dimension_numbers = #tpu.dot_dimension_numbers<[1], [0], [0], [1], [0, 0, 1, 1], [], []>} : vector<64x128xf32>, vector<128x128xf32>, vector<64x128xf32> -> vector<64x128xf32>
    %c0_3 = arith.constant 0 : index
    %c0_4 = arith.constant 0 : index
    %3 = vector.load %arg4[%c0_3, %c0_4] : memref<1x128xf32, #tpu.memory_space<vmem>>, vector<1x128xf32>
    %4 = vector.broadcast %3 : vector<1x128xf32> to vector<64x128xf32>
    %5 = arith.addf %2, %4 : vector<64x128xf32>
    %c0_5 = arith.constant 0 : index
    %c0_6 = arith.constant 0 : index
    %6 = vector.load %arg5[%c0_5, %c0_6] : memref<64x128xf32, #tpu.memory_space<vmem>>, vector<64x128xf32>
    tpu.vector_store %arg5[%c0_5, %c0_6], %5 {strides = array<i32>} : memref<64x128xf32, #tpu.memory_space<vmem>>, vector<64x128xf32>,
    return
  }
  func.func @transform_0(%arg0: i32, %arg1: i32) -> (i32, i32) {
    %c0_i32 = arith.constant 0 : i32
    %c0_i32_0 = arith.constant 0 : i32
    return %arg0, %c0_i32 : i32, i32
  }
  func.func @transform_1(%arg0: i32, %arg1: i32) -> (i32, i32) {
    %c0_i32 = arith.constant 0 : i32
    %c0_i32_0 = arith.constant 0 : i32
    return %c0_i32, %arg1 : i32, i32
  }
  func.func @transform_2(%arg0: i32, %arg1: i32) -> (i32, i32) {
    %c0_i32 = arith.constant 0 : i32
    %c0_i32_0 = arith.constant 0 : i32
    return %c0_i32, %arg1 : i32, i32
  }
  func.func @transform_3(%arg0: i32, %arg1: i32) -> (i32, i32) {
    %c0_i32 = arith.constant 0 : i32
    return %arg0, %arg1 : i32, i32
  }
}

</mosaic_0001>

<llo_original>
// kernel: tpu_custom_call.1
$region0: #{tpu_custom_call.1}
  #allocation0 [shape = 'u32[]', space=smem, size = 0x4, offset = 0x4, fixed_abs, tag = 'smem constant byte address 0x4 - core index']
  #allocation1 [shape = 'u32[144,128]{1,0:T(1,128)}', space=vmem, size = 0x12000, scoped, tag = 'internal scratch']
  %s0 = inlined_call_operand.hbm [shape: f32[8,128], index: 0, kind: input, shape index: {}]
  %s1 = inlined_call_operand.hbm [shape: f32[8,128], index: 1, kind: output, shape index: {}]
  %s2 = sld [smem:[#allocation0]]
  $region18: #{tpu_custom_call.1} parent=0
    _
  %s4 = ssub.s32 1, %s2
  %s5 = scalar_select 0, %s4, %s2
  $region1: #{tpu_custom_call.1} parent=0
    #allocation2 [shape = 'u8[4096]{0}', space=vmem, size = 0x1000, scoped, tag = 'input window, operand 0, single buffered']
    #allocation3 [shape = 's32[1]{0}', space=sflag, size = 0x4, scoped, tag = 'scoped memory for tpu_custom_call.1']
    #allocation4 [shape = 's32[1]{0}', space=sflag, size = 0x4, scoped, tag = 'scoped memory for tpu_custom_call.1']
    #allocation5 [shape = 'u8[4096]{0}', space=vmem, size = 0x1000, scoped, tag = 'output window, operand 0, single buffered']
    %6 = vsyncpa [#allocation3], 0
    %7 = vsyncpa [#allocation4], 0
    // Predicated region
    $region2: #{tpu_custom_call.1} parent=1 // pred_check
      _
    $region3: #{tpu_custom_call.1} parent=1 // pred_check_branch
      %9 = sbr.rel (0) target = $region5
    $region4: #{tpu_custom_call.1} parent=1 // pred_region
      %s11 = ssub.s32 128, 128
      %12 = vsyncadd [#allocation3], %s11
      %s14 = sshll.u32 [#allocation2], 4
      %s15 = int_to_ptr.vmem [resolvable:$true] %s14
      %17 = dma.hbm_to_vmem [thread:$0]  %s0, 128, %s15, [#allocation3]
    $region5: #{tpu_custom_call.1} parent=1 // pred_fallthru
      _
    // Predicated region
    $region6: #{tpu_custom_call.1} parent=1 // pred_check
      _
    $region7: #{tpu_custom_call.1} parent=1 // pred_check_branch
      %19 = sbr.rel (0) target = $region9
    $region8: #{tpu_custom_call.1} parent=1 // pred_region
      %20 = dma.done [#allocation3], 128
    $region9: #{tpu_custom_call.1} parent=1 // pred_fallthru
      _
    %v21 = vld [vmem:[#allocation2] sm:$0xff]
    %22 = vst [vmem:[#allocation5] sm:$0xff] %v21
    // Predicated region
    $region10: #{tpu_custom_call.1} parent=1 // pred_check
      _
    $region11: #{tpu_custom_call.1} parent=1 // pred_check_branch
      %24 = sbr.rel (0) target = $region13
    $region12: #{tpu_custom_call.1} parent=1 // pred_region
      %s26 = ssub.s32 128, 128
      %27 = vsyncadd [#allocation4], %s26
      %s29 = sshll.u32 [#allocation5], 4
      %s30 = int_to_ptr.vmem [resolvable:$true] %s29
      %32 = dma.vmem_to_hbm [thread:$0]  %s30, 128, %s1, [#allocation4]
    $region13: #{tpu_custom_call.1} parent=1 // pred_fallthru
      _
    // Predicated region
    $region14: #{tpu_custom_call.1} parent=1 // pred_check
      _
    $region15: #{tpu_custom_call.1} parent=1 // pred_check_branch
      %34 = sbr.rel (0) target = $region17
    $region16: #{tpu_custom_call.1} parent=1 // pred_region
      %35 = dma.done [#allocation4], 128
    $region17: #{tpu_custom_call.1} parent=1 // pred_fallthru
      _
    %36 = vsyncpa [#allocation3], 1
    %37 = vsyncpa [#allocation4], 1

// kernel: _forward_jit.5
$region0: #{_forward_jit.5}
  #allocation0 [shape = 'u32[]', space=smem, size = 0x4, offset = 0x4, fixed_abs, tag = 'smem constant byte address 0x4 - core index']
  #allocation1 [shape = 'u32[144,128]{1,0:T(1,128)}', space=vmem, size = 0x12000, scoped, tag = 'internal scratch']
  %s0 = inlined_call_operand.vmem [shape: f32[64,128], index: 0, kind: input, shape index: {}]
  %s1 = inlined_call_operand.vmem [shape: f32[128,128], index: 1, kind: input, shape index: {}]
  %s2 = inlined_call_operand.vmem [shape: f32[1,128], index: 2, kind: input, shape index: {}]
  %s3 = inlined_call_operand.vmem [shape: f32[64,128], index: 3, kind: output, shape index: {}]
  %s4 = sld [smem:[#allocation0]]
  $region22: #{_forward_jit.5} parent=0
    _
  %s6 = ssub.s32 1, %s4
  %s7 = scalar_select 0, %s6, %s4
  // Predicated region
  $region2: #{_forward_jit.5} parent=0 // pred_check
    _
  $region3: #{_forward_jit.5} parent=0 // pred_check_branch
    %9 = sbr.rel (0) target = $region5
  $region4: #{_forward_jit.5} parent=0 // pred_region
    _
  $region5: #{_forward_jit.5} parent=0 // pred_fallthru
    _
  // Predicated region
  $region6: #{_forward_jit.5} parent=0 // pred_check
    _
  $region7: #{_forward_jit.5} parent=0 // pred_check_branch
    %11 = sbr.rel (0) target = $region9
  $region8: #{_forward_jit.5} parent=0 // pred_region
    _
  $region9: #{_forward_jit.5} parent=0 // pred_fallthru
    _
  // Predicated region
  $region10: #{_forward_jit.5} parent=0 // pred_check
    _
  $region11: #{_forward_jit.5} parent=0 // pred_check_branch
    %13 = sbr.rel (0) target = $region13
  $region12: #{_forward_jit.5} parent=0 // pred_region
    _
  $region13: #{_forward_jit.5} parent=0 // pred_fallthru
    _
  %v14 = vld [vmem:[%s0] sm:$0xff]
  %v15 = vld [vmem:[%s0 + $0x8] sm:$0xff]
  %v16 = vld [vmem:[%s0 + $0x10] sm:$0xff]
  %v17 = vld [vmem:[%s0 + $0x18] sm:$0xff]
  %v18 = vld [vmem:[%s0 + $0x20] sm:$0xff]
  %v19 = vld [vmem:[%s0 + $0x28] sm:$0xff]
  %v20 = vld [vmem:[%s0 + $0x30] sm:$0xff]
  %v21 = vld [vmem:[%s0 + $0x38] sm:$0xff]
  %v22 = vld [vmem:[%s1] sm:$0xff]
  %v23 = vld [vmem:[%s1 + $0x8] sm:$0xff]
  %v24 = vld [vmem:[%s1 + $0x10] sm:$0xff]
  %v25 = vld [vmem:[%s1 + $0x18] sm:$0xff]
  %v26 = vld [vmem:[%s1 + $0x20] sm:$0xff]
  %v27 = vld [vmem:[%s1 + $0x28] sm:$0xff]
  %v28 = vld [vmem:[%s1 + $0x30] sm:$0xff]
  %v29 = vld [vmem:[%s1 + $0x38] sm:$0xff]
  %v30 = vld [vmem:[%s1 + $0x40] sm:$0xff]
  %v31 = vld [vmem:[%s1 + $0x48] sm:$0xff]
  %v32 = vld [vmem:[%s1 + $0x50] sm:$0xff]
  %v33 = vld [vmem:[%s1 + $0x58] sm:$0xff]
  %v34 = vld [vmem:[%s1 + $0x60] sm:$0xff]
  %v35 = vld [vmem:[%s1 + $0x68] sm:$0xff]
  %v36 = vld [vmem:[%s1 + $0x70] sm:$0xff]
  %v37 = vld [vmem:[%s1 + $0x78] sm:$0xff]
  %v38 = vld [vmem:[%s2] sm:$0x1]
  %v40 = vlaneseq
  %v41 = vshrl.u32 %v40, 7
  %v42 = vsub.s32 0, %v41
  %v43 = vrot.slane %v38, %v42
  %45 = vmatprep.subr.mxu0 0.0
  %46 = vmatpush1.msra.mxu0 %v37
  %47 = vmatprep.subr.mxu0 0.0
  %48 = vmatpush1.msra.mxu0 %v36
  %49 = vmatprep.subr.mxu0 0.0
  %50 = vmatpush1.msra.mxu0 %v35
  %51 = vmatprep.subr.mxu0 0.0
  %52 = vmatpush1.msra.mxu0 %v34
  %53 = vmatprep.subr.mxu0 0.0
  %54 = vmatpush1.msra.mxu0 %v33
  %55 = vmatprep.subr.mxu0 0.0
  %56 = vmatpush1.msra.mxu0 %v32
  %57 = vmatprep.subr.mxu0 0.0
  %58 = vmatpush1.msra.mxu0 %v31
  %59 = vmatprep.subr.mxu0 0.0
  %60 = vmatpush1.msra.mxu0 %v30
  %61 = vmatprep.subr.mxu0 0.0
  %62 = vmatpush1.msra.mxu0 %v29
  %63 = vmatprep.subr.mxu0 0.0
  %64 = vmatpush1.msra.mxu0 %v28
  %65 = vmatprep.subr.mxu0 0.0
  %66 = vmatpush1.msra.mxu0 %v27
  %67 = vmatprep.subr.mxu0 0.0
  %68 = vmatpush1.msra.mxu0 %v26
  %69 = vmatprep.subr.mxu0 0.0
  %70 = vmatpush1.msra.mxu0 %v25
  %71 = vmatprep.subr.mxu0 0.0
  %72 = vmatpush1.msra.mxu0 %v24
  %73 = vmatprep.subr.mxu0 0.0
  %74 = vmatpush1.msra.mxu0 %v23
  %75 = vmatprep.subr.mxu0 0.0
  %76 = vmatpush1.msra.mxu0 %v22
  %77 = vmatprep.subr.mxu0 0.0
  %78 = vmatpush2.msra.mxu0 0.0
  %79 = vmatprep.subr.mxu0 0.0
  %80 = vmatpush2.msra.mxu0 0.0
  %81 = vmatprep.subr.mxu0 0.0
  %82 = vmatpush2.msra.mxu0 0.0
  %83 = vmatprep.subr.mxu0 0.0
  %84 = vmatpush2.msra.mxu0 0.0
  %85 = vmatprep.subr.mxu0 0.0
  %86 = vmatpush2.msra.mxu0 0.0
  %87 = vmatprep.subr.mxu0 0.0
  %88 = vmatpush2.msra.mxu0 0.0
  %89 = vmatprep.subr.mxu0 0.0
  %90 = vmatpush2.msra.mxu0 0.0
  %91 = vmatprep.subr.mxu0 0.0
  %92 = vmatpush2.msra.mxu0 0.0
  %93 = vmatprep.subr.mxu0 0.0
  %94 = vmatpush2.msra.mxu0 0.0
  %95 = vmatprep.subr.mxu0 0.0
  %96 = vmatpush2.msra.mxu0 0.0
  %97 = vmatprep.subr.mxu0 0.0
  %98 = vmatpush2.msra.mxu0 0.0
  %99 = vmatprep.subr.mxu0 0.0
  %100 = vmatpush2.msra.mxu0 0.0
  %101 = vmatprep.subr.mxu0 0.0
  %102 = vmatpush2.msra.mxu0 0.0
  %103 = vmatprep.subr.mxu0 0.0
  %104 = vmatpush2.msra.mxu0 0.0
  %105 = vmatprep.subr.mxu0 0.0
  %106 = vmatpush2.msra.mxu0 0.0
  %107 = vmatprep.subr.mxu0 0.0
  %108 = vmatpush2.msra.mxu0 0.0
  %109 = vmatprep.mubr.f32.mxu0 0.0
  %110 = vmatmul.mubr.f32.gmra.mxu0 %v14
  %v111 = vpop.f32.mrf.mxu0
  %v112 = vadd.f32 %v43, %v111
  %v113 = vpop.f32.mrf.mxu0
  %114 = vmatprep.mubr.f32.mxu0 0.0
  %115 = vmatmul.mubr.f32.gmra.mxu0 %v15
  %v116 = vpop.f32.mrf.mxu0
  %v117 = vadd.f32 %v43, %v116
  %v118 = vpop.f32.mrf.mxu0
  %119 = vmatprep.mubr.f32.mxu0 0.0
  %120 = vmatmul.mubr.f32.gmra.mxu0 %v16
  %v121 = vpop.f32.mrf.mxu0
  %v122 = vadd.f32 %v43, %v121
  %v123 = vpop.f32.mrf.mxu0
  %124 = vmatprep.mubr.f32.mxu0 0.0
  %125 = vmatmul.mubr.f32.gmra.mxu0 %v17
  %v126 = vpop.f32.mrf.mxu0
  %v127 = vadd.f32 %v43, %v126
  %v128 = vpop.f32.mrf.mxu0
  %129 = vmatprep.mubr.f32.mxu0 0.0
  %130 = vmatmul.mubr.f32.gmra.mxu0 %v18
  %v131 = vpop.f32.mrf.mxu0
  %v132 = vadd.f32 %v43, %v131
  %v133 = vpop.f32.mrf.mxu0
  %134 = vmatprep.mubr.f32.mxu0 0.0
  %135 = vmatmul.mubr.f32.gmra.mxu0 %v19
  %v136 = vpop.f32.mrf.mxu0
  %v137 = vadd.f32 %v43, %v136
  %v138 = vpop.f32.mrf.mxu0
  %139 = vmatprep.mubr.f32.mxu0 0.0
  %140 = vmatmul.mubr.f32.gmra.mxu0 %v20
  %v141 = vpop.f32.mrf.mxu0
  %v142 = vadd.f32 %v43, %v141
  %v143 = vpop.f32.mrf.mxu0
  %144 = vmatprep.mubr.f32.mxu0 0.0
  %145 = vmatmul.mubr.f32.gmra.mxu0 %v21
  %v146 = vpop.f32.mrf.mxu0
  %v147 = vadd.f32 %v43, %v146
  %v148 = vpop.f32.mrf.mxu0
  %149 = vdwg.mxu0
  %150 = vst [vmem:[%s3] sm:$0xff] %v112
  %151 = vst [vmem:[%s3 + $0x8] sm:$0xff] %v117
  %152 = vst [vmem:[%s3 + $0x10] sm:$0xff] %v122
  %153 = vst [vmem:[%s3 + $0x18] sm:$0xff] %v127
  %154 = vst [vmem:[%s3 + $0x20] sm:$0xff] %v132
  %155 = vst [vmem:[%s3 + $0x28] sm:$0xff] %v137
  %156 = vst [vmem:[%s3 + $0x30] sm:$0xff] %v142
  %157 = vst [vmem:[%s3 + $0x38] sm:$0xff] %v147
  // Predicated region
  $region14: #{_forward_jit.5} parent=0 // pred_check
    _
  $region15: #{_forward_jit.5} parent=0 // pred_check_branch
    %159 = sbr.rel (0) target = $region17
  $region16: #{_forward_jit.5} parent=0 // pred_region
    _
  $region17: #{_forward_jit.5} parent=0 // pred_fallthru
    _
  // Predicated region
  $region18: #{_forward_jit.5} parent=0 // pred_check
    _
  $region19: #{_forward_jit.5} parent=0 // pred_check_branch
    %161 = sbr.rel (0) target = $region21
  $region20: #{_forward_jit.5} parent=0 // pred_region
    _
  $region21: #{_forward_jit.5} parent=0 // pred_fallthru
    _

// kernel: _forward_jit.4
$region0: #{_forward_jit.4}
  #allocation0 [shape = 'u32[]', space=smem, size = 0x4, offset = 0x4, fixed_abs, tag = 'smem constant byte address 0x4 - core index']
  #allocation1 [shape = 'u32[144,128]{1,0:T(1,128)}', space=vmem, size = 0x12000, scoped, tag = 'internal scratch']
  #allocation2 [shape = 'f32[8,128]{1,0:T(8,128)}', space=vmem, size = 0x1000, scoped, tag = 'scratch operand']
  #allocation3 [shape = 'f32[8,128]{1,0:T(8,128)}', space=vmem, size = 0x1000, scoped, tag = 'scratch operand']
  #allocation4 [shape = 'f32[64,512]{1,0:T(8,128)}', space=vmem, size = 0x20000, scoped, tag = 'scratch operand']
  %s0 = inlined_call_operand.vmem [shape: f32[1,64,128], index: 0, kind: input, shape index: {}]
  %s1 = inlined_call_operand.vmem [shape: f32[128,512], index: 1, kind: input, shape index: {}]
  %s2 = inlined_call_operand.hbm [shape: f32[128,512], index: 2, kind: input, shape index: {}]
  %s3 = inlined_call_operand.vmem [shape: f32[1,512], index: 3, kind: input, shape index: {}]
  %s4 = inlined_call_operand.vmem [shape: f32[1,64,128], index: 4, kind: output, shape index: {}]
  %s5 = sld [smem:[#allocation0]]
  $region34: #{_forward_jit.4} parent=0
    _
  %s7 = ssub.s32 1, %s5
  %s8 = scalar_select 0, %s7, %s5
  $region1: #{_forward_jit.4} parent=0
    #allocation5 [shape = 'u8[262144]{0}', space=vmem, size = 0x40000, scoped, tag = 'input window, operand 2, single buffered']
    #allocation6 [shape = 's32[1]{0}', space=sflag, size = 0x4, scoped, tag = 'scoped memory for _forward_jit.4']
    %9 = vsyncpa [#allocation6], 0
    // Predicated region
    $region2: #{_forward_jit.4} parent=1 // pred_check
      _
    $region3: #{_forward_jit.4} parent=1 // pred_check_branch
      %11 = sbr.rel (0) target = $region5
    $region4: #{_forward_jit.4} parent=1 // pred_region
      _
    $region5: #{_forward_jit.4} parent=1 // pred_fallthru
      _
    // Predicated region
    $region6: #{_forward_jit.4} parent=1 // pred_check
      _
    $region7: #{_forward_jit.4} parent=1 // pred_check_branch
      %13 = sbr.rel (0) target = $region9
    $region8: #{_forward_jit.4} parent=1 // pred_region
      _
    $region9: #{_forward_jit.4} parent=1 // pred_fallthru
      _
    // Predicated region
    $region10: #{_forward_jit.4} parent=1 // pred_check
      _
    $region11: #{_forward_jit.4} parent=1 // pred_check_branch
      %15 = sbr.rel (0) target = $region13
    $region12: #{_forward_jit.4} parent=1 // pred_region
      %s17 = ssub.s32 8192, 8192
      %18 = vsyncadd [#allocation6], %s17
      %s19 = sshll.u32 [#allocation5], 4
      %s20 = int_to_ptr.vmem [resolvable:$true] %s19
      %25 = dma.hbm_to_vmem [thread:$0]  %s2, 8192, %s20, [#allocation6], 512, 512, 32
    $region13: #{_forward_jit.4} parent=1 // pred_fallthru
      _
    // Predicated region
    $region14: #{_forward_jit.4} parent=1 // pred_check
      _
    $region15: #{_forward_jit.4} parent=1 // pred_check_branch
      %27 = sbr.rel (0) target = $region17
    $region16: #{_forward_jit.4} parent=1 // pred_region
      _
    $region17: #{_forward_jit.4} parent=1 // pred_fallthru
      _
    // Predicated region
    $region18: #{_forward_jit.4} parent=1 // pred_check
      _
    $region19: #{_forward_jit.4} parent=1 // pred_check_branch
      %29 = sbr.rel (0) target = $region21
    $region20: #{_forward_jit.4} parent=1 // pred_region
      %30 = dma.done [#allocation6], 8192
    $region21: #{_forward_jit.4} parent=1 // pred_fallthru
      _
    %p31 = scmp.eq.s32.totalorder 0, 0
    // Predicated region
    $region22: #{_forward_jit.4} parent=1 // pred_check
      %p32 = pneg %p31
    $region23: #{_forward_jit.4} parent=1 // pred_check_branch
      %34 = sbr.rel (%p32) target = $region25
    $region24: #{_forward_jit.4} parent=1 // pred_region
      %35 = vst [vmem:[#allocation2] sm:$0xff] 0.0
      %36 = vst [vmem:[#allocation3] sm:$0xff] 0.0
    $region25: #{_forward_jit.4} parent=1 // pred_fallthru
      _
    %v37 = vld [vmem:[%s0] sm:$0xff]
    %v38 = vld [vmem:[%s0 + $0x8] sm:$0xff]
    %v39 = vld [vmem:[%s0 + $0x10] sm:$0xff]
    %v40 = vld [vmem:[%s0 + $0x18] sm:$0xff]
    %v41 = vld [vmem:[%s0 + $0x20] sm:$0xff]
    %v42 = vld [vmem:[%s0 + $0x28] sm:$0xff]
    %v43 = vld [vmem:[%s0 + $0x30] sm:$0xff]
    %v44 = vld [vmem:[%s0 + $0x38] sm:$0xff]
    %v45 = vld [vmem:[%s1] sm:$0xff]
    %v46 = vld [vmem:[%s1 + $0x8] sm:$0xff]
    %v47 = vld [vmem:[%s1 + $0x10] sm:$0xff]
    %v48 = vld [vmem:[%s1 + $0x18] sm:$0xff]
    %v49 = vld [vmem:[%s1 + $0x20] sm:$0xff]
    %v50 = vld [vmem:[%s1 + $0x28] sm:$0xff]
    %v51 = vld [vmem:[%s1 + $0x30] sm:$0xff]
    %v52 = vld [vmem:[%s1 + $0x38] sm:$0xff]
    %v53 = vld [vmem:[%s1 + $0x40] sm:$0xff]
    %v54 = vld [vmem:[%s1 + $0x48] sm:$0xff]
    %v55 = vld [vmem:[%s1 + $0x50] sm:$0xff]
    %v56 = vld [vmem:[%s1 + $0x58] sm:$0xff]
    %v57 = vld [vmem:[%s1 + $0x60] sm:$0xff]
    %v58 = vld [vmem:[%s1 + $0x68] sm:$0xff]
    %v59 = vld [vmem:[%s1 + $0x70] sm:$0xff]
    %v60 = vld [vmem:[%s1 + $0x78] sm:$0xff]
    %v61 = vld [vmem:[%s1 + $0x80] sm:$0xff]
    %v62 = vld [vmem:[%s1 + $0x88] sm:$0xff]
    %v63 = vld [vmem:[%s1 + $0x90] sm:$0xff]
    %v64 = vld [vmem:[%s1 + $0x98] sm:$0xff]
    %v65 = vld [vmem:[%s1 + $0xa0] sm:$0xff]
    %v66 = vld [vmem:[%s1 + $0xa8] sm:$0xff]
    %v67 = vld [vmem:[%s1 + $0xb0] sm:$0xff]
    %v68 = vld [vmem:[%s1 + $0xb8] sm:$0xff]
    %v69 = vld [vmem:[%s1 + $0xc0] sm:$0xff]
    %v70 = vld [vmem:[%s1 + $0xc8] sm:$0xff]
    %v71 = vld [vmem:[%s1 + $0xd0] sm:$0xff]
    %v72 = vld [vmem:[%s1 + $0xd8] sm:$0xff]
    %v73 = vld [vmem:[%s1 + $0xe0] sm:$0xff]
    %v74 = vld [vmem:[%s1 + $0xe8] sm:$0xff]
    %v75 = vld [vmem:[%s1 + $0xf0] sm:$0xff]
    %v76 = vld [vmem:[%s1 + $0xf8] sm:$0xff]
    %v77 = vld [vmem:[%s1 + $0x100] sm:$0xff]
    %v78 = vld [vmem:[%s1 + $0x108] sm:$0xff]
    %v79 = vld [vmem:[%s1 + $0x110] sm:$0xff]
    %v80 = vld [vmem:[%s1 + $0x118] sm:$0xff]
    %v81 = vld [vmem:[%s1 + $0x120] sm:$0xff]
    %v82 = vld [vmem:[%s1 + $0x128] sm:$0xff]
    %v83 = vld [vmem:[%s1 + $0x130] sm:$0xff]
    %v84 = vld [vmem:[%s1 + $0x138] sm:$0xff]
    %v85 = vld [vmem:[%s1 + $0x140] sm:$0xff]
    %v86 = vld [vmem:[%s1 + $0x148] sm:$0xff]
    %v87 = vld [vmem:[%s1 + $0x150] sm:$0xff]
    %v88 = vld [vmem:[%s1 + $0x158] sm:$0xff]
    %v89 = vld [vmem:[%s1 + $0x160] sm:$0xff]
    %v90 = vld [vmem:[%s1 + $0x168] sm:$0xff]
    %v91 = vld [vmem:[%s1 + $0x170] sm:$0xff]
    %v92 = vld [vmem:[%s1 + $0x178] sm:$0xff]
    %v93 = vld [vmem:[%s1 + $0x180] sm:$0xff]
    %v94 = vld [vmem:[%s1 + $0x188] sm:$0xff]
    %v95 = vld [vmem:[%s1 + $0x190] sm:$0xff]
    %v96 = vld [vmem:[%s1 + $0x198] sm:$0xff]
    %v97 = vld [vmem:[%s1 + $0x1a0] sm:$0xff]
    %v98 = vld [vmem:[%s1 + $0x1a8] sm:$0xff]
    %v99 = vld [vmem:[%s1 + $0x1b0] sm:$0xff]
    %v100 = vld [vmem:[%s1 + $0x1b8] sm:$0xff]
    %v101 = vld [vmem:[%s1 + $0x1c0] sm:$0xff]
    %v102 = vld [vmem:[%s1 + $0x1c8] sm:$0xff]
    %v103 = vld [vmem:[%s1 + $0x1d0] sm:$0xff]
    %v104 = vld [vmem:[%s1 + $0x1d8] sm:$0xff]
    %v105 = vld [vmem:[%s1 + $0x1e0] sm:$0xff]
    %v106 = vld [vmem:[%s1 + $0x1e8] sm:$0xff]
    %v107 = vld [vmem:[%s1 + $0x1f0] sm:$0xff]
    %v108 = vld [vmem:[%s1 + $0x1f8] sm:$0xff]
    %v109 = vld [vmem:[%s3] sm:$0xf]
    %v111 = vlaneseq
    %v112 = vshrl.u32 %v111, 7
    %v113 = vsub.s32 0, %v112
    %v114 = vrot.slane %v109, %v113
    %v115 = vlaneseq
    %v116 = vshrl.u32 %v115, 7
    %v117 = vsub.s32 1, %v116
    %v118 = vrot.slane %v109, %v117
    %v119 = vlaneseq
    %v120 = vshrl.u32 %v119, 7
    %v121 = vsub.s32 2, %v120
    %v122 = vrot.slane %v109, %v121
    %v123 = vlaneseq
    %v124 = vshrl.u32 %v123, 7
    %v125 = vsub.s32 3, %v124
    %v126 = vrot.slane %v109, %v125
    %131 = vmatprep.subr.mxu0 %v106
    %132 = vmatpush1.msra.mxu0 %v105
    %133 = vmatprep.subr.mxu0 %v102
    %134 = vmatpush1.msra.mxu0 %v101
    %135 = vmatprep.subr.mxu0 %v98
    %136 = vmatpush1.msra.mxu0 %v97
    %137 = vmatprep.subr.mxu0 %v94
    %138 = vmatpush1.msra.mxu0 %v93
    %139 = vmatprep.subr.mxu0 %v90
    %140 = vmatpush1.msra.mxu0 %v89
    %141 = vmatprep.subr.mxu0 %v86
    %142 = vmatpush1.msra.mxu0 %v85
    %143 = vmatprep.subr.mxu0 %v82
    %144 = vmatpush1.msra.mxu0 %v81
    %145 = vmatprep.subr.mxu0 %v78
    %146 = vmatpush1.msra.mxu0 %v77
    %147 = vmatprep.subr.mxu0 %v74
    %148 = vmatpush1.msra.mxu0 %v73
    %149 = vmatprep.subr.mxu0 %v70
    %150 = vmatpush1.msra.mxu0 %v69
    %151 = vmatprep.subr.mxu0 %v66
    %152 = vmatpush1.msra.mxu0 %v65
    %153 = vmatprep.subr.mxu0 %v62
    %154 = vmatpush1.msra.mxu0 %v61
    %155 = vmatprep.subr.mxu0 %v58
    %156 = vmatpush1.msra.mxu0 %v57
    %157 = vmatprep.subr.mxu0 %v54
    %158 = vmatpush1.msra.mxu0 %v53
    %159 = vmatprep.subr.mxu0 %v50
    %160 = vmatpush1.msra.mxu0 %v49
    %161 = vmatprep.subr.mxu0 %v46
    %162 = vmatpush1.msra.mxu0 %v45
    %163 = vmatprep.subr.mxu0 0.0
    %164 = vmatpush2.msra.mxu0 0.0
    %165 = vmatprep.subr.mxu0 0.0
    %166 = vmatpush2.msra.mxu0 0.0
    %167 = vmatprep.subr.mxu0 0.0
    %168 = vmatpush2.msra.mxu0 0.0
    %169 = vmatprep.subr.mxu0 0.0
    %170 = vmatpush2.msra.mxu0 0.0
    %171 = vmatprep.subr.mxu0 0.0
    %172 = vmatpush2.msra.mxu0 0.0
    %173 = vmatprep.subr.mxu0 0.0
    %174 = vmatpush2.msra.mxu0 0.0
    %175 = vmatprep.subr.mxu0 0.0
    %176 = vmatpush2.msra.mxu0 0.0
    %177 = vmatprep.subr.mxu0 0.0
    %178 = vmatpush2.msra.mxu0 0.0
    %179 = vmatprep.subr.mxu0 0.0
    %180 = vmatpush2.msra.mxu0 0.0
    %181 = vmatprep.subr.mxu0 0.0
    %182 = vmatpush2.msra.mxu0 0.0
    %183 = vmatprep.subr.mxu0 0.0
    %184 = vmatpush2.msra.mxu0 0.0
    %185 = vmatprep.subr.mxu0 0.0
    %186 = vmatpush2.msra.mxu0 0.0
    %187 = vmatprep.subr.mxu0 0.0
    %188 = vmatpush2.msra.mxu0 0.0
    %189 = vmatprep.subr.mxu0 0.0
    %190 = vmatpush2.msra.mxu0 0.0
    %191 = vmatprep.subr.mxu0 0.0
    %192 = vmatpush2.msra.mxu0 0.0
    %193 = vmatprep.subr.mxu0 0.0
    %194 = vmatpush2.msra.mxu0 0.0
    %195 = vmatprep.mubr.f32.mxu0 0.0
    %196 = vmatmul.mubr.f32.gmra.mxu0 %v37
    %v197 = vpop.f32.mrf.mxu0
    %v198 = vadd.f32 %v114, %v197
    %v199 = vpop.f32.mrf.mxu0
    %v200 = vadd.f32 %v118, %v199
    %201 = vmatprep.mubr.f32.mxu0 0.0
    %202 = vmatmul.mubr.f32.gmra.mxu0 %v38
    %v203 = vpop.f32.mrf.mxu0
    %v204 = vadd.f32 %v114, %v203
    %v205 = vpop.f32.mrf.mxu0
    %v206 = vadd.f32 %v118, %v205
    %207 = vmatprep.mubr.f32.mxu0 0.0
    %208 = vmatmul.mubr.f32.gmra.mxu0 %v39
    %v209 = vpop.f32.mrf.mxu0
    %v210 = vadd.f32 %v114, %v209
    %v211 = vpop.f32.mrf.mxu0
    %v212 = vadd.f32 %v118, %v211
    %213 = vmatprep.mubr.f32.mxu0 0.0
    %214 = vmatmul.mubr.f32.gmra.mxu0 %v40
    %v215 = vpop.f32.mrf.mxu0
    %v216 = vadd.f32 %v114, %v215
    %v217 = vpop.f32.mrf.mxu0
    %v218 = vadd.f32 %v118, %v217
    %219 = vmatprep.mubr.f32.mxu0 0.0
    %220 = vmatmul.mubr.f32.gmra.mxu0 %v41
    %v221 = vpop.f32.mrf.mxu0
    %v222 = vadd.f32 %v114, %v221
    %v223 = vpop.f32.mrf.mxu0
    %v224 = vadd.f32 %v118, %v223
    %225 = vmatprep.mubr.f32.mxu0 0.0
    %226 = vmatmul.mubr.f32.gmra.mxu0 %v42
    %v227 = vpop.f32.mrf.mxu0
    %v228 = vadd.f32 %v114, %v227
    %v229 = vpop.f32.mrf.mxu0
    %v230 = vadd.f32 %v118, %v229
    %231 = vmatprep.mubr.f32.mxu0 0.0
    %232 = vmatmul.mubr.f32.gmra.mxu0 %v43
    %v233 = vpop.f32.mrf.mxu0
    %v234 = vadd.f32 %v114, %v233
    %v235 = vpop.f32.mrf.mxu0
    %v236 = vadd.f32 %v118, %v235
    %237 = vmatprep.mubr.f32.mxu0 0.0
    %238 = vmatmul.mubr.f32.gmra.mxu0 %v44
    %v239 = vpop.f32.mrf.mxu0
    %v240 = vadd.f32 %v114, %v239
    %v241 = vpop.f32.mrf.mxu0
    %v242 = vadd.f32 %v118, %v241
    %243 = vdwg.mxu0
    %244 = vmatprep.subr.mxu0 %v108
    %245 = vmatpush1.msra.mxu0 %v107
    %246 = vmatprep.subr.mxu0 %v104
    %247 = vmatpush1.msra.mxu0 %v103
    %248 = vmatprep.subr.mxu0 %v100
    %249 = vmatpush1.msra.mxu0 %v99
    %250 = vmatprep.subr.mxu0 %v96
    %251 = vmatpush1.msra.mxu0 %v95
    %252 = vmatprep.subr.mxu0 %v92
    %253 = vmatpush1.msra.mxu0 %v91
    %254 = vmatprep.subr.mxu0 %v88
    %255 = vmatpush1.msra.mxu0 %v87
    %256 = vmatprep.subr.mxu0 %v84
    %257 = vmatpush1.msra.mxu0 %v83
    %258 = vmatprep.subr.mxu0 %v80
    %259 = vmatpush1.msra.mxu0 %v79
    %260 = vmatprep.subr.mxu0 %v76
    %261 = vmatpush1.msra.mxu0 %v75
    %262 = vmatprep.subr.mxu0 %v72
    %263 = vmatpush1.msra.mxu0 %v71
    %264 = vmatprep.subr.mxu0 %v68
    %265 = vmatpush1.msra.mxu0 %v67
    %266 = vmatprep.subr.mxu0 %v64
    %267 = vmatpush1.msra.mxu0 %v63
    %268 = vmatprep.subr.mxu0 %v60
    %269 = vmatpush1.msra.mxu0 %v59
    %270 = vmatprep.subr.mxu0 %v56
    %271 = vmatpush1.msra.mxu0 %v55
    %272 = vmatprep.subr.mxu0 %v52
    %273 = vmatpush1.msra.mxu0 %v51
    %274 = vmatprep.subr.mxu0 %v48
    %275 = vmatpush1.msra.mxu0 %v47
    %276 = vmatprep.subr.mxu0 0.0
    %277 = vmatpush2.msra.mxu0 0.0
    %278 = vmatprep.subr.mxu0 0.0
    %279 = vmatpush2.msra.mxu0 0.0
    %280 = vmatprep.subr.mxu0 0.0
    %281 = vmatpush2.msra.mxu0 0.0
    %282 = vmatprep.subr.mxu0 0.0
    %283 = vmatpush2.msra.mxu0 0.0
    %284 = vmatprep.subr.mxu0 0.0
    %285 = vmatpush2.msra.mxu0 0.0
    %286 = vmatprep.subr.mxu0 0.0
    %287 = vmatpush2.msra.mxu0 0.0
    %288 = vmatprep.subr.mxu0 0.0
    %289 = vmatpush2.msra.mxu0 0.0
    %290 = vmatprep.subr.mxu0 0.0
    %291 = vmatpush2.msra.mxu0 0.0
    %292 = vmatprep.subr.mxu0 0.0
    %293 = vmatpush2.msra.mxu0 0.0
    %294 = vmatprep.subr.mxu0 0.0
    %295 = vmatpush2.msra.mxu0 0.0
    %296 = vmatprep.subr.mxu0 0.0
    %297 = vmatpush2.msra.mxu0 0.0
    %298 = vmatprep.subr.mxu0 0.0
    %299 = vmatpush2.msra.mxu0 0.0
    %300 = vmatprep.subr.mxu0 0.0
    %301 = vmatpush2.msra.mxu0 0.0
    %302 = vmatprep.subr.mxu0 0.0
    %303 = vmatpush2.msra.mxu0 0.0
    %304 = vmatprep.subr.mxu0 0.0
    %305 = vmatpush2.msra.mxu0 0.0
    %306 = vmatprep.subr.mxu0 0.0
    %307 = vmatpush2.msra.mxu0 0.0
    %308 = vmatprep.mubr.f32.mxu0 0.0
    %309 = vmatmul.mubr.f32.gmra.mxu0 %v37
    %v310 = vpop.f32.mrf.mxu0
    %v311 = vadd.f32 %v122, %v310
    %v312 = vpop.f32.mrf.mxu0
    %v313 = vadd.f32 %v126, %v312
    %314 = vmatprep.mubr.f32.mxu0 0.0
    %315 = vmatmul.mubr.f32.gmra.mxu0 %v38
    %v316 = vpop.f32.mrf.mxu0
    %v317 = vadd.f32 %v122, %v316
    %v318 = vpop.f32.mrf.mxu0
    %v319 = vadd.f32 %v126, %v318
    %320 = vmatprep.mubr.f32.mxu0 0.0
    %321 = vmatmul.mubr.f32.gmra.mxu0 %v39
    %v322 = vpop.f32.mrf.mxu0
    %v323 = vadd.f32 %v122, %v322
    %v324 = vpop.f32.mrf.mxu0
    %v325 = vadd.f32 %v126, %v324
    %326 = vmatprep.mubr.f32.mxu0 0.0
    %327 = vmatmul.mubr.f32.gmra.mxu0 %v40
    %v328 = vpop.f32.mrf.mxu0
    %v329 = vadd.f32 %v122, %v328
    %v330 = vpop.f32.mrf.mxu0
    %v331 = vadd.f32 %v126, %v330
    %332 = vmatprep.mubr.f32.mxu0 0.0
    %333 = vmatmul.mubr.f32.gmra.mxu0 %v41
    %v334 = vpop.f32.mrf.mxu0
    %v335 = vadd.f32 %v122, %v334
    %v336 = vpop.f32.mrf.mxu0
    %v337 = vadd.f32 %v126, %v336
    %338 = vmatprep.mubr.f32.mxu0 0.0
    %339 = vmatmul.mubr.f32.gmra.mxu0 %v42
    %v340 = vpop.f32.mrf.mxu0
    %v341 = vadd.f32 %v122, %v340
    %v342 = vpop.f32.mrf.mxu0
    %v343 = vadd.f32 %v126, %v342
    %344 = vmatprep.mubr.f32.mxu0 0.0
    %345 = vmatmul.mubr.f32.gmra.mxu0 %v43
    %v346 = vpop.f32.mrf.mxu0
    %v347 = vadd.f32 %v122, %v346
    %v348 = vpop.f32.mrf.mxu0
    %v349 = vadd.f32 %v126, %v348
    %350 = vmatprep.mubr.f32.mxu0 0.0
    %351 = vmatmul.mubr.f32.gmra.mxu0 %v44
    %v352 = vpop.f32.mrf.mxu0
    %v353 = vadd.f32 %v122, %v352
    %v354 = vpop.f32.mrf.mxu0
    %v355 = vadd.f32 %v126, %v354
    %356 = vdwg.mxu0
    %357 = vst [vmem:[#allocation4] sm:$0xff] %v198
    %358 = vst [vmem:[#allocation4 + $0x8] sm:$0xff] %v200
    %359 = vst [vmem:[#allocation4 + $0x10] sm:$0xff] %v311
    %360 = vst [vmem:[#allocation4 + $0x18] sm:$0xff] %v313
    %361 = vst [vmem:[#allocation4 + $0x20] sm:$0xff] %v204
    %362 = vst [vmem:[#allocation4 + $0x28] sm:$0xff] %v206
    %363 = vst [vmem:[#allocation4 + $0x30] sm:$0xff] %v317
    %364 = vst [vmem:[#allocation4 + $0x38] sm:$0xff] %v319
    %365 = vst [vmem:[#allocation4 + $0x40] sm:$0xff] %v210
    %366 = vst [vmem:[#allocation4 + $0x48] sm:$0xff] %v212
    %367 = vst [vmem:[#allocation4 + $0x50] sm:$0xff] %v323
    %368 = vst [vmem:[#allocation4 + $0x58] sm:$0xff] %v325
    %369 = vst [vmem:[#allocation4 + $0x60] sm:$0xff] %v216
    %370 = vst [vmem:[#allocation4 + $0x68] sm:$0xff] %v218
    %371 = vst [vmem:[#allocation4 + $0x70] sm:$0xff] %v329
    %372 = vst [vmem:[#allocation4 + $0x78] sm:$0xff] %v331
    %373 = vst [vmem:[#allocation4 + $0x80] sm:$0xff] %v222
    %374 = vst [vmem:[#allocation4 + $0x88] sm:$0xff] %v224
    %375 = vst [vmem:[#allocation4 + $0x90] sm:$0xff] %v335
    %376 = vst [vmem:[#allocation4 + $0x98] sm:$0xff] %v337
    %377 = vst [vmem:[#allocation4 + $0xa0] sm:$0xff] %v228
    %378 = vst [vmem:[#allocation4 + $0xa8] sm:$0xff] %v230
    %379 = vst [vmem:[#allocation4 + $0xb0] sm:$0xff] %v341
    %380 = vst [vmem:[#allocation4 + $0xb8] sm:$0xff] %v343
    %381 = vst [vmem:[#allocation4 + $0xc0] sm:$0xff] %v234
    %382 = vst [vmem:[#allocation4 + $0xc8] sm:$0xff] %v236
    %383 = vst [vmem:[#allocation4 + $0xd0] sm:$0xff] %v347
    %384 = vst [vmem:[#allocation4 + $0xd8] sm:$0xff] %v349
    %385 = vst [vmem:[#allocation4 + $0xe0] sm:$0xff] %v240
    %386 = vst [vmem:[#allocation4 + $0xe8] sm:$0xff] %v242
    %387 = vst [vmem:[#allocation4 + $0xf0] sm:$0xff] %v353
    %388 = vst [vmem:[#allocation4 + $0xf8] sm:$0xff] %v355
    %v389 = vld [vmem:[#allocation2] sm:$0xff]
    %v390 = vld [vmem:[#allocation3] sm:$0xff]
    %s391 = smul.u32 0, 4
    %s392 = smul.addr %s391, 8
    %s393 = scalar_lea.vmem [#allocation4], %s392
    %v394 = vld [vmem:[%s393] sm:$0xff]
    %v395 = vld [vmem:[%s393 + $0x8] sm:$0xff]
    %v396 = vld [vmem:[%s393 + $0x10] sm:$0xff]
    %v397 = vld [vmem:[%s393 + $0x18] sm:$0xff]
    %v398 = vld [vmem:[#allocation5] sm:$0xff]
    %v399 = vld [vmem:[#allocation5 + $0x8] sm:$0xff]
    %v400 = vld [vmem:[#allocation5 + $0x10] sm:$0xff]
    %v401 = vld [vmem:[#allocation5 + $0x18] sm:$0xff]
    %v402 = vld [vmem:[#allocation5 + $0x20] sm:$0xff]
    %v403 = vld [vmem:[#allocation5 + $0x28] sm:$0xff]
    %v404 = vld [vmem:[#allocation5 + $0x30] sm:$0xff]
    %v405 = vld [vmem:[#allocation5 + $0x38] sm:$0xff]
    %v406 = vld [vmem:[#allocation5 + $0x40] sm:$0xff]
    %v407 = vld [vmem:[#allocation5 + $0x48] sm:$0xff]
    %v408 = vld [vmem:[#allocation5 + $0x50] sm:$0xff]
    %v409 = vld [vmem:[#allocation5 + $0x58] sm:$0xff]
    %v410 = vld [vmem:[#allocation5 + $0x60] sm:$0xff]
    %v411 = vld [vmem:[#allocation5 + $0x68] sm:$0xff]
    %v412 = vld [vmem:[#allocation5 + $0x70] sm:$0xff]
    %v413 = vld [vmem:[#allocation5 + $0x78] sm:$0xff]
    %v414 = vld [vmem:[#allocation5 + $0x80] sm:$0xff]
    %v415 = vld [vmem:[#allocation5 + $0x88] sm:$0xff]
    %v416 = vld [vmem:[#allocation5 + $0x90] sm:$0xff]
    %v417 = vld [vmem:[#allocation5 + $0x98] sm:$0xff]
    %v418 = vld [vmem:[#allocation5 + $0xa0] sm:$0xff]
    %v419 = vld [vmem:[#allocation5 + $0xa8] sm:$0xff]
    %v420 = vld [vmem:[#allocation5 + $0xb0] sm:$0xff]
    %v421 = vld [vmem:[#allocation5 + $0xb8] sm:$0xff]
    %v422 = vld [vmem:[#allocation5 + $0xc0] sm:$0xff]
    %v423 = vld [vmem:[#allocation5 + $0xc8] sm:$0xff]
    %v424 = vld [vmem:[#allocation5 + $0xd0] sm:$0xff]
    %v425 = vld [vmem:[#allocation5 + $0xd8] sm:$0xff]
    %v426 = vld [vmem:[#allocation5 + $0xe0] sm:$0xff]
    %v427 = vld [vmem:[#allocation5 + $0xe8] sm:$0xff]
    %v428 = vld [vmem:[#allocation5 + $0xf0] sm:$0xff]
    %v429 = vld [vmem:[#allocation5 + $0xf8] sm:$0xff]
    %v430 = vld [vmem:[#allocation5 + $0x100] sm:$0xff]
    %v431 = vld [vmem:[#allocation5 + $0x108] sm:$0xff]
    %v432 = vld [vmem:[#allocation5 + $0x110] sm:$0xff]
    %v433 = vld [vmem:[#allocation5 + $0x118] sm:$0xff]
    %v434 = vld [vmem:[#allocation5 + $0x120] sm:$0xff]
    %v435 = vld [vmem:[#allocation5 + $0x128] sm:$0xff]
    %v436 = vld [vmem:[#allocation5 + $0x130] sm:$0xff]
    %v437 = vld [vmem:[#allocation5 + $0x138] sm:$0xff]
    %v438 = vld [vmem:[#allocation5 + $0x140] sm:$0xff]
    %v439 = vld [vmem:[#allocation5 + $0x148] sm:$0xff]
    %v440 = vld [vmem:[#allocation5 + $0x150] sm:$0xff]
    %v441 = vld [vmem:[#allocation5 + $0x158] sm:$0xff]
    %v442 = vld [vmem:[#allocation5 + $0x160] sm:$0xff]
    %v443 = vld [vmem:[#allocation5 + $0x168] sm:$0xff]
    %v444 = vld [vmem:[#allocation5 + $0x170] sm:$0xff]
    %v445 = vld [vmem:[#allocation5 + $0x178] sm:$0xff]
    %v446 = vld [vmem:[#allocation5 + $0x180] sm:$0xff]
    %v447 = vld [vmem:[#allocation5 + $0x188] sm:$0xff]
    %v448 = vld [vmem:[#allocation5 + $0x190] sm:$0xff]
    %v449 = vld [vmem:[#allocation5 + $0x198] sm:$0xff]
    %v450 = vld [vmem:[#allocation5 + $0x1a0] sm:$0xff]
    %v451 = vld [vmem:[#allocation5 + $0x1a8] sm:$0xff]
    %v452 = vld [vmem:[#allocation5 + $0x1b0] sm:$0xff]
    %v453 = vld [vmem:[#allocation5 + $0x1b8] sm:$0xff]
    %v454 = vld [vmem:[#allocation5 + $0x1c0] sm:$0xff]
    %v455 = vld [vmem:[#allocation5 + $0x1c8] sm:$0xff]
    %v456 = vld [vmem:[#allocation5 + $0x1d0] sm:$0xff]
    %v457 = vld [vmem:[#allocation5 + $0x1d8] sm:$0xff]
    %v458 = vld [vmem:[#allocation5 + $0x1e0] sm:$0xff]
    %v459 = vld [vmem:[#allocation5 + $0x1e8] sm:$0xff]
    %v460 = vld [vmem:[#allocation5 + $0x1f0] sm:$0xff]
    %v461 = vld [vmem:[#allocation5 + $0x1f8] sm:$0xff]
    %462 = vmatprep.subr.mxu0 %v459
    %463 = vmatpush1.msra.mxu0 %v458
    %464 = vmatprep.subr.mxu0 %v455
    %465 = vmatpush1.msra.mxu0 %v454
    %466 = vmatprep.subr.mxu0 %v451
    %467 = vmatpush1.msra.mxu0 %v450
    %468 = vmatprep.subr.mxu0 %v447
    %469 = vmatpush1.msra.mxu0 %v446
    %470 = vmatprep.subr.mxu0 %v443
    %471 = vmatpush1.msra.mxu0 %v442
    %472 = vmatprep.subr.mxu0 %v439
    %473 = vmatpush1.msra.mxu0 %v438
    %474 = vmatprep.subr.mxu0 %v435
    %475 = vmatpush1.msra.mxu0 %v434
    %476 = vmatprep.subr.mxu0 %v431
    %477 = vmatpush1.msra.mxu0 %v430
    %478 = vmatprep.subr.mxu0 %v427
    %479 = vmatpush1.msra.mxu0 %v426
    %480 = vmatprep.subr.mxu0 %v423
    %481 = vmatpush1.msra.mxu0 %v422
    %482 = vmatprep.subr.mxu0 %v419
    %483 = vmatpush1.msra.mxu0 %v418
    %484 = vmatprep.subr.mxu0 %v415
    %485 = vmatpush1.msra.mxu0 %v414
    %486 = vmatprep.subr.mxu0 %v411
    %487 = vmatpush1.msra.mxu0 %v410
    %488 = vmatprep.subr.mxu0 %v407
    %489 = vmatpush1.msra.mxu0 %v406
    %490 = vmatprep.subr.mxu0 %v403
    %491 = vmatpush1.msra.mxu0 %v402
    %492 = vmatprep.subr.mxu0 %v399
    %493 = vmatpush1.msra.mxu0 %v398
    %494 = vmatprep.subr.mxu0 0.0
    %495 = vmatpush2.msra.mxu0 0.0
    %496 = vmatprep.subr.mxu0 0.0
    %497 = vmatpush2.msra.mxu0 0.0
    %498 = vmatprep.subr.mxu0 0.0
    %499 = vmatpush2.msra.mxu0 0.0
    %500 = vmatprep.subr.mxu0 0.0
    %501 = vmatpush2.msra.mxu0 0.0
    %502 = vmatprep.subr.mxu0 0.0
    %503 = vmatpush2.msra.mxu0 0.0
    %504 = vmatprep.subr.mxu0 0.0
    %505 = vmatpush2.msra.mxu0 0.0
    %506 = vmatprep.subr.mxu0 0.0
    %507 = vmatpush2.msra.mxu0 0.0
    %508 = vmatprep.subr.mxu0 0.0
    %509 = vmatpush2.msra.mxu0 0.0
    %510 = vmatprep.subr.mxu0 0.0
    %511 = vmatpush2.msra.mxu0 0.0
    %512 = vmatprep.subr.mxu0 0.0
    %513 = vmatpush2.msra.mxu0 0.0
    %514 = vmatprep.subr.mxu0 0.0
    %515 = vmatpush2.msra.mxu0 0.0
    %516 = vmatprep.subr.mxu0 0.0
    %517 = vmatpush2.msra.mxu0 0.0
    %518 = vmatprep.subr.mxu0 0.0
    %519 = vmatpush2.msra.mxu0 0.0
    %520 = vmatprep.subr.mxu0 0.0
    %521 = vmatpush2.msra.mxu0 0.0
    %522 = vmatprep.subr.mxu0 0.0
    %523 = vmatpush2.msra.mxu0 0.0
    %524 = vmatprep.subr.mxu0 0.0
    %525 = vmatpush2.msra.mxu0 0.0
    %526 = vmatprep.mubr.f32.mxu0 0.0
    %527 = vmatmul.mubr.f32.gmra.mxu0 %v389
    %v528 = vpop.f32.mrf.mxu0
    %v529 = vadd.f32 0.0, %v528
    %v530 = vpop.f32.mrf.mxu0
    %v531 = vadd.f32 0.0, %v530
    %532 = vdwg.mxu0
    %533 = vmatprep.subr.mxu0 %v461
    %534 = vmatpush1.msra.mxu0 %v460
    %535 = vmatprep.subr.mxu0 %v457
    %536 = vmatpush1.msra.mxu0 %v456
    %537 = vmatprep.subr.mxu0 %v453
    %538 = vmatpush1.msra.mxu0 %v452
    %539 = vmatprep.subr.mxu0 %v449
    %540 = vmatpush1.msra.mxu0 %v448
    %541 = vmatprep.subr.mxu0 %v445
    %542 = vmatpush1.msra.mxu0 %v444
    %543 = vmatprep.subr.mxu0 %v441
    %544 = vmatpush1.msra.mxu0 %v440
    %545 = vmatprep.subr.mxu0 %v437
    %546 = vmatpush1.msra.mxu0 %v436
    %547 = vmatprep.subr.mxu0 %v433
    %548 = vmatpush1.msra.mxu0 %v432
    %549 = vmatprep.subr.mxu0 %v429
    %550 = vmatpush1.msra.mxu0 %v428
    %551 = vmatprep.subr.mxu0 %v425
    %552 = vmatpush1.msra.mxu0 %v424
    %553 = vmatprep.subr.mxu0 %v421
    %554 = vmatpush1.msra.mxu0 %v420
    %555 = vmatprep.subr.mxu0 %v417
    %556 = vmatpush1.msra.mxu0 %v416
    %557 = vmatprep.subr.mxu0 %v413
    %558 = vmatpush1.msra.mxu0 %v412
    %559 = vmatprep.subr.mxu0 %v409
    %560 = vmatpush1.msra.mxu0 %v408
    %561 = vmatprep.subr.mxu0 %v405
    %562 = vmatpush1.msra.mxu0 %v404
    %563 = vmatprep.subr.mxu0 %v401
    %564 = vmatpush1.msra.mxu0 %v400
    %565 = vmatprep.subr.mxu0 0.0
    %566 = vmatpush2.msra.mxu0 0.0
    %567 = vmatprep.subr.mxu0 0.0
    %568 = vmatpush2.msra.mxu0 0.0
    %569 = vmatprep.subr.mxu0 0.0
    %570 = vmatpush2.msra.mxu0 0.0
    %571 = vmatprep.subr.mxu0 0.0
    %572 = vmatpush2.msra.mxu0 0.0
    %573 = vmatprep.subr.mxu0 0.0
    %574 = vmatpush2.msra.mxu0 0.0
    %575 = vmatprep.subr.mxu0 0.0
    %576 = vmatpush2.msra.mxu0 0.0
    %577 = vmatprep.subr.mxu0 0.0
    %578 = vmatpush2.msra.mxu0 0.0
    %579 = vmatprep.subr.mxu0 0.0
    %580 = vmatpush2.msra.mxu0 0.0
    %581 = vmatprep.subr.mxu0 0.0
    %582 = vmatpush2.msra.mxu0 0.0
    %583 = vmatprep.subr.mxu0 0.0
    %584 = vmatpush2.msra.mxu0 0.0
    %585 = vmatprep.subr.mxu0 0.0
    %586 = vmatpush2.msra.mxu0 0.0
    %587 = vmatprep.subr.mxu0 0.0
    %588 = vmatpush2.msra.mxu0 0.0
    %589 = vmatprep.subr.mxu0 0.0
    %590 = vmatpush2.msra.mxu0 0.0
    %591 = vmatprep.subr.mxu0 0.0
    %592 = vmatpush2.msra.mxu0 0.0
    %593 = vmatprep.subr.mxu0 0.0
    %594 = vmatpush2.msra.mxu0 0.0
    %595 = vmatprep.subr.mxu0 0.0
    %596 = vmatpush2.msra.mxu0 0.0
    %597 = vmatprep.mubr.f32.mxu0 0.0
    %598 = vmatmul.mubr.f32.gmra.mxu0 %v389
    %v599 = vpop.f32.mrf.mxu0
    %v600 = vadd.f32 0.0, %v599
    %v601 = vpop.f32.mrf.mxu0
    %v602 = vadd.f32 0.0, %v601
    %603 = vdwg.mxu0
    %v604 = vadd.f32 %v394, %v529
    %v605 = vadd.f32 %v395, %v531
    %v606 = vadd.f32 %v396, %v600
    %v607 = vadd.f32 %v397, %v602
    %v608 = vxor.u32 %v604, 2147483648
    %v609 = vmul.f32 %v608, 1.442695
    %v610 = vpow.pop %v609
    %v611 = vadd.f32 %v610, 1.0
    %v612 = vrcp.pop %v611
    %v613 = vmul.f32 1.0, %v612
    %v614 = vxor.u32 %v605, 2147483648
    %v615 = vmul.f32 %v614, 1.442695
    %v616 = vpow.pop %v615
    %v617 = vadd.f32 %v616, 1.0
    %v618 = vrcp.pop %v617
    %v619 = vmul.f32 1.0, %v618
    %v620 = vtanh.pop %v606
    %v621 = vxor.u32 %v607, 2147483648
    %v622 = vmul.f32 %v621, 1.442695
    %v623 = vpow.pop %v622
    %v624 = vadd.f32 %v623, 1.0
    %v625 = vrcp.pop %v624
    %v626 = vmul.f32 1.0, %v625
    %v627 = vmul.f32 %v619, %v390
    %v628 = vmul.f32 %v613, %v620
    %v629 = vadd.f32 %v627, %v628
    %v630 = vtanh.pop %v629
    %v631 = vmul.f32 %v626, %v630
    %632 = vst [vmem:[#allocation3] sm:$0xff] %v629
    %633 = vst [vmem:[#allocation2] sm:$0xff] %v631
    %634 = vst [vmem:[%s4] sm:$0xff] %v631
    %v635 = vld [vmem:[#allocation2] sm:$0xff]
    %v636 = vld [vmem:[#allocation3] sm:$0xff]
    %s637 = smul.u32 1, 4
    %s638 = smul.addr %s637, 8
    %s639 = scalar_lea.vmem [#allocation4], %s638
    %v640 = vld [vmem:[%s639] sm:$0xff]
    %v641 = vld [vmem:[%s639 + $0x8] sm:$0xff]
    %v642 = vld [vmem:[%s639 + $0x10] sm:$0xff]
    %v643 = vld [vmem:[%s639 + $0x18] sm:$0xff]
    %v644 = vld [vmem:[#allocation5] sm:$0xff]
    %v645 = vld [vmem:[#allocation5 + $0x8] sm:$0xff]
    %v646 = vld [vmem:[#allocation5 + $0x10] sm:$0xff]
    %v647 = vld [vmem:[#allocation5 + $0x18] sm:$0xff]
    %v648 = vld [vmem:[#allocation5 + $0x20] sm:$0xff]
    %v649 = vld [vmem:[#allocation5 + $0x28] sm:$0xff]
    %v650 = vld [vmem:[#allocation5 + $0x30] sm:$0xff]
    %v651 = vld [vmem:[#allocation5 + $0x38] sm:$0xff]
    %v652 = vld [vmem:[#allocation5 + $0x40] sm:$0xff]
    %v653 = vld [vmem:[#allocation5 + $0x48] sm:$0xff]
    %v654 = vld [vmem:[#allocation5 + $0x50] sm:$0xff]
    %v655 = vld [vmem:[#allocation5 + $0x58] sm:$0xff]
    %v656 = vld [vmem:[#allocation5 + $0x60] sm:$0xff]
    %v657 = vld [vmem:[#allocation5 + $0x68] sm:$0xff]
    %v658 = vld [vmem:[#allocation5 + $0x70] sm:$0xff]
    %v659 = vld [vmem:[#allocation5 + $0x78] sm:$0xff]
    %v660 = vld [vmem:[#allocation5 + $0x80] sm:$0xff]
    %v661 = vld [vmem:[#allocation5 + $0x88] sm:$0xff]
    %v662 = vld [vmem:[#allocation5 + $0x90] sm:$0xff]
    %v663 = vld [vmem:[#allocation5 + $0x98] sm:$0xff]
    %v664 = vld [vmem:[#allocation5 + $0xa0] sm:$0xff]
    %v665 = vld [vmem:[#allocation5 + $0xa8] sm:$0xff]
    %v666 = vld [vmem:[#allocation5 + $0xb0] sm:$0xff]
    %v667 = vld [vmem:[#allocation5 + $0xb8] sm:$0xff]
    %v668 = vld [vmem:[#allocation5 + $0xc0] sm:$0xff]
    %v669 = vld [vmem:[#allocation5 + $0xc8] sm:$0xff]
    %v670 = vld [vmem:[#allocation5 + $0xd0] sm:$0xff]
    %v671 = vld [vmem:[#allocation5 + $0xd8] sm:$0xff]
    %v672 = vld [vmem:[#allocation5 + $0xe0] sm:$0xff]
    %v673 = vld [vmem:[#allocation5 + $0xe8] sm:$0xff]
    %v674 = vld [vmem:[#allocation5 + $0xf0] sm:$0xff]
    %v675 = vld [vmem:[#allocation5 + $0xf8] sm:$0xff]
    %v676 = vld [vmem:[#allocation5 + $0x100] sm:$0xff]
    %v677 = vld [vmem:[#allocation5 + $0x108] sm:$0xff]
    %v678 = vld [vmem:[#allocation5 + $0x110] sm:$0xff]
    %v679 = vld [vmem:[#allocation5 + $0x118] sm:$0xff]
    %v680 = vld [vmem:[#allocation5 + $0x120] sm:$0xff]
    %v681 = vld [vmem:[#allocation5 + $0x128] sm:$0xff]
    %v682 = vld [vmem:[#allocation5 + $0x130] sm:$0xff]
    %v683 = vld [vmem:[#allocation5 + $0x138] sm:$0xff]
    %v684 = vld [vmem:[#allocation5 + $0x140] sm:$0xff]
    %v685 = vld [vmem:[#allocation5 + $0x148] sm:$0xff]
    %v686 = vld [vmem:[#allocation5 + $0x150] sm:$0xff]
    %v687 = vld [vmem:[#allocation5 + $0x158] sm:$0xff]
    %v688 = vld [vmem:[#allocation5 + $0x160] sm:$0xff]
    %v689 = vld [vmem:[#allocation5 + $0x168] sm:$0xff]
    %v690 = vld [vmem:[#allocation5 + $0x170] sm:$0xff]
    %v691 = vld [vmem:[#allocation5 + $0x178] sm:$0xff]
    %v692 = vld [vmem:[#allocation5 + $0x180] sm:$0xff]
    %v693 = vld [vmem:[#allocation5 + $0x188] sm:$0xff]
    %v694 = vld [vmem:[#allocation5 + $0x190] sm:$0xff]
    %v695 = vld [vmem:[#allocation5 + $0x198] sm:$0xff]
    %v696 = vld [vmem:[#allocation5 + $0x1a0] sm:$0xff]
    %v697 = vld [vmem:[#allocation5 + $0x1a8] sm:$0xff]
    %v698 = vld [vmem:[#allocation5 + $0x1b0] sm:$0xff]
    %v699 = vld [vmem:[#allocation5 + $0x1b8] sm:$0xff]
    %v700 = vld [vmem:[#allocation5 + $0x1c0] sm:$0xff]
    %v701 = vld [vmem:[#allocation5 + $0x1c8] sm:$0xff]
    %v702 = vld [vmem:[#allocation5 + $0x1d0] sm:$0xff]
    %v703 = vld [vmem:[#allocation5 + $0x1d8] sm:$0xff]
    %v704 = vld [vmem:[#allocation5 + $0x1e0] sm:$0xff]
    %v705 = vld [vmem:[#allocation5 + $0x1e8] sm:$0xff]
    %v706 = vld [vmem:[#allocation5 + $0x1f0] sm:$0xff]
    %v707 = vld [vmem:[#allocation5 + $0x1f8] sm:$0xff]
    %708 = vmatprep.subr.mxu0 %v705
    %709 = vmatpush1.msra.mxu0 %v704
    %710 = vmatprep.subr.mxu0 %v701
    %711 = vmatpush1.msra.mxu0 %v700
    %712 = vmatprep.subr.mxu0 %v697
    %713 = vmatpush1.msra.mxu0 %v696
    %714 = vmatprep.subr.mxu0 %v693
    %715 = vmatpush1.msra.mxu0 %v692
    %716 = vmatprep.subr.mxu0 %v689
    %717 = vmatpush1.msra.mxu0 %v688
    %718 = vmatprep.subr.mxu0 %v685
    %719 = vmatpush1.msra.mxu0 %v684
    %720 = vmatprep.subr.mxu0 %v681
    %721 = vmatpush1.msra.mxu0 %v680
    %722 = vmatprep.subr.mxu0 %v677
    %723 = vmatpush1.msra.mxu0 %v676
    %724 = vmatprep.subr.mxu0 %v673
    %725 = vmatpush1.msra.mxu0 %v672
    %726 = vmatprep.subr.mxu0 %v669
    %727 = vmatpush1.msra.mxu0 %v668
    %728 = vmatprep.subr.mxu0 %v665
    %729 = vmatpush1.msra.mxu0 %v664
    %730 = vmatprep.subr.mxu0 %v661
    %731 = vmatpush1.msra.mxu0 %v660
    %732 = vmatprep.subr.mxu0 %v657
    %733 = vmatpush1.msra.mxu0 %v656
    %734 = vmatprep.subr.mxu0 %v653
    %735 = vmatpush1.msra.mxu0 %v652
    %736 = vmatprep.subr.mxu0 %v649
    %737 = vmatpush1.msra.mxu0 %v648
    %738 = vmatprep.subr.mxu0 %v645
    %739 = vmatpush1.msra.mxu0 %v644
    %740 = vmatprep.subr.mxu0 0.0
    %741 = vmatpush2.msra.mxu0 0.0
    %742 = vmatprep.subr.mxu0 0.0
    %743 = vmatpush2.msra.mxu0 0.0
    %744 = vmatprep.subr.mxu0 0.0
    %745 = vmatpush2.msra.mxu0 0.0
    %746 = vmatprep.subr.mxu0 0.0
    %747 = vmatpush2.msra.mxu0 0.0
    %748 = vmatprep.subr.mxu0 0.0
    %749 = vmatpush2.msra.mxu0 0.0
    %750 = vmatprep.subr.mxu0 0.0
    %751 = vmatpush2.msra.mxu0 0.0
    %752 = vmatprep.subr.mxu0 0.0
    %753 = vmatpush2.msra.mxu0 0.0
    %754 = vmatprep.subr.mxu0 0.0
    %755 = vmatpush2.msra.mxu0 0.0
    %756 = vmatprep.subr.mxu0 0.0
    %757 = vmatpush2.msra.mxu0 0.0
    %758 = vmatprep.subr.mxu0 0.0
    %759 = vmatpush2.msra.mxu0 0.0
    %760 = vmatprep.subr.mxu0 0.0
    %761 = vmatpush2.msra.mxu0 0.0
    %762 = vmatprep.subr.mxu0 0.0
    %763 = vmatpush2.msra.mxu0 0.0
    %764 = vmatprep.subr.mxu0 0.0
    %765 = vmatpush2.msra.mxu0 0.0
    %766 = vmatprep.subr.mxu0 0.0
    %767 = vmatpush2.msra.mxu0 0.0
    %768 = vmatprep.subr.mxu0 0.0
    %769 = vmatpush2.msra.mxu0 0.0
    %770 = vmatprep.subr.mxu0 0.0
    %771 = vmatpush2.msra.mxu0 0.0
    %772 = vmatprep.mubr.f32.mxu0 0.0
    %773 = vmatmul.mubr.f32.gmra.mxu0 %v635
    %v774 = vpop.f32.mrf.mxu0
    %v775 = vadd.f32 0.0, %v774
    %v776 = vpop.f32.mrf.mxu0
    %v777 = vadd.f32 0.0, %v776
    %778 = vdwg.mxu0
    %779 = vmatprep.subr.mxu0 %v707
    %780 = vmatpush1.msra.mxu0 %v706
    %781 = vmatprep.subr.mxu0 %v703
    %782 = vmatpush1.msra.mxu0 %v702
    %783 = vmatprep.subr.mxu0 %v699
    %784 = vmatpush1.msra.mxu0 %v698
    %785 = vmatprep.subr.mxu0 %v695
    %786 = vmatpush1.msra.mxu0 %v694
    %787 = vmatprep.subr.mxu0 %v691
    %788 = vmatpush1.msra.mxu0 %v690
    %789 = vmatprep.subr.mxu0 %v687
    %790 = vmatpush1.msra.mxu0 %v686
    %791 = vmatprep.subr.mxu0 %v683
    %792 = vmatpush1.msra.mxu0 %v682
    %793 = vmatprep.subr.mxu0 %v679
    %794 = vmatpush1.msra.mxu0 %v678
    %795 = vmatprep.subr.mxu0 %v675
    %796 = vmatpush1.msra.mxu0 %v674
    %797 = vmatprep.subr.mxu0 %v671
    %798 = vmatpush1.msra.mxu0 %v670
    %799 = vmatprep.subr.mxu0 %v667
    %800 = vmatpush1.msra.mxu0 %v666
    %801 = vmatprep.subr.mxu0 %v663
    %802 = vmatpush1.msra.mxu0 %v662
    %803 = vmatprep.subr.mxu0 %v659
    %804 = vmatpush1.msra.mxu0 %v658
    %805 = vmatprep.subr.mxu0 %v655
    %806 = vmatpush1.msra.mxu0 %v654
    %807 = vmatprep.subr.mxu0 %v651
    %808 = vmatpush1.msra.mxu0 %v650
    %809 = vmatprep.subr.mxu0 %v647
    %810 = vmatpush1.msra.mxu0 %v646
    %811 = vmatprep.subr.mxu0 0.0
    %812 = vmatpush2.msra.mxu0 0.0
    %813 = vmatprep.subr.mxu0 0.0
    %814 = vmatpush2.msra.mxu0 0.0
    %815 = vmatprep.subr.mxu0 0.0
    %816 = vmatpush2.msra.mxu0 0.0
    %817 = vmatprep.subr.mxu0 0.0
    %818 = vmatpush2.msra.mxu0 0.0
    %819 = vmatprep.subr.mxu0 0.0
    %820 = vmatpush2.msra.mxu0 0.0
    %821 = vmatprep.subr.mxu0 0.0
    %822 = vmatpush2.msra.mxu0 0.0
    %823 = vmatprep.subr.mxu0 0.0
    %824 = vmatpush2.msra.mxu0 0.0
    %825 = vmatprep.subr.mxu0 0.0
    %826 = vmatpush2.msra.mxu0 0.0
    %827 = vmatprep.subr.mxu0 0.0
    %828 = vmatpush2.msra.mxu0 0.0
    %829 = vmatprep.subr.mxu0 0.0
    %830 = vmatpush2.msra.mxu0 0.0
    %831 = vmatprep.subr.mxu0 0.0
    %832 = vmatpush2.msra.mxu0 0.0
    %833 = vmatprep.subr.mxu0 0.0
    %834 = vmatpush2.msra.mxu0 0.0
    %835 = vmatprep.subr.mxu0 0.0
    %836 = vmatpush2.msra.mxu0 0.0
    %837 = vmatprep.subr.mxu0 0.0
    %838 = vmatpush2.msra.mxu0 0.0
    %839 = vmatprep.subr.mxu0 0.0
    %840 = vmatpush2.msra.mxu0 0.0
    %841 = vmatprep.subr.mxu0 0.0
    %842 = vmatpush2.msra.mxu0 0.0
    %843 = vmatprep.mubr.f32.mxu0 0.0
    %844 = vmatmul.mubr.f32.gmra.mxu0 %v635
    %v845 = vpop.f32.mrf.mxu0
    %v846 = vadd.f32 0.0, %v845
    %v847 = vpop.f32.mrf.mxu0
    %v848 = vadd.f32 0.0, %v847
    %849 = vdwg.mxu0
    %v850 = vadd.f32 %v640, %v775
    %v851 = vadd.f32 %v641, %v777
    %v852 = vadd.f32 %v642, %v846
    %v853 = vadd.f32 %v643, %v848
    %v854 = vxor.u32 %v850, 2147483648
    %v855 = vmul.f32 %v854, 1.442695
    %v856 = vpow.pop %v855
    %v857 = vadd.f32 %v856, 1.0
    %v858 = vrcp.pop %v857
    %v859 = vmul.f32 1.0, %v858
    %v860 = vxor.u32 %v851, 2147483648
    %v861 = vmul.f32 %v860, 1.442695
    %v862 = vpow.pop %v861
    %v863 = vadd.f32 %v862, 1.0
    %v864 = vrcp.pop %v863
    %v865 = vmul.f32 1.0, %v864
    %v866 = vtanh.pop %v852
    %v867 = vxor.u32 %v853, 2147483648
    %v868 = vmul.f32 %v867, 1.442695
    %v869 = vpow.pop %v868
    %v870 = vadd.f32 %v869, 1.0
    %v871 = vrcp.pop %v870
    %v872 = vmul.f32 1.0, %v871
    %v873 = vmul.f32 %v865, %v636
    %v874 = vmul.f32 %v859, %v866
    %v875 = vadd.f32 %v873, %v874
    %v876 = vtanh.pop %v875
    %v877 = vmul.f32 %v872, %v876
    %878 = vst [vmem:[#allocation3] sm:$0xff] %v875
    %879 = vst [vmem:[#allocation2] sm:$0xff] %v877
    %s880 = scalar_lea.vmem %s4, 8
    %881 = vst [vmem:[%s880] sm:$0xff] %v877
    %v882 = vld [vmem:[#allocation2] sm:$0xff]
    %v883 = vld [vmem:[#allocation3] sm:$0xff]
    %s884 = smul.u32 2, 4
    %s885 = smul.addr %s884, 8
    %s886 = scalar_lea.vmem [#allocation4], %s885
    %v887 = vld [vmem:[%s886] sm:$0xff]
    %v888 = vld [vmem:[%s886 + $0x8] sm:$0xff]
    %v889 = vld [vmem:[%s886 + $0x10] sm:$0xff]
    %v890 = vld [vmem:[%s886 + $0x18] sm:$0xff]
    %v891 = vld [vmem:[#allocation5] sm:$0xff]
    %v892 = vld [vmem:[#allocation5 + $0x8] sm:$0xff]
    %v893 = vld [vmem:[#allocation5 + $0x10] sm:$0xff]
    %v894 = vld [vmem:[#allocation5 + $0x18] sm:$0xff]
    %v895 = vld [vmem:[#allocation5 + $0x20] sm:$0xff]
    %v896 = vld [vmem:[#allocation5 + $0x28] sm:$0xff]
    %v897 = vld [vmem:[#allocation5 + $0x30] sm:$0xff]
    %v898 = vld [vmem:[#allocation5 + $0x38] sm:$0xff]
    %v899 = vld [vmem:[#allocation5 + $0x40] sm:$0xff]
    %v900 = vld [vmem:[#allocation5 + $0x48] sm:$0xff]
    %v901 = vld [vmem:[#allocation5 + $0x50] sm:$0xff]
    %v902 = vld [vmem:[#allocation5 + $0x58] sm:$0xff]
    %v903 = vld [vmem:[#allocation5 + $0x60] sm:$0xff]
    %v904 = vld [vmem:[#allocation5 + $0x68] sm:$0xff]
    %v905 = vld [vmem:[#allocation5 + $0x70] sm:$0xff]
    %v906 = vld [vmem:[#allocation5 + $0x78] sm:$0xff]
    %v907 = vld [vmem:[#allocation5 + $0x80] sm:$0xff]
    %v908 = vld [vmem:[#allocation5 + $0x88] sm:$0xff]
    %v909 = vld [vmem:[#allocation5 + $0x90] sm:$0xff]
    %v910 = vld [vmem:[#allocation5 + $0x98] sm:$0xff]
    %v911 = vld [vmem:[#allocation5 + $0xa0] sm:$0xff]
    %v912 = vld [vmem:[#allocation5 + $0xa8] sm:$0xff]
    %v913 = vld [vmem:[#allocation5 + $0xb0] sm:$0xff]
    %v914 = vld [vmem:[#allocation5 + $0xb8] sm:$0xff]
    %v915 = vld [vmem:[#allocation5 + $0xc0] sm:$0xff]
    %v916 = vld [vmem:[#allocation5 + $0xc8] sm:$0xff]
    %v917 = vld [vmem:[#allocation5 + $0xd0] sm:$0xff]
    %v918 = vld [vmem:[#allocation5 + $0xd8] sm:$0xff]
    %v919 = vld [vmem:[#allocation5 + $0xe0] sm:$0xff]
    %v920 = vld [vmem:[#allocation5 + $0xe8] sm:$0xff]
    %v921 = vld [vmem:[#allocation5 + $0xf0] sm:$0xff]
    %v922 = vld [vmem:[#allocation5 + $0xf8] sm:$0xff]
    %v923 = vld [vmem:[#allocation5 + $0x100] sm:$0xff]
    %v924 = vld [vmem:[#allocation5 + $0x108] sm:$0xff]
    %v925 = vld [vmem:[#allocation5 + $0x110] sm:$0xff]
    %v926 = vld [vmem:[#allocation5 + $0x118] sm:$0xff]
    %v927 = vld [vmem:[#allocation5 + $0x120] sm:$0xff]
    %v928 = vld [vmem:[#allocation5 + $0x128] sm:$0xff]
    %v929 = vld [vmem:[#allocation5 + $0x130] sm:$0xff]
    %v930 = vld [vmem:[#allocation5 + $0x138] sm:$0xff]
    %v931 = vld [vmem:[#allocation5 + $0x140] sm:$0xff]
    %v932 = vld [vmem:[#allocation5 + $0x148] sm:$0xff]
    %v933 = vld [vmem:[#allocation5 + $0x150] sm:$0xff]
    %v934 = vld [vmem:[#allocation5 + $0x158] sm:$0xff]
    %v935 = vld [vmem:[#allocation5 + $0x160] sm:$0xff]
    %v936 = vld [vmem:[#allocation5 + $0x168] sm:$0xff]
    %v937 = vld [vmem:[#allocation5 + $0x170] sm:$0xff]
    %v938 = vld [vmem:[#allocation5 + $0x178] sm:$0xff]
    %v939 = vld [vmem:[#allocation5 + $0x180] sm:$0xff]
    %v940 = vld [vmem:[#allocation5 + $0x188] sm:$0xff]
    %v941 = vld [vmem:[#allocation5 + $0x190] sm:$0xff]
    %v942 = vld [vmem:[#allocation5 + $0x198] sm:$0xff]
    %v943 = vld [vmem:[#allocation5 + $0x1a0] sm:$0xff]
    %v944 = vld [vmem:[#allocation5 + $0x1a8] sm:$0xff]
    %v945 = vld [vmem:[#allocation5 + $0x1b0] sm:$0xff]
    %v946 = vld [vmem:[#allocation5 + $0x1b8] sm:$0xff]
    %v947 = vld [vmem:[#allocation5 + $0x1c0] sm:$0xff]
    %v948 = vld [vmem:[#allocation5 + $0x1c8] sm:$0xff]
    %v949 = vld [vmem:[#allocation5 + $0x1d0] sm:$0xff]
    %v950 = vld [vmem:[#allocation5 + $0x1d8] sm:$0xff]
    %v951 = vld [vmem:[#allocation5 + $0x1e0] sm:$0xff]
    %v952 = vld [vmem:[#allocation5 + $0x1e8] sm:$0xff]
    %v953 = vld [vmem:[#allocation5 + $0x1f0] sm:$0xff]
    %v954 = vld [vmem:[#allocation5 + $0x1f8] sm:$0xff]
    %955 = vmatprep.subr.mxu0 %v952
    %956 = vmatpush1.msra.mxu0 %v951
    %957 = vmatprep.subr.mxu0 %v948
    %958 = vmatpush1.msra.mxu0 %v947
    %959 = vmatprep.subr.mxu0 %v944
    %960 = vmatpush1.msra.mxu0 %v943
    %961 = vmatprep.subr.mxu0 %v940
    %962 = vmatpush1.msra.mxu0 %v939
    %963 = vmatprep.subr.mxu0 %v936
    %964 = vmatpush1.msra.mxu0 %v935
    %965 = vmatprep.subr.mxu0 %v932
    %966 = vmatpush1.msra.mxu0 %v931
    %967 = vmatprep.subr.mxu0 %v928
    %968 = vmatpush1.msra.mxu0 %v927
    %969 = vmatprep.subr.mxu0 %v924
    %970 = vmatpush1.msra.mxu0 %v923
    %971 = vmatprep.subr.mxu0 %v920
    %972 = vmatpush1.msra.mxu0 %v919
    %973 = vmatprep.subr.mxu0 %v916
    %974 = vmatpush1.msra.mxu0 %v915
    %975 = vmatprep.subr.mxu0 %v912
    %976 = vmatpush1.msra.mxu0 %v911
    %977 = vmatprep.subr.mxu0 %v908
    %978 = vmatpush1.msra.mxu0 %v907
    %979 = vmatprep.subr.mxu0 %v904
    %980 = vmatpush1.msra.mxu0 %v903
    %981 = vmatprep.subr.mxu0 %v900
    %982 = vmatpush1.msra.mxu0 %v899
    %983 = vmatprep.subr.mxu0 %v896
    %984 = vmatpush1.msra.mxu0 %v895
    %985 = vmatprep.subr.mxu0 %v892
    %986 = vmatpush1.msra.mxu0 %v891
    %987 = vmatprep.subr.mxu0 0.0
    %988 = vmatpush2.msra.mxu0 0.0
    %989 = vmatprep.subr.mxu0 0.0
    %990 = vmatpush2.msra.mxu0 0.0
    %991 = vmatprep.subr.mxu0 0.0
    %992 = vmatpush2.msra.mxu0 0.0
    %993 = vmatprep.subr.mxu0 0.0
    %994 = vmatpush2.msra.mxu0 0.0
    %995 = vmatprep.subr.mxu0 0.0
    %996 = vmatpush2.msra.mxu0 0.0
    %997 = vmatprep.subr.mxu0 0.0
    %998 = vmatpush2.msra.mxu0 0.0
    %999 = vmatprep.subr.mxu0 0.0
    %1000 = vmatpush2.msra.mxu0 0.0
    %1001 = vmatprep.subr.mxu0 0.0
    %1002 = vmatpush2.msra.mxu0 0.0
    %1003 = vmatprep.subr.mxu0 0.0
    %1004 = vmatpush2.msra.mxu0 0.0
    %1005 = vmatprep.subr.mxu0 0.0
    %1006 = vmatpush2.msra.mxu0 0.0
    %1007 = vmatprep.subr.mxu0 0.0
    %1008 = vmatpush2.msra.mxu0 0.0
    %1009 = vmatprep.subr.mxu0 0.0
    %1010 = vmatpush2.msra.mxu0 0.0
    %1011 = vmatprep.subr.mxu0 0.0
    %1012 = vmatpush2.msra.mxu0 0.0
    %1013 = vmatprep.subr.mxu0 0.0
    %1014 = vmatpush2.msra.mxu0 0.0
    %1015 = vmatprep.subr.mxu0 0.0
    %1016 = vmatpush2.msra.mxu0 0.0
    %1017 = vmatprep.subr.mxu0 0.0
    %1018 = vmatpush2.msra.mxu0 0.0
    %1019 = vmatprep.mubr.f32.mxu0 0.0
    %1020 = vmatmul.mubr.f32.gmra.mxu0 %v882
    %v1021 = vpop.f32.mrf.mxu0
    %v1022 = vadd.f32 0.0, %v1021
    %v1023 = vpop.f32.mrf.mxu0
    %v1024 = vadd.f32 0.0, %v1023
    %1025 = vdwg.mxu0
    %1026 = vmatprep.subr.mxu0 %v954
    %1027 = vmatpush1.msra.mxu0 %v953
    %1028 = vmatprep.subr.mxu0 %v950
    %1029 = vmatpush1.msra.mxu0 %v949
    %1030 = vmatprep.subr.mxu0 %v946
    %1031 = vmatpush1.msra.mxu0 %v945
    %1032 = vmatprep.subr.mxu0 %v942
    %1033 = vmatpush1.msra.mxu0 %v941
    %1034 = vmatprep.subr.mxu0 %v938
    %1035 = vmatpush1.msra.mxu0 %v937
    %1036 = vmatprep.subr.mxu0 %v934
    %1037 = vmatpush1.msra.mxu0 %v933
    %1038 = vmatprep.subr.mxu0 %v930
    %1039 = vmatpush1.msra.mxu0 %v929
    %1040 = vmatprep.subr.mxu0 %v926
    %1041 = vmatpush1.msra.mxu0 %v925
    %1042 = vmatprep.subr.mxu0 %v922
    %1043 = vmatpush1.msra.mxu0 %v921
    %1044 = vmatprep.subr.mxu0 %v918
    %1045 = vmatpush1.msra.mxu0 %v917
    %1046 = vmatprep.subr.mxu0 %v914
    %1047 = vmatpush1.msra.mxu0 %v913
    %1048 = vmatprep.subr.mxu0 %v910
    %1049 = vmatpush1.msra.mxu0 %v909
    %1050 = vmatprep.subr.mxu0 %v906
    %1051 = vmatpush1.msra.mxu0 %v905
    %1052 = vmatprep.subr.mxu0 %v902
    %1053 = vmatpush1.msra.mxu0 %v901
    %1054 = vmatprep.subr.mxu0 %v898
    %1055 = vmatpush1.msra.mxu0 %v897
    %1056 = vmatprep.subr.mxu0 %v894
    %1057 = vmatpush1.msra.mxu0 %v893
    %1058 = vmatprep.subr.mxu0 0.0
    %1059 = vmatpush2.msra.mxu0 0.0
    %1060 = vmatprep.subr.mxu0 0.0
    %1061 = vmatpush2.msra.mxu0 0.0
    %1062 = vmatprep.subr.mxu0 0.0
    %1063 = vmatpush2.msra.mxu0 0.0
    %1064 = vmatprep.subr.mxu0 0.0
    %1065 = vmatpush2.msra.mxu0 0.0
    %1066 = vmatprep.subr.mxu0 0.0
    %1067 = vmatpush2.msra.mxu0 0.0
    %1068 = vmatprep.subr.mxu0 0.0
    %1069 = vmatpush2.msra.mxu0 0.0
    %1070 = vmatprep.subr.mxu0 0.0
    %1071 = vmatpush2.msra.mxu0 0.0
    %1072 = vmatprep.subr.mxu0 0.0
    %1073 = vmatpush2.msra.mxu0 0.0
    %1074 = vmatprep.subr.mxu0 0.0
    %1075 = vmatpush2.msra.mxu0 0.0
    %1076 = vmatprep.subr.mxu0 0.0
    %1077 = vmatpush2.msra.mxu0 0.0
    %1078 = vmatprep.subr.mxu0 0.0
    %1079 = vmatpush2.msra.mxu0 0.0
    %1080 = vmatprep.subr.mxu0 0.0
    %1081 = vmatpush2.msra.mxu0 0.0
    %1082 = vmatprep.subr.mxu0 0.0
    %1083 = vmatpush2.msra.mxu0 0.0
    %1084 = vmatprep.subr.mxu0 0.0
    %1085 = vmatpush2.msra.mxu0 0.0
    %1086 = vmatprep.subr.mxu0 0.0
    %1087 = vmatpush2.msra.mxu0 0.0
    %1088 = vmatprep.subr.mxu0 0.0
    %1089 = vmatpush2.msra.mxu0 0.0
    %1090 = vmatprep.mubr.f32.mxu0 0.0
    %1091 = vmatmul.mubr.f32.gmra.mxu0 %v882
    %v1092 = vpop.f32.mrf.mxu0
    %v1093 = vadd.f32 0.0, %v1092
    %v1094 = vpop.f32.mrf.mxu0
    %v1095 = vadd.f32 0.0, %v1094
    %1096 = vdwg.mxu0
    %v1097 = vadd.f32 %v887, %v1022
    %v1098 = vadd.f32 %v888, %v1024
    %v1099 = vadd.f32 %v889, %v1093
    %v1100 = vadd.f32 %v890, %v1095
    %v1101 = vxor.u32 %v1097, 2147483648
    %v1102 = vmul.f32 %v1101, 1.442695
    %v1103 = vpow.pop %v1102
    %v1104 = vadd.f32 %v1103, 1.0
    %v1105 = vrcp.pop %v1104
    %v1106 = vmul.f32 1.0, %v1105
    %v1107 = vxor.u32 %v1098, 2147483648
    %v1108 = vmul.f32 %v1107, 1.442695
    %v1109 = vpow.pop %v1108
    %v1110 = vadd.f32 %v1109, 1.0
    %v1111 = vrcp.pop %v1110
    %v1112 = vmul.f32 1.0, %v1111
    %v1113 = vtanh.pop %v1099
    %v1114 = vxor.u32 %v1100, 2147483648
    %v1115 = vmul.f32 %v1114, 1.442695
    %v1116 = vpow.pop %v1115
    %v1117 = vadd.f32 %v1116, 1.0
    %v1118 = vrcp.pop %v1117
    %v1119 = vmul.f32 1.0, %v1118
    %v1120 = vmul.f32 %v1112, %v883
    %v1121 = vmul.f32 %v1106, %v1113
    %v1122 = vadd.f32 %v1120, %v1121
    %v1123 = vtanh.pop %v1122
    %v1124 = vmul.f32 %v1119, %v1123
    %1125 = vst [vmem:[#allocation3] sm:$0xff] %v1122
    %1126 = vst [vmem:[#allocation2] sm:$0xff] %v1124
    %s1127 = scalar_lea.vmem %s4, 16
    %1128 = vst [vmem:[%s1127] sm:$0xff] %v1124
    %v1129 = vld [vmem:[#allocation2] sm:$0xff]
    %v1130 = vld [vmem:[#allocation3] sm:$0xff]
    %s1131 = smul.u32 3, 4
    %s1132 = smul.addr %s1131, 8
    %s1133 = scalar_lea.vmem [#allocation4], %s1132
    %v1134 = vld [vmem:[%s1133] sm:$0xff]
    %v1135 = vld [vmem:[%s1133 + $0x8] sm:$0xff]
    %v1136 = vld [vmem:[%s1133 + $0x10] sm:$0xff]
    %v1137 = vld [vmem:[%s1133 + $0x18] sm:$0xff]
    %v1138 = vld [vmem:[#allocation5] sm:$0xff]
    %v1139 = vld [vmem:[#allocation5 + $0x8] sm:$0xff]
    %v1140 = vld [vmem:[#allocation5 + $0x10] sm:$0xff]
    %v1141 = vld [vmem:[#allocation5 + $0x18] sm:$0xff]
    %v1142 = vld [vmem:[#allocation5 + $0x20] sm:$0xff]
    %v1143 = vld [vmem:[#allocation5 + $0x28] sm:$0xff]
    %v1144 = vld [vmem:[#allocation5 + $0x30] sm:$0xff]
    %v1145 = vld [vmem:[#allocation5 + $0x38] sm:$0xff]
    %v1146 = vld [vmem:[#allocation5 + $0x40] sm:$0xff]
    %v1147 = vld [vmem:[#allocation5 + $0x48] sm:$0xff]
    %v1148 = vld [vmem:[#allocation5 + $0x50] sm:$0xff]
    %v1149 = vld [vmem:[#allocation5 + $0x58] sm:$0xff]
    %v1150 = vld [vmem:[#allocation5 + $0x60] sm:$0xff]
    %v1151 = vld [vmem:[#allocation5 + $0x68] sm:$0xff]
    %v1152 = vld [vmem:[#allocation5 + $0x70] sm:$0xff]
    %v1153 = vld [vmem:[#allocation5 + $0x78] sm:$0xff]
    %v1154 = vld [vmem:[#allocation5 + $0x80] sm:$0xff]
    %v1155 = vld [vmem:[#allocation5 + $0x88] sm:$0xff]
    %v1156 = vld [vmem:[#allocation5 + $0x90] sm:$0xff]
    %v1157 = vld [vmem:[#allocation5 + $0x98] sm:$0xff]
    %v1158 = vld [vmem:[#allocation5 + $0xa0] sm:$0xff]
    %v1159 = vld [vmem:[#allocation5 + $0xa8] sm:$0xff]
    %v1160 = vld [vmem:[#allocation5 + $0xb0] sm:$0xff]
    %v1161 = vld [vmem:[#allocation5 + $0xb8] sm:$0xff]
    %v1162 = vld [vmem:[#allocation5 + $0xc0] sm:$0xff]
    %v1163 = vld [vmem:[#allocation5 + $0xc8] sm:$0xff]
    %v1164 = vld [vmem:[#allocation5 + $0xd0] sm:$0xff]
    %v1165 = vld [vmem:[#allocation5 + $0xd8] sm:$0xff]
    %v1166 = vld [vmem:[#allocation5 + $0xe0] sm:$0xff]
    %v1167 = vld [vmem:[#allocation5 + $0xe8] sm:$0xff]
    %v1168 = vld [vmem:[#allocation5 + $0xf0] sm:$0xff]
    %v1169 = vld [vmem:[#allocation5 + $0xf8] sm:$0xff]
    %v1170 = vld [vmem:[#allocation5 + $0x100] sm:$0xff]
    %v1171 = vld [vmem:[#allocation5 + $0x108] sm:$0xff]
    %v1172 = vld [vmem:[#allocation5 + $0x110] sm:$0xff]
    %v1173 = vld [vmem:[#allocation5 + $0x118] sm:$0xff]
    %v1174 = vld [vmem:[#allocation5 + $0x120] sm:$0xff]
    %v1175 = vld [vmem:[#allocation5 + $0x128] sm:$0xff]
    %v1176 = vld [vmem:[#allocation5 + $0x130] sm:$0xff]
    %v1177 = vld [vmem:[#allocation5 + $0x138] sm:$0xff]
    %v1178 = vld [vmem:[#allocation5 + $0x140] sm:$0xff]
    %v1179 = vld [vmem:[#allocation5 + $0x148] sm:$0xff]
    %v1180 = vld [vmem:[#allocation5 + $0x150] sm:$0xff]
    %v1181 = vld [vmem:[#allocation5 + $0x158] sm:$0xff]
    %v1182 = vld [vmem:[#allocation5 + $0x160] sm:$0xff]
    %v1183 = vld [vmem:[#allocation5 + $0x168] sm:$0xff]
    %v1184 = vld [vmem:[#allocation5 + $0x170] sm:$0xff]
    %v1185 = vld [vmem:[#allocation5 + $0x178] sm:$0xff]
    %v1186 = vld [vmem:[#allocation5 + $0x180] sm:$0xff]
    %v1187 = vld [vmem:[#allocation5 + $0x188] sm:$0xff]
    %v1188 = vld [vmem:[#allocation5 + $0x190] sm:$0xff]
    %v1189 = vld [vmem:[#allocation5 + $0x198] sm:$0xff]
    %v1190 = vld [vmem:[#allocation5 + $0x1a0] sm:$0xff]
    %v1191 = vld [vmem:[#allocation5 + $0x1a8] sm:$0xff]
    %v1192 = vld [vmem:[#allocation5 + $0x1b0] sm:$0xff]
    %v1193 = vld [vmem:[#allocation5 + $0x1b8] sm:$0xff]
    %v1194 = vld [vmem:[#allocation5 + $0x1c0] sm:$0xff]
    %v1195 = vld [vmem:[#allocation5 + $0x1c8] sm:$0xff]
    %v1196 = vld [vmem:[#allocation5 + $0x1d0] sm:$0xff]
    %v1197 = vld [vmem:[#allocation5 + $0x1d8] sm:$0xff]
    %v1198 = vld [vmem:[#allocation5 + $0x1e0] sm:$0xff]
    %v1199 = vld [vmem:[#allocation5 + $0x1e8] sm:$0xff]
    %v1200 = vld [vmem:[#allocation5 + $0x1f0] sm:$0xff]
    %v1201 = vld [vmem:[#allocation5 + $0x1f8] sm:$0xff]
    %1202 = vmatprep.subr.mxu0 %v1199
    %1203 = vmatpush1.msra.mxu0 %v1198
    %1204 = vmatprep.subr.mxu0 %v1195
    %1205 = vmatpush1.msra.mxu0 %v1194
    %1206 = vmatprep.subr.mxu0 %v1191
    %1207 = vmatpush1.msra.mxu0 %v1190
    %1208 = vmatprep.subr.mxu0 %v1187
    %1209 = vmatpush1.msra.mxu0 %v1186
    %1210 = vmatprep.subr.mxu0 %v1183
    %1211 = vmatpush1.msra.mxu0 %v1182
    %1212 = vmatprep.subr.mxu0 %v1179
    %1213 = vmatpush1.msra.mxu0 %v1178
    %1214 = vmatprep.subr.mxu0 %v1175
    %1215 = vmatpush1.msra.mxu0 %v1174
    %1216 = vmatprep.subr.mxu0 %v1171
    %1217 = vmatpush1.msra.mxu0 %v1170
    %1218 = vmatprep.subr.mxu0 %v1167
    %1219 = vmatpush1.msra.mxu0 %v1166
    %1220 = vmatprep.subr.mxu0 %v1163
    %1221 = vmatpush1.msra.mxu0 %v1162
    %1222 = vmatprep.subr.mxu0 %v1159
    %1223 = vmatpush1.msra.mxu0 %v1158
    %1224 = vmatprep.subr.mxu0 %v1155
    %1225 = vmatpush1.msra.mxu0 %v1154
    %1226 = vmatprep.subr.mxu0 %v1151
    %1227 = vmatpush1.msra.mxu0 %v1150
    %1228 = vmatprep.subr.mxu0 %v1147
    %1229 = vmatpush1.msra.mxu0 %v1146
    %1230 = vmatprep.subr.mxu0 %v1143
    %1231 = vmatpush1.msra.mxu0 %v1142
    %1232 = vmatprep.subr.mxu0 %v1139
    %1233 = vmatpush1.msra.mxu0 %v1138
    %1234 = vmatprep.subr.mxu0 0.0
    %1235 = vmatpush2.msra.mxu0 0.0
    %1236 = vmatprep.subr.mxu0 0.0
    %1237 = vmatpush2.msra.mxu0 0.0
    %1238 = vmatprep.subr.mxu0 0.0
    %1239 = vmatpush2.msra.mxu0 0.0
    %1240 = vmatprep.subr.mxu0 0.0
    %1241 = vmatpush2.msra.mxu0 0.0
    %1242 = vmatprep.subr.mxu0 0.0
    %1243 = vmatpush2.msra.mxu0 0.0
    %1244 = vmatprep.subr.mxu0 0.0
    %1245 = vmatpush2.msra.mxu0 0.0
    %1246 = vmatprep.subr.mxu0 0.0
    %1247 = vmatpush2.msra.mxu0 0.0
    %1248 = vmatprep.subr.mxu0 0.0
    %1249 = vmatpush2.msra.mxu0 0.0
    %1250 = vmatprep.subr.mxu0 0.0
    %1251 = vmatpush2.msra.mxu0 0.0
    %1252 = vmatprep.subr.mxu0 0.0
    %1253 = vmatpush2.msra.mxu0 0.0
    %1254 = vmatprep.subr.mxu0 0.0
    %1255 = vmatpush2.msra.mxu0 0.0
    %1256 = vmatprep.subr.mxu0 0.0
    %1257 = vmatpush2.msra.mxu0 0.0
    %1258 = vmatprep.subr.mxu0 0.0
    %1259 = vmatpush2.msra.mxu0 0.0
    %1260 = vmatprep.subr.mxu0 0.0
    %1261 = vmatpush2.msra.mxu0 0.0
    %1262 = vmatprep.subr.mxu0 0.0
    %1263 = vmatpush2.msra.mxu0 0.0
    %1264 = vmatprep.subr.mxu0 0.0
    %1265 = vmatpush2.msra.mxu0 0.0
    %1266 = vmatprep.mubr.f32.mxu0 0.0
    %1267 = vmatmul.mubr.f32.gmra.mxu0 %v1129
    %v1268 = vpop.f32.mrf.mxu0
    %v1269 = vadd.f32 0.0, %v1268
    %v1270 = vpop.f32.mrf.mxu0
    %v1271 = vadd.f32 0.0, %v1270
    %1272 = vdwg.mxu0
    %1273 = vmatprep.subr.mxu0 %v1201
    %1274 = vmatpush1.msra.mxu0 %v1200
    %1275 = vmatprep.subr.mxu0 %v1197
    %1276 = vmatpush1.msra.mxu0 %v1196
    %1277 = vmatprep.subr.mxu0 %v1193
    %1278 = vmatpush1.msra.mxu0 %v1192
    %1279 = vmatprep.subr.mxu0 %v1189
    %1280 = vmatpush1.msra.mxu0 %v1188
    %1281 = vmatprep.subr.mxu0 %v1185
    %1282 = vmatpush1.msra.mxu0 %v1184
    %1283 = vmatprep.subr.mxu0 %v1181
    %1284 = vmatpush1.msra.mxu0 %v1180
    %1285 = vmatprep.subr.mxu0 %v1177
    %1286 = vmatpush1.msra.mxu0 %v1176
    %1287 = vmatprep.subr.mxu0 %v1173
    %1288 = vmatpush1.msra.mxu0 %v1172
    %1289 = vmatprep.subr.mxu0 %v1169
    %1290 = vmatpush1.msra.mxu0 %v1168
    %1291 = vmatprep.subr.mxu0 %v1165
    %1292 = vmatpush1.msra.mxu0 %v1164
    %1293 = vmatprep.subr.mxu0 %v1161
    %1294 = vmatpush1.msra.mxu0 %v1160
    %1295 = vmatprep.subr.mxu0 %v1157
    %1296 = vmatpush1.msra.mxu0 %v1156
    %1297 = vmatprep.subr.mxu0 %v1153
    %1298 = vmatpush1.msra.mxu0 %v1152
    %1299 = vmatprep.subr.mxu0 %v1149
    %1300 = vmatpush1.msra.mxu0 %v1148
    %1301 = vmatprep.subr.mxu0 %v1145
    %1302 = vmatpush1.msra.mxu0 %v1144
    %1303 = vmatprep.subr.mxu0 %v1141
    %1304 = vmatpush1.msra.mxu0 %v1140
    %1305 = vmatprep.subr.mxu0 0.0
    %1306 = vmatpush2.msra.mxu0 0.0
    %1307 = vmatprep.subr.mxu0 0.0
    %1308 = vmatpush2.msra.mxu0 0.0
    %1309 = vmatprep.subr.mxu0 0.0
    %1310 = vmatpush2.msra.mxu0 0.0
    %1311 = vmatprep.subr.mxu0 0.0
    %1312 = vmatpush2.msra.mxu0 0.0
    %1313 = vmatprep.subr.mxu0 0.0
    %1314 = vmatpush2.msra.mxu0 0.0
    %1315 = vmatprep.subr.mxu0 0.0
    %1316 = vmatpush2.msra.mxu0 0.0
    %1317 = vmatprep.subr.mxu0 0.0
    %1318 = vmatpush2.msra.mxu0 0.0
    %1319 = vmatprep.subr.mxu0 0.0
    %1320 = vmatpush2.msra.mxu0 0.0
    %1321 = vmatprep.subr.mxu0 0.0
    %1322 = vmatpush2.msra.mxu0 0.0
    %1323 = vmatprep.subr.mxu0 0.0
    %1324 = vmatpush2.msra.mxu0 0.0
    %1325 = vmatprep.subr.mxu0 0.0
    %1326 = vmatpush2.msra.mxu0 0.0
    %1327 = vmatprep.subr.mxu0 0.0
    %1328 = vmatpush2.msra.mxu0 0.0
    %1329 = vmatprep.subr.mxu0 0.0
    %1330 = vmatpush2.msra.mxu0 0.0
    %1331 = vmatprep.subr.mxu0 0.0
    %1332 = vmatpush2.msra.mxu0 0.0
    %1333 = vmatprep.subr.mxu0 0.0
    %1334 = vmatpush2.msra.mxu0 0.0
    %1335 = vmatprep.subr.mxu0 0.0
    %1336 = vmatpush2.msra.mxu0 0.0
    %1337 = vmatprep.mubr.f32.mxu0 0.0
    %1338 = vmatmul.mubr.f32.gmra.mxu0 %v1129
    %v1339 = vpop.f32.mrf.mxu0
    %v1340 = vadd.f32 0.0, %v1339
    %v1341 = vpop.f32.mrf.mxu0
    %v1342 = vadd.f32 0.0, %v1341
    %1343 = vdwg.mxu0
    %v1344 = vadd.f32 %v1134, %v1269
    %v1345 = vadd.f32 %v1135, %v1271
    %v1346 = vadd.f32 %v1136, %v1340
    %v1347 = vadd.f32 %v1137, %v1342
    %v1348 = vxor.u32 %v1344, 2147483648
    %v1349 = vmul.f32 %v1348, 1.442695
    %v1350 = vpow.pop %v1349
    %v1351 = vadd.f32 %v1350, 1.0
    %v1352 = vrcp.pop %v1351
    %v1353 = vmul.f32 1.0, %v1352
    %v1354 = vxor.u32 %v1345, 2147483648
    %v1355 = vmul.f32 %v1354, 1.442695
    %v1356 = vpow.pop %v1355
    %v1357 = vadd.f32 %v1356, 1.0
    %v1358 = vrcp.pop %v1357
    %v1359 = vmul.f32 1.0, %v1358
    %v1360 = vtanh.pop %v1346
    %v1361 = vxor.u32 %v1347, 2147483648
    %v1362 = vmul.f32 %v1361, 1.442695
    %v1363 = vpow.pop %v1362
    %v1364 = vadd.f32 %v1363, 1.0
    %v1365 = vrcp.pop %v1364
    %v1366 = vmul.f32 1.0, %v1365
    %v1367 = vmul.f32 %v1359, %v1130
    %v1368 = vmul.f32 %v1353, %v1360
    %v1369 = vadd.f32 %v1367, %v1368
    %v1370 = vtanh.pop %v1369
    %v1371 = vmul.f32 %v1366, %v1370
    %1372 = vst [vmem:[#allocation3] sm:$0xff] %v1369
    %1373 = vst [vmem:[#allocation2] sm:$0xff] %v1371
    %s1374 = scalar_lea.vmem %s4, 24
    %1375 = vst [vmem:[%s1374] sm:$0xff] %v1371
    %v1376 = vld [vmem:[#allocation2] sm:$0xff]
    %v1377 = vld [vmem:[#allocation3] sm:$0xff]
    %s1378 = smul.u32 4, 4
    %s1379 = smul.addr %s1378, 8
    %s1380 = scalar_lea.vmem [#allocation4], %s1379
    %v1381 = vld [vmem:[%s1380] sm:$0xff]
    %v1382 = vld [vmem:[%s1380 + $0x8] sm:$0xff]
    %v1383 = vld [vmem:[%s1380 + $0x10] sm:$0xff]
    %v1384 = vld [vmem:[%s1380 + $0x18] sm:$0xff]
    %v1385 = vld [vmem:[#allocation5] sm:$0xff]
    %v1386 = vld [vmem:[#allocation5 + $0x8] sm:$0xff]
    %v1387 = vld [vmem:[#allocation5 + $0x10] sm:$0xff]
    %v1388 = vld [vmem:[#allocation5 + $0x18] sm:$0xff]
    %v1389 = vld [vmem:[#allocation5 + $0x20] sm:$0xff]
    %v1390 = vld [vmem:[#allocation5 + $0x28] sm:$0xff]
    %v1391 = vld [vmem:[#allocation5 + $0x30] sm:$0xff]
    %v1392 = vld [vmem:[#allocation5 + $0x38] sm:$0xff]
    %v1393 = vld [vmem:[#allocation5 + $0x40] sm:$0xff]
    %v1394 = vld [vmem:[#allocation5 + $0x48] sm:$0xff]
    %v1395 = vld [vmem:[#allocation5 + $0x50] sm:$0xff]
    %v1396 = vld [vmem:[#allocation5 + $0x58] sm:$0xff]
    %v1397 = vld [vmem:[#allocation5 + $0x60] sm:$0xff]
    %v1398 = vld [vmem:[#allocation5 + $0x68] sm:$0xff]
    %v1399 = vld [vmem:[#allocation5 + $0x70] sm:$0xff]
    %v1400 = vld [vmem:[#allocation5 + $0x78] sm:$0xff]
    %v1401 = vld [vmem:[#allocation5 + $0x80] sm:$0xff]
    %v1402 = vld [vmem:[#allocation5 + $0x88] sm:$0xff]
    %v1403 = vld [vmem:[#allocation5 + $0x90] sm:$0xff]
    %v1404 = vld [vmem:[#allocation5 + $0x98] sm:$0xff]
    %v1405 = vld [vmem:[#allocation5 + $0xa0] sm:$0xff]
    %v1406 = vld [vmem:[#allocation5 + $0xa8] sm:$0xff]
    %v1407 = vld [vmem:[#allocation5 + $0xb0] sm:$0xff]
    %v1408 = vld [vmem:[#allocation5 + $0xb8] sm:$0xff]
    %v1409 = vld [vmem:[#allocation5 + $0xc0] sm:$0xff]
    %v1410 = vld [vmem:[#allocation5 + $0xc8] sm:$0xff]
    %v1411 = vld [vmem:[#allocation5 + $0xd0] sm:$0xff]
    %v1412 = vld [vmem:[#allocation5 + $0xd8] sm:$0xff]
    %v1413 = vld [vmem:[#allocation5 + $0xe0] sm:$0xff]
    %v1414 = vld [vmem:[#allocation5 + $0xe8] sm:$0xff]
    %v1415 = vld [vmem:[#allocation5 + $0xf0] sm:$0xff]
    %v1416 = vld [vmem:[#allocation5 + $0xf8] sm:$0xff]
    %v1417 = vld [vmem:[#allocation5 + $0x100] sm:$0xff]
    %v1418 = vld [vmem:[#allocation5 + $0x108] sm:$0xff]
    %v1419 = vld [vmem:[#allocation5 + $0x110] sm:$0xff]
    %v1420 = vld [vmem:[#allocation5 + $0x118] sm:$0xff]
    %v1421 = vld [vmem:[#allocation5 + $0x120] sm:$0xff]
    %v1422 = vld [vmem:[#allocation5 + $0x128] sm:$0xff]
    %v1423 = vld [vmem:[#allocation5 + $0x130] sm:$0xff]
    %v1424 = vld [vmem:[#allocation5 + $0x138] sm:$0xff]
    %v1425 = vld [vmem:[#allocation5 + $0x140] sm:$0xff]
    %v1426 = vld [vmem:[#allocation5 + $0x148] sm:$0xff]
    %v1427 = vld [vmem:[#allocation5 + $0x150] sm:$0xff]
    %v1428 = vld [vmem:[#allocation5 + $0x158] sm:$0xff]
    %v1429 = vld [vmem:[#allocation5 + $0x160] sm:$0xff]
    %v1430 = vld [vmem:[#allocation5 + $0x168] sm:$0xff]
    %v1431 = vld [vmem:[#allocation5 + $0x170] sm:$0xff]
    %v1432 = vld [vmem:[#allocation5 + $0x178] sm:$0xff]
    %v1433 = vld [vmem:[#allocation5 + $0x180] sm:$0xff]
    %v1434 = vld [vmem:[#allocation5 + $0x188] sm:$0xff]
    %v1435 = vld [vmem:[#allocation5 + $0x190] sm:$0xff]
    %v1436 = vld [vmem:[#allocation5 + $0x198] sm:$0xff]
    %v1437 = vld [vmem:[#allocation5 + $0x1a0] sm:$0xff]
    %v1438 = vld [vmem:[#allocation5 + $0x1a8] sm:$0xff]
    %v1439 = vld [vmem:[#allocation5 + $0x1b0] sm:$0xff]
    %v1440 = vld [vmem:[#allocation5 + $0x1b8] sm:$0xff]
    %v1441 = vld [vmem:[#allocation5 + $0x1c0] sm:$0xff]
    %v1442 = vld [vmem:[#allocation5 + $0x1c8] sm:$0xff]
    %v1443 = vld [vmem:[#allocation5 + $0x1d0] sm:$0xff]
    %v1444 = vld [vmem:[#allocation5 + $0x1d8] sm:$0xff]
    %v1445 = vld [vmem:[#allocation5 + $0x1e0] sm:$0xff]
    %v1446 = vld [vmem:[#allocation5 + $0x1e8] sm:$0xff]
    %v1447 = vld [vmem:[#allocation5 + $0x1f0] sm:$0xff]
    %v1448 = vld [vmem:[#allocation5 + $0x1f8] sm:$0xff]
    %1449 = vmatprep.subr.mxu0 %v1446
    %1450 = vmatpush1.msra.mxu0 %v1445
    %1451 = vmatprep.subr.mxu0 %v1442
    %1452 = vmatpush1.msra.mxu0 %v1441
    %1453 = vmatprep.subr.mxu0 %v1438
    %1454 = vmatpush1.msra.mxu0 %v1437
    %1455 = vmatprep.subr.mxu0 %v1434
    %1456 = vmatpush1.msra.mxu0 %v1433
    %1457 = vmatprep.subr.mxu0 %v1430
    %1458 = vmatpush1.msra.mxu0 %v1429
    %1459 = vmatprep.subr.mxu0 %v1426
    %1460 = vmatpush1.msra.mxu0 %v1425
    %1461 = vmatprep.subr.mxu0 %v1422
    %1462 = vmatpush1.msra.mxu0 %v1421
    %1463 = vmatprep.subr.mxu0 %v1418
    %1464 = vmatpush1.msra.mxu0 %v1417
    %1465 = vmatprep.subr.mxu0 %v1414
    %1466 = vmatpush1.msra.mxu0 %v1413
    %1467 = vmatprep.subr.mxu0 %v1410
    %1468 = vmatpush1.msra.mxu0 %v1409
    %1469 = vmatprep.subr.mxu0 %v1406
    %1470 = vmatpush1.msra.mxu0 %v1405
    %1471 = vmatprep.subr.mxu0 %v1402
    %1472 = vmatpush1.msra.mxu0 %v1401
    %1473 = vmatprep.subr.mxu0 %v1398
    %1474 = vmatpush1.msra.mxu0 %v1397
    %1475 = vmatprep.subr.mxu0 %v1394
    %1476 = vmatpush1.msra.mxu0 %v1393
    %1477 = vmatprep.subr.mxu0 %v1390
    %1478 = vmatpush1.msra.mxu0 %v1389
    %1479 = vmatprep.subr.mxu0 %v1386
    %1480 = vmatpush1.msra.mxu0 %v1385
    %1481 = vmatprep.subr.mxu0 0.0
    %1482 = vmatpush2.msra.mxu0 0.0
    %1483 = vmatprep.subr.mxu0 0.0
    %1484 = vmatpush2.msra.mxu0 0.0
    %1485 = vmatprep.subr.mxu0 0.0
    %1486 = vmatpush2.msra.mxu0 0.0
    %1487 = vmatprep.subr.mxu0 0.0
    %1488 = vmatpush2.msra.mxu0 0.0
    %1489 = vmatprep.subr.mxu0 0.0
    %1490 = vmatpush2.msra.mxu0 0.0
    %1491 = vmatprep.subr.mxu0 0.0
    %1492 = vmatpush2.msra.mxu0 0.0
    %1493 = vmatprep.subr.mxu0 0.0
    %1494 = vmatpush2.msra.mxu0 0.0
    %1495 = vmatprep.subr.mxu0 0.0
    %1496 = vmatpush2.msra.mxu0 0.0
    %1497 = vmatprep.subr.mxu0 0.0
    %1498 = vmatpush2.msra.mxu0 0.0
    %1499 = vmatprep.subr.mxu0 0.0
    %1500 = vmatpush2.msra.mxu0 0.0
    %1501 = vmatprep.subr.mxu0 0.0
    %1502 = vmatpush2.msra.mxu0 0.0
    %1503 = vmatprep.subr.mxu0 0.0
    %1504 = vmatpush2.msra.mxu0 0.0
    %1505 = vmatprep.subr.mxu0 0.0
    %1506 = vmatpush2.msra.mxu0 0.0
    %1507 = vmatprep.subr.mxu0 0.0
    %1508 = vmatpush2.msra.mxu0 0.0
    %1509 = vmatprep.subr.mxu0 0.0
    %1510 = vmatpush2.msra.mxu0 0.0
    %1511 = vmatprep.subr.mxu0 0.0
    %1512 = vmatpush2.msra.mxu0 0.0
    %1513 = vmatprep.mubr.f32.mxu0 0.0
    %1514 = vmatmul.mubr.f32.gmra.mxu0 %v1376
    %v1515 = vpop.f32.mrf.mxu0
    %v1516 = vadd.f32 0.0, %v1515
    %v1517 = vpop.f32.mrf.mxu0
    %v1518 = vadd.f32 0.0, %v1517
    %1519 = vdwg.mxu0
    %1520 = vmatprep.subr.mxu0 %v1448
    %1521 = vmatpush1.msra.mxu0 %v1447
    %1522 = vmatprep.subr.mxu0 %v1444
    %1523 = vmatpush1.msra.mxu0 %v1443
    %1524 = vmatprep.subr.mxu0 %v1440
    %1525 = vmatpush1.msra.mxu0 %v1439
    %1526 = vmatprep.subr.mxu0 %v1436
    %1527 = vmatpush1.msra.mxu0 %v1435
    %1528 = vmatprep.subr.mxu0 %v1432
    %1529 = vmatpush1.msra.mxu0 %v1431
    %1530 = vmatprep.subr.mxu0 %v1428
    %1531 = vmatpush1.msra.mxu0 %v1427
    %1532 = vmatprep.subr.mxu0 %v1424
    %1533 = vmatpush1.msra.mxu0 %v1423
    %1534 = vmatprep.subr.mxu0 %v1420
    %1535 = vmatpush1.msra.mxu0 %v1419
    %1536 = vmatprep.subr.mxu0 %v1416
    %1537 = vmatpush1.msra.mxu0 %v1415
    %1538 = vmatprep.subr.mxu0 %v1412
    %1539 = vmatpush1.msra.mxu0 %v1411
    %1540 = vmatprep.subr.mxu0 %v1408
    %1541 = vmatpush1.msra.mxu0 %v1407
    %1542 = vmatprep.subr.mxu0 %v1404
    %1543 = vmatpush1.msra.mxu0 %v1403
    %1544 = vmatprep.subr.mxu0 %v1400
    %1545 = vmatpush1.msra.mxu0 %v1399
    %1546 = vmatprep.subr.mxu0 %v1396
    %1547 = vmatpush1.msra.mxu0 %v1395
    %1548 = vmatprep.subr.mxu0 %v1392
    %1549 = vmatpush1.msra.mxu0 %v1391
    %1550 = vmatprep.subr.mxu0 %v1388
    %1551 = vmatpush1.msra.mxu0 %v1387
    %1552 = vmatprep.subr.mxu0 0.0
    %1553 = vmatpush2.msra.mxu0 0.0
    %1554 = vmatprep.subr.mxu0 0.0
    %1555 = vmatpush2.msra.mxu0 0.0
    %1556 = vmatprep.subr.mxu0 0.0
    %1557 = vmatpush2.msra.mxu0 0.0
    %1558 = vmatprep.subr.mxu0 0.0
    %1559 = vmatpush2.msra.mxu0 0.0
    %1560 = vmatprep.subr.mxu0 0.0
    %1561 = vmatpush2.msra.mxu0 0.0
    %1562 = vmatprep.subr.mxu0 0.0
    %1563 = vmatpush2.msra.mxu0 0.0
    %1564 = vmatprep.subr.mxu0 0.0
    %1565 = vmatpush2.msra.mxu0 0.0
    %1566 = vmatprep.subr.mxu0 0.0
    %1567 = vmatpush2.msra.mxu0 0.0
    %1568 = vmatprep.subr.mxu0 0.0
    %1569 = vmatpush2.msra.mxu0 0.0
    %1570 = vmatprep.subr.mxu0 0.0
    %1571 = vmatpush2.msra.mxu0 0.0
    %1572 = vmatprep.subr.mxu0 0.0
    %1573 = vmatpush2.msra.mxu0 0.0
    %1574 = vmatprep.subr.mxu0 0.0
    %1575 = vmatpush2.msra.mxu0 0.0
    %1576 = vmatprep.subr.mxu0 0.0
    %1577 = vmatpush2.msra.mxu0 0.0
    %1578 = vmatprep.subr.mxu0 0.0
    %1579 = vmatpush2.msra.mxu0 0.0
    %1580 = vmatprep.subr.mxu0 0.0
    %1581 = vmatpush2.msra.mxu0 0.0
    %1582 = vmatprep.subr.mxu0 0.0
    %1583 = vmatpush2.msra.mxu0 0.0
    %1584 = vmatprep.mubr.f32.mxu0 0.0
    %1585 = vmatmul.mubr.f32.gmra.mxu0 %v1376
    %v1586 = vpop.f32.mrf.mxu0
    %v1587 = vadd.f32 0.0, %v1586
    %v1588 = vpop.f32.mrf.mxu0
    %v1589 = vadd.f32 0.0, %v1588
    %1590 = vdwg.mxu0
    %v1591 = vadd.f32 %v1381, %v1516
    %v1592 = vadd.f32 %v1382, %v1518
    %v1593 = vadd.f32 %v1383, %v1587
    %v1594 = vadd.f32 %v1384, %v1589
    %v1595 = vxor.u32 %v1591, 2147483648
    %v1596 = vmul.f32 %v1595, 1.442695
    %v1597 = vpow.pop %v1596
    %v1598 = vadd.f32 %v1597, 1.0
    %v1599 = vrcp.pop %v1598
    %v1600 = vmul.f32 1.0, %v1599
    %v1601 = vxor.u32 %v1592, 2147483648
    %v1602 = vmul.f32 %v1601, 1.442695
    %v1603 = vpow.pop %v1602
    %v1604 = vadd.f32 %v1603, 1.0
    %v1605 = vrcp.pop %v1604
    %v1606 = vmul.f32 1.0, %v1605
    %v1607 = vtanh.pop %v1593
    %v1608 = vxor.u32 %v1594, 2147483648
    %v1609 = vmul.f32 %v1608, 1.442695
    %v1610 = vpow.pop %v1609
    %v1611 = vadd.f32 %v1610, 1.0
    %v1612 = vrcp.pop %v1611
    %v1613 = vmul.f32 1.0, %v1612
    %v1614 = vmul.f32 %v1606, %v1377
    %v1615 = vmul.f32 %v1600, %v1607
    %v1616 = vadd.f32 %v1614, %v1615
    %v1617 = vtanh.pop %v1616
    %v1618 = vmul.f32 %v1613, %v1617
    %1619 = vst [vmem:[#allocation3] sm:$0xff] %v1616
    %1620 = vst [vmem:[#allocation2] sm:$0xff] %v1618
    %s1621 = scalar_lea.vmem %s4, 32
    %1622 = vst [vmem:[%s1621] sm:$0xff] %v1618
    %v1623 = vld [vmem:[#allocation2] sm:$0xff]
    %v1624 = vld [vmem:[#allocation3] sm:$0xff]
    %s1625 = smul.u32 5, 4
    %s1626 = smul.addr %s1625, 8
    %s1627 = scalar_lea.vmem [#allocation4], %s1626
    %v1628 = vld [vmem:[%s1627] sm:$0xff]
    %v1629 = vld [vmem:[%s1627 + $0x8] sm:$0xff]
    %v1630 = vld [vmem:[%s1627 + $0x10] sm:$0xff]
    %v1631 = vld [vmem:[%s1627 + $0x18] sm:$0xff]
    %v1632 = vld [vmem:[#allocation5] sm:$0xff]
    %v1633 = vld [vmem:[#allocation5 + $0x8] sm:$0xff]
    %v1634 = vld [vmem:[#allocation5 + $0x10] sm:$0xff]
    %v1635 = vld [vmem:[#allocation5 + $0x18] sm:$0xff]
    %v1636 = vld [vmem:[#allocation5 + $0x20] sm:$0xff]
    %v1637 = vld [vmem:[#allocation5 + $0x28] sm:$0xff]
    %v1638 = vld [vmem:[#allocation5 + $0x30] sm:$0xff]
    %v1639 = vld [vmem:[#allocation5 + $0x38] sm:$0xff]
    %v1640 = vld [vmem:[#allocation5 + $0x40] sm:$0xff]
    %v1641 = vld [vmem:[#allocation5 + $0x48] sm:$0xff]
    %v1642 = vld [vmem:[#allocation5 + $0x50] sm:$0xff]
    %v1643 = vld [vmem:[#allocation5 + $0x58] sm:$0xff]
    %v1644 = vld [vmem:[#allocation5 + $0x60] sm:$0xff]
    %v1645 = vld [vmem:[#allocation5 + $0x68] sm:$0xff]
    %v1646 = vld [vmem:[#allocation5 + $0x70] sm:$0xff]
    %v1647 = vld [vmem:[#allocation5 + $0x78] sm:$0xff]
    %v1648 = vld [vmem:[#allocation5 + $0x80] sm:$0xff]
    %v1649 = vld [vmem:[#allocation5 + $0x88] sm:$0xff]
    %v1650 = vld [vmem:[#allocation5 + $0x90] sm:$0xff]
    %v1651 = vld [vmem:[#allocation5 + $0x98] sm:$0xff]
    %v1652 = vld [vmem:[#allocation5 + $0xa0] sm:$0xff]
    %v1653 = vld [vmem:[#allocation5 + $0xa8] sm:$0xff]
    %v1654 = vld [vmem:[#allocation5 + $0xb0] sm:$0xff]
    %v1655 = vld [vmem:[#allocation5 + $0xb8] sm:$0xff]
    %v1656 = vld [vmem:[#allocation5 + $0xc0] sm:$0xff]
    %v1657 = vld [vmem:[#allocation5 + $0xc8] sm:$0xff]
    %v1658 = vld [vmem:[#allocation5 + $0xd0] sm:$0xff]
    %v1659 = vld [vmem:[#allocation5 + $0xd8] sm:$0xff]
    %v1660 = vld [vmem:[#allocation5 + $0xe0] sm:$0xff]
    %v1661 = vld [vmem:[#allocation5 + $0xe8] sm:$0xff]
    %v1662 = vld [vmem:[#allocation5 + $0xf0] sm:$0xff]
    %v1663 = vld [vmem:[#allocation5 + $0xf8] sm:$0xff]
    %v1664 = vld [vmem:[#allocation5 + $0x100] sm:$0xff]
    %v1665 = vld [vmem:[#allocation5 + $0x108] sm:$0xff]
    %v1666 = vld [vmem:[#allocation5 + $0x110] sm:$0xff]
    %v1667 = vld [vmem:[#allocation5 + $0x118] sm:$0xff]
    %v1668 = vld [vmem:[#allocation5 + $0x120] sm:$0xff]
    %v1669 = vld [vmem:[#allocation5 + $0x128] sm:$0xff]
    %v1670 = vld [vmem:[#allocation5 + $0x130] sm:$0xff]
    %v1671 = vld [vmem:[#allocation5 + $0x138] sm:$0xff]
    %v1672 = vld [vmem:[#allocation5 + $0x140] sm:$0xff]
    %v1673 = vld [vmem:[#allocation5 + $0x148] sm:$0xff]
    %v1674 = vld [vmem:[#allocation5 + $0x150] sm:$0xff]
    %v1675 = vld [vmem:[#allocation5 + $0x158] sm:$0xff]
    %v1676 = vld [vmem:[#allocation5 + $0x160] sm:$0xff]
    %v1677 = vld [vmem:[#allocation5 + $0x168] sm:$0xff]
    %v1678 = vld [vmem:[#allocation5 + $0x170] sm:$0xff]
    %v1679 = vld [vmem:[#allocation5 + $0x178] sm:$0xff]
    %v1680 = vld [vmem:[#allocation5 + $0x180] sm:$0xff]
    %v1681 = vld [vmem:[#allocation5 + $0x188] sm:$0xff]
    %v1682 = vld [vmem:[#allocation5 + $0x190] sm:$0xff]
    %v1683 = vld [vmem:[#allocation5 + $0x198] sm:$0xff]
    %v1684 = vld [vmem:[#allocation5 + $0x1a0] sm:$0xff]
    %v1685 = vld [vmem:[#allocation5 + $0x1a8] sm:$0xff]
    %v1686 = vld [vmem:[#allocation5 + $0x1b0] sm:$0xff]
    %v1687 = vld [vmem:[#allocation5 + $0x1b8] sm:$0xff]
    %v1688 = vld [vmem:[#allocation5 + $0x1c0] sm:$0xff]
    %v1689 = vld [vmem:[#allocation5 + $0x1c8] sm:$0xff]
    %v1690 = vld [vmem:[#allocation5 + $0x1d0] sm:$0xff]
    %v1691 = vld [vmem:[#allocation5 + $0x1d8] sm:$0xff]
    %v1692 = vld [vmem:[#allocation5 + $0x1e0] sm:$0xff]
    %v1693 = vld [vmem:[#allocation5 + $0x1e8] sm:$0xff]
    %v1694 = vld [vmem:[#allocation5 + $0x1f0] sm:$0xff]
    %v1695 = vld [vmem:[#allocation5 + $0x1f8] sm:$0xff]
    %1696 = vmatprep.subr.mxu0 %v1693
    %1697 = vmatpush1.msra.mxu0 %v1692
    %1698 = vmatprep.subr.mxu0 %v1689
    %1699 = vmatpush1.msra.mxu0 %v1688
    %1700 = vmatprep.subr.mxu0 %v1685
    %1701 = vmatpush1.msra.mxu0 %v1684
    %1702 = vmatprep.subr.mxu0 %v1681
    %1703 = vmatpush1.msra.mxu0 %v1680
    %1704 = vmatprep.subr.mxu0 %v1677
    %1705 = vmatpush1.msra.mxu0 %v1676
    %1706 = vmatprep.subr.mxu0 %v1673
    %1707 = vmatpush1.msra.mxu0 %v1672
    %1708 = vmatprep.subr.mxu0 %v1669
    %1709 = vmatpush1.msra.mxu0 %v1668
    %1710 = vmatprep.subr.mxu0 %v1665
    %1711 = vmatpush1.msra.mxu0 %v1664
    %1712 = vmatprep.subr.mxu0 %v1661
    %1713 = vmatpush1.msra.mxu0 %v1660
    %1714 = vmatprep.subr.mxu0 %v1657
    %1715 = vmatpush1.msra.mxu0 %v1656
    %1716 = vmatprep.subr.mxu0 %v1653
    %1717 = vmatpush1.msra.mxu0 %v1652
    %1718 = vmatprep.subr.mxu0 %v1649
    %1719 = vmatpush1.msra.mxu0 %v1648
    %1720 = vmatprep.subr.mxu0 %v1645
    %1721 = vmatpush1.msra.mxu0 %v1644
    %1722 = vmatprep.subr.mxu0 %v1641
    %1723 = vmatpush1.msra.mxu0 %v1640
    %1724 = vmatprep.subr.mxu0 %v1637
    %1725 = vmatpush1.msra.mxu0 %v1636
    %1726 = vmatprep.subr.mxu0 %v1633
    %1727 = vmatpush1.msra.mxu0 %v1632
    %1728 = vmatprep.subr.mxu0 0.0
    %1729 = vmatpush2.msra.mxu0 0.0
    %1730 = vmatprep.subr.mxu0 0.0
    %1731 = vmatpush2.msra.mxu0 0.0
    %1732 = vmatprep.subr.mxu0 0.0
    %1733 = vmatpush2.msra.mxu0 0.0
    %1734 = vmatprep.subr.mxu0 0.0
    %1735 = vmatpush2.msra.mxu0 0.0
    %1736 = vmatprep.subr.mxu0 0.0
    %1737 = vmatpush2.msra.mxu0 0.0
    %1738 = vmatprep.subr.mxu0 0.0
    %1739 = vmatpush2.msra.mxu0 0.0
    %1740 = vmatprep.subr.mxu0 0.0
    %1741 = vmatpush2.msra.mxu0 0.0
    %1742 = vmatprep.subr.mxu0 0.0
    %1743 = vmatpush2.msra.mxu0 0.0
    %1744 = vmatprep.subr.mxu0 0.0
    %1745 = vmatpush2.msra.mxu0 0.0
    %1746 = vmatprep.subr.mxu0 0.0
    %1747 = vmatpush2.msra.mxu0 0.0
    %1748 = vmatprep.subr.mxu0 0.0
    %1749 = vmatpush2.msra.mxu0 0.0
    %1750 = vmatprep.subr.mxu0 0.0
    %1751 = vmatpush2.msra.mxu0 0.0
    %1752 = vmatprep.subr.mxu0 0.0
    %1753 = vmatpush2.msra.mxu0 0.0
    %1754 = vmatprep.subr.mxu0 0.0
    %1755 = vmatpush2.msra.mxu0 0.0
    %1756 = vmatprep.subr.mxu0 0.0
    %1757 = vmatpush2.msra.mxu0 0.0
    %1758 = vmatprep.subr.mxu0 0.0
    %1759 = vmatpush2.msra.mxu0 0.0
    %1760 = vmatprep.mubr.f32.mxu0 0.0
    %1761 = vmatmul.mubr.f32.gmra.mxu0 %v1623
    %v1762 = vpop.f32.mrf.mxu0
    %v1763 = vadd.f32 0.0, %v1762
    %v1764 = vpop.f32.mrf.mxu0
    %v1765 = vadd.f32 0.0, %v1764
    %1766 = vdwg.mxu0
    %1767 = vmatprep.subr.mxu0 %v1695
    %1768 = vmatpush1.msra.mxu0 %v1694
    %1769 = vmatprep.subr.mxu0 %v1691
    %1770 = vmatpush1.msra.mxu0 %v1690
    %1771 = vmatprep.subr.mxu0 %v1687
    %1772 = vmatpush1.msra.mxu0 %v1686
    %1773 = vmatprep.subr.mxu0 %v1683
    %1774 = vmatpush1.msra.mxu0 %v1682
    %1775 = vmatprep.subr.mxu0 %v1679
    %1776 = vmatpush1.msra.mxu0 %v1678
    %1777 = vmatprep.subr.mxu0 %v1675
    %1778 = vmatpush1.msra.mxu0 %v1674
    %1779 = vmatprep.subr.mxu0 %v1671
    %1780 = vmatpush1.msra.mxu0 %v1670
    %1781 = vmatprep.subr.mxu0 %v1667
    %1782 = vmatpush1.msra.mxu0 %v1666
    %1783 = vmatprep.subr.mxu0 %v1663
    %1784 = vmatpush1.msra.mxu0 %v1662
    %1785 = vmatprep.subr.mxu0 %v1659
    %1786 = vmatpush1.msra.mxu0 %v1658
    %1787 = vmatprep.subr.mxu0 %v1655
    %1788 = vmatpush1.msra.mxu0 %v1654
    %1789 = vmatprep.subr.mxu0 %v1651
    %1790 = vmatpush1.msra.mxu0 %v1650
    %1791 = vmatprep.subr.mxu0 %v1647
    %1792 = vmatpush1.msra.mxu0 %v1646
    %1793 = vmatprep.subr.mxu0 %v1643
    %1794 = vmatpush1.msra.mxu0 %v1642
    %1795 = vmatprep.subr.mxu0 %v1639
    %1796 = vmatpush1.msra.mxu0 %v1638
    %1797 = vmatprep.subr.mxu0 %v1635
    %1798 = vmatpush1.msra.mxu0 %v1634
    %1799 = vmatprep.subr.mxu0 0.0
    %1800 = vmatpush2.msra.mxu0 0.0
    %1801 = vmatprep.subr.mxu0 0.0
    %1802 = vmatpush2.msra.mxu0 0.0
    %1803 = vmatprep.subr.mxu0 0.0
    %1804 = vmatpush2.msra.mxu0 0.0
    %1805 = vmatprep.subr.mxu0 0.0
    %1806 = vmatpush2.msra.mxu0 0.0
    %1807 = vmatprep.subr.mxu0 0.0
    %1808 = vmatpush2.msra.mxu0 0.0
    %1809 = vmatprep.subr.mxu0 0.0
    %1810 = vmatpush2.msra.mxu0 0.0
    %1811 = vmatprep.subr.mxu0 0.0
    %1812 = vmatpush2.msra.mxu0 0.0
    %1813 = vmatprep.subr.mxu0 0.0
    %1814 = vmatpush2.msra.mxu0 0.0
    %1815 = vmatprep.subr.mxu0 0.0
    %1816 = vmatpush2.msra.mxu0 0.0
    %1817 = vmatprep.subr.mxu0 0.0
    %1818 = vmatpush2.msra.mxu0 0.0
    %1819 = vmatprep.subr.mxu0 0.0
    %1820 = vmatpush2.msra.mxu0 0.0
    %1821 = vmatprep.subr.mxu0 0.0
    %1822 = vmatpush2.msra.mxu0 0.0
    %1823 = vmatprep.subr.mxu0 0.0
    %1824 = vmatpush2.msra.mxu0 0.0
    %1825 = vmatprep.subr.mxu0 0.0
    %1826 = vmatpush2.msra.mxu0 0.0
    %1827 = vmatprep.subr.mxu0 0.0
    %1828 = vmatpush2.msra.mxu0 0.0
    %1829 = vmatprep.subr.mxu0 0.0
    %1830 = vmatpush2.msra.mxu0 0.0
    %1831 = vmatprep.mubr.f32.mxu0 0.0
    %1832 = vmatmul.mubr.f32.gmra.mxu0 %v1623
    %v1833 = vpop.f32.mrf.mxu0
    %v1834 = vadd.f32 0.0, %v1833
    %v1835 = vpop.f32.mrf.mxu0
    %v1836 = vadd.f32 0.0, %v1835
    %1837 = vdwg.mxu0
    %v1838 = vadd.f32 %v1628, %v1763
    %v1839 = vadd.f32 %v1629, %v1765
    %v1840 = vadd.f32 %v1630, %v1834
    %v1841 = vadd.f32 %v1631, %v1836
    %v1842 = vxor.u32 %v1838, 2147483648
    %v1843 = vmul.f32 %v1842, 1.442695
    %v1844 = vpow.pop %v1843
    %v1845 = vadd.f32 %v1844, 1.0
    %v1846 = vrcp.pop %v1845
    %v1847 = vmul.f32 1.0, %v1846
    %v1848 = vxor.u32 %v1839, 2147483648
    %v1849 = vmul.f32 %v1848, 1.442695
    %v1850 = vpow.pop %v1849
    %v1851 = vadd.f32 %v1850, 1.0
    %v1852 = vrcp.pop %v1851
    %v1853 = vmul.f32 1.0, %v1852
    %v1854 = vtanh.pop %v1840
    %v1855 = vxor.u32 %v1841, 2147483648
    %v1856 = vmul.f32 %v1855, 1.442695
    %v1857 = vpow.pop %v1856
    %v1858 = vadd.f32 %v1857, 1.0
    %v1859 = vrcp.pop %v1858
    %v1860 = vmul.f32 1.0, %v1859
    %v1861 = vmul.f32 %v1853, %v1624
    %v1862 = vmul.f32 %v1847, %v1854
    %v1863 = vadd.f32 %v1861, %v1862
    %v1864 = vtanh.pop %v1863
    %v1865 = vmul.f32 %v1860, %v1864
    %1866 = vst [vmem:[#allocation3] sm:$0xff] %v1863
    %1867 = vst [vmem:[#allocation2] sm:$0xff] %v1865
    %s1868 = scalar_lea.vmem %s4, 40
    %1869 = vst [vmem:[%s1868] sm:$0xff] %v1865
    %v1870 = vld [vmem:[#allocation2] sm:$0xff]
    %v1871 = vld [vmem:[#allocation3] sm:$0xff]
    %s1872 = smul.u32 6, 4
    %s1873 = smul.addr %s1872, 8
    %s1874 = scalar_lea.vmem [#allocation4], %s1873
    %v1875 = vld [vmem:[%s1874] sm:$0xff]
    %v1876 = vld [vmem:[%s1874 + $0x8] sm:$0xff]
    %v1877 = vld [vmem:[%s1874 + $0x10] sm:$0xff]
    %v1878 = vld [vmem:[%s1874 + $0x18] sm:$0xff]
    %v1879 = vld [vmem:[#allocation5] sm:$0xff]
    %v1880 = vld [vmem:[#allocation5 + $0x8] sm:$0xff]
    %v1881 = vld [vmem:[#allocation5 + $0x10] sm:$0xff]
    %v1882 = vld [vmem:[#allocation5 + $0x18] sm:$0xff]
    %v1883 = vld [vmem:[#allocation5 + $0x20] sm:$0xff]
    %v1884 = vld [vmem:[#allocation5 + $0x28] sm:$0xff]
    %v1885 = vld [vmem:[#allocation5 + $0x30] sm:$0xff]
    %v1886 = vld [vmem:[#allocation5 + $0x38] sm:$0xff]
    %v1887 = vld [vmem:[#allocation5 + $0x40] sm:$0xff]
    %v1888 = vld [vmem:[#allocation5 + $0x48] sm:$0xff]
    %v1889 = vld [vmem:[#allocation5 + $0x50] sm:$0xff]
    %v1890 = vld [vmem:[#allocation5 + $0x58] sm:$0xff]
    %v1891 = vld [vmem:[#allocation5 + $0x60] sm:$0xff]
    %v1892 = vld [vmem:[#allocation5 + $0x68] sm:$0xff]
    %v1893 = vld [vmem:[#allocation5 + $0x70] sm:$0xff]
    %v1894 = vld [vmem:[#allocation5 + $0x78] sm:$0xff]
    %v1895 = vld [vmem:[#allocation5 + $0x80] sm:$0xff]
    %v1896 = vld [vmem:[#allocation5 + $0x88] sm:$0xff]
    %v1897 = vld [vmem:[#allocation5 + $0x90] sm:$0xff]
    %v1898 = vld [vmem:[#allocation5 + $0x98] sm:$0xff]
    %v1899 = vld [vmem:[#allocation5 + $0xa0] sm:$0xff]
    %v1900 = vld [vmem:[#allocation5 + $0xa8] sm:$0xff]
    %v1901 = vld [vmem:[#allocation5 + $0xb0] sm:$0xff]
    %v1902 = vld [vmem:[#allocation5 + $0xb8] sm:$0xff]
    %v1903 = vld [vmem:[#allocation5 + $0xc0] sm:$0xff]
    %v1904 = vld [vmem:[#allocation5 + $0xc8] sm:$0xff]
    %v1905 = vld [vmem:[#allocation5 + $0xd0] sm:$0xff]
    %v1906 = vld [vmem:[#allocation5 + $0xd8] sm:$0xff]
    %v1907 = vld [vmem:[#allocation5 + $0xe0] sm:$0xff]
    %v1908 = vld [vmem:[#allocation5 + $0xe8] sm:$0xff]
    %v1909 = vld [vmem:[#allocation5 + $0xf0] sm:$0xff]
    %v1910 = vld [vmem:[#allocation5 + $0xf8] sm:$0xff]
    %v1911 = vld [vmem:[#allocation5 + $0x100] sm:$0xff]
    %v1912 = vld [vmem:[#allocation5 + $0x108] sm:$0xff]
    %v1913 = vld [vmem:[#allocation5 + $0x110] sm:$0xff]
    %v1914 = vld [vmem:[#allocation5 + $0x118] sm:$0xff]
    %v1915 = vld [vmem:[#allocation5 + $0x120] sm:$0xff]
    %v1916 = vld [vmem:[#allocation5 + $0x128] sm:$0xff]
    %v1917 = vld [vmem:[#allocation5 + $0x130] sm:$0xff]
    %v1918 = vld [vmem:[#allocation5 + $0x138] sm:$0xff]
    %v1919 = vld [vmem:[#allocation5 + $0x140] sm:$0xff]
    %v1920 = vld [vmem:[#allocation5 + $0x148] sm:$0xff]
    %v1921 = vld [vmem:[#allocation5 + $0x150] sm:$0xff]
    %v1922 = vld [vmem:[#allocation5 + $0x158] sm:$0xff]
    %v1923 = vld [vmem:[#allocation5 + $0x160] sm:$0xff]
    %v1924 = vld [vmem:[#allocation5 + $0x168] sm:$0xff]
    %v1925 = vld [vmem:[#allocation5 + $0x170] sm:$0xff]
    %v1926 = vld [vmem:[#allocation5 + $0x178] sm:$0xff]
    %v1927 = vld [vmem:[#allocation5 + $0x180] sm:$0xff]
    %v1928 = vld [vmem:[#allocation5 + $0x188] sm:$0xff]
    %v1929 = vld [vmem:[#allocation5 + $0x190] sm:$0xff]
    %v1930 = vld [vmem:[#allocation5 + $0x198] sm:$0xff]
    %v1931 = vld [vmem:[#allocation5 + $0x1a0] sm:$0xff]
    %v1932 = vld [vmem:[#allocation5 + $0x1a8] sm:$0xff]
    %v1933 = vld [vmem:[#allocation5 + $0x1b0] sm:$0xff]
    %v1934 = vld [vmem:[#allocation5 + $0x1b8] sm:$0xff]
    %v1935 = vld [vmem:[#allocation5 + $0x1c0] sm:$0xff]
    %v1936 = vld [vmem:[#allocation5 + $0x1c8] sm:$0xff]
    %v1937 = vld [vmem:[#allocation5 + $0x1d0] sm:$0xff]
    %v1938 = vld [vmem:[#allocation5 + $0x1d8] sm:$0xff]
    %v1939 = vld [vmem:[#allocation5 + $0x1e0] sm:$0xff]
    %v1940 = vld [vmem:[#allocation5 + $0x1e8] sm:$0xff]
    %v1941 = vld [vmem:[#allocation5 + $0x1f0] sm:$0xff]
    %v1942 = vld [vmem:[#allocation5 + $0x1f8] sm:$0xff]
    %1943 = vmatprep.subr.mxu0 %v1940
    %1944 = vmatpush1.msra.mxu0 %v1939
    %1945 = vmatprep.subr.mxu0 %v1936
    %1946 = vmatpush1.msra.mxu0 %v1935
    %1947 = vmatprep.subr.mxu0 %v1932
    %1948 = vmatpush1.msra.mxu0 %v1931
    %1949 = vmatprep.subr.mxu0 %v1928
    %1950 = vmatpush1.msra.mxu0 %v1927
    %1951 = vmatprep.subr.mxu0 %v1924
    %1952 = vmatpush1.msra.mxu0 %v1923
    %1953 = vmatprep.subr.mxu0 %v1920
    %1954 = vmatpush1.msra.mxu0 %v1919
    %1955 = vmatprep.subr.mxu0 %v1916
    %1956 = vmatpush1.msra.mxu0 %v1915
    %1957 = vmatprep.subr.mxu0 %v1912
    %1958 = vmatpush1.msra.mxu0 %v1911
    %1959 = vmatprep.subr.mxu0 %v1908
    %1960 = vmatpush1.msra.mxu0 %v1907
    %1961 = vmatprep.subr.mxu0 %v1904
    %1962 = vmatpush1.msra.mxu0 %v1903
    %1963 = vmatprep.subr.mxu0 %v1900
    %1964 = vmatpush1.msra.mxu0 %v1899
    %1965 = vmatprep.subr.mxu0 %v1896
    %1966 = vmatpush1.msra.mxu0 %v1895
    %1967 = vmatprep.subr.mxu0 %v1892
    %1968 = vmatpush1.msra.mxu0 %v1891
    %1969 = vmatprep.subr.mxu0 %v1888
    %1970 = vmatpush1.msra.mxu0 %v1887
    %1971 = vmatprep.subr.mxu0 %v1884
    %1972 = vmatpush1.msra.mxu0 %v1883
    %1973 = vmatprep.subr.mxu0 %v1880
    %1974 = vmatpush1.msra.mxu0 %v1879
    %1975 = vmatprep.subr.mxu0 0.0
    %1976 = vmatpush2.msra.mxu0 0.0
    %1977 = vmatprep.subr.mxu0 0.0
    %1978 = vmatpush2.msra.mxu0 0.0
    %1979 = vmatprep.subr.mxu0 0.0
    %1980 = vmatpush2.msra.mxu0 0.0
    %1981 = vmatprep.subr.mxu0 0.0
    %1982 = vmatpush2.msra.mxu0 0.0
    %1983 = vmatprep.subr.mxu0 0.0
    %1984 = vmatpush2.msra.mxu0 0.0
    %1985 = vmatprep.subr.mxu0 0.0
    %1986 = vmatpush2.msra.mxu0 0.0
    %1987 = vmatprep.subr.mxu0 0.0
    %1988 = vmatpush2.msra.mxu0 0.0
    %1989 = vmatprep.subr.mxu0 0.0
    %1990 = vmatpush2.msra.mxu0 0.0
    %1991 = vmatprep.subr.mxu0 0.0
    %1992 = vmatpush2.msra.mxu0 0.0
    %1993 = vmatprep.subr.mxu0 0.0
    %1994 = vmatpush2.msra.mxu0 0.0
    %1995 = vmatprep.subr.mxu0 0.0
    %1996 = vmatpush2.msra.mxu0 0.0
    %1997 = vmatprep.subr.mxu0 0.0
    %1998 = vmatpush2.msra.mxu0 0.0
    %1999 = vmatprep.subr.mxu0 0.0
    %2000 = vmatpush2.msra.mxu0 0.0
    %2001 = vmatprep.subr.mxu0 0.0
    %2002 = vmatpush2.msra.mxu0 0.0
    %2003 = vmatprep.subr.mxu0 0.0
    %2004 = vmatpush2.msra.mxu0 0.0
    %2005 = vmatprep.subr.mxu0 0.0
    %2006 = vmatpush2.msra.mxu0 0.0
    %2007 = vmatprep.mubr.f32.mxu0 0.0
    %2008 = vmatmul.mubr.f32.gmra.mxu0 %v1870
    %v2009 = vpop.f32.mrf.mxu0
    %v2010 = vadd.f32 0.0, %v2009
    %v2011 = vpop.f32.mrf.mxu0
    %v2012 = vadd.f32 0.0, %v2011
    %2013 = vdwg.mxu0
    %2014 = vmatprep.subr.mxu0 %v1942
    %2015 = vmatpush1.msra.mxu0 %v1941
    %2016 = vmatprep.subr.mxu0 %v1938
    %2017 = vmatpush1.msra.mxu0 %v1937
    %2018 = vmatprep.subr.mxu0 %v1934
    %2019 = vmatpush1.msra.mxu0 %v1933
    %2020 = vmatprep.subr.mxu0 %v1930
    %2021 = vmatpush1.msra.mxu0 %v1929
    %2022 = vmatprep.subr.mxu0 %v1926
    %2023 = vmatpush1.msra.mxu0 %v1925
    %2024 = vmatprep.subr.mxu0 %v1922
    %2025 = vmatpush1.msra.mxu0 %v1921
    %2026 = vmatprep.subr.mxu0 %v1918
    %2027 = vmatpush1.msra.mxu0 %v1917
    %2028 = vmatprep.subr.mxu0 %v1914
    %2029 = vmatpush1.msra.mxu0 %v1913
    %2030 = vmatprep.subr.mxu0 %v1910
    %2031 = vmatpush1.msra.mxu0 %v1909
    %2032 = vmatprep.subr.mxu0 %v1906
    %2033 = vmatpush1.msra.mxu0 %v1905
    %2034 = vmatprep.subr.mxu0 %v1902
    %2035 = vmatpush1.msra.mxu0 %v1901
    %2036 = vmatprep.subr.mxu0 %v1898
    %2037 = vmatpush1.msra.mxu0 %v1897
    %2038 = vmatprep.subr.mxu0 %v1894
    %2039 = vmatpush1.msra.mxu0 %v1893
    %2040 = vmatprep.subr.mxu0 %v1890
    %2041 = vmatpush1.msra.mxu0 %v1889
    %2042 = vmatprep.subr.mxu0 %v1886
    %2043 = vmatpush1.msra.mxu0 %v1885
    %2044 = vmatprep.subr.mxu0 %v1882
    %2045 = vmatpush1.msra.mxu0 %v1881
    %2046 = vmatprep.subr.mxu0 0.0
    %2047 = vmatpush2.msra.mxu0 0.0
    %2048 = vmatprep.subr.mxu0 0.0
    %2049 = vmatpush2.msra.mxu0 0.0
    %2050 = vmatprep.subr.mxu0 0.0
    %2051 = vmatpush2.msra.mxu0 0.0
    %2052 = vmatprep.subr.mxu0 0.0
    %2053 = vmatpush2.msra.mxu0 0.0
    %2054 = vmatprep.subr.mxu0 0.0
    %2055 = vmatpush2.msra.mxu0 0.0
    %2056 = vmatprep.subr.mxu0 0.0
    %2057 = vmatpush2.msra.mxu0 0.0
    %2058 = vmatprep.subr.mxu0 0.0
    %2059 = vmatpush2.msra.mxu0 0.0
    %2060 = vmatprep.subr.mxu0 0.0
    %2061 = vmatpush2.msra.mxu0 0.0
    %2062 = vmatprep.subr.mxu0 0.0
    %2063 = vmatpush2.msra.mxu0 0.0
    %2064 = vmatprep.subr.mxu0 0.0
    %2065 = vmatpush2.msra.mxu0 0.0
    %2066 = vmatprep.subr.mxu0 0.0
    %2067 = vmatpush2.msra.mxu0 0.0
    %2068 = vmatprep.subr.mxu0 0.0
    %2069 = vmatpush2.msra.mxu0 0.0
    %2070 = vmatprep.subr.mxu0 0.0
    %2071 = vmatpush2.msra.mxu0 0.0
    %2072 = vmatprep.subr.mxu0 0.0
    %2073 = vmatpush2.msra.mxu0 0.0
    %2074 = vmatprep.subr.mxu0 0.0
    %2075 = vmatpush2.msra.mxu0 0.0
    %2076 = vmatprep.subr.mxu0 0.0
    %2077 = vmatpush2.msra.mxu0 0.0
    %2078 = vmatprep.mubr.f32.mxu0 0.0
    %2079 = vmatmul.mubr.f32.gmra.mxu0 %v1870
    %v2080 = vpop.f32.mrf.mxu0
    %v2081 = vadd.f32 0.0, %v2080
    %v2082 = vpop.f32.mrf.mxu0
    %v2083 = vadd.f32 0.0, %v2082
    %2084 = vdwg.mxu0
    %v2085 = vadd.f32 %v1875, %v2010
    %v2086 = vadd.f32 %v1876, %v2012
    %v2087 = vadd.f32 %v1877, %v2081
    %v2088 = vadd.f32 %v1878, %v2083
    %v2089 = vxor.u32 %v2085, 2147483648
    %v2090 = vmul.f32 %v2089, 1.442695
    %v2091 = vpow.pop %v2090
    %v2092 = vadd.f32 %v2091, 1.0
    %v2093 = vrcp.pop %v2092
    %v2094 = vmul.f32 1.0, %v2093
    %v2095 = vxor.u32 %v2086, 2147483648
    %v2096 = vmul.f32 %v2095, 1.442695
    %v2097 = vpow.pop %v2096
    %v2098 = vadd.f32 %v2097, 1.0
    %v2099 = vrcp.pop %v2098
    %v2100 = vmul.f32 1.0, %v2099
    %v2101 = vtanh.pop %v2087
    %v2102 = vxor.u32 %v2088, 2147483648
    %v2103 = vmul.f32 %v2102, 1.442695
    %v2104 = vpow.pop %v2103
    %v2105 = vadd.f32 %v2104, 1.0
    %v2106 = vrcp.pop %v2105
    %v2107 = vmul.f32 1.0, %v2106
    %v2108 = vmul.f32 %v2100, %v1871
    %v2109 = vmul.f32 %v2094, %v2101
    %v2110 = vadd.f32 %v2108, %v2109
    %v2111 = vtanh.pop %v2110
    %v2112 = vmul.f32 %v2107, %v2111
    %2113 = vst [vmem:[#allocation3] sm:$0xff] %v2110
    %2114 = vst [vmem:[#allocation2] sm:$0xff] %v2112
    %s2115 = scalar_lea.vmem %s4, 48
    %2116 = vst [vmem:[%s2115] sm:$0xff] %v2112
    %v2117 = vld [vmem:[#allocation2] sm:$0xff]
    %v2118 = vld [vmem:[#allocation3] sm:$0xff]
    %s2119 = smul.u32 7, 4
    %s2120 = smul.addr %s2119, 8
    %s2121 = scalar_lea.vmem [#allocation4], %s2120
    %v2122 = vld [vmem:[%s2121] sm:$0xff]
    %v2123 = vld [vmem:[%s2121 + $0x8] sm:$0xff]
    %v2124 = vld [vmem:[%s2121 + $0x10] sm:$0xff]
    %v2125 = vld [vmem:[%s2121 + $0x18] sm:$0xff]
    %v2126 = vld [vmem:[#allocation5] sm:$0xff]
    %v2127 = vld [vmem:[#allocation5 + $0x8] sm:$0xff]
    %v2128 = vld [vmem:[#allocation5 + $0x10] sm:$0xff]
    %v2129 = vld [vmem:[#allocation5 + $0x18] sm:$0xff]
    %v2130 = vld [vmem:[#allocation5 + $0x20] sm:$0xff]
    %v2131 = vld [vmem:[#allocation5 + $0x28] sm:$0xff]
    %v2132 = vld [vmem:[#allocation5 + $0x30] sm:$0xff]
    %v2133 = vld [vmem:[#allocation5 + $0x38] sm:$0xff]
    %v2134 = vld [vmem:[#allocation5 + $0x40] sm:$0xff]
    %v2135 = vld [vmem:[#allocation5 + $0x48] sm:$0xff]
    %v2136 = vld [vmem:[#allocation5 + $0x50] sm:$0xff]
    %v2137 = vld [vmem:[#allocation5 + $0x58] sm:$0xff]
    %v2138 = vld [vmem:[#allocation5 + $0x60] sm:$0xff]
    %v2139 = vld [vmem:[#allocation5 + $0x68] sm:$0xff]
    %v2140 = vld [vmem:[#allocation5 + $0x70] sm:$0xff]
    %v2141 = vld [vmem:[#allocation5 + $0x78] sm:$0xff]
    %v2142 = vld [vmem:[#allocation5 + $0x80] sm:$0xff]
    %v2143 = vld [vmem:[#allocation5 + $0x88] sm:$0xff]
    %v2144 = vld [vmem:[#allocation5 + $0x90] sm:$0xff]
    %v2145 = vld [vmem:[#allocation5 + $0x98] sm:$0xff]
    %v2146 = vld [vmem:[#allocation5 + $0xa0] sm:$0xff]
    %v2147 = vld [vmem:[#allocation5 + $0xa8] sm:$0xff]
    %v2148 = vld [vmem:[#allocation5 + $0xb0] sm:$0xff]
    %v2149 = vld [vmem:[#allocation5 + $0xb8] sm:$0xff]
    %v2150 = vld [vmem:[#allocation5 + $0xc0] sm:$0xff]
    %v2151 = vld [vmem:[#allocation5 + $0xc8] sm:$0xff]
    %v2152 = vld [vmem:[#allocation5 + $0xd0] sm:$0xff]
    %v2153 = vld [vmem:[#allocation5 + $0xd8] sm:$0xff]
    %v2154 = vld [vmem:[#allocation5 + $0xe0] sm:$0xff]
    %v2155 = vld [vmem:[#allocation5 + $0xe8] sm:$0xff]
    %v2156 = vld [vmem:[#allocation5 + $0xf0] sm:$0xff]
    %v2157 = vld [vmem:[#allocation5 + $0xf8] sm:$0xff]
    %v2158 = vld [vmem:[#allocation5 + $0x100] sm:$0xff]
    %v2159 = vld [vmem:[#allocation5 + $0x108] sm:$0xff]
    %v2160 = vld [vmem:[#allocation5 + $0x110] sm:$0xff]
    %v2161 = vld [vmem:[#allocation5 + $0x118] sm:$0xff]
    %v2162 = vld [vmem:[#allocation5 + $0x120] sm:$0xff]
    %v2163 = vld [vmem:[#allocation5 + $0x128] sm:$0xff]
    %v2164 = vld [vmem:[#allocation5 + $0x130] sm:$0xff]
    %v2165 = vld [vmem:[#allocation5 + $0x138] sm:$0xff]
    %v2166 = vld [vmem:[#allocation5 + $0x140] sm:$0xff]
    %v2167 = vld [vmem:[#allocation5 + $0x148] sm:$0xff]
    %v2168 = vld [vmem:[#allocation5 + $0x150] sm:$0xff]
    %v2169 = vld [vmem:[#allocation5 + $0x158] sm:$0xff]
    %v2170 = vld [vmem:[#allocation5 + $0x160] sm:$0xff]
    %v2171 = vld [vmem:[#allocation5 + $0x168] sm:$0xff]
    %v2172 = vld [vmem:[#allocation5 + $0x170] sm:$0xff]
    %v2173 = vld [vmem:[#allocation5 + $0x178] sm:$0xff]
    %v2174 = vld [vmem:[#allocation5 + $0x180] sm:$0xff]
    %v2175 = vld [vmem:[#allocation5 + $0x188] sm:$0xff]
    %v2176 = vld [vmem:[#allocation5 + $0x190] sm:$0xff]
    %v2177 = vld [vmem:[#allocation5 + $0x198] sm:$0xff]
    %v2178 = vld [vmem:[#allocation5 + $0x1a0] sm:$0xff]
    %v2179 = vld [vmem:[#allocation5 + $0x1a8] sm:$0xff]
    %v2180 = vld [vmem:[#allocation5 + $0x1b0] sm:$0xff]
    %v2181 = vld [vmem:[#allocation5 + $0x1b8] sm:$0xff]
    %v2182 = vld [vmem:[#allocation5 + $0x1c0] sm:$0xff]
    %v2183 = vld [vmem:[#allocation5 + $0x1c8] sm:$0xff]
    %v2184 = vld [vmem:[#allocation5 + $0x1d0] sm:$0xff]
    %v2185 = vld [vmem:[#allocation5 + $0x1d8] sm:$0xff]
    %v2186 = vld [vmem:[#allocation5 + $0x1e0] sm:$0xff]
    %v2187 = vld [vmem:[#allocation5 + $0x1e8] sm:$0xff]
    %v2188 = vld [vmem:[#allocation5 + $0x1f0] sm:$0xff]
    %v2189 = vld [vmem:[#allocation5 + $0x1f8] sm:$0xff]
    %2190 = vmatprep.subr.mxu0 %v2187
    %2191 = vmatpush1.msra.mxu0 %v2186
    %2192 = vmatprep.subr.mxu0 %v2183
    %2193 = vmatpush1.msra.mxu0 %v2182
    %2194 = vmatprep.subr.mxu0 %v2179
    %2195 = vmatpush1.msra.mxu0 %v2178
    %2196 = vmatprep.subr.mxu0 %v2175
    %2197 = vmatpush1.msra.mxu0 %v2174
    %2198 = vmatprep.subr.mxu0 %v2171
    %2199 = vmatpush1.msra.mxu0 %v2170
    %2200 = vmatprep.subr.mxu0 %v2167
    %2201 = vmatpush1.msra.mxu0 %v2166
    %2202 = vmatprep.subr.mxu0 %v2163
    %2203 = vmatpush1.msra.mxu0 %v2162
    %2204 = vmatprep.subr.mxu0 %v2159
    %2205 = vmatpush1.msra.mxu0 %v2158
    %2206 = vmatprep.subr.mxu0 %v2155
    %2207 = vmatpush1.msra.mxu0 %v2154
    %2208 = vmatprep.subr.mxu0 %v2151
    %2209 = vmatpush1.msra.mxu0 %v2150
    %2210 = vmatprep.subr.mxu0 %v2147
    %2211 = vmatpush1.msra.mxu0 %v2146
    %2212 = vmatprep.subr.mxu0 %v2143
    %2213 = vmatpush1.msra.mxu0 %v2142
    %2214 = vmatprep.subr.mxu0 %v2139
    %2215 = vmatpush1.msra.mxu0 %v2138
    %2216 = vmatprep.subr.mxu0 %v2135
    %2217 = vmatpush1.msra.mxu0 %v2134
    %2218 = vmatprep.subr.mxu0 %v2131
    %2219 = vmatpush1.msra.mxu0 %v2130
    %2220 = vmatprep.subr.mxu0 %v2127
    %2221 = vmatpush1.msra.mxu0 %v2126
    %2222 = vmatprep.subr.mxu0 0.0
    %2223 = vmatpush2.msra.mxu0 0.0
    %2224 = vmatprep.subr.mxu0 0.0
    %2225 = vmatpush2.msra.mxu0 0.0
    %2226 = vmatprep.subr.mxu0 0.0
    %2227 = vmatpush2.msra.mxu0 0.0
    %2228 = vmatprep.subr.mxu0 0.0
    %2229 = vmatpush2.msra.mxu0 0.0
    %2230 = vmatprep.subr.mxu0 0.0
    %2231 = vmatpush2.msra.mxu0 0.0
    %2232 = vmatprep.subr.mxu0 0.0
    %2233 = vmatpush2.msra.mxu0 0.0
    %2234 = vmatprep.subr.mxu0 0.0
    %2235 = vmatpush2.msra.mxu0 0.0
    %2236 = vmatprep.subr.mxu0 0.0
    %2237 = vmatpush2.msra.mxu0 0.0
    %2238 = vmatprep.subr.mxu0 0.0
    %2239 = vmatpush2.msra.mxu0 0.0
    %2240 = vmatprep.subr.mxu0 0.0
    %2241 = vmatpush2.msra.mxu0 0.0
    %2242 = vmatprep.subr.mxu0 0.0
    %2243 = vmatpush2.msra.mxu0 0.0
    %2244 = vmatprep.subr.mxu0 0.0
    %2245 = vmatpush2.msra.mxu0 0.0
    %2246 = vmatprep.subr.mxu0 0.0
    %2247 = vmatpush2.msra.mxu0 0.0
    %2248 = vmatprep.subr.mxu0 0.0
    %2249 = vmatpush2.msra.mxu0 0.0
    %2250 = vmatprep.subr.mxu0 0.0
    %2251 = vmatpush2.msra.mxu0 0.0
    %2252 = vmatprep.subr.mxu0 0.0
    %2253 = vmatpush2.msra.mxu0 0.0
    %2254 = vmatprep.mubr.f32.mxu0 0.0
    %2255 = vmatmul.mubr.f32.gmra.mxu0 %v2117
    %v2256 = vpop.f32.mrf.mxu0
    %v2257 = vadd.f32 0.0, %v2256
    %v2258 = vpop.f32.mrf.mxu0
    %v2259 = vadd.f32 0.0, %v2258
    %2260 = vdwg.mxu0
    %2261 = vmatprep.subr.mxu0 %v2189
    %2262 = vmatpush1.msra.mxu0 %v2188
    %2263 = vmatprep.subr.mxu0 %v2185
    %2264 = vmatpush1.msra.mxu0 %v2184
    %2265 = vmatprep.subr.mxu0 %v2181
    %2266 = vmatpush1.msra.mxu0 %v2180
    %2267 = vmatprep.subr.mxu0 %v2177
    %2268 = vmatpush1.msra.mxu0 %v2176
    %2269 = vmatprep.subr.mxu0 %v2173
    %2270 = vmatpush1.msra.mxu0 %v2172
    %2271 = vmatprep.subr.mxu0 %v2169
    %2272 = vmatpush1.msra.mxu0 %v2168
    %2273 = vmatprep.subr.mxu0 %v2165
    %2274 = vmatpush1.msra.mxu0 %v2164
    %2275 = vmatprep.subr.mxu0 %v2161
    %2276 = vmatpush1.msra.mxu0 %v2160
    %2277 = vmatprep.subr.mxu0 %v2157
    %2278 = vmatpush1.msra.mxu0 %v2156
    %2279 = vmatprep.subr.mxu0 %v2153
    %2280 = vmatpush1.msra.mxu0 %v2152
    %2281 = vmatprep.subr.mxu0 %v2149
    %2282 = vmatpush1.msra.mxu0 %v2148
    %2283 = vmatprep.subr.mxu0 %v2145
    %2284 = vmatpush1.msra.mxu0 %v2144
    %2285 = vmatprep.subr.mxu0 %v2141
    %2286 = vmatpush1.msra.mxu0 %v2140
    %2287 = vmatprep.subr.mxu0 %v2137
    %2288 = vmatpush1.msra.mxu0 %v2136
    %2289 = vmatprep.subr.mxu0 %v2133
    %2290 = vmatpush1.msra.mxu0 %v2132
    %2291 = vmatprep.subr.mxu0 %v2129
    %2292 = vmatpush1.msra.mxu0 %v2128
    %2293 = vmatprep.subr.mxu0 0.0
    %2294 = vmatpush2.msra.mxu0 0.0
    %2295 = vmatprep.subr.mxu0 0.0
    %2296 = vmatpush2.msra.mxu0 0.0
    %2297 = vmatprep.subr.mxu0 0.0
    %2298 = vmatpush2.msra.mxu0 0.0
    %2299 = vmatprep.subr.mxu0 0.0
    %2300 = vmatpush2.msra.mxu0 0.0
    %2301 = vmatprep.subr.mxu0 0.0
    %2302 = vmatpush2.msra.mxu0 0.0
    %2303 = vmatprep.subr.mxu0 0.0
    %2304 = vmatpush2.msra.mxu0 0.0
    %2305 = vmatprep.subr.mxu0 0.0
    %2306 = vmatpush2.msra.mxu0 0.0
    %2307 = vmatprep.subr.mxu0 0.0
    %2308 = vmatpush2.msra.mxu0 0.0
    %2309 = vmatprep.subr.mxu0 0.0
    %2310 = vmatpush2.msra.mxu0 0.0
    %2311 = vmatprep.subr.mxu0 0.0
    %2312 = vmatpush2.msra.mxu0 0.0
    %2313 = vmatprep.subr.mxu0 0.0
    %2314 = vmatpush2.msra.mxu0 0.0
    %2315 = vmatprep.subr.mxu0 0.0
    %2316 = vmatpush2.msra.mxu0 0.0
    %2317 = vmatprep.subr.mxu0 0.0
    %2318 = vmatpush2.msra.mxu0 0.0
    %2319 = vmatprep.subr.mxu0 0.0
    %2320 = vmatpush2.msra.mxu0 0.0
    %2321 = vmatprep.subr.mxu0 0.0
    %2322 = vmatpush2.msra.mxu0 0.0
    %2323 = vmatprep.subr.mxu0 0.0
    %2324 = vmatpush2.msra.mxu0 0.0
    %2325 = vmatprep.mubr.f32.mxu0 0.0
    %2326 = vmatmul.mubr.f32.gmra.mxu0 %v2117
    %v2327 = vpop.f32.mrf.mxu0
    %v2328 = vadd.f32 0.0, %v2327
    %v2329 = vpop.f32.mrf.mxu0
    %v2330 = vadd.f32 0.0, %v2329
    %2331 = vdwg.mxu0
    %v2332 = vadd.f32 %v2122, %v2257
    %v2333 = vadd.f32 %v2123, %v2259
    %v2334 = vadd.f32 %v2124, %v2328
    %v2335 = vadd.f32 %v2125, %v2330
    %v2336 = vxor.u32 %v2332, 2147483648
    %v2337 = vmul.f32 %v2336, 1.442695
    %v2338 = vpow.pop %v2337
    %v2339 = vadd.f32 %v2338, 1.0
    %v2340 = vrcp.pop %v2339
    %v2341 = vmul.f32 1.0, %v2340
    %v2342 = vxor.u32 %v2333, 2147483648
    %v2343 = vmul.f32 %v2342, 1.442695
    %v2344 = vpow.pop %v2343
    %v2345 = vadd.f32 %v2344, 1.0
    %v2346 = vrcp.pop %v2345
    %v2347 = vmul.f32 1.0, %v2346
    %v2348 = vtanh.pop %v2334
    %v2349 = vxor.u32 %v2335, 2147483648
    %v2350 = vmul.f32 %v2349, 1.442695
    %v2351 = vpow.pop %v2350
    %v2352 = vadd.f32 %v2351, 1.0
    %v2353 = vrcp.pop %v2352
    %v2354 = vmul.f32 1.0, %v2353
    %v2355 = vmul.f32 %v2347, %v2118
    %v2356 = vmul.f32 %v2341, %v2348
    %v2357 = vadd.f32 %v2355, %v2356
    %v2358 = vtanh.pop %v2357
    %v2359 = vmul.f32 %v2354, %v2358
    %2360 = vst [vmem:[#allocation3] sm:$0xff] %v2357
    %2361 = vst [vmem:[#allocation2] sm:$0xff] %v2359
    %s2362 = scalar_lea.vmem %s4, 56
    %2363 = vst [vmem:[%s2362] sm:$0xff] %v2359
    // Predicated region
    $region26: #{_forward_jit.4} parent=1 // pred_check
      _
    $region27: #{_forward_jit.4} parent=1 // pred_check_branch
      %2365 = sbr.rel (0) target = $region29
    $region28: #{_forward_jit.4} parent=1 // pred_region
      _
    $region29: #{_forward_jit.4} parent=1 // pred_fallthru
      _
    // Predicated region
    $region30: #{_forward_jit.4} parent=1 // pred_check
      _
    $region31: #{_forward_jit.4} parent=1 // pred_check_branch
      %2367 = sbr.rel (0) target = $region33
    $region32: #{_forward_jit.4} parent=1 // pred_region
      _
    $region33: #{_forward_jit.4} parent=1 // pred_fallthru
      _
    %2368 = vsyncpa [#allocation6], 1

// kernel: _forward_jit.3
$region0: #{_forward_jit.3}
  #allocation0 [shape = 'u32[]', space=smem, size = 0x4, offset = 0x4, fixed_abs, tag = 'smem constant byte address 0x4 - core index']
  #allocation1 [shape = 'u32[144,128]{1,0:T(1,128)}', space=vmem, size = 0x12000, scoped, tag = 'internal scratch']
  #allocation2 [shape = 'f32[8,128]{1,0:T(8,128)}', space=vmem, size = 0x1000, scoped, tag = 'scratch operand']
  #allocation3 [shape = 'f32[8,128]{1,0:T(8,128)}', space=vmem, size = 0x1000, scoped, tag = 'scratch operand']
  #allocation4 [shape = 'f32[64,512]{1,0:T(8,128)}', space=vmem, size = 0x20000, scoped, tag = 'scratch operand']
  %s0 = inlined_call_operand.vmem [shape: f32[1,64,16], index: 0, kind: input, shape index: {}]
  %s1 = inlined_call_operand.hbm [shape: f32[16,512], index: 1, kind: input, shape index: {}]
  %s2 = inlined_call_operand.hbm [shape: f32[128,512], index: 2, kind: input, shape index: {}]
  %s3 = inlined_call_operand.hbm [shape: f32[1,512], index: 3, kind: input, shape index: {}]
  %s4 = inlined_call_operand.vmem [shape: f32[1,64,128], index: 4, kind: output, shape index: {}]
  %s5 = sld [smem:[#allocation0]]
  $region42: #{_forward_jit.3} parent=0
    _
  %s7 = ssub.s32 1, %s5
  %s8 = scalar_select 0, %s7, %s5
  $region1: #{_forward_jit.3} parent=0
    #allocation5 [shape = 'u8[32768]{0}', space=vmem, size = 0x8000, scoped, tag = 'input window, operand 1, single buffered']
    #allocation6 [shape = 's32[1]{0}', space=sflag, size = 0x4, scoped, tag = 'scoped memory for _forward_jit.3']
    #allocation7 [shape = 'u8[262144]{0}', space=vmem, size = 0x40000, scoped, tag = 'input window, operand 2, single buffered']
    #allocation8 [shape = 's32[1]{0}', space=sflag, size = 0x4, scoped, tag = 'scoped memory for _forward_jit.3']
    #allocation9 [shape = 'u8[2048]{0}', space=vmem, size = 0x800, scoped, tag = 'input window, operand 3, single buffered']
    %9 = vsyncpa [#allocation6], 0
    %10 = vsyncpa [#allocation8], 0
    // Predicated region
    $region2: #{_forward_jit.3} parent=1 // pred_check
      _
    $region3: #{_forward_jit.3} parent=1 // pred_check_branch
      %12 = sbr.rel (0) target = $region5
    $region4: #{_forward_jit.3} parent=1 // pred_region
      _
    $region5: #{_forward_jit.3} parent=1 // pred_fallthru
      _
    // Predicated region
    $region6: #{_forward_jit.3} parent=1 // pred_check
      _
    $region7: #{_forward_jit.3} parent=1 // pred_check_branch
      %14 = sbr.rel (0) target = $region9
    $region8: #{_forward_jit.3} parent=1 // pred_region
      %s16 = ssub.s32 1024, 1024
      %17 = vsyncadd [#allocation6], %s16
      %s18 = sshll.u32 [#allocation5], 4
      %s19 = int_to_ptr.vmem [resolvable:$true] %s18
      %24 = dma.hbm_to_vmem [thread:$0]  %s1, 1024, %s19, [#allocation6], 512, 512, 32
    $region9: #{_forward_jit.3} parent=1 // pred_fallthru
      _
    // Predicated region
    $region10: #{_forward_jit.3} parent=1 // pred_check
      _
    $region11: #{_forward_jit.3} parent=1 // pred_check_branch
      %26 = sbr.rel (0) target = $region13
    $region12: #{_forward_jit.3} parent=1 // pred_region
      %s28 = ssub.s32 8192, 8192
      %29 = vsyncadd [#allocation8], %s28
      %s30 = sshll.u32 [#allocation7], 4
      %s31 = int_to_ptr.vmem [resolvable:$true] %s30
      %36 = dma.hbm_to_vmem [thread:$0]  %s2, 8192, %s31, [#allocation8], 512, 512, 32
    $region13: #{_forward_jit.3} parent=1 // pred_fallthru
      _
    // Predicated region
    $region14: #{_forward_jit.3} parent=1 // pred_check
      _
    $region15: #{_forward_jit.3} parent=1 // pred_check_branch
      %38 = sbr.rel (0) target = $region17
    $region16: #{_forward_jit.3} parent=1 // pred_region
      %s40 = ssub.s32 64, 64
      %41 = vsyncadd [#allocation8], %s40
      %s43 = sshll.u32 [#allocation9], 4
      %s44 = int_to_ptr.vmem [resolvable:$true] %s43
      %46 = dma.hbm_to_vmem [thread:$0]  %s3, 64, %s44, [#allocation8]
    $region17: #{_forward_jit.3} parent=1 // pred_fallthru
      _
    // Predicated region
    $region18: #{_forward_jit.3} parent=1 // pred_check
      _
    $region19: #{_forward_jit.3} parent=1 // pred_check_branch
      %48 = sbr.rel (0) target = $region21
    $region20: #{_forward_jit.3} parent=1 // pred_region
      %49 = dma.done [#allocation6], 1024
    $region21: #{_forward_jit.3} parent=1 // pred_fallthru
      _
    // Predicated region
    $region22: #{_forward_jit.3} parent=1 // pred_check
      _
    $region23: #{_forward_jit.3} parent=1 // pred_check_branch
      %51 = sbr.rel (0) target = $region25
    $region24: #{_forward_jit.3} parent=1 // pred_region
      %52 = dma.done [#allocation8], 8192
    $region25: #{_forward_jit.3} parent=1 // pred_fallthru
      _
    // Predicated region
    $region26: #{_forward_jit.3} parent=1 // pred_check
      _
    $region27: #{_forward_jit.3} parent=1 // pred_check_branch
      %54 = sbr.rel (0) target = $region29
    $region28: #{_forward_jit.3} parent=1 // pred_region
      %55 = dma.done [#allocation8], 64
    $region29: #{_forward_jit.3} parent=1 // pred_fallthru
      _
    %p56 = scmp.eq.s32.totalorder 0, 0
    // Predicated region
    $region30: #{_forward_jit.3} parent=1 // pred_check
      %p57 = pneg %p56
    $region31: #{_forward_jit.3} parent=1 // pred_check_branch
      %59 = sbr.rel (%p57) target = $region33
    $region32: #{_forward_jit.3} parent=1 // pred_region
      %60 = vst [vmem:[#allocation2] sm:$0xff] 0.0
      %61 = vst [vmem:[#allocation3] sm:$0xff] 0.0
    $region33: #{_forward_jit.3} parent=1 // pred_fallthru
      _
    %v62 = vld [vmem:[%s0] sm:$0xff]
    %v63 = vld [vmem:[%s0 + $0x8] sm:$0xff]
    %v64 = vld [vmem:[%s0 + $0x10] sm:$0xff]
    %v65 = vld [vmem:[%s0 + $0x18] sm:$0xff]
    %v66 = vld [vmem:[%s0 + $0x20] sm:$0xff]
    %v67 = vld [vmem:[%s0 + $0x28] sm:$0xff]
    %v68 = vld [vmem:[%s0 + $0x30] sm:$0xff]
    %v69 = vld [vmem:[%s0 + $0x38] sm:$0xff]
    %v70 = vld [vmem:[#allocation5] sm:$0xff]
    %v71 = vld [vmem:[#allocation5 + $0x8] sm:$0xff]
    %v72 = vld [vmem:[#allocation5 + $0x10] sm:$0xff]
    %v73 = vld [vmem:[#allocation5 + $0x18] sm:$0xff]
    %v74 = vld [vmem:[#allocation5 + $0x20] sm:$0xff]
    %v75 = vld [vmem:[#allocation5 + $0x28] sm:$0xff]
    %v76 = vld [vmem:[#allocation5 + $0x30] sm:$0xff]
    %v77 = vld [vmem:[#allocation5 + $0x38] sm:$0xff]
    %v78 = vld [vmem:[#allocation9] sm:$0xf]
    %v80 = vlaneseq
    %v81 = vshrl.u32 %v80, 7
    %v82 = vsub.s32 0, %v81
    %v83 = vrot.slane %v78, %v82
    %v84 = vlaneseq
    %v85 = vshrl.u32 %v84, 7
    %v86 = vsub.s32 1, %v85
    %v87 = vrot.slane %v78, %v86
    %v88 = vlaneseq
    %v89 = vshrl.u32 %v88, 7
    %v90 = vsub.s32 2, %v89
    %v91 = vrot.slane %v78, %v90
    %v92 = vlaneseq
    %v93 = vshrl.u32 %v92, 7
    %v94 = vsub.s32 3, %v93
    %v95 = vrot.slane %v78, %v94
    %vm100 = vcmask 130048
    %v102 = vsel %vm100, %v62, 0
    %v105 = vsel %vm100, %v63, 0
    %v108 = vsel %vm100, %v64, 0
    %v111 = vsel %vm100, %v65, 0
    %v114 = vsel %vm100, %v66, 0
    %v117 = vsel %vm100, %v67, 0
    %v120 = vsel %vm100, %v68, 0
    %v123 = vsel %vm100, %v69, 0
    %125 = vmatprep.subr.mxu0 0.0
    %126 = vmatpush1.msra.mxu0 0.0
    %127 = vmatprep.subr.mxu0 0.0
    %128 = vmatpush1.msra.mxu0 0.0
    %129 = vmatprep.subr.mxu0 0.0
    %130 = vmatpush1.msra.mxu0 0.0
    %131 = vmatprep.subr.mxu0 0.0
    %132 = vmatpush1.msra.mxu0 0.0
    %133 = vmatprep.subr.mxu0 0.0
    %134 = vmatpush1.msra.mxu0 0.0
    %135 = vmatprep.subr.mxu0 0.0
    %136 = vmatpush1.msra.mxu0 0.0
    %137 = vmatprep.subr.mxu0 0.0
    %138 = vmatpush1.msra.mxu0 0.0
    %139 = vmatprep.subr.mxu0 0.0
    %140 = vmatpush1.msra.mxu0 0.0
    %141 = vmatprep.subr.mxu0 0.0
    %142 = vmatpush1.msra.mxu0 0.0
    %143 = vmatprep.subr.mxu0 0.0
    %144 = vmatpush1.msra.mxu0 0.0
    %145 = vmatprep.subr.mxu0 0.0
    %146 = vmatpush1.msra.mxu0 0.0
    %147 = vmatprep.subr.mxu0 0.0
    %148 = vmatpush1.msra.mxu0 0.0
    %149 = vmatprep.subr.mxu0 0.0
    %150 = vmatpush1.msra.mxu0 0.0
    %151 = vmatprep.subr.mxu0 0.0
    %152 = vmatpush1.msra.mxu0 0.0
    %153 = vmatprep.subr.mxu0 %v75
    %154 = vmatpush1.msra.mxu0 %v74
    %155 = vmatprep.subr.mxu0 %v71
    %156 = vmatpush1.msra.mxu0 %v70
    %157 = vmatprep.subr.mxu0 0.0
    %158 = vmatpush2.msra.mxu0 0.0
    %159 = vmatprep.subr.mxu0 0.0
    %160 = vmatpush2.msra.mxu0 0.0
    %161 = vmatprep.subr.mxu0 0.0
    %162 = vmatpush2.msra.mxu0 0.0
    %163 = vmatprep.subr.mxu0 0.0
    %164 = vmatpush2.msra.mxu0 0.0
    %165 = vmatprep.subr.mxu0 0.0
    %166 = vmatpush2.msra.mxu0 0.0
    %167 = vmatprep.subr.mxu0 0.0
    %168 = vmatpush2.msra.mxu0 0.0
    %169 = vmatprep.subr.mxu0 0.0
    %170 = vmatpush2.msra.mxu0 0.0
    %171 = vmatprep.subr.mxu0 0.0
    %172 = vmatpush2.msra.mxu0 0.0
    %173 = vmatprep.subr.mxu0 0.0
    %174 = vmatpush2.msra.mxu0 0.0
    %175 = vmatprep.subr.mxu0 0.0
    %176 = vmatpush2.msra.mxu0 0.0
    %177 = vmatprep.subr.mxu0 0.0
    %178 = vmatpush2.msra.mxu0 0.0
    %179 = vmatprep.subr.mxu0 0.0
    %180 = vmatpush2.msra.mxu0 0.0
    %181 = vmatprep.subr.mxu0 0.0
    %182 = vmatpush2.msra.mxu0 0.0
    %183 = vmatprep.subr.mxu0 0.0
    %184 = vmatpush2.msra.mxu0 0.0
    %185 = vmatprep.subr.mxu0 0.0
    %186 = vmatpush2.msra.mxu0 0.0
    %187 = vmatprep.subr.mxu0 0.0
    %188 = vmatpush2.msra.mxu0 0.0
    %189 = vmatprep.mubr.f32.mxu0 0.0
    %190 = vmatmul.mubr.f32.gmra.mxu0 %v102
    %v191 = vpop.f32.mrf.mxu0
    %v192 = vadd.f32 %v83, %v191
    %v193 = vpop.f32.mrf.mxu0
    %v194 = vadd.f32 %v87, %v193
    %195 = vmatprep.mubr.f32.mxu0 0.0
    %196 = vmatmul.mubr.f32.gmra.mxu0 %v105
    %v197 = vpop.f32.mrf.mxu0
    %v198 = vadd.f32 %v83, %v197
    %v199 = vpop.f32.mrf.mxu0
    %v200 = vadd.f32 %v87, %v199
    %201 = vmatprep.mubr.f32.mxu0 0.0
    %202 = vmatmul.mubr.f32.gmra.mxu0 %v108
    %v203 = vpop.f32.mrf.mxu0
    %v204 = vadd.f32 %v83, %v203
    %v205 = vpop.f32.mrf.mxu0
    %v206 = vadd.f32 %v87, %v205
    %207 = vmatprep.mubr.f32.mxu0 0.0
    %208 = vmatmul.mubr.f32.gmra.mxu0 %v111
    %v209 = vpop.f32.mrf.mxu0
    %v210 = vadd.f32 %v83, %v209
    %v211 = vpop.f32.mrf.mxu0
    %v212 = vadd.f32 %v87, %v211
    %213 = vmatprep.mubr.f32.mxu0 0.0
    %214 = vmatmul.mubr.f32.gmra.mxu0 %v114
    %v215 = vpop.f32.mrf.mxu0
    %v216 = vadd.f32 %v83, %v215
    %v217 = vpop.f32.mrf.mxu0
    %v218 = vadd.f32 %v87, %v217
    %219 = vmatprep.mubr.f32.mxu0 0.0
    %220 = vmatmul.mubr.f32.gmra.mxu0 %v117
    %v221 = vpop.f32.mrf.mxu0
    %v222 = vadd.f32 %v83, %v221
    %v223 = vpop.f32.mrf.mxu0
    %v224 = vadd.f32 %v87, %v223
    %225 = vmatprep.mubr.f32.mxu0 0.0
    %226 = vmatmul.mubr.f32.gmra.mxu0 %v120
    %v227 = vpop.f32.mrf.mxu0
    %v228 = vadd.f32 %v83, %v227
    %v229 = vpop.f32.mrf.mxu0
    %v230 = vadd.f32 %v87, %v229
    %231 = vmatprep.mubr.f32.mxu0 0.0
    %232 = vmatmul.mubr.f32.gmra.mxu0 %v123
    %v233 = vpop.f32.mrf.mxu0
    %v234 = vadd.f32 %v83, %v233
    %v235 = vpop.f32.mrf.mxu0
    %v236 = vadd.f32 %v87, %v235
    %237 = vdwg.mxu0
    %238 = vmatprep.subr.mxu0 0.0
    %239 = vmatpush1.msra.mxu0 0.0
    %240 = vmatprep.subr.mxu0 0.0
    %241 = vmatpush1.msra.mxu0 0.0
    %242 = vmatprep.subr.mxu0 0.0
    %243 = vmatpush1.msra.mxu0 0.0
    %244 = vmatprep.subr.mxu0 0.0
    %245 = vmatpush1.msra.mxu0 0.0
    %246 = vmatprep.subr.mxu0 0.0
    %247 = vmatpush1.msra.mxu0 0.0
    %248 = vmatprep.subr.mxu0 0.0
    %249 = vmatpush1.msra.mxu0 0.0
    %250 = vmatprep.subr.mxu0 0.0
    %251 = vmatpush1.msra.mxu0 0.0
    %252 = vmatprep.subr.mxu0 0.0
    %253 = vmatpush1.msra.mxu0 0.0
    %254 = vmatprep.subr.mxu0 0.0
    %255 = vmatpush1.msra.mxu0 0.0
    %256 = vmatprep.subr.mxu0 0.0
    %257 = vmatpush1.msra.mxu0 0.0
    %258 = vmatprep.subr.mxu0 0.0
    %259 = vmatpush1.msra.mxu0 0.0
    %260 = vmatprep.subr.mxu0 0.0
    %261 = vmatpush1.msra.mxu0 0.0
    %262 = vmatprep.subr.mxu0 0.0
    %263 = vmatpush1.msra.mxu0 0.0
    %264 = vmatprep.subr.mxu0 0.0
    %265 = vmatpush1.msra.mxu0 0.0
    %266 = vmatprep.subr.mxu0 %v77
    %267 = vmatpush1.msra.mxu0 %v76
    %268 = vmatprep.subr.mxu0 %v73
    %269 = vmatpush1.msra.mxu0 %v72
    %270 = vmatprep.subr.mxu0 0.0
    %271 = vmatpush2.msra.mxu0 0.0
    %272 = vmatprep.subr.mxu0 0.0
    %273 = vmatpush2.msra.mxu0 0.0
    %274 = vmatprep.subr.mxu0 0.0
    %275 = vmatpush2.msra.mxu0 0.0
    %276 = vmatprep.subr.mxu0 0.0
    %277 = vmatpush2.msra.mxu0 0.0
    %278 = vmatprep.subr.mxu0 0.0
    %279 = vmatpush2.msra.mxu0 0.0
    %280 = vmatprep.subr.mxu0 0.0
    %281 = vmatpush2.msra.mxu0 0.0
    %282 = vmatprep.subr.mxu0 0.0
    %283 = vmatpush2.msra.mxu0 0.0
    %284 = vmatprep.subr.mxu0 0.0
    %285 = vmatpush2.msra.mxu0 0.0
    %286 = vmatprep.subr.mxu0 0.0
    %287 = vmatpush2.msra.mxu0 0.0
    %288 = vmatprep.subr.mxu0 0.0
    %289 = vmatpush2.msra.mxu0 0.0
    %290 = vmatprep.subr.mxu0 0.0
    %291 = vmatpush2.msra.mxu0 0.0
    %292 = vmatprep.subr.mxu0 0.0
    %293 = vmatpush2.msra.mxu0 0.0
    %294 = vmatprep.subr.mxu0 0.0
    %295 = vmatpush2.msra.mxu0 0.0
    %296 = vmatprep.subr.mxu0 0.0
    %297 = vmatpush2.msra.mxu0 0.0
    %298 = vmatprep.subr.mxu0 0.0
    %299 = vmatpush2.msra.mxu0 0.0
    %300 = vmatprep.subr.mxu0 0.0
    %301 = vmatpush2.msra.mxu0 0.0
    %302 = vmatprep.mubr.f32.mxu0 0.0
    %303 = vmatmul.mubr.f32.gmra.mxu0 %v102
    %v304 = vpop.f32.mrf.mxu0
    %v305 = vadd.f32 %v91, %v304
    %v306 = vpop.f32.mrf.mxu0
    %v307 = vadd.f32 %v95, %v306
    %308 = vmatprep.mubr.f32.mxu0 0.0
    %309 = vmatmul.mubr.f32.gmra.mxu0 %v105
    %v310 = vpop.f32.mrf.mxu0
    %v311 = vadd.f32 %v91, %v310
    %v312 = vpop.f32.mrf.mxu0
    %v313 = vadd.f32 %v95, %v312
    %314 = vmatprep.mubr.f32.mxu0 0.0
    %315 = vmatmul.mubr.f32.gmra.mxu0 %v108
    %v316 = vpop.f32.mrf.mxu0
    %v317 = vadd.f32 %v91, %v316
    %v318 = vpop.f32.mrf.mxu0
    %v319 = vadd.f32 %v95, %v318
    %320 = vmatprep.mubr.f32.mxu0 0.0
    %321 = vmatmul.mubr.f32.gmra.mxu0 %v111
    %v322 = vpop.f32.mrf.mxu0
    %v323 = vadd.f32 %v91, %v322
    %v324 = vpop.f32.mrf.mxu0
    %v325 = vadd.f32 %v95, %v324
    %326 = vmatprep.mubr.f32.mxu0 0.0
    %327 = vmatmul.mubr.f32.gmra.mxu0 %v114
    %v328 = vpop.f32.mrf.mxu0
    %v329 = vadd.f32 %v91, %v328
    %v330 = vpop.f32.mrf.mxu0
    %v331 = vadd.f32 %v95, %v330
    %332 = vmatprep.mubr.f32.mxu0 0.0
    %333 = vmatmul.mubr.f32.gmra.mxu0 %v117
    %v334 = vpop.f32.mrf.mxu0
    %v335 = vadd.f32 %v91, %v334
    %v336 = vpop.f32.mrf.mxu0
    %v337 = vadd.f32 %v95, %v336
    %338 = vmatprep.mubr.f32.mxu0 0.0
    %339 = vmatmul.mubr.f32.gmra.mxu0 %v120
    %v340 = vpop.f32.mrf.mxu0
    %v341 = vadd.f32 %v91, %v340
    %v342 = vpop.f32.mrf.mxu0
    %v343 = vadd.f32 %v95, %v342
    %344 = vmatprep.mubr.f32.mxu0 0.0
    %345 = vmatmul.mubr.f32.gmra.mxu0 %v123
    %v346 = vpop.f32.mrf.mxu0
    %v347 = vadd.f32 %v91, %v346
    %v348 = vpop.f32.mrf.mxu0
    %v349 = vadd.f32 %v95, %v348
    %350 = vdwg.mxu0
    %351 = vst [vmem:[#allocation4] sm:$0xff] %v192
    %352 = vst [vmem:[#allocation4 + $0x8] sm:$0xff] %v194
    %353 = vst [vmem:[#allocation4 + $0x10] sm:$0xff] %v305
    %354 = vst [vmem:[#allocation4 + $0x18] sm:$0xff] %v307
    %355 = vst [vmem:[#allocation4 + $0x20] sm:$0xff] %v198
    %356 = vst [vmem:[#allocation4 + $0x28] sm:$0xff] %v200
    %357 = vst [vmem:[#allocation4 + $0x30] sm:$0xff] %v311
    %358 = vst [vmem:[#allocation4 + $0x38] sm:$0xff] %v313
    %359 = vst [vmem:[#allocation4 + $0x40] sm:$0xff] %v204
    %360 = vst [vmem:[#allocation4 + $0x48] sm:$0xff] %v206
    %361 = vst [vmem:[#allocation4 + $0x50] sm:$0xff] %v317
    %362 = vst [vmem:[#allocation4 + $0x58] sm:$0xff] %v319
    %363 = vst [vmem:[#allocation4 + $0x60] sm:$0xff] %v210
    %364 = vst [vmem:[#allocation4 + $0x68] sm:$0xff] %v212
    %365 = vst [vmem:[#allocation4 + $0x70] sm:$0xff] %v323
    %366 = vst [vmem:[#allocation4 + $0x78] sm:$0xff] %v325
    %367 = vst [vmem:[#allocation4 + $0x80] sm:$0xff] %v216
    %368 = vst [vmem:[#allocation4 + $0x88] sm:$0xff] %v218
    %369 = vst [vmem:[#allocation4 + $0x90] sm:$0xff] %v329
    %370 = vst [vmem:[#allocation4 + $0x98] sm:$0xff] %v331
    %371 = vst [vmem:[#allocation4 + $0xa0] sm:$0xff] %v222
    %372 = vst [vmem:[#allocation4 + $0xa8] sm:$0xff] %v224
    %373 = vst [vmem:[#allocation4 + $0xb0] sm:$0xff] %v335
    %374 = vst [vmem:[#allocation4 + $0xb8] sm:$0xff] %v337
    %375 = vst [vmem:[#allocation4 + $0xc0] sm:$0xff] %v228
    %376 = vst [vmem:[#allocation4 + $0xc8] sm:$0xff] %v230
    %377 = vst [vmem:[#allocation4 + $0xd0] sm:$0xff] %v341
    %378 = vst [vmem:[#allocation4 + $0xd8] sm:$0xff] %v343
    %379 = vst [vmem:[#allocation4 + $0xe0] sm:$0xff] %v234
    %380 = vst [vmem:[#allocation4 + $0xe8] sm:$0xff] %v236
    %381 = vst [vmem:[#allocation4 + $0xf0] sm:$0xff] %v347
    %382 = vst [vmem:[#allocation4 + $0xf8] sm:$0xff] %v349
    %v383 = vld [vmem:[#allocation2] sm:$0xff]
    %v384 = vld [vmem:[#allocation3] sm:$0xff]
    %s385 = smul.u32 0, 4
    %s386 = smul.addr %s385, 8
    %s387 = scalar_lea.vmem [#allocation4], %s386
    %v388 = vld [vmem:[%s387] sm:$0xff]
    %v389 = vld [vmem:[%s387 + $0x8] sm:$0xff]
    %v390 = vld [vmem:[%s387 + $0x10] sm:$0xff]
    %v391 = vld [vmem:[%s387 + $0x18] sm:$0xff]
    %v392 = vld [vmem:[#allocation7] sm:$0xff]
    %v393 = vld [vmem:[#allocation7 + $0x8] sm:$0xff]
    %v394 = vld [vmem:[#allocation7 + $0x10] sm:$0xff]
    %v395 = vld [vmem:[#allocation7 + $0x18] sm:$0xff]
    %v396 = vld [vmem:[#allocation7 + $0x20] sm:$0xff]
    %v397 = vld [vmem:[#allocation7 + $0x28] sm:$0xff]
    %v398 = vld [vmem:[#allocation7 + $0x30] sm:$0xff]
    %v399 = vld [vmem:[#allocation7 + $0x38] sm:$0xff]
    %v400 = vld [vmem:[#allocation7 + $0x40] sm:$0xff]
    %v401 = vld [vmem:[#allocation7 + $0x48] sm:$0xff]
    %v402 = vld [vmem:[#allocation7 + $0x50] sm:$0xff]
    %v403 = vld [vmem:[#allocation7 + $0x58] sm:$0xff]
    %v404 = vld [vmem:[#allocation7 + $0x60] sm:$0xff]
    %v405 = vld [vmem:[#allocation7 + $0x68] sm:$0xff]
    %v406 = vld [vmem:[#allocation7 + $0x70] sm:$0xff]
    %v407 = vld [vmem:[#allocation7 + $0x78] sm:$0xff]
    %v408 = vld [vmem:[#allocation7 + $0x80] sm:$0xff]
    %v409 = vld [vmem:[#allocation7 + $0x88] sm:$0xff]
    %v410 = vld [vmem:[#allocation7 + $0x90] sm:$0xff]
    %v411 = vld [vmem:[#allocation7 + $0x98] sm:$0xff]
    %v412 = vld [vmem:[#allocation7 + $0xa0] sm:$0xff]
    %v413 = vld [vmem:[#allocation7 + $0xa8] sm:$0xff]
    %v414 = vld [vmem:[#allocation7 + $0xb0] sm:$0xff]
    %v415 = vld [vmem:[#allocation7 + $0xb8] sm:$0xff]
    %v416 = vld [vmem:[#allocation7 + $0xc0] sm:$0xff]
    %v417 = vld [vmem:[#allocation7 + $0xc8] sm:$0xff]
    %v418 = vld [vmem:[#allocation7 + $0xd0] sm:$0xff]
    %v419 = vld [vmem:[#allocation7 + $0xd8] sm:$0xff]
    %v420 = vld [vmem:[#allocation7 + $0xe0] sm:$0xff]
    %v421 = vld [vmem:[#allocation7 + $0xe8] sm:$0xff]
    %v422 = vld [vmem:[#allocation7 + $0xf0] sm:$0xff]
    %v423 = vld [vmem:[#allocation7 + $0xf8] sm:$0xff]
    %v424 = vld [vmem:[#allocation7 + $0x100] sm:$0xff]
    %v425 = vld [vmem:[#allocation7 + $0x108] sm:$0xff]
    %v426 = vld [vmem:[#allocation7 + $0x110] sm:$0xff]
    %v427 = vld [vmem:[#allocation7 + $0x118] sm:$0xff]
    %v428 = vld [vmem:[#allocation7 + $0x120] sm:$0xff]
    %v429 = vld [vmem:[#allocation7 + $0x128] sm:$0xff]
    %v430 = vld [vmem:[#allocation7 + $0x130] sm:$0xff]
    %v431 = vld [vmem:[#allocation7 + $0x138] sm:$0xff]
    %v432 = vld [vmem:[#allocation7 + $0x140] sm:$0xff]
    %v433 = vld [vmem:[#allocation7 + $0x148] sm:$0xff]
    %v434 = vld [vmem:[#allocation7 + $0x150] sm:$0xff]
    %v435 = vld [vmem:[#allocation7 + $0x158] sm:$0xff]
    %v436 = vld [vmem:[#allocation7 + $0x160] sm:$0xff]
    %v437 = vld [vmem:[#allocation7 + $0x168] sm:$0xff]
    %v438 = vld [vmem:[#allocation7 + $0x170] sm:$0xff]
    %v439 = vld [vmem:[#allocation7 + $0x178] sm:$0xff]
    %v440 = vld [vmem:[#allocation7 + $0x180] sm:$0xff]
    %v441 = vld [vmem:[#allocation7 + $0x188] sm:$0xff]
    %v442 = vld [vmem:[#allocation7 + $0x190] sm:$0xff]
    %v443 = vld [vmem:[#allocation7 + $0x198] sm:$0xff]
    %v444 = vld [vmem:[#allocation7 + $0x1a0] sm:$0xff]
    %v445 = vld [vmem:[#allocation7 + $0x1a8] sm:$0xff]
    %v446 = vld [vmem:[#allocation7 + $0x1b0] sm:$0xff]
    %v447 = vld [vmem:[#allocation7 + $0x1b8] sm:$0xff]
    %v448 = vld [vmem:[#allocation7 + $0x1c0] sm:$0xff]
    %v449 = vld [vmem:[#allocation7 + $0x1c8] sm:$0xff]
    %v450 = vld [vmem:[#allocation7 + $0x1d0] sm:$0xff]
    %v451 = vld [vmem:[#allocation7 + $0x1d8] sm:$0xff]
    %v452 = vld [vmem:[#allocation7 + $0x1e0] sm:$0xff]
    %v453 = vld [vmem:[#allocation7 + $0x1e8] sm:$0xff]
    %v454 = vld [vmem:[#allocation7 + $0x1f0] sm:$0xff]
    %v455 = vld [vmem:[#allocation7 + $0x1f8] sm:$0xff]
    %456 = vmatprep.subr.mxu0 %v453
    %457 = vmatpush1.msra.mxu0 %v452
    %458 = vmatprep.subr.mxu0 %v449
    %459 = vmatpush1.msra.mxu0 %v448
    %460 = vmatprep.subr.mxu0 %v445
    %461 = vmatpush1.msra.mxu0 %v444
    %462 = vmatprep.subr.mxu0 %v441
    %463 = vmatpush1.msra.mxu0 %v440
    %464 = vmatprep.subr.mxu0 %v437
    %465 = vmatpush1.msra.mxu0 %v436
    %466 = vmatprep.subr.mxu0 %v433
    %467 = vmatpush1.msra.mxu0 %v432
    %468 = vmatprep.subr.mxu0 %v429
    %469 = vmatpush1.msra.mxu0 %v428
    %470 = vmatprep.subr.mxu0 %v425
    %471 = vmatpush1.msra.mxu0 %v424
    %472 = vmatprep.subr.mxu0 %v421
    %473 = vmatpush1.msra.mxu0 %v420
    %474 = vmatprep.subr.mxu0 %v417
    %475 = vmatpush1.msra.mxu0 %v416
    %476 = vmatprep.subr.mxu0 %v413
    %477 = vmatpush1.msra.mxu0 %v412
    %478 = vmatprep.subr.mxu0 %v409
    %479 = vmatpush1.msra.mxu0 %v408
    %480 = vmatprep.subr.mxu0 %v405
    %481 = vmatpush1.msra.mxu0 %v404
    %482 = vmatprep.subr.mxu0 %v401
    %483 = vmatpush1.msra.mxu0 %v400
    %484 = vmatprep.subr.mxu0 %v397
    %485 = vmatpush1.msra.mxu0 %v396
    %486 = vmatprep.subr.mxu0 %v393
    %487 = vmatpush1.msra.mxu0 %v392
    %488 = vmatprep.subr.mxu0 0.0
    %489 = vmatpush2.msra.mxu0 0.0
    %490 = vmatprep.subr.mxu0 0.0
    %491 = vmatpush2.msra.mxu0 0.0
    %492 = vmatprep.subr.mxu0 0.0
    %493 = vmatpush2.msra.mxu0 0.0
    %494 = vmatprep.subr.mxu0 0.0
    %495 = vmatpush2.msra.mxu0 0.0
    %496 = vmatprep.subr.mxu0 0.0
    %497 = vmatpush2.msra.mxu0 0.0
    %498 = vmatprep.subr.mxu0 0.0
    %499 = vmatpush2.msra.mxu0 0.0
    %500 = vmatprep.subr.mxu0 0.0
    %501 = vmatpush2.msra.mxu0 0.0
    %502 = vmatprep.subr.mxu0 0.0
    %503 = vmatpush2.msra.mxu0 0.0
    %504 = vmatprep.subr.mxu0 0.0
    %505 = vmatpush2.msra.mxu0 0.0
    %506 = vmatprep.subr.mxu0 0.0
    %507 = vmatpush2.msra.mxu0 0.0
    %508 = vmatprep.subr.mxu0 0.0
    %509 = vmatpush2.msra.mxu0 0.0
    %510 = vmatprep.subr.mxu0 0.0
    %511 = vmatpush2.msra.mxu0 0.0
    %512 = vmatprep.subr.mxu0 0.0
    %513 = vmatpush2.msra.mxu0 0.0
    %514 = vmatprep.subr.mxu0 0.0
    %515 = vmatpush2.msra.mxu0 0.0
    %516 = vmatprep.subr.mxu0 0.0
    %517 = vmatpush2.msra.mxu0 0.0
    %518 = vmatprep.subr.mxu0 0.0
    %519 = vmatpush2.msra.mxu0 0.0
    %520 = vmatprep.mubr.f32.mxu0 0.0
    %521 = vmatmul.mubr.f32.gmra.mxu0 %v383
    %v522 = vpop.f32.mrf.mxu0
    %v523 = vadd.f32 0.0, %v522
    %v524 = vpop.f32.mrf.mxu0
    %v525 = vadd.f32 0.0, %v524
    %526 = vdwg.mxu0
    %527 = vmatprep.subr.mxu0 %v455
    %528 = vmatpush1.msra.mxu0 %v454
    %529 = vmatprep.subr.mxu0 %v451
    %530 = vmatpush1.msra.mxu0 %v450
    %531 = vmatprep.subr.mxu0 %v447
    %532 = vmatpush1.msra.mxu0 %v446
    %533 = vmatprep.subr.mxu0 %v443
    %534 = vmatpush1.msra.mxu0 %v442
    %535 = vmatprep.subr.mxu0 %v439
    %536 = vmatpush1.msra.mxu0 %v438
    %537 = vmatprep.subr.mxu0 %v435
    %538 = vmatpush1.msra.mxu0 %v434
    %539 = vmatprep.subr.mxu0 %v431
    %540 = vmatpush1.msra.mxu0 %v430
    %541 = vmatprep.subr.mxu0 %v427
    %542 = vmatpush1.msra.mxu0 %v426
    %543 = vmatprep.subr.mxu0 %v423
    %544 = vmatpush1.msra.mxu0 %v422
    %545 = vmatprep.subr.mxu0 %v419
    %546 = vmatpush1.msra.mxu0 %v418
    %547 = vmatprep.subr.mxu0 %v415
    %548 = vmatpush1.msra.mxu0 %v414
    %549 = vmatprep.subr.mxu0 %v411
    %550 = vmatpush1.msra.mxu0 %v410
    %551 = vmatprep.subr.mxu0 %v407
    %552 = vmatpush1.msra.mxu0 %v406
    %553 = vmatprep.subr.mxu0 %v403
    %554 = vmatpush1.msra.mxu0 %v402
    %555 = vmatprep.subr.mxu0 %v399
    %556 = vmatpush1.msra.mxu0 %v398
    %557 = vmatprep.subr.mxu0 %v395
    %558 = vmatpush1.msra.mxu0 %v394
    %559 = vmatprep.subr.mxu0 0.0
    %560 = vmatpush2.msra.mxu0 0.0
    %561 = vmatprep.subr.mxu0 0.0
    %562 = vmatpush2.msra.mxu0 0.0
    %563 = vmatprep.subr.mxu0 0.0
    %564 = vmatpush2.msra.mxu0 0.0
    %565 = vmatprep.subr.mxu0 0.0
    %566 = vmatpush2.msra.mxu0 0.0
    %567 = vmatprep.subr.mxu0 0.0
    %568 = vmatpush2.msra.mxu0 0.0
    %569 = vmatprep.subr.mxu0 0.0
    %570 = vmatpush2.msra.mxu0 0.0
    %571 = vmatprep.subr.mxu0 0.0
    %572 = vmatpush2.msra.mxu0 0.0
    %573 = vmatprep.subr.mxu0 0.0
    %574 = vmatpush2.msra.mxu0 0.0
    %575 = vmatprep.subr.mxu0 0.0
    %576 = vmatpush2.msra.mxu0 0.0
    %577 = vmatprep.subr.mxu0 0.0
    %578 = vmatpush2.msra.mxu0 0.0
    %579 = vmatprep.subr.mxu0 0.0
    %580 = vmatpush2.msra.mxu0 0.0
    %581 = vmatprep.subr.mxu0 0.0
    %582 = vmatpush2.msra.mxu0 0.0
    %583 = vmatprep.subr.mxu0 0.0
    %584 = vmatpush2.msra.mxu0 0.0
    %585 = vmatprep.subr.mxu0 0.0
    %586 = vmatpush2.msra.mxu0 0.0
    %587 = vmatprep.subr.mxu0 0.0
    %588 = vmatpush2.msra.mxu0 0.0
    %589 = vmatprep.subr.mxu0 0.0
    %590 = vmatpush2.msra.mxu0 0.0
    %591 = vmatprep.mubr.f32.mxu0 0.0
    %592 = vmatmul.mubr.f32.gmra.mxu0 %v383
    %v593 = vpop.f32.mrf.mxu0
    %v594 = vadd.f32 0.0, %v593
    %v595 = vpop.f32.mrf.mxu0
    %v596 = vadd.f32 0.0, %v595
    %597 = vdwg.mxu0
    %v598 = vadd.f32 %v388, %v523
    %v599 = vadd.f32 %v389, %v525
    %v600 = vadd.f32 %v390, %v594
    %v601 = vadd.f32 %v391, %v596
    %v602 = vxor.u32 %v598, 2147483648
    %v603 = vmul.f32 %v602, 1.442695
    %v604 = vpow.pop %v603
    %v605 = vadd.f32 %v604, 1.0
    %v606 = vrcp.pop %v605
    %v607 = vmul.f32 1.0, %v606
    %v608 = vxor.u32 %v599, 2147483648
    %v609 = vmul.f32 %v608, 1.442695
    %v610 = vpow.pop %v609
    %v611 = vadd.f32 %v610, 1.0
    %v612 = vrcp.pop %v611
    %v613 = vmul.f32 1.0, %v612
    %v614 = vtanh.pop %v600
    %v615 = vxor.u32 %v601, 2147483648
    %v616 = vmul.f32 %v615, 1.442695
    %v617 = vpow.pop %v616
    %v618 = vadd.f32 %v617, 1.0
    %v619 = vrcp.pop %v618
    %v620 = vmul.f32 1.0, %v619
    %v621 = vmul.f32 %v613, %v384
    %v622 = vmul.f32 %v607, %v614
    %v623 = vadd.f32 %v621, %v622
    %v624 = vtanh.pop %v623
    %v625 = vmul.f32 %v620, %v624
    %626 = vst [vmem:[#allocation3] sm:$0xff] %v623
    %627 = vst [vmem:[#allocation2] sm:$0xff] %v625
    %628 = vst [vmem:[%s4] sm:$0xff] %v625
    %v629 = vld [vmem:[#allocation2] sm:$0xff]
    %v630 = vld [vmem:[#allocation3] sm:$0xff]
    %s631 = smul.u32 1, 4
    %s632 = smul.addr %s631, 8
    %s633 = scalar_lea.vmem [#allocation4], %s632
    %v634 = vld [vmem:[%s633] sm:$0xff]
    %v635 = vld [vmem:[%s633 + $0x8] sm:$0xff]
    %v636 = vld [vmem:[%s633 + $0x10] sm:$0xff]
    %v637 = vld [vmem:[%s633 + $0x18] sm:$0xff]
    %v638 = vld [vmem:[#allocation7] sm:$0xff]
    %v639 = vld [vmem:[#allocation7 + $0x8] sm:$0xff]
    %v640 = vld [vmem:[#allocation7 + $0x10] sm:$0xff]
    %v641 = vld [vmem:[#allocation7 + $0x18] sm:$0xff]
    %v642 = vld [vmem:[#allocation7 + $0x20] sm:$0xff]
    %v643 = vld [vmem:[#allocation7 + $0x28] sm:$0xff]
    %v644 = vld [vmem:[#allocation7 + $0x30] sm:$0xff]
    %v645 = vld [vmem:[#allocation7 + $0x38] sm:$0xff]
    %v646 = vld [vmem:[#allocation7 + $0x40] sm:$0xff]
    %v647 = vld [vmem:[#allocation7 + $0x48] sm:$0xff]
    %v648 = vld [vmem:[#allocation7 + $0x50] sm:$0xff]
    %v649 = vld [vmem:[#allocation7 + $0x58] sm:$0xff]
    %v650 = vld [vmem:[#allocation7 + $0x60] sm:$0xff]
    %v651 = vld [vmem:[#allocation7 + $0x68] sm:$0xff]
    %v652 = vld [vmem:[#allocation7 + $0x70] sm:$0xff]
    %v653 = vld [vmem:[#allocation7 + $0x78] sm:$0xff]
    %v654 = vld [vmem:[#allocation7 + $0x80] sm:$0xff]
    %v655 = vld [vmem:[#allocation7 + $0x88] sm:$0xff]
    %v656 = vld [vmem:[#allocation7 + $0x90] sm:$0xff]
    %v657 = vld [vmem:[#allocation7 + $0x98] sm:$0xff]
    %v658 = vld [vmem:[#allocation7 + $0xa0] sm:$0xff]
    %v659 = vld [vmem:[#allocation7 + $0xa8] sm:$0xff]
    %v660 = vld [vmem:[#allocation7 + $0xb0] sm:$0xff]
    %v661 = vld [vmem:[#allocation7 + $0xb8] sm:$0xff]
    %v662 = vld [vmem:[#allocation7 + $0xc0] sm:$0xff]
    %v663 = vld [vmem:[#allocation7 + $0xc8] sm:$0xff]
    %v664 = vld [vmem:[#allocation7 + $0xd0] sm:$0xff]
    %v665 = vld [vmem:[#allocation7 + $0xd8] sm:$0xff]
    %v666 = vld [vmem:[#allocation7 + $0xe0] sm:$0xff]
    %v667 = vld [vmem:[#allocation7 + $0xe8] sm:$0xff]
    %v668 = vld [vmem:[#allocation7 + $0xf0] sm:$0xff]
    %v669 = vld [vmem:[#allocation7 + $0xf8] sm:$0xff]
    %v670 = vld [vmem:[#allocation7 + $0x100] sm:$0xff]
    %v671 = vld [vmem:[#allocation7 + $0x108] sm:$0xff]
    %v672 = vld [vmem:[#allocation7 + $0x110] sm:$0xff]
    %v673 = vld [vmem:[#allocation7 + $0x118] sm:$0xff]
    %v674 = vld [vmem:[#allocation7 + $0x120] sm:$0xff]
    %v675 = vld [vmem:[#allocation7 + $0x128] sm:$0xff]
    %v676 = vld [vmem:[#allocation7 + $0x130] sm:$0xff]
    %v677 = vld [vmem:[#allocation7 + $0x138] sm:$0xff]
    %v678 = vld [vmem:[#allocation7 + $0x140] sm:$0xff]
    %v679 = vld [vmem:[#allocation7 + $0x148] sm:$0xff]
    %v680 = vld [vmem:[#allocation7 + $0x150] sm:$0xff]
    %v681 = vld [vmem:[#allocation7 + $0x158] sm:$0xff]
    %v682 = vld [vmem:[#allocation7 + $0x160] sm:$0xff]
    %v683 = vld [vmem:[#allocation7 + $0x168] sm:$0xff]
    %v684 = vld [vmem:[#allocation7 + $0x170] sm:$0xff]
    %v685 = vld [vmem:[#allocation7 + $0x178] sm:$0xff]
    %v686 = vld [vmem:[#allocation7 + $0x180] sm:$0xff]
    %v687 = vld [vmem:[#allocation7 + $0x188] sm:$0xff]
    %v688 = vld [vmem:[#allocation7 + $0x190] sm:$0xff]
    %v689 = vld [vmem:[#allocation7 + $0x198] sm:$0xff]
    %v690 = vld [vmem:[#allocation7 + $0x1a0] sm:$0xff]
    %v691 = vld [vmem:[#allocation7 + $0x1a8] sm:$0xff]
    %v692 = vld [vmem:[#allocation7 + $0x1b0] sm:$0xff]
    %v693 = vld [vmem:[#allocation7 + $0x1b8] sm:$0xff]
    %v694 = vld [vmem:[#allocation7 + $0x1c0] sm:$0xff]
    %v695 = vld [vmem:[#allocation7 + $0x1c8] sm:$0xff]
    %v696 = vld [vmem:[#allocation7 + $0x1d0] sm:$0xff]
    %v697 = vld [vmem:[#allocation7 + $0x1d8] sm:$0xff]
    %v698 = vld [vmem:[#allocation7 + $0x1e0] sm:$0xff]
    %v699 = vld [vmem:[#allocation7 + $0x1e8] sm:$0xff]
    %v700 = vld [vmem:[#allocation7 + $0x1f0] sm:$0xff]
    %v701 = vld [vmem:[#allocation7 + $0x1f8] sm:$0xff]
    %702 = vmatprep.subr.mxu0 %v699
    %703 = vmatpush1.msra.mxu0 %v698
    %704 = vmatprep.subr.mxu0 %v695
    %705 = vmatpush1.msra.mxu0 %v694
    %706 = vmatprep.subr.mxu0 %v691
    %707 = vmatpush1.msra.mxu0 %v690
    %708 = vmatprep.subr.mxu0 %v687
    %709 = vmatpush1.msra.mxu0 %v686
    %710 = vmatprep.subr.mxu0 %v683
    %711 = vmatpush1.msra.mxu0 %v682
    %712 = vmatprep.subr.mxu0 %v679
    %713 = vmatpush1.msra.mxu0 %v678
    %714 = vmatprep.subr.mxu0 %v675
    %715 = vmatpush1.msra.mxu0 %v674
    %716 = vmatprep.subr.mxu0 %v671
    %717 = vmatpush1.msra.mxu0 %v670
    %718 = vmatprep.subr.mxu0 %v667
    %719 = vmatpush1.msra.mxu0 %v666
    %720 = vmatprep.subr.mxu0 %v663
    %721 = vmatpush1.msra.mxu0 %v662
    %722 = vmatprep.subr.mxu0 %v659
    %723 = vmatpush1.msra.mxu0 %v658
    %724 = vmatprep.subr.mxu0 %v655
    %725 = vmatpush1.msra.mxu0 %v654
    %726 = vmatprep.subr.mxu0 %v651
    %727 = vmatpush1.msra.mxu0 %v650
    %728 = vmatprep.subr.mxu0 %v647
    %729 = vmatpush1.msra.mxu0 %v646
    %730 = vmatprep.subr.mxu0 %v643
    %731 = vmatpush1.msra.mxu0 %v642
    %732 = vmatprep.subr.mxu0 %v639
    %733 = vmatpush1.msra.mxu0 %v638
    %734 = vmatprep.subr.mxu0 0.0
    %735 = vmatpush2.msra.mxu0 0.0
    %736 = vmatprep.subr.mxu0 0.0
    %737 = vmatpush2.msra.mxu0 0.0
    %738 = vmatprep.subr.mxu0 0.0
    %739 = vmatpush2.msra.mxu0 0.0
    %740 = vmatprep.subr.mxu0 0.0
    %741 = vmatpush2.msra.mxu0 0.0
    %742 = vmatprep.subr.mxu0 0.0
    %743 = vmatpush2.msra.mxu0 0.0
    %744 = vmatprep.subr.mxu0 0.0
    %745 = vmatpush2.msra.mxu0 0.0
    %746 = vmatprep.subr.mxu0 0.0
    %747 = vmatpush2.msra.mxu0 0.0
    %748 = vmatprep.subr.mxu0 0.0
    %749 = vmatpush2.msra.mxu0 0.0
    %750 = vmatprep.subr.mxu0 0.0
    %751 = vmatpush2.msra.mxu0 0.0
    %752 = vmatprep.subr.mxu0 0.0
    %753 = vmatpush2.msra.mxu0 0.0
    %754 = vmatprep.subr.mxu0 0.0
    %755 = vmatpush2.msra.mxu0 0.0
    %756 = vmatprep.subr.mxu0 0.0
    %757 = vmatpush2.msra.mxu0 0.0
    %758 = vmatprep.subr.mxu0 0.0
    %759 = vmatpush2.msra.mxu0 0.0
    %760 = vmatprep.subr.mxu0 0.0
    %761 = vmatpush2.msra.mxu0 0.0
    %762 = vmatprep.subr.mxu0 0.0
    %763 = vmatpush2.msra.mxu0 0.0
    %764 = vmatprep.subr.mxu0 0.0
    %765 = vmatpush2.msra.mxu0 0.0
    %766 = vmatprep.mubr.f32.mxu0 0.0
    %767 = vmatmul.mubr.f32.gmra.mxu0 %v629
    %v768 = vpop.f32.mrf.mxu0
    %v769 = vadd.f32 0.0, %v768
    %v770 = vpop.f32.mrf.mxu0
    %v771 = vadd.f32 0.0, %v770
    %772 = vdwg.mxu0
    %773 = vmatprep.subr.mxu0 %v701
    %774 = vmatpush1.msra.mxu0 %v700
    %775 = vmatprep.subr.mxu0 %v697
    %776 = vmatpush1.msra.mxu0 %v696
    %777 = vmatprep.subr.mxu0 %v693
    %778 = vmatpush1.msra.mxu0 %v692
    %779 = vmatprep.subr.mxu0 %v689
    %780 = vmatpush1.msra.mxu0 %v688
    %781 = vmatprep.subr.mxu0 %v685
    %782 = vmatpush1.msra.mxu0 %v684
    %783 = vmatprep.subr.mxu0 %v681
    %784 = vmatpush1.msra.mxu0 %v680
    %785 = vmatprep.subr.mxu0 %v677
    %786 = vmatpush1.msra.mxu0 %v676
    %787 = vmatprep.subr.mxu0 %v673
    %788 = vmatpush1.msra.mxu0 %v672
    %789 = vmatprep.subr.mxu0 %v669
    %790 = vmatpush1.msra.mxu0 %v668
    %791 = vmatprep.subr.mxu0 %v665
    %792 = vmatpush1.msra.mxu0 %v664
    %793 = vmatprep.subr.mxu0 %v661
    %794 = vmatpush1.msra.mxu0 %v660
    %795 = vmatprep.subr.mxu0 %v657
    %796 = vmatpush1.msra.mxu0 %v656
    %797 = vmatprep.subr.mxu0 %v653
    %798 = vmatpush1.msra.mxu0 %v652
    %799 = vmatprep.subr.mxu0 %v649
    %800 = vmatpush1.msra.mxu0 %v648
    %801 = vmatprep.subr.mxu0 %v645
    %802 = vmatpush1.msra.mxu0 %v644
    %803 = vmatprep.subr.mxu0 %v641
    %804 = vmatpush1.msra.mxu0 %v640
    %805 = vmatprep.subr.mxu0 0.0
    %806 = vmatpush2.msra.mxu0 0.0
    %807 = vmatprep.subr.mxu0 0.0
    %808 = vmatpush2.msra.mxu0 0.0
    %809 = vmatprep.subr.mxu0 0.0
    %810 = vmatpush2.msra.mxu0 0.0
    %811 = vmatprep.subr.mxu0 0.0
    %812 = vmatpush2.msra.mxu0 0.0
    %813 = vmatprep.subr.mxu0 0.0
    %814 = vmatpush2.msra.mxu0 0.0
    %815 = vmatprep.subr.mxu0 0.0
    %816 = vmatpush2.msra.mxu0 0.0
    %817 = vmatprep.subr.mxu0 0.0
    %818 = vmatpush2.msra.mxu0 0.0
    %819 = vmatprep.subr.mxu0 0.0
    %820 = vmatpush2.msra.mxu0 0.0
    %821 = vmatprep.subr.mxu0 0.0
    %822 = vmatpush2.msra.mxu0 0.0
    %823 = vmatprep.subr.mxu0 0.0
    %824 = vmatpush2.msra.mxu0 0.0
    %825 = vmatprep.subr.mxu0 0.0
    %826 = vmatpush2.msra.mxu0 0.0
    %827 = vmatprep.subr.mxu0 0.0
    %828 = vmatpush2.msra.mxu0 0.0
    %829 = vmatprep.subr.mxu0 0.0
    %830 = vmatpush2.msra.mxu0 0.0
    %831 = vmatprep.subr.mxu0 0.0
    %832 = vmatpush2.msra.mxu0 0.0
    %833 = vmatprep.subr.mxu0 0.0
    %834 = vmatpush2.msra.mxu0 0.0
    %835 = vmatprep.subr.mxu0 0.0
    %836 = vmatpush2.msra.mxu0 0.0
    %837 = vmatprep.mubr.f32.mxu0 0.0
    %838 = vmatmul.mubr.f32.gmra.mxu0 %v629
    %v839 = vpop.f32.mrf.mxu0
    %v840 = vadd.f32 0.0, %v839
    %v841 = vpop.f32.mrf.mxu0
    %v842 = vadd.f32 0.0, %v841
    %843 = vdwg.mxu0
    %v844 = vadd.f32 %v634, %v769
    %v845 = vadd.f32 %v635, %v771
    %v846 = vadd.f32 %v636, %v840
    %v847 = vadd.f32 %v637, %v842
    %v848 = vxor.u32 %v844, 2147483648
    %v849 = vmul.f32 %v848, 1.442695
    %v850 = vpow.pop %v849
    %v851 = vadd.f32 %v850, 1.0
    %v852 = vrcp.pop %v851
    %v853 = vmul.f32 1.0, %v852
    %v854 = vxor.u32 %v845, 2147483648
    %v855 = vmul.f32 %v854, 1.442695
    %v856 = vpow.pop %v855
    %v857 = vadd.f32 %v856, 1.0
    %v858 = vrcp.pop %v857
    %v859 = vmul.f32 1.0, %v858
    %v860 = vtanh.pop %v846
    %v861 = vxor.u32 %v847, 2147483648
    %v862 = vmul.f32 %v861, 1.442695
    %v863 = vpow.pop %v862
    %v864 = vadd.f32 %v863, 1.0
    %v865 = vrcp.pop %v864
    %v866 = vmul.f32 1.0, %v865
    %v867 = vmul.f32 %v859, %v630
    %v868 = vmul.f32 %v853, %v860
    %v869 = vadd.f32 %v867, %v868
    %v870 = vtanh.pop %v869
    %v871 = vmul.f32 %v866, %v870
    %872 = vst [vmem:[#allocation3] sm:$0xff] %v869
    %873 = vst [vmem:[#allocation2] sm:$0xff] %v871
    %s874 = scalar_lea.vmem %s4, 8
    %875 = vst [vmem:[%s874] sm:$0xff] %v871
    %v876 = vld [vmem:[#allocation2] sm:$0xff]
    %v877 = vld [vmem:[#allocation3] sm:$0xff]
    %s878 = smul.u32 2, 4
    %s879 = smul.addr %s878, 8
    %s880 = scalar_lea.vmem [#allocation4], %s879
    %v881 = vld [vmem:[%s880] sm:$0xff]
    %v882 = vld [vmem:[%s880 + $0x8] sm:$0xff]
    %v883 = vld [vmem:[%s880 + $0x10] sm:$0xff]
    %v884 = vld [vmem:[%s880 + $0x18] sm:$0xff]
    %v885 = vld [vmem:[#allocation7] sm:$0xff]
    %v886 = vld [vmem:[#allocation7 + $0x8] sm:$0xff]
    %v887 = vld [vmem:[#allocation7 + $0x10] sm:$0xff]
    %v888 = vld [vmem:[#allocation7 + $0x18] sm:$0xff]
    %v889 = vld [vmem:[#allocation7 + $0x20] sm:$0xff]
    %v890 = vld [vmem:[#allocation7 + $0x28] sm:$0xff]
    %v891 = vld [vmem:[#allocation7 + $0x30] sm:$0xff]
    %v892 = vld [vmem:[#allocation7 + $0x38] sm:$0xff]
    %v893 = vld [vmem:[#allocation7 + $0x40] sm:$0xff]
    %v894 = vld [vmem:[#allocation7 + $0x48] sm:$0xff]
    %v895 = vld [vmem:[#allocation7 + $0x50] sm:$0xff]
    %v896 = vld [vmem:[#allocation7 + $0x58] sm:$0xff]
    %v897 = vld [vmem:[#allocation7 + $0x60] sm:$0xff]
    %v898 = vld [vmem:[#allocation7 + $0x68] sm:$0xff]
    %v899 = vld [vmem:[#allocation7 + $0x70] sm:$0xff]
    %v900 = vld [vmem:[#allocation7 + $0x78] sm:$0xff]
    %v901 = vld [vmem:[#allocation7 + $0x80] sm:$0xff]
    %v902 = vld [vmem:[#allocation7 + $0x88] sm:$0xff]
    %v903 = vld [vmem:[#allocation7 + $0x90] sm:$0xff]
    %v904 = vld [vmem:[#allocation7 + $0x98] sm:$0xff]
    %v905 = vld [vmem:[#allocation7 + $0xa0] sm:$0xff]
    %v906 = vld [vmem:[#allocation7 + $0xa8] sm:$0xff]
    %v907 = vld [vmem:[#allocation7 + $0xb0] sm:$0xff]
    %v908 = vld [vmem:[#allocation7 + $0xb8] sm:$0xff]
    %v909 = vld [vmem:[#allocation7 + $0xc0] sm:$0xff]
    %v910 = vld [vmem:[#allocation7 + $0xc8] sm:$0xff]
    %v911 = vld [vmem:[#allocation7 + $0xd0] sm:$0xff]
    %v912 = vld [vmem:[#allocation7 + $0xd8] sm:$0xff]
    %v913 = vld [vmem:[#allocation7 + $0xe0] sm:$0xff]
    %v914 = vld [vmem:[#allocation7 + $0xe8] sm:$0xff]
    %v915 = vld [vmem:[#allocation7 + $0xf0] sm:$0xff]
    %v916 = vld [vmem:[#allocation7 + $0xf8] sm:$0xff]
    %v917 = vld [vmem:[#allocation7 + $0x100] sm:$0xff]
    %v918 = vld [vmem:[#allocation7 + $0x108] sm:$0xff]
    %v919 = vld [vmem:[#allocation7 + $0x110] sm:$0xff]
    %v920 = vld [vmem:[#allocation7 + $0x118] sm:$0xff]
    %v921 = vld [vmem:[#allocation7 + $0x120] sm:$0xff]
    %v922 = vld [vmem:[#allocation7 + $0x128] sm:$0xff]
    %v923 = vld [vmem:[#allocation7 + $0x130] sm:$0xff]
    %v924 = vld [vmem:[#allocation7 + $0x138] sm:$0xff]
    %v925 = vld [vmem:[#allocation7 + $0x140] sm:$0xff]
    %v926 = vld [vmem:[#allocation7 + $0x148] sm:$0xff]
    %v927 = vld [vmem:[#allocation7 + $0x150] sm:$0xff]
    %v928 = vld [vmem:[#allocation7 + $0x158] sm:$0xff]
    %v929 = vld [vmem:[#allocation7 + $0x160] sm:$0xff]
    %v930 = vld [vmem:[#allocation7 + $0x168] sm:$0xff]
    %v931 = vld [vmem:[#allocation7 + $0x170] sm:$0xff]
    %v932 = vld [vmem:[#allocation7 + $0x178] sm:$0xff]
    %v933 = vld [vmem:[#allocation7 + $0x180] sm:$0xff]
    %v934 = vld [vmem:[#allocation7 + $0x188] sm:$0xff]
    %v935 = vld [vmem:[#allocation7 + $0x190] sm:$0xff]
    %v936 = vld [vmem:[#allocation7 + $0x198] sm:$0xff]
    %v937 = vld [vmem:[#allocation7 + $0x1a0] sm:$0xff]
    %v938 = vld [vmem:[#allocation7 + $0x1a8] sm:$0xff]
    %v939 = vld [vmem:[#allocation7 + $0x1b0] sm:$0xff]
    %v940 = vld [vmem:[#allocation7 + $0x1b8] sm:$0xff]
    %v941 = vld [vmem:[#allocation7 + $0x1c0] sm:$0xff]
    %v942 = vld [vmem:[#allocation7 + $0x1c8] sm:$0xff]
    %v943 = vld [vmem:[#allocation7 + $0x1d0] sm:$0xff]
    %v944 = vld [vmem:[#allocation7 + $0x1d8] sm:$0xff]
    %v945 = vld [vmem:[#allocation7 + $0x1e0] sm:$0xff]
    %v946 = vld [vmem:[#allocation7 + $0x1e8] sm:$0xff]
    %v947 = vld [vmem:[#allocation7 + $0x1f0] sm:$0xff]
    %v948 = vld [vmem:[#allocation7 + $0x1f8] sm:$0xff]
    %949 = vmatprep.subr.mxu0 %v946
    %950 = vmatpush1.msra.mxu0 %v945
    %951 = vmatprep.subr.mxu0 %v942
    %952 = vmatpush1.msra.mxu0 %v941
    %953 = vmatprep.subr.mxu0 %v938
    %954 = vmatpush1.msra.mxu0 %v937
    %955 = vmatprep.subr.mxu0 %v934
    %956 = vmatpush1.msra.mxu0 %v933
    %957 = vmatprep.subr.mxu0 %v930
    %958 = vmatpush1.msra.mxu0 %v929
    %959 = vmatprep.subr.mxu0 %v926
    %960 = vmatpush1.msra.mxu0 %v925
    %961 = vmatprep.subr.mxu0 %v922
    %962 = vmatpush1.msra.mxu0 %v921
    %963 = vmatprep.subr.mxu0 %v918
    %964 = vmatpush1.msra.mxu0 %v917
    %965 = vmatprep.subr.mxu0 %v914
    %966 = vmatpush1.msra.mxu0 %v913
    %967 = vmatprep.subr.mxu0 %v910
    %968 = vmatpush1.msra.mxu0 %v909
    %969 = vmatprep.subr.mxu0 %v906
    %970 = vmatpush1.msra.mxu0 %v905
    %971 = vmatprep.subr.mxu0 %v902
    %972 = vmatpush1.msra.mxu0 %v901
    %973 = vmatprep.subr.mxu0 %v898
    %974 = vmatpush1.msra.mxu0 %v897
    %975 = vmatprep.subr.mxu0 %v894
    %976 = vmatpush1.msra.mxu0 %v893
    %977 = vmatprep.subr.mxu0 %v890
    %978 = vmatpush1.msra.mxu0 %v889
    %979 = vmatprep.subr.mxu0 %v886
    %980 = vmatpush1.msra.mxu0 %v885
    %981 = vmatprep.subr.mxu0 0.0
    %982 = vmatpush2.msra.mxu0 0.0
    %983 = vmatprep.subr.mxu0 0.0
    %984 = vmatpush2.msra.mxu0 0.0
    %985 = vmatprep.subr.mxu0 0.0
    %986 = vmatpush2.msra.mxu0 0.0
    %987 = vmatprep.subr.mxu0 0.0
    %988 = vmatpush2.msra.mxu0 0.0
    %989 = vmatprep.subr.mxu0 0.0
    %990 = vmatpush2.msra.mxu0 0.0
    %991 = vmatprep.subr.mxu0 0.0
    %992 = vmatpush2.msra.mxu0 0.0
    %993 = vmatprep.subr.mxu0 0.0
    %994 = vmatpush2.msra.mxu0 0.0
    %995 = vmatprep.subr.mxu0 0.0
    %996 = vmatpush2.msra.mxu0 0.0
    %997 = vmatprep.subr.mxu0 0.0
    %998 = vmatpush2.msra.mxu0 0.0
    %999 = vmatprep.subr.mxu0 0.0
    %1000 = vmatpush2.msra.mxu0 0.0
    %1001 = vmatprep.subr.mxu0 0.0
    %1002 = vmatpush2.msra.mxu0 0.0
    %1003 = vmatprep.subr.mxu0 0.0
    %1004 = vmatpush2.msra.mxu0 0.0
    %1005 = vmatprep.subr.mxu0 0.0
    %1006 = vmatpush2.msra.mxu0 0.0
    %1007 = vmatprep.subr.mxu0 0.0
    %1008 = vmatpush2.msra.mxu0 0.0
    %1009 = vmatprep.subr.mxu0 0.0
    %1010 = vmatpush2.msra.mxu0 0.0
    %1011 = vmatprep.subr.mxu0 0.0
    %1012 = vmatpush2.msra.mxu0 0.0
    %1013 = vmatprep.mubr.f32.mxu0 0.0
    %1014 = vmatmul.mubr.f32.gmra.mxu0 %v876
    %v1015 = vpop.f32.mrf.mxu0
    %v1016 = vadd.f32 0.0, %v1015
    %v1017 = vpop.f32.mrf.mxu0
    %v1018 = vadd.f32 0.0, %v1017
    %1019 = vdwg.mxu0
    %1020 = vmatprep.subr.mxu0 %v948
    %1021 = vmatpush1.msra.mxu0 %v947
    %1022 = vmatprep.subr.mxu0 %v944
    %1023 = vmatpush1.msra.mxu0 %v943
    %1024 = vmatprep.subr.mxu0 %v940
    %1025 = vmatpush1.msra.mxu0 %v939
    %1026 = vmatprep.subr.mxu0 %v936
    %1027 = vmatpush1.msra.mxu0 %v935
    %1028 = vmatprep.subr.mxu0 %v932
    %1029 = vmatpush1.msra.mxu0 %v931
    %1030 = vmatprep.subr.mxu0 %v928
    %1031 = vmatpush1.msra.mxu0 %v927
    %1032 = vmatprep.subr.mxu0 %v924
    %1033 = vmatpush1.msra.mxu0 %v923
    %1034 = vmatprep.subr.mxu0 %v920
    %1035 = vmatpush1.msra.mxu0 %v919
    %1036 = vmatprep.subr.mxu0 %v916
    %1037 = vmatpush1.msra.mxu0 %v915
    %1038 = vmatprep.subr.mxu0 %v912
    %1039 = vmatpush1.msra.mxu0 %v911
    %1040 = vmatprep.subr.mxu0 %v908
    %1041 = vmatpush1.msra.mxu0 %v907
    %1042 = vmatprep.subr.mxu0 %v904
    %1043 = vmatpush1.msra.mxu0 %v903
    %1044 = vmatprep.subr.mxu0 %v900
    %1045 = vmatpush1.msra.mxu0 %v899
    %1046 = vmatprep.subr.mxu0 %v896
    %1047 = vmatpush1.msra.mxu0 %v895
    %1048 = vmatprep.subr.mxu0 %v892
    %1049 = vmatpush1.msra.mxu0 %v891
    %1050 = vmatprep.subr.mxu0 %v888
    %1051 = vmatpush1.msra.mxu0 %v887
    %1052 = vmatprep.subr.mxu0 0.0
    %1053 = vmatpush2.msra.mxu0 0.0
    %1054 = vmatprep.subr.mxu0 0.0
    %1055 = vmatpush2.msra.mxu0 0.0
    %1056 = vmatprep.subr.mxu0 0.0
    %1057 = vmatpush2.msra.mxu0 0.0
    %1058 = vmatprep.subr.mxu0 0.0
    %1059 = vmatpush2.msra.mxu0 0.0
    %1060 = vmatprep.subr.mxu0 0.0
    %1061 = vmatpush2.msra.mxu0 0.0
    %1062 = vmatprep.subr.mxu0 0.0
    %1063 = vmatpush2.msra.mxu0 0.0
    %1064 = vmatprep.subr.mxu0 0.0
    %1065 = vmatpush2.msra.mxu0 0.0
    %1066 = vmatprep.subr.mxu0 0.0
    %1067 = vmatpush2.msra.mxu0 0.0
    %1068 = vmatprep.subr.mxu0 0.0
    %1069 = vmatpush2.msra.mxu0 0.0
    %1070 = vmatprep.subr.mxu0 0.0
    %1071 = vmatpush2.msra.mxu0 0.0
    %1072 = vmatprep.subr.mxu0 0.0
    %1073 = vmatpush2.msra.mxu0 0.0
    %1074 = vmatprep.subr.mxu0 0.0
    %1075 = vmatpush2.msra.mxu0 0.0
    %1076 = vmatprep.subr.mxu0 0.0
    %1077 = vmatpush2.msra.mxu0 0.0
    %1078 = vmatprep.subr.mxu0 0.0
    %1079 = vmatpush2.msra.mxu0 0.0
    %1080 = vmatprep.subr.mxu0 0.0
    %1081 = vmatpush2.msra.mxu0 0.0
    %1082 = vmatprep.subr.mxu0 0.0
    %1083 = vmatpush2.msra.mxu0 0.0
    %1084 = vmatprep.mubr.f32.mxu0 0.0
    %1085 = vmatmul.mubr.f32.gmra.mxu0 %v876
    %v1086 = vpop.f32.mrf.mxu0
    %v1087 = vadd.f32 0.0, %v1086
    %v1088 = vpop.f32.mrf.mxu0
    %v1089 = vadd.f32 0.0, %v1088
    %1090 = vdwg.mxu0
    %v1091 = vadd.f32 %v881, %v1016
    %v1092 = vadd.f32 %v882, %v1018
    %v1093 = vadd.f32 %v883, %v1087
    %v1094 = vadd.f32 %v884, %v1089
    %v1095 = vxor.u32 %v1091, 2147483648
    %v1096 = vmul.f32 %v1095, 1.442695
    %v1097 = vpow.pop %v1096
    %v1098 = vadd.f32 %v1097, 1.0
    %v1099 = vrcp.pop %v1098
    %v1100 = vmul.f32 1.0, %v1099
    %v1101 = vxor.u32 %v1092, 2147483648
    %v1102 = vmul.f32 %v1101, 1.442695
    %v1103 = vpow.pop %v1102
    %v1104 = vadd.f32 %v1103, 1.0
    %v1105 = vrcp.pop %v1104
    %v1106 = vmul.f32 1.0, %v1105
    %v1107 = vtanh.pop %v1093
    %v1108 = vxor.u32 %v1094, 2147483648
    %v1109 = vmul.f32 %v1108, 1.442695
    %v1110 = vpow.pop %v1109
    %v1111 = vadd.f32 %v1110, 1.0
    %v1112 = vrcp.pop %v1111
    %v1113 = vmul.f32 1.0, %v1112
    %v1114 = vmul.f32 %v1106, %v877
    %v1115 = vmul.f32 %v1100, %v1107
    %v1116 = vadd.f32 %v1114, %v1115
    %v1117 = vtanh.pop %v1116
    %v1118 = vmul.f32 %v1113, %v1117
    %1119 = vst [vmem:[#allocation3] sm:$0xff] %v1116
    %1120 = vst [vmem:[#allocation2] sm:$0xff] %v1118
    %s1121 = scalar_lea.vmem %s4, 16
    %1122 = vst [vmem:[%s1121] sm:$0xff] %v1118
    %v1123 = vld [vmem:[#allocation2] sm:$0xff]
    %v1124 = vld [vmem:[#allocation3] sm:$0xff]
    %s1125 = smul.u32 3, 4
    %s1126 = smul.addr %s1125, 8
    %s1127 = scalar_lea.vmem [#allocation4], %s1126
    %v1128 = vld [vmem:[%s1127] sm:$0xff]
    %v1129 = vld [vmem:[%s1127 + $0x8] sm:$0xff]
    %v1130 = vld [vmem:[%s1127 + $0x10] sm:$0xff]
    %v1131 = vld [vmem:[%s1127 + $0x18] sm:$0xff]
    %v1132 = vld [vmem:[#allocation7] sm:$0xff]
    %v1133 = vld [vmem:[#allocation7 + $0x8] sm:$0xff]
    %v1134 = vld [vmem:[#allocation7 + $0x10] sm:$0xff]
    %v1135 = vld [vmem:[#allocation7 + $0x18] sm:$0xff]
    %v1136 = vld [vmem:[#allocation7 + $0x20] sm:$0xff]
    %v1137 = vld [vmem:[#allocation7 + $0x28] sm:$0xff]
    %v1138 = vld [vmem:[#allocation7 + $0x30] sm:$0xff]
    %v1139 = vld [vmem:[#allocation7 + $0x38] sm:$0xff]
    %v1140 = vld [vmem:[#allocation7 + $0x40] sm:$0xff]
    %v1141 = vld [vmem:[#allocation7 + $0x48] sm:$0xff]
    %v1142 = vld [vmem:[#allocation7 + $0x50] sm:$0xff]
    %v1143 = vld [vmem:[#allocation7 + $0x58] sm:$0xff]
    %v1144 = vld [vmem:[#allocation7 + $0x60] sm:$0xff]
    %v1145 = vld [vmem:[#allocation7 + $0x68] sm:$0xff]
    %v1146 = vld [vmem:[#allocation7 + $0x70] sm:$0xff]
    %v1147 = vld [vmem:[#allocation7 + $0x78] sm:$0xff]
    %v1148 = vld [vmem:[#allocation7 + $0x80] sm:$0xff]
    %v1149 = vld [vmem:[#allocation7 + $0x88] sm:$0xff]
    %v1150 = vld [vmem:[#allocation7 + $0x90] sm:$0xff]
    %v1151 = vld [vmem:[#allocation7 + $0x98] sm:$0xff]
    %v1152 = vld [vmem:[#allocation7 + $0xa0] sm:$0xff]
    %v1153 = vld [vmem:[#allocation7 + $0xa8] sm:$0xff]
    %v1154 = vld [vmem:[#allocation7 + $0xb0] sm:$0xff]
    %v1155 = vld [vmem:[#allocation7 + $0xb8] sm:$0xff]
    %v1156 = vld [vmem:[#allocation7 + $0xc0] sm:$0xff]
    %v1157 = vld [vmem:[#allocation7 + $0xc8] sm:$0xff]
    %v1158 = vld [vmem:[#allocation7 + $0xd0] sm:$0xff]
    %v1159 = vld [vmem:[#allocation7 + $0xd8] sm:$0xff]
    %v1160 = vld [vmem:[#allocation7 + $0xe0] sm:$0xff]
    %v1161 = vld [vmem:[#allocation7 + $0xe8] sm:$0xff]
    %v1162 = vld [vmem:[#allocation7 + $0xf0] sm:$0xff]
    %v1163 = vld [vmem:[#allocation7 + $0xf8] sm:$0xff]
    %v1164 = vld [vmem:[#allocation7 + $0x100] sm:$0xff]
    %v1165 = vld [vmem:[#allocation7 + $0x108] sm:$0xff]
    %v1166 = vld [vmem:[#allocation7 + $0x110] sm:$0xff]
    %v1167 = vld [vmem:[#allocation7 + $0x118] sm:$0xff]
    %v1168 = vld [vmem:[#allocation7 + $0x120] sm:$0xff]
    %v1169 = vld [vmem:[#allocation7 + $0x128] sm:$0xff]
    %v1170 = vld [vmem:[#allocation7 + $0x130] sm:$0xff]
    %v1171 = vld [vmem:[#allocation7 + $0x138] sm:$0xff]
    %v1172 = vld [vmem:[#allocation7 + $0x140] sm:$0xff]
    %v1173 = vld [vmem:[#allocation7 + $0x148] sm:$0xff]
    %v1174 = vld [vmem:[#allocation7 + $0x150] sm:$0xff]
    %v1175 = vld [vmem:[#allocation7 + $0x158] sm:$0xff]
    %v1176 = vld [vmem:[#allocation7 + $0x160] sm:$0xff]
    %v1177 = vld [vmem:[#allocation7 + $0x168] sm:$0xff]
    %v1178 = vld [vmem:[#allocation7 + $0x170] sm:$0xff]
    %v1179 = vld [vmem:[#allocation7 + $0x178] sm:$0xff]
    %v1180 = vld [vmem:[#allocation7 + $0x180] sm:$0xff]
    %v1181 = vld [vmem:[#allocation7 + $0x188] sm:$0xff]
    %v1182 = vld [vmem:[#allocation7 + $0x190] sm:$0xff]
    %v1183 = vld [vmem:[#allocation7 + $0x198] sm:$0xff]
    %v1184 = vld [vmem:[#allocation7 + $0x1a0] sm:$0xff]
    %v1185 = vld [vmem:[#allocation7 + $0x1a8] sm:$0xff]
    %v1186 = vld [vmem:[#allocation7 + $0x1b0] sm:$0xff]
    %v1187 = vld [vmem:[#allocation7 + $0x1b8] sm:$0xff]
    %v1188 = vld [vmem:[#allocation7 + $0x1c0] sm:$0xff]
    %v1189 = vld [vmem:[#allocation7 + $0x1c8] sm:$0xff]
    %v1190 = vld [vmem:[#allocation7 + $0x1d0] sm:$0xff]
    %v1191 = vld [vmem:[#allocation7 + $0x1d8] sm:$0xff]
    %v1192 = vld [vmem:[#allocation7 + $0x1e0] sm:$0xff]
    %v1193 = vld [vmem:[#allocation7 + $0x1e8] sm:$0xff]
    %v1194 = vld [vmem:[#allocation7 + $0x1f0] sm:$0xff]
    %v1195 = vld [vmem:[#allocation7 + $0x1f8] sm:$0xff]
    %1196 = vmatprep.subr.mxu0 %v1193
    %1197 = vmatpush1.msra.mxu0 %v1192
    %1198 = vmatprep.subr.mxu0 %v1189
    %1199 = vmatpush1.msra.mxu0 %v1188
    %1200 = vmatprep.subr.mxu0 %v1185
    %1201 = vmatpush1.msra.mxu0 %v1184
    %1202 = vmatprep.subr.mxu0 %v1181
    %1203 = vmatpush1.msra.mxu0 %v1180
    %1204 = vmatprep.subr.mxu0 %v1177
    %1205 = vmatpush1.msra.mxu0 %v1176
    %1206 = vmatprep.subr.mxu0 %v1173
    %1207 = vmatpush1.msra.mxu0 %v1172
    %1208 = vmatprep.subr.mxu0 %v1169
    %1209 = vmatpush1.msra.mxu0 %v1168
    %1210 = vmatprep.subr.mxu0 %v1165
    %1211 = vmatpush1.msra.mxu0 %v1164
    %1212 = vmatprep.subr.mxu0 %v1161
    %1213 = vmatpush1.msra.mxu0 %v1160
    %1214 = vmatprep.subr.mxu0 %v1157
    %1215 = vmatpush1.msra.mxu0 %v1156
    %1216 = vmatprep.subr.mxu0 %v1153
    %1217 = vmatpush1.msra.mxu0 %v1152
    %1218 = vmatprep.subr.mxu0 %v1149
    %1219 = vmatpush1.msra.mxu0 %v1148
    %1220 = vmatprep.subr.mxu0 %v1145
    %1221 = vmatpush1.msra.mxu0 %v1144
    %1222 = vmatprep.subr.mxu0 %v1141
    %1223 = vmatpush1.msra.mxu0 %v1140
    %1224 = vmatprep.subr.mxu0 %v1137
    %1225 = vmatpush1.msra.mxu0 %v1136
    %1226 = vmatprep.subr.mxu0 %v1133
    %1227 = vmatpush1.msra.mxu0 %v1132
    %1228 = vmatprep.subr.mxu0 0.0
    %1229 = vmatpush2.msra.mxu0 0.0
    %1230 = vmatprep.subr.mxu0 0.0
    %1231 = vmatpush2.msra.mxu0 0.0
    %1232 = vmatprep.subr.mxu0 0.0
    %1233 = vmatpush2.msra.mxu0 0.0
    %1234 = vmatprep.subr.mxu0 0.0
    %1235 = vmatpush2.msra.mxu0 0.0
    %1236 = vmatprep.subr.mxu0 0.0
    %1237 = vmatpush2.msra.mxu0 0.0
    %1238 = vmatprep.subr.mxu0 0.0
    %1239 = vmatpush2.msra.mxu0 0.0
    %1240 = vmatprep.subr.mxu0 0.0
    %1241 = vmatpush2.msra.mxu0 0.0
    %1242 = vmatprep.subr.mxu0 0.0
    %1243 = vmatpush2.msra.mxu0 0.0
    %1244 = vmatprep.subr.mxu0 0.0
    %1245 = vmatpush2.msra.mxu0 0.0
    %1246 = vmatprep.subr.mxu0 0.0
    %1247 = vmatpush2.msra.mxu0 0.0
    %1248 = vmatprep.subr.mxu0 0.0
    %1249 = vmatpush2.msra.mxu0 0.0
    %1250 = vmatprep.subr.mxu0 0.0
    %1251 = vmatpush2.msra.mxu0 0.0
    %1252 = vmatprep.subr.mxu0 0.0
    %1253 = vmatpush2.msra.mxu0 0.0
    %1254 = vmatprep.subr.mxu0 0.0
    %1255 = vmatpush2.msra.mxu0 0.0
    %1256 = vmatprep.subr.mxu0 0.0
    %1257 = vmatpush2.msra.mxu0 0.0
    %1258 = vmatprep.subr.mxu0 0.0
    %1259 = vmatpush2.msra.mxu0 0.0
    %1260 = vmatprep.mubr.f32.mxu0 0.0
    %1261 = vmatmul.mubr.f32.gmra.mxu0 %v1123
    %v1262 = vpop.f32.mrf.mxu0
    %v1263 = vadd.f32 0.0, %v1262
    %v1264 = vpop.f32.mrf.mxu0
    %v1265 = vadd.f32 0.0, %v1264
    %1266 = vdwg.mxu0
    %1267 = vmatprep.subr.mxu0 %v1195
    %1268 = vmatpush1.msra.mxu0 %v1194
    %1269 = vmatprep.subr.mxu0 %v1191
    %1270 = vmatpush1.msra.mxu0 %v1190
    %1271 = vmatprep.subr.mxu0 %v1187
    %1272 = vmatpush1.msra.mxu0 %v1186
    %1273 = vmatprep.subr.mxu0 %v1183
    %1274 = vmatpush1.msra.mxu0 %v1182
    %1275 = vmatprep.subr.mxu0 %v1179
    %1276 = vmatpush1.msra.mxu0 %v1178
    %1277 = vmatprep.subr.mxu0 %v1175
    %1278 = vmatpush1.msra.mxu0 %v1174
    %1279 = vmatprep.subr.mxu0 %v1171
    %1280 = vmatpush1.msra.mxu0 %v1170
    %1281 = vmatprep.subr.mxu0 %v1167
    %1282 = vmatpush1.msra.mxu0 %v1166
    %1283 = vmatprep.subr.mxu0 %v1163
    %1284 = vmatpush1.msra.mxu0 %v1162
    %1285 = vmatprep.subr.mxu0 %v1159
    %1286 = vmatpush1.msra.mxu0 %v1158
    %1287 = vmatprep.subr.mxu0 %v1155
    %1288 = vmatpush1.msra.mxu0 %v1154
    %1289 = vmatprep.subr.mxu0 %v1151
    %1290 = vmatpush1.msra.mxu0 %v1150
    %1291 = vmatprep.subr.mxu0 %v1147
    %1292 = vmatpush1.msra.mxu0 %v1146
    %1293 = vmatprep.subr.mxu0 %v1143
    %1294 = vmatpush1.msra.mxu0 %v1142
    %1295 = vmatprep.subr.mxu0 %v1139
    %1296 = vmatpush1.msra.mxu0 %v1138
    %1297 = vmatprep.subr.mxu0 %v1135
    %1298 = vmatpush1.msra.mxu0 %v1134
    %1299 = vmatprep.subr.mxu0 0.0
    %1300 = vmatpush2.msra.mxu0 0.0
    %1301 = vmatprep.subr.mxu0 0.0
    %1302 = vmatpush2.msra.mxu0 0.0
    %1303 = vmatprep.subr.mxu0 0.0
    %1304 = vmatpush2.msra.mxu0 0.0
    %1305 = vmatprep.subr.mxu0 0.0
    %1306 = vmatpush2.msra.mxu0 0.0
    %1307 = vmatprep.subr.mxu0 0.0
    %1308 = vmatpush2.msra.mxu0 0.0
    %1309 = vmatprep.subr.mxu0 0.0
    %1310 = vmatpush2.msra.mxu0 0.0
    %1311 = vmatprep.subr.mxu0 0.0
    %1312 = vmatpush2.msra.mxu0 0.0
    %1313 = vmatprep.subr.mxu0 0.0
    %1314 = vmatpush2.msra.mxu0 0.0
    %1315 = vmatprep.subr.mxu0 0.0
    %1316 = vmatpush2.msra.mxu0 0.0
    %1317 = vmatprep.subr.mxu0 0.0
    %1318 = vmatpush2.msra.mxu0 0.0
    %1319 = vmatprep.subr.mxu0 0.0
    %1320 = vmatpush2.msra.mxu0 0.0
    %1321 = vmatprep.subr.mxu0 0.0
    %1322 = vmatpush2.msra.mxu0 0.0
    %1323 = vmatprep.subr.mxu0 0.0
    %1324 = vmatpush2.msra.mxu0 0.0
    %1325 = vmatprep.subr.mxu0 0.0
    %1326 = vmatpush2.msra.mxu0 0.0
    %1327 = vmatprep.subr.mxu0 0.0
    %1328 = vmatpush2.msra.mxu0 0.0
    %1329 = vmatprep.subr.mxu0 0.0
    %1330 = vmatpush2.msra.mxu0 0.0
    %1331 = vmatprep.mubr.f32.mxu0 0.0
    %1332 = vmatmul.mubr.f32.gmra.mxu0 %v1123
    %v1333 = vpop.f32.mrf.mxu0
    %v1334 = vadd.f32 0.0, %v1333
    %v1335 = vpop.f32.mrf.mxu0
    %v1336 = vadd.f32 0.0, %v1335
    %1337 = vdwg.mxu0
    %v1338 = vadd.f32 %v1128, %v1263
    %v1339 = vadd.f32 %v1129, %v1265
    %v1340 = vadd.f32 %v1130, %v1334
    %v1341 = vadd.f32 %v1131, %v1336
    %v1342 = vxor.u32 %v1338, 2147483648
    %v1343 = vmul.f32 %v1342, 1.442695
    %v1344 = vpow.pop %v1343
    %v1345 = vadd.f32 %v1344, 1.0
    %v1346 = vrcp.pop %v1345
    %v1347 = vmul.f32 1.0, %v1346
    %v1348 = vxor.u32 %v1339, 2147483648
    %v1349 = vmul.f32 %v1348, 1.442695
    %v1350 = vpow.pop %v1349
    %v1351 = vadd.f32 %v1350, 1.0
    %v1352 = vrcp.pop %v1351
    %v1353 = vmul.f32 1.0, %v1352
    %v1354 = vtanh.pop %v1340
    %v1355 = vxor.u32 %v1341, 2147483648
    %v1356 = vmul.f32 %v1355, 1.442695
    %v1357 = vpow.pop %v1356
    %v1358 = vadd.f32 %v1357, 1.0
    %v1359 = vrcp.pop %v1358
    %v1360 = vmul.f32 1.0, %v1359
    %v1361 = vmul.f32 %v1353, %v1124
    %v1362 = vmul.f32 %v1347, %v1354
    %v1363 = vadd.f32 %v1361, %v1362
    %v1364 = vtanh.pop %v1363
    %v1365 = vmul.f32 %v1360, %v1364
    %1366 = vst [vmem:[#allocation3] sm:$0xff] %v1363
    %1367 = vst [vmem:[#allocation2] sm:$0xff] %v1365
    %s1368 = scalar_lea.vmem %s4, 24
    %1369 = vst [vmem:[%s1368] sm:$0xff] %v1365
    %v1370 = vld [vmem:[#allocation2] sm:$0xff]
    %v1371 = vld [vmem:[#allocation3] sm:$0xff]
    %s1372 = smul.u32 4, 4
    %s1373 = smul.addr %s1372, 8
    %s1374 = scalar_lea.vmem [#allocation4], %s1373
    %v1375 = vld [vmem:[%s1374] sm:$0xff]
    %v1376 = vld [vmem:[%s1374 + $0x8] sm:$0xff]
    %v1377 = vld [vmem:[%s1374 + $0x10] sm:$0xff]
    %v1378 = vld [vmem:[%s1374 + $0x18] sm:$0xff]
    %v1379 = vld [vmem:[#allocation7] sm:$0xff]
    %v1380 = vld [vmem:[#allocation7 + $0x8] sm:$0xff]
    %v1381 = vld [vmem:[#allocation7 + $0x10] sm:$0xff]
    %v1382 = vld [vmem:[#allocation7 + $0x18] sm:$0xff]
    %v1383 = vld [vmem:[#allocation7 + $0x20] sm:$0xff]
    %v1384 = vld [vmem:[#allocation7 + $0x28] sm:$0xff]
    %v1385 = vld [vmem:[#allocation7 + $0x30] sm:$0xff]
    %v1386 = vld [vmem:[#allocation7 + $0x38] sm:$0xff]
    %v1387 = vld [vmem:[#allocation7 + $0x40] sm:$0xff]
    %v1388 = vld [vmem:[#allocation7 + $0x48] sm:$0xff]
    %v1389 = vld [vmem:[#allocation7 + $0x50] sm:$0xff]
    %v1390 = vld [vmem:[#allocation7 + $0x58] sm:$0xff]
    %v1391 = vld [vmem:[#allocation7 + $0x60] sm:$0xff]
    %v1392 = vld [vmem:[#allocation7 + $0x68] sm:$0xff]
    %v1393 = vld [vmem:[#allocation7 + $0x70] sm:$0xff]
    %v1394 = vld [vmem:[#allocation7 + $0x78] sm:$0xff]
    %v1395 = vld [vmem:[#allocation7 + $0x80] sm:$0xff]
    %v1396 = vld [vmem:[#allocation7 + $0x88] sm:$0xff]
    %v1397 = vld [vmem:[#allocation7 + $0x90] sm:$0xff]
    %v1398 = vld [vmem:[#allocation7 + $0x98] sm:$0xff]
    %v1399 = vld [vmem:[#allocation7 + $0xa0] sm:$0xff]
    %v1400 = vld [vmem:[#allocation7 + $0xa8] sm:$0xff]
    %v1401 = vld [vmem:[#allocation7 + $0xb0] sm:$0xff]
    %v1402 = vld [vmem:[#allocation7 + $0xb8] sm:$0xff]
    %v1403 = vld [vmem:[#allocation7 + $0xc0] sm:$0xff]
    %v1404 = vld [vmem:[#allocation7 + $0xc8] sm:$0xff]
    %v1405 = vld [vmem:[#allocation7 + $0xd0] sm:$0xff]
    %v1406 = vld [vmem:[#allocation7 + $0xd8] sm:$0xff]
    %v1407 = vld [vmem:[#allocation7 + $0xe0] sm:$0xff]
    %v1408 = vld [vmem:[#allocation7 + $0xe8] sm:$0xff]
    %v1409 = vld [vmem:[#allocation7 + $0xf0] sm:$0xff]
    %v1410 = vld [vmem:[#allocation7 + $0xf8] sm:$0xff]
    %v1411 = vld [vmem:[#allocation7 + $0x100] sm:$0xff]
    %v1412 = vld [vmem:[#allocation7 + $0x108] sm:$0xff]
    %v1413 = vld [vmem:[#allocation7 + $0x110] sm:$0xff]
    %v1414 = vld [vmem:[#allocation7 + $0x118] sm:$0xff]
    %v1415 = vld [vmem:[#allocation7 + $0x120] sm:$0xff]
    %v1416 = vld [vmem:[#allocation7 + $0x128] sm:$0xff]
    %v1417 = vld [vmem:[#allocation7 + $0x130] sm:$0xff]
    %v1418 = vld [vmem:[#allocation7 + $0x138] sm:$0xff]
    %v1419 = vld [vmem:[#allocation7 + $0x140] sm:$0xff]
    %v1420 = vld [vmem:[#allocation7 + $0x148] sm:$0xff]
    %v1421 = vld [vmem:[#allocation7 + $0x150] sm:$0xff]
    %v1422 = vld [vmem:[#allocation7 + $0x158] sm:$0xff]
    %v1423 = vld [vmem:[#allocation7 + $0x160] sm:$0xff]
    %v1424 = vld [vmem:[#allocation7 + $0x168] sm:$0xff]
    %v1425 = vld [vmem:[#allocation7 + $0x170] sm:$0xff]
    %v1426 = vld [vmem:[#allocation7 + $0x178] sm:$0xff]
    %v1427 = vld [vmem:[#allocation7 + $0x180] sm:$0xff]
    %v1428 = vld [vmem:[#allocation7 + $0x188] sm:$0xff]
    %v1429 = vld [vmem:[#allocation7 + $0x190] sm:$0xff]
    %v1430 = vld [vmem:[#allocation7 + $0x198] sm:$0xff]
    %v1431 = vld [vmem:[#allocation7 + $0x1a0] sm:$0xff]
    %v1432 = vld [vmem:[#allocation7 + $0x1a8] sm:$0xff]
    %v1433 = vld [vmem:[#allocation7 + $0x1b0] sm:$0xff]
    %v1434 = vld [vmem:[#allocation7 + $0x1b8] sm:$0xff]
    %v1435 = vld [vmem:[#allocation7 + $0x1c0] sm:$0xff]
    %v1436 = vld [vmem:[#allocation7 + $0x1c8] sm:$0xff]
    %v1437 = vld [vmem:[#allocation7 + $0x1d0] sm:$0xff]
    %v1438 = vld [vmem:[#allocation7 + $0x1d8] sm:$0xff]
    %v1439 = vld [vmem:[#allocation7 + $0x1e0] sm:$0xff]
    %v1440 = vld [vmem:[#allocation7 + $0x1e8] sm:$0xff]
    %v1441 = vld [vmem:[#allocation7 + $0x1f0] sm:$0xff]
    %v1442 = vld [vmem:[#allocation7 + $0x1f8] sm:$0xff]
    %1443 = vmatprep.subr.mxu0 %v1440
    %1444 = vmatpush1.msra.mxu0 %v1439
    %1445 = vmatprep.subr.mxu0 %v1436
    %1446 = vmatpush1.msra.mxu0 %v1435
    %1447 = vmatprep.subr.mxu0 %v1432
    %1448 = vmatpush1.msra.mxu0 %v1431
    %1449 = vmatprep.subr.mxu0 %v1428
    %1450 = vmatpush1.msra.mxu0 %v1427
    %1451 = vmatprep.subr.mxu0 %v1424
    %1452 = vmatpush1.msra.mxu0 %v1423
    %1453 = vmatprep.subr.mxu0 %v1420
    %1454 = vmatpush1.msra.mxu0 %v1419
    %1455 = vmatprep.subr.mxu0 %v1416
    %1456 = vmatpush1.msra.mxu0 %v1415
    %1457 = vmatprep.subr.mxu0 %v1412
    %1458 = vmatpush1.msra.mxu0 %v1411
    %1459 = vmatprep.subr.mxu0 %v1408
    %1460 = vmatpush1.msra.mxu0 %v1407
    %1461 = vmatprep.subr.mxu0 %v1404
    %1462 = vmatpush1.msra.mxu0 %v1403
    %1463 = vmatprep.subr.mxu0 %v1400
    %1464 = vmatpush1.msra.mxu0 %v1399
    %1465 = vmatprep.subr.mxu0 %v1396
    %1466 = vmatpush1.msra.mxu0 %v1395
    %1467 = vmatprep.subr.mxu0 %v1392
    %1468 = vmatpush1.msra.mxu0 %v1391
    %1469 = vmatprep.subr.mxu0 %v1388
    %1470 = vmatpush1.msra.mxu0 %v1387
    %1471 = vmatprep.subr.mxu0 %v1384
    %1472 = vmatpush1.msra.mxu0 %v1383
    %1473 = vmatprep.subr.mxu0 %v1380
    %1474 = vmatpush1.msra.mxu0 %v1379
    %1475 = vmatprep.subr.mxu0 0.0
    %1476 = vmatpush2.msra.mxu0 0.0
    %1477 = vmatprep.subr.mxu0 0.0
    %1478 = vmatpush2.msra.mxu0 0.0
    %1479 = vmatprep.subr.mxu0 0.0
    %1480 = vmatpush2.msra.mxu0 0.0
    %1481 = vmatprep.subr.mxu0 0.0
    %1482 = vmatpush2.msra.mxu0 0.0
    %1483 = vmatprep.subr.mxu0 0.0
    %1484 = vmatpush2.msra.mxu0 0.0
    %1485 = vmatprep.subr.mxu0 0.0
    %1486 = vmatpush2.msra.mxu0 0.0
    %1487 = vmatprep.subr.mxu0 0.0
    %1488 = vmatpush2.msra.mxu0 0.0
    %1489 = vmatprep.subr.mxu0 0.0
    %1490 = vmatpush2.msra.mxu0 0.0
    %1491 = vmatprep.subr.mxu0 0.0
    %1492 = vmatpush2.msra.mxu0 0.0
    %1493 = vmatprep.subr.mxu0 0.0
    %1494 = vmatpush2.msra.mxu0 0.0
    %1495 = vmatprep.subr.mxu0 0.0
    %1496 = vmatpush2.msra.mxu0 0.0
    %1497 = vmatprep.subr.mxu0 0.0
    %1498 = vmatpush2.msra.mxu0 0.0
    %1499 = vmatprep.subr.mxu0 0.0
    %1500 = vmatpush2.msra.mxu0 0.0
    %1501 = vmatprep.subr.mxu0 0.0
    %1502 = vmatpush2.msra.mxu0 0.0
    %1503 = vmatprep.subr.mxu0 0.0
    %1504 = vmatpush2.msra.mxu0 0.0
    %1505 = vmatprep.subr.mxu0 0.0
    %1506 = vmatpush2.msra.mxu0 0.0
    %1507 = vmatprep.mubr.f32.mxu0 0.0
    %1508 = vmatmul.mubr.f32.gmra.mxu0 %v1370
    %v1509 = vpop.f32.mrf.mxu0
    %v1510 = vadd.f32 0.0, %v1509
    %v1511 = vpop.f32.mrf.mxu0
    %v1512 = vadd.f32 0.0, %v1511
    %1513 = vdwg.mxu0
    %1514 = vmatprep.subr.mxu0 %v1442
    %1515 = vmatpush1.msra.mxu0 %v1441
    %1516 = vmatprep.subr.mxu0 %v1438
    %1517 = vmatpush1.msra.mxu0 %v1437
    %1518 = vmatprep.subr.mxu0 %v1434
    %1519 = vmatpush1.msra.mxu0 %v1433
    %1520 = vmatprep.subr.mxu0 %v1430
    %1521 = vmatpush1.msra.mxu0 %v1429
    %1522 = vmatprep.subr.mxu0 %v1426
    %1523 = vmatpush1.msra.mxu0 %v1425
    %1524 = vmatprep.subr.mxu0 %v1422
    %1525 = vmatpush1.msra.mxu0 %v1421
    %1526 = vmatprep.subr.mxu0 %v1418
    %1527 = vmatpush1.msra.mxu0 %v1417
    %1528 = vmatprep.subr.mxu0 %v1414
    %1529 = vmatpush1.msra.mxu0 %v1413
    %1530 = vmatprep.subr.mxu0 %v1410
    %1531 = vmatpush1.msra.mxu0 %v1409
    %1532 = vmatprep.subr.mxu0 %v1406
    %1533 = vmatpush1.msra.mxu0 %v1405
    %1534 = vmatprep.subr.mxu0 %v1402
    %1535 = vmatpush1.msra.mxu0 %v1401
    %1536 = vmatprep.subr.mxu0 %v1398
    %1537 = vmatpush1.msra.mxu0 %v1397
    %1538 = vmatprep.subr.mxu0 %v1394
    %1539 = vmatpush1.msra.mxu0 %v1393
    %1540 = vmatprep.subr.mxu0 %v1390
    %1541 = vmatpush1.msra.mxu0 %v1389
    %1542 = vmatprep.subr.mxu0 %v1386
    %1543 = vmatpush1.msra.mxu0 %v1385
    %1544 = vmatprep.subr.mxu0 %v1382
    %1545 = vmatpush1.msra.mxu0 %v1381
    %1546 = vmatprep.subr.mxu0 0.0
    %1547 = vmatpush2.msra.mxu0 0.0
    %1548 = vmatprep.subr.mxu0 0.0
    %1549 = vmatpush2.msra.mxu0 0.0
    %1550 = vmatprep.subr.mxu0 0.0
    %1551 = vmatpush2.msra.mxu0 0.0
    %1552 = vmatprep.subr.mxu0 0.0
    %1553 = vmatpush2.msra.mxu0 0.0
    %1554 = vmatprep.subr.mxu0 0.0
    %1555 = vmatpush2.msra.mxu0 0.0
    %1556 = vmatprep.subr.mxu0 0.0
    %1557 = vmatpush2.msra.mxu0 0.0
    %1558 = vmatprep.subr.mxu0 0.0
    %1559 = vmatpush2.msra.mxu0 0.0
    %1560 = vmatprep.subr.mxu0 0.0
    %1561 = vmatpush2.msra.mxu0 0.0
    %1562 = vmatprep.subr.mxu0 0.0
    %1563 = vmatpush2.msra.mxu0 0.0
    %1564 = vmatprep.subr.mxu0 0.0
    %1565 = vmatpush2.msra.mxu0 0.0
    %1566 = vmatprep.subr.mxu0 0.0
    %1567 = vmatpush2.msra.mxu0 0.0
    %1568 = vmatprep.subr.mxu0 0.0
    %1569 = vmatpush2.msra.mxu0 0.0
    %1570 = vmatprep.subr.mxu0 0.0
    %1571 = vmatpush2.msra.mxu0 0.0
    %1572 = vmatprep.subr.mxu0 0.0
    %1573 = vmatpush2.msra.mxu0 0.0
    %1574 = vmatprep.subr.mxu0 0.0
    %1575 = vmatpush2.msra.mxu0 0.0
    %1576 = vmatprep.subr.mxu0 0.0
    %1577 = vmatpush2.msra.mxu0 0.0
    %1578 = vmatprep.mubr.f32.mxu0 0.0
    %1579 = vmatmul.mubr.f32.gmra.mxu0 %v1370
    %v1580 = vpop.f32.mrf.mxu0
    %v1581 = vadd.f32 0.0, %v1580
    %v1582 = vpop.f32.mrf.mxu0
    %v1583 = vadd.f32 0.0, %v1582
    %1584 = vdwg.mxu0
    %v1585 = vadd.f32 %v1375, %v1510
    %v1586 = vadd.f32 %v1376, %v1512
    %v1587 = vadd.f32 %v1377, %v1581
    %v1588 = vadd.f32 %v1378, %v1583
    %v1589 = vxor.u32 %v1585, 2147483648
    %v1590 = vmul.f32 %v1589, 1.442695
    %v1591 = vpow.pop %v1590
    %v1592 = vadd.f32 %v1591, 1.0
    %v1593 = vrcp.pop %v1592
    %v1594 = vmul.f32 1.0, %v1593
    %v1595 = vxor.u32 %v1586, 2147483648
    %v1596 = vmul.f32 %v1595, 1.442695
    %v1597 = vpow.pop %v1596
    %v1598 = vadd.f32 %v1597, 1.0
    %v1599 = vrcp.pop %v1598
    %v1600 = vmul.f32 1.0, %v1599
    %v1601 = vtanh.pop %v1587
    %v1602 = vxor.u32 %v1588, 2147483648
    %v1603 = vmul.f32 %v1602, 1.442695
    %v1604 = vpow.pop %v1603
    %v1605 = vadd.f32 %v1604, 1.0
    %v1606 = vrcp.pop %v1605
    %v1607 = vmul.f32 1.0, %v1606
    %v1608 = vmul.f32 %v1600, %v1371
    %v1609 = vmul.f32 %v1594, %v1601
    %v1610 = vadd.f32 %v1608, %v1609
    %v1611 = vtanh.pop %v1610
    %v1612 = vmul.f32 %v1607, %v1611
    %1613 = vst [vmem:[#allocation3] sm:$0xff] %v1610
    %1614 = vst [vmem:[#allocation2] sm:$0xff] %v1612
    %s1615 = scalar_lea.vmem %s4, 32
    %1616 = vst [vmem:[%s1615] sm:$0xff] %v1612
    %v1617 = vld [vmem:[#allocation2] sm:$0xff]
    %v1618 = vld [vmem:[#allocation3] sm:$0xff]
    %s1619 = smul.u32 5, 4
    %s1620 = smul.addr %s1619, 8
    %s1621 = scalar_lea.vmem [#allocation4], %s1620
    %v1622 = vld [vmem:[%s1621] sm:$0xff]
    %v1623 = vld [vmem:[%s1621 + $0x8] sm:$0xff]
    %v1624 = vld [vmem:[%s1621 + $0x10] sm:$0xff]
    %v1625 = vld [vmem:[%s1621 + $0x18] sm:$0xff]
    %v1626 = vld [vmem:[#allocation7] sm:$0xff]
    %v1627 = vld [vmem:[#allocation7 + $0x8] sm:$0xff]
    %v1628 = vld [vmem:[#allocation7 + $0x10] sm:$0xff]
    %v1629 = vld [vmem:[#allocation7 + $0x18] sm:$0xff]
    %v1630 = vld [vmem:[#allocation7 + $0x20] sm:$0xff]
    %v1631 = vld [vmem:[#allocation7 + $0x28] sm:$0xff]
    %v1632 = vld [vmem:[#allocation7 + $0x30] sm:$0xff]
    %v1633 = vld [vmem:[#allocation7 + $0x38] sm:$0xff]
    %v1634 = vld [vmem:[#allocation7 + $0x40] sm:$0xff]
    %v1635 = vld [vmem:[#allocation7 + $0x48] sm:$0xff]
    %v1636 = vld [vmem:[#allocation7 + $0x50] sm:$0xff]
    %v1637 = vld [vmem:[#allocation7 + $0x58] sm:$0xff]
    %v1638 = vld [vmem:[#allocation7 + $0x60] sm:$0xff]
    %v1639 = vld [vmem:[#allocation7 + $0x68] sm:$0xff]
    %v1640 = vld [vmem:[#allocation7 + $0x70] sm:$0xff]
    %v1641 = vld [vmem:[#allocation7 + $0x78] sm:$0xff]
    %v1642 = vld [vmem:[#allocation7 + $0x80] sm:$0xff]
    %v1643 = vld [vmem:[#allocation7 + $0x88] sm:$0xff]
    %v1644 = vld [vmem:[#allocation7 + $0x90] sm:$0xff]
    %v1645 = vld [vmem:[#allocation7 + $0x98] sm:$0xff]
    %v1646 = vld [vmem:[#allocation7 + $0xa0] sm:$0xff]
    %v1647 = vld [vmem:[#allocation7 + $0xa8] sm:$0xff]
    %v1648 = vld [vmem:[#allocation7 + $0xb0] sm:$0xff]
    %v1649 = vld [vmem:[#allocation7 + $0xb8] sm:$0xff]
    %v1650 = vld [vmem:[#allocation7 + $0xc0] sm:$0xff]
    %v1651 = vld [vmem:[#allocation7 + $0xc8] sm:$0xff]
    %v1652 = vld [vmem:[#allocation7 + $0xd0] sm:$0xff]
    %v1653 = vld [vmem:[#allocation7 + $0xd8] sm:$0xff]
    %v1654 = vld [vmem:[#allocation7 + $0xe0] sm:$0xff]
    %v1655 = vld [vmem:[#allocation7 + $0xe8] sm:$0xff]
    %v1656 = vld [vmem:[#allocation7 + $0xf0] sm:$0xff]
    %v1657 = vld [vmem:[#allocation7 + $0xf8] sm:$0xff]
    %v1658 = vld [vmem:[#allocation7 + $0x100] sm:$0xff]
    %v1659 = vld [vmem:[#allocation7 + $0x108] sm:$0xff]
    %v1660 = vld [vmem:[#allocation7 + $0x110] sm:$0xff]
    %v1661 = vld [vmem:[#allocation7 + $0x118] sm:$0xff]
    %v1662 = vld [vmem:[#allocation7 + $0x120] sm:$0xff]
    %v1663 = vld [vmem:[#allocation7 + $0x128] sm:$0xff]
    %v1664 = vld [vmem:[#allocation7 + $0x130] sm:$0xff]
    %v1665 = vld [vmem:[#allocation7 + $0x138] sm:$0xff]
    %v1666 = vld [vmem:[#allocation7 + $0x140] sm:$0xff]
    %v1667 = vld [vmem:[#allocation7 + $0x148] sm:$0xff]
    %v1668 = vld [vmem:[#allocation7 + $0x150] sm:$0xff]
    %v1669 = vld [vmem:[#allocation7 + $0x158] sm:$0xff]
    %v1670 = vld [vmem:[#allocation7 + $0x160] sm:$0xff]
    %v1671 = vld [vmem:[#allocation7 + $0x168] sm:$0xff]
    %v1672 = vld [vmem:[#allocation7 + $0x170] sm:$0xff]
    %v1673 = vld [vmem:[#allocation7 + $0x178] sm:$0xff]
    %v1674 = vld [vmem:[#allocation7 + $0x180] sm:$0xff]
    %v1675 = vld [vmem:[#allocation7 + $0x188] sm:$0xff]
    %v1676 = vld [vmem:[#allocation7 + $0x190] sm:$0xff]
    %v1677 = vld [vmem:[#allocation7 + $0x198] sm:$0xff]
    %v1678 = vld [vmem:[#allocation7 + $0x1a0] sm:$0xff]
    %v1679 = vld [vmem:[#allocation7 + $0x1a8] sm:$0xff]
    %v1680 = vld [vmem:[#allocation7 + $0x1b0] sm:$0xff]
    %v1681 = vld [vmem:[#allocation7 + $0x1b8] sm:$0xff]
    %v1682 = vld [vmem:[#allocation7 + $0x1c0] sm:$0xff]
    %v1683 = vld [vmem:[#allocation7 + $0x1c8] sm:$0xff]
    %v1684 = vld [vmem:[#allocation7 + $0x1d0] sm:$0xff]
    %v1685 = vld [vmem:[#allocation7 + $0x1d8] sm:$0xff]
    %v1686 = vld [vmem:[#allocation7 + $0x1e0] sm:$0xff]
    %v1687 = vld [vmem:[#allocation7 + $0x1e8] sm:$0xff]
    %v1688 = vld [vmem:[#allocation7 + $0x1f0] sm:$0xff]
    %v1689 = vld [vmem:[#allocation7 + $0x1f8] sm:$0xff]
    %1690 = vmatprep.subr.mxu0 %v1687
    %1691 = vmatpush1.msra.mxu0 %v1686
    %1692 = vmatprep.subr.mxu0 %v1683
    %1693 = vmatpush1.msra.mxu0 %v1682
    %1694 = vmatprep.subr.mxu0 %v1679
    %1695 = vmatpush1.msra.mxu0 %v1678
    %1696 = vmatprep.subr.mxu0 %v1675
    %1697 = vmatpush1.msra.mxu0 %v1674
    %1698 = vmatprep.subr.mxu0 %v1671
    %1699 = vmatpush1.msra.mxu0 %v1670
    %1700 = vmatprep.subr.mxu0 %v1667
    %1701 = vmatpush1.msra.mxu0 %v1666
    %1702 = vmatprep.subr.mxu0 %v1663
    %1703 = vmatpush1.msra.mxu0 %v1662
    %1704 = vmatprep.subr.mxu0 %v1659
    %1705 = vmatpush1.msra.mxu0 %v1658
    %1706 = vmatprep.subr.mxu0 %v1655
    %1707 = vmatpush1.msra.mxu0 %v1654
    %1708 = vmatprep.subr.mxu0 %v1651
    %1709 = vmatpush1.msra.mxu0 %v1650
    %1710 = vmatprep.subr.mxu0 %v1647
    %1711 = vmatpush1.msra.mxu0 %v1646
    %1712 = vmatprep.subr.mxu0 %v1643
    %1713 = vmatpush1.msra.mxu0 %v1642
    %1714 = vmatprep.subr.mxu0 %v1639
    %1715 = vmatpush1.msra.mxu0 %v1638
    %1716 = vmatprep.subr.mxu0 %v1635
    %1717 = vmatpush1.msra.mxu0 %v1634
    %1718 = vmatprep.subr.mxu0 %v1631
    %1719 = vmatpush1.msra.mxu0 %v1630
    %1720 = vmatprep.subr.mxu0 %v1627
    %1721 = vmatpush1.msra.mxu0 %v1626
    %1722 = vmatprep.subr.mxu0 0.0
    %1723 = vmatpush2.msra.mxu0 0.0
    %1724 = vmatprep.subr.mxu0 0.0
    %1725 = vmatpush2.msra.mxu0 0.0
    %1726 = vmatprep.subr.mxu0 0.0
    %1727 = vmatpush2.msra.mxu0 0.0
    %1728 = vmatprep.subr.mxu0 0.0
    %1729 = vmatpush2.msra.mxu0 0.0
    %1730 = vmatprep.subr.mxu0 0.0
    %1731 = vmatpush2.msra.mxu0 0.0
    %1732 = vmatprep.subr.mxu0 0.0
    %1733 = vmatpush2.msra.mxu0 0.0
    %1734 = vmatprep.subr.mxu0 0.0
    %1735 = vmatpush2.msra.mxu0 0.0
    %1736 = vmatprep.subr.mxu0 0.0
    %1737 = vmatpush2.msra.mxu0 0.0
    %1738 = vmatprep.subr.mxu0 0.0
    %1739 = vmatpush2.msra.mxu0 0.0
    %1740 = vmatprep.subr.mxu0 0.0
    %1741 = vmatpush2.msra.mxu0 0.0
    %1742 = vmatprep.subr.mxu0 0.0
    %1743 = vmatpush2.msra.mxu0 0.0
    %1744 = vmatprep.subr.mxu0 0.0
    %1745 = vmatpush2.msra.mxu0 0.0
    %1746 = vmatprep.subr.mxu0 0.0
    %1747 = vmatpush2.msra.mxu0 0.0
    %1748 = vmatprep.subr.mxu0 0.0
    %1749 = vmatpush2.msra.mxu0 0.0
    %1750 = vmatprep.subr.mxu0 0.0
    %1751 = vmatpush2.msra.mxu0 0.0
    %1752 = vmatprep.subr.mxu0 0.0
    %1753 = vmatpush2.msra.mxu0 0.0
    %1754 = vmatprep.mubr.f32.mxu0 0.0
    %1755 = vmatmul.mubr.f32.gmra.mxu0 %v1617
    %v1756 = vpop.f32.mrf.mxu0
    %v1757 = vadd.f32 0.0, %v1756
    %v1758 = vpop.f32.mrf.mxu0
    %v1759 = vadd.f32 0.0, %v1758
    %1760 = vdwg.mxu0
    %1761 = vmatprep.subr.mxu0 %v1689
    %1762 = vmatpush1.msra.mxu0 %v1688
    %1763 = vmatprep.subr.mxu0 %v1685
    %1764 = vmatpush1.msra.mxu0 %v1684
    %1765 = vmatprep.subr.mxu0 %v1681
    %1766 = vmatpush1.msra.mxu0 %v1680
    %1767 = vmatprep.subr.mxu0 %v1677
    %1768 = vmatpush1.msra.mxu0 %v1676
    %1769 = vmatprep.subr.mxu0 %v1673
    %1770 = vmatpush1.msra.mxu0 %v1672
    %1771 = vmatprep.subr.mxu0 %v1669
    %1772 = vmatpush1.msra.mxu0 %v1668
    %1773 = vmatprep.subr.mxu0 %v1665
    %1774 = vmatpush1.msra.mxu0 %v1664
    %1775 = vmatprep.subr.mxu0 %v1661
    %1776 = vmatpush1.msra.mxu0 %v1660
    %1777 = vmatprep.subr.mxu0 %v1657
    %1778 = vmatpush1.msra.mxu0 %v1656
    %1779 = vmatprep.subr.mxu0 %v1653
    %1780 = vmatpush1.msra.mxu0 %v1652
    %1781 = vmatprep.subr.mxu0 %v1649
    %1782 = vmatpush1.msra.mxu0 %v1648
    %1783 = vmatprep.subr.mxu0 %v1645
    %1784 = vmatpush1.msra.mxu0 %v1644
    %1785 = vmatprep.subr.mxu0 %v1641
    %1786 = vmatpush1.msra.mxu0 %v1640
    %1787 = vmatprep.subr.mxu0 %v1637
    %1788 = vmatpush1.msra.mxu0 %v1636
    %1789 = vmatprep.subr.mxu0 %v1633
    %1790 = vmatpush1.msra.mxu0 %v1632
    %1791 = vmatprep.subr.mxu0 %v1629
    %1792 = vmatpush1.msra.mxu0 %v1628
    %1793 = vmatprep.subr.mxu0 0.0
    %1794 = vmatpush2.msra.mxu0 0.0
    %1795 = vmatprep.subr.mxu0 0.0
    %1796 = vmatpush2.msra.mxu0 0.0
    %1797 = vmatprep.subr.mxu0 0.0
    %1798 = vmatpush2.msra.mxu0 0.0
    %1799 = vmatprep.subr.mxu0 0.0
    %1800 = vmatpush2.msra.mxu0 0.0
    %1801 = vmatprep.subr.mxu0 0.0
    %1802 = vmatpush2.msra.mxu0 0.0
    %1803 = vmatprep.subr.mxu0 0.0
    %1804 = vmatpush2.msra.mxu0 0.0
    %1805 = vmatprep.subr.mxu0 0.0
    %1806 = vmatpush2.msra.mxu0 0.0
    %1807 = vmatprep.subr.mxu0 0.0
    %1808 = vmatpush2.msra.mxu0 0.0
    %1809 = vmatprep.subr.mxu0 0.0
    %1810 = vmatpush2.msra.mxu0 0.0
    %1811 = vmatprep.subr.mxu0 0.0
    %1812 = vmatpush2.msra.mxu0 0.0
    %1813 = vmatprep.subr.mxu0 0.0
    %1814 = vmatpush2.msra.mxu0 0.0
    %1815 = vmatprep.subr.mxu0 0.0
    %1816 = vmatpush2.msra.mxu0 0.0
    %1817 = vmatprep.subr.mxu0 0.0
    %1818 = vmatpush2.msra.mxu0 0.0
    %1819 = vmatprep.subr.mxu0 0.0
    %1820 = vmatpush2.msra.mxu0 0.0
    %1821 = vmatprep.subr.mxu0 0.0
    %1822 = vmatpush2.msra.mxu0 0.0
    %1823 = vmatprep.subr.mxu0 0.0
    %1824 = vmatpush2.msra.mxu0 0.0
    %1825 = vmatprep.mubr.f32.mxu0 0.0
    %1826 = vmatmul.mubr.f32.gmra.mxu0 %v1617
    %v1827 = vpop.f32.mrf.mxu0
    %v1828 = vadd.f32 0.0, %v1827
    %v1829 = vpop.f32.mrf.mxu0
    %v1830 = vadd.f32 0.0, %v1829
    %1831 = vdwg.mxu0
    %v1832 = vadd.f32 %v1622, %v1757
    %v1833 = vadd.f32 %v1623, %v1759
    %v1834 = vadd.f32 %v1624, %v1828
    %v1835 = vadd.f32 %v1625, %v1830
    %v1836 = vxor.u32 %v1832, 2147483648
    %v1837 = vmul.f32 %v1836, 1.442695
    %v1838 = vpow.pop %v1837
    %v1839 = vadd.f32 %v1838, 1.0
    %v1840 = vrcp.pop %v1839
    %v1841 = vmul.f32 1.0, %v1840
    %v1842 = vxor.u32 %v1833, 2147483648
    %v1843 = vmul.f32 %v1842, 1.442695
    %v1844 = vpow.pop %v1843
    %v1845 = vadd.f32 %v1844, 1.0
    %v1846 = vrcp.pop %v1845
    %v1847 = vmul.f32 1.0, %v1846
    %v1848 = vtanh.pop %v1834
    %v1849 = vxor.u32 %v1835, 2147483648
    %v1850 = vmul.f32 %v1849, 1.442695
    %v1851 = vpow.pop %v1850
    %v1852 = vadd.f32 %v1851, 1.0
    %v1853 = vrcp.pop %v1852
    %v1854 = vmul.f32 1.0, %v1853
    %v1855 = vmul.f32 %v1847, %v1618
    %v1856 = vmul.f32 %v1841, %v1848
    %v1857 = vadd.f32 %v1855, %v1856
    %v1858 = vtanh.pop %v1857
    %v1859 = vmul.f32 %v1854, %v1858
    %1860 = vst [vmem:[#allocation3] sm:$0xff] %v1857
    %1861 = vst [vmem:[#allocation2] sm:$0xff] %v1859
    %s1862 = scalar_lea.vmem %s4, 40
    %1863 = vst [vmem:[%s1862] sm:$0xff] %v1859
    %v1864 = vld [vmem:[#allocation2] sm:$0xff]
    %v1865 = vld [vmem:[#allocation3] sm:$0xff]
    %s1866 = smul.u32 6, 4
    %s1867 = smul.addr %s1866, 8
    %s1868 = scalar_lea.vmem [#allocation4], %s1867
    %v1869 = vld [vmem:[%s1868] sm:$0xff]
    %v1870 = vld [vmem:[%s1868 + $0x8] sm:$0xff]
    %v1871 = vld [vmem:[%s1868 + $0x10] sm:$0xff]
    %v1872 = vld [vmem:[%s1868 + $0x18] sm:$0xff]
    %v1873 = vld [vmem:[#allocation7] sm:$0xff]
    %v1874 = vld [vmem:[#allocation7 + $0x8] sm:$0xff]
    %v1875 = vld [vmem:[#allocation7 + $0x10] sm:$0xff]
    %v1876 = vld [vmem:[#allocation7 + $0x18] sm:$0xff]
    %v1877 = vld [vmem:[#allocation7 + $0x20] sm:$0xff]
    %v1878 = vld [vmem:[#allocation7 + $0x28] sm:$0xff]
    %v1879 = vld [vmem:[#allocation7 + $0x30] sm:$0xff]
    %v1880 = vld [vmem:[#allocation7 + $0x38] sm:$0xff]
    %v1881 = vld [vmem:[#allocation7 + $0x40] sm:$0xff]
    %v1882 = vld [vmem:[#allocation7 + $0x48] sm:$0xff]
    %v1883 = vld [vmem:[#allocation7 + $0x50] sm:$0xff]
    %v1884 = vld [vmem:[#allocation7 + $0x58] sm:$0xff]
    %v1885 = vld [vmem:[#allocation7 + $0x60] sm:$0xff]
    %v1886 = vld [vmem:[#allocation7 + $0x68] sm:$0xff]
    %v1887 = vld [vmem:[#allocation7 + $0x70] sm:$0xff]
    %v1888 = vld [vmem:[#allocation7 + $0x78] sm:$0xff]
    %v1889 = vld [vmem:[#allocation7 + $0x80] sm:$0xff]
    %v1890 = vld [vmem:[#allocation7 + $0x88] sm:$0xff]
    %v1891 = vld [vmem:[#allocation7 + $0x90] sm:$0xff]
    %v1892 = vld [vmem:[#allocation7 + $0x98] sm:$0xff]
    %v1893 = vld [vmem:[#allocation7 + $0xa0] sm:$0xff]
    %v1894 = vld [vmem:[#allocation7 + $0xa8] sm:$0xff]
    %v1895 = vld [vmem:[#allocation7 + $0xb0] sm:$0xff]
    %v1896 = vld [vmem:[#allocation7 + $0xb8] sm:$0xff]
    %v1897 = vld [vmem:[#allocation7 + $0xc0] sm:$0xff]
    %v1898 = vld [vmem:[#allocation7 + $0xc8] sm:$0xff]
    %v1899 = vld [vmem:[#allocation7 + $0xd0] sm:$0xff]
    %v1900 = vld [vmem:[#allocation7 + $0xd8] sm:$0xff]
    %v1901 = vld [vmem:[#allocation7 + $0xe0] sm:$0xff]
    %v1902 = vld [vmem:[#allocation7 + $0xe8] sm:$0xff]
    %v1903 = vld [vmem:[#allocation7 + $0xf0] sm:$0xff]
    %v1904 = vld [vmem:[#allocation7 + $0xf8] sm:$0xff]
    %v1905 = vld [vmem:[#allocation7 + $0x100] sm:$0xff]
    %v1906 = vld [vmem:[#allocation7 + $0x108] sm:$0xff]
    %v1907 = vld [vmem:[#allocation7 + $0x110] sm:$0xff]
    %v1908 = vld [vmem:[#allocation7 + $0x118] sm:$0xff]
    %v1909 = vld [vmem:[#allocation7 + $0x120] sm:$0xff]
    %v1910 = vld [vmem:[#allocation7 + $0x128] sm:$0xff]
    %v1911 = vld [vmem:[#allocation7 + $0x130] sm:$0xff]
    %v1912 = vld [vmem:[#allocation7 + $0x138] sm:$0xff]
    %v1913 = vld [vmem:[#allocation7 + $0x140] sm:$0xff]
    %v1914 = vld [vmem:[#allocation7 + $0x148] sm:$0xff]
    %v1915 = vld [vmem:[#allocation7 + $0x150] sm:$0xff]
    %v1916 = vld [vmem:[#allocation7 + $0x158] sm:$0xff]
    %v1917 = vld [vmem:[#allocation7 + $0x160] sm:$0xff]
    %v1918 = vld [vmem:[#allocation7 + $0x168] sm:$0xff]
    %v1919 = vld [vmem:[#allocation7 + $0x170] sm:$0xff]
    %v1920 = vld [vmem:[#allocation7 + $0x178] sm:$0xff]
    %v1921 = vld [vmem:[#allocation7 + $0x180] sm:$0xff]
    %v1922 = vld [vmem:[#allocation7 + $0x188] sm:$0xff]
    %v1923 = vld [vmem:[#allocation7 + $0x190] sm:$0xff]
    %v1924 = vld [vmem:[#allocation7 + $0x198] sm:$0xff]
    %v1925 = vld [vmem:[#allocation7 + $0x1a0] sm:$0xff]
    %v1926 = vld [vmem:[#allocation7 + $0x1a8] sm:$0xff]
    %v1927 = vld [vmem:[#allocation7 + $0x1b0] sm:$0xff]
    %v1928 = vld [vmem:[#allocation7 + $0x1b8] sm:$0xff]
    %v1929 = vld [vmem:[#allocation7 + $0x1c0] sm:$0xff]
    %v1930 = vld [vmem:[#allocation7 + $0x1c8] sm:$0xff]
    %v1931 = vld [vmem:[#allocation7 + $0x1d0] sm:$0xff]
    %v1932 = vld [vmem:[#allocation7 + $0x1d8] sm:$0xff]
    %v1933 = vld [vmem:[#allocation7 + $0x1e0] sm:$0xff]
    %v1934 = vld [vmem:[#allocation7 + $0x1e8] sm:$0xff]
    %v1935 = vld [vmem:[#allocation7 + $0x1f0] sm:$0xff]
    %v1936 = vld [vmem:[#allocation7 + $0x1f8] sm:$0xff]
    %1937 = vmatprep.subr.mxu0 %v1934
    %1938 = vmatpush1.msra.mxu0 %v1933
    %1939 = vmatprep.subr.mxu0 %v1930
    %1940 = vmatpush1.msra.mxu0 %v1929
    %1941 = vmatprep.subr.mxu0 %v1926
    %1942 = vmatpush1.msra.mxu0 %v1925
    %1943 = vmatprep.subr.mxu0 %v1922
    %1944 = vmatpush1.msra.mxu0 %v1921
    %1945 = vmatprep.subr.mxu0 %v1918
    %1946 = vmatpush1.msra.mxu0 %v1917
    %1947 = vmatprep.subr.mxu0 %v1914
    %1948 = vmatpush1.msra.mxu0 %v1913
    %1949 = vmatprep.subr.mxu0 %v1910
    %1950 = vmatpush1.msra.mxu0 %v1909
    %1951 = vmatprep.subr.mxu0 %v1906
    %1952 = vmatpush1.msra.mxu0 %v1905
    %1953 = vmatprep.subr.mxu0 %v1902
    %1954 = vmatpush1.msra.mxu0 %v1901
    %1955 = vmatprep.subr.mxu0 %v1898
    %1956 = vmatpush1.msra.mxu0 %v1897
    %1957 = vmatprep.subr.mxu0 %v1894
    %1958 = vmatpush1.msra.mxu0 %v1893
    %1959 = vmatprep.subr.mxu0 %v1890
    %1960 = vmatpush1.msra.mxu0 %v1889
    %1961 = vmatprep.subr.mxu0 %v1886
    %1962 = vmatpush1.msra.mxu0 %v1885
    %1963 = vmatprep.subr.mxu0 %v1882
    %1964 = vmatpush1.msra.mxu0 %v1881
    %1965 = vmatprep.subr.mxu0 %v1878
    %1966 = vmatpush1.msra.mxu0 %v1877
    %1967 = vmatprep.subr.mxu0 %v1874
    %1968 = vmatpush1.msra.mxu0 %v1873
    %1969 = vmatprep.subr.mxu0 0.0
    %1970 = vmatpush2.msra.mxu0 0.0
    %1971 = vmatprep.subr.mxu0 0.0
    %1972 = vmatpush2.msra.mxu0 0.0
    %1973 = vmatprep.subr.mxu0 0.0
    %1974 = vmatpush2.msra.mxu0 0.0
    %1975 = vmatprep.subr.mxu0 0.0
    %1976 = vmatpush2.msra.mxu0 0.0
    %1977 = vmatprep.subr.mxu0 0.0
    %1978 = vmatpush2.msra.mxu0 0.0
    %1979 = vmatprep.subr.mxu0 0.0
    %1980 = vmatpush2.msra.mxu0 0.0
    %1981 = vmatprep.subr.mxu0 0.0
    %1982 = vmatpush2.msra.mxu0 0.0
    %1983 = vmatprep.subr.mxu0 0.0
    %1984 = vmatpush2.msra.mxu0 0.0
    %1985 = vmatprep.subr.mxu0 0.0
    %1986 = vmatpush2.msra.mxu0 0.0
    %1987 = vmatprep.subr.mxu0 0.0
    %1988 = vmatpush2.msra.mxu0 0.0
    %1989 = vmatprep.subr.mxu0 0.0
    %1990 = vmatpush2.msra.mxu0 0.0
    %1991 = vmatprep.subr.mxu0 0.0
    %1992 = vmatpush2.msra.mxu0 0.0
    %1993 = vmatprep.subr.mxu0 0.0
    %1994 = vmatpush2.msra.mxu0 0.0
    %1995 = vmatprep.subr.mxu0 0.0
    %1996 = vmatpush2.msra.mxu0 0.0
    %1997 = vmatprep.subr.mxu0 0.0
    %1998 = vmatpush2.msra.mxu0 0.0
    %1999 = vmatprep.subr.mxu0 0.0
    %2000 = vmatpush2.msra.mxu0 0.0
    %2001 = vmatprep.mubr.f32.mxu0 0.0
    %2002 = vmatmul.mubr.f32.gmra.mxu0 %v1864
    %v2003 = vpop.f32.mrf.mxu0
    %v2004 = vadd.f32 0.0, %v2003
    %v2005 = vpop.f32.mrf.mxu0
    %v2006 = vadd.f32 0.0, %v2005
    %2007 = vdwg.mxu0
    %2008 = vmatprep.subr.mxu0 %v1936
    %2009 = vmatpush1.msra.mxu0 %v1935
    %2010 = vmatprep.subr.mxu0 %v1932
    %2011 = vmatpush1.msra.mxu0 %v1931
    %2012 = vmatprep.subr.mxu0 %v1928
    %2013 = vmatpush1.msra.mxu0 %v1927
    %2014 = vmatprep.subr.mxu0 %v1924
    %2015 = vmatpush1.msra.mxu0 %v1923
    %2016 = vmatprep.subr.mxu0 %v1920
    %2017 = vmatpush1.msra.mxu0 %v1919
    %2018 = vmatprep.subr.mxu0 %v1916
    %2019 = vmatpush1.msra.mxu0 %v1915
    %2020 = vmatprep.subr.mxu0 %v1912
    %2021 = vmatpush1.msra.mxu0 %v1911
    %2022 = vmatprep.subr.mxu0 %v1908
    %2023 = vmatpush1.msra.mxu0 %v1907
    %2024 = vmatprep.subr.mxu0 %v1904
    %2025 = vmatpush1.msra.mxu0 %v1903
    %2026 = vmatprep.subr.mxu0 %v1900
    %2027 = vmatpush1.msra.mxu0 %v1899
    %2028 = vmatprep.subr.mxu0 %v1896
    %2029 = vmatpush1.msra.mxu0 %v1895
    %2030 = vmatprep.subr.mxu0 %v1892
    %2031 = vmatpush1.msra.mxu0 %v1891
    %2032 = vmatprep.subr.mxu0 %v1888
    %2033 = vmatpush1.msra.mxu0 %v1887
    %2034 = vmatprep.subr.mxu0 %v1884
    %2035 = vmatpush1.msra.mxu0 %v1883
    %2036 = vmatprep.subr.mxu0 %v1880
    %2037 = vmatpush1.msra.mxu0 %v1879
    %2038 = vmatprep.subr.mxu0 %v1876
    %2039 = vmatpush1.msra.mxu0 %v1875
    %2040 = vmatprep.subr.mxu0 0.0
    %2041 = vmatpush2.msra.mxu0 0.0
    %2042 = vmatprep.subr.mxu0 0.0
    %2043 = vmatpush2.msra.mxu0 0.0
    %2044 = vmatprep.subr.mxu0 0.0
    %2045 = vmatpush2.msra.mxu0 0.0
    %2046 = vmatprep.subr.mxu0 0.0
    %2047 = vmatpush2.msra.mxu0 0.0
    %2048 = vmatprep.subr.mxu0 0.0
    %2049 = vmatpush2.msra.mxu0 0.0
    %2050 = vmatprep.subr.mxu0 0.0
    %2051 = vmatpush2.msra.mxu0 0.0
    %2052 = vmatprep.subr.mxu0 0.0
    %2053 = vmatpush2.msra.mxu0 0.0
    %2054 = vmatprep.subr.mxu0 0.0
    %2055 = vmatpush2.msra.mxu0 0.0
    %2056 = vmatprep.subr.mxu0 0.0
    %2057 = vmatpush2.msra.mxu0 0.0
    %2058 = vmatprep.subr.mxu0 0.0
    %2059 = vmatpush2.msra.mxu0 0.0
    %2060 = vmatprep.subr.mxu0 0.0
    %2061 = vmatpush2.msra.mxu0 0.0
    %2062 = vmatprep.subr.mxu0 0.0
    %2063 = vmatpush2.msra.mxu0 0.0
    %2064 = vmatprep.subr.mxu0 0.0
    %2065 = vmatpush2.msra.mxu0 0.0
    %2066 = vmatprep.subr.mxu0 0.0
    %2067 = vmatpush2.msra.mxu0 0.0
    %2068 = vmatprep.subr.mxu0 0.0
    %2069 = vmatpush2.msra.mxu0 0.0
    %2070 = vmatprep.subr.mxu0 0.0
    %2071 = vmatpush2.msra.mxu0 0.0
    %2072 = vmatprep.mubr.f32.mxu0 0.0
    %2073 = vmatmul.mubr.f32.gmra.mxu0 %v1864
    %v2074 = vpop.f32.mrf.mxu0
    %v2075 = vadd.f32 0.0, %v2074
    %v2076 = vpop.f32.mrf.mxu0
    %v2077 = vadd.f32 0.0, %v2076
    %2078 = vdwg.mxu0
    %v2079 = vadd.f32 %v1869, %v2004
    %v2080 = vadd.f32 %v1870, %v2006
    %v2081 = vadd.f32 %v1871, %v2075
    %v2082 = vadd.f32 %v1872, %v2077
    %v2083 = vxor.u32 %v2079, 2147483648
    %v2084 = vmul.f32 %v2083, 1.442695
    %v2085 = vpow.pop %v2084
    %v2086 = vadd.f32 %v2085, 1.0
    %v2087 = vrcp.pop %v2086
    %v2088 = vmul.f32 1.0, %v2087
    %v2089 = vxor.u32 %v2080, 2147483648
    %v2090 = vmul.f32 %v2089, 1.442695
    %v2091 = vpow.pop %v2090
    %v2092 = vadd.f32 %v2091, 1.0
    %v2093 = vrcp.pop %v2092
    %v2094 = vmul.f32 1.0, %v2093
    %v2095 = vtanh.pop %v2081
    %v2096 = vxor.u32 %v2082, 2147483648
    %v2097 = vmul.f32 %v2096, 1.442695
    %v2098 = vpow.pop %v2097
    %v2099 = vadd.f32 %v2098, 1.0
    %v2100 = vrcp.pop %v2099
    %v2101 = vmul.f32 1.0, %v2100
    %v2102 = vmul.f32 %v2094, %v1865
    %v2103 = vmul.f32 %v2088, %v2095
    %v2104 = vadd.f32 %v2102, %v2103
    %v2105 = vtanh.pop %v2104
    %v2106 = vmul.f32 %v2101, %v2105
    %2107 = vst [vmem:[#allocation3] sm:$0xff] %v2104
    %2108 = vst [vmem:[#allocation2] sm:$0xff] %v2106
    %s2109 = scalar_lea.vmem %s4, 48
    %2110 = vst [vmem:[%s2109] sm:$0xff] %v2106
    %v2111 = vld [vmem:[#allocation2] sm:$0xff]
    %v2112 = vld [vmem:[#allocation3] sm:$0xff]
    %s2113 = smul.u32 7, 4
    %s2114 = smul.addr %s2113, 8
    %s2115 = scalar_lea.vmem [#allocation4], %s2114
    %v2116 = vld [vmem:[%s2115] sm:$0xff]
    %v2117 = vld [vmem:[%s2115 + $0x8] sm:$0xff]
    %v2118 = vld [vmem:[%s2115 + $0x10] sm:$0xff]
    %v2119 = vld [vmem:[%s2115 + $0x18] sm:$0xff]
    %v2120 = vld [vmem:[#allocation7] sm:$0xff]
    %v2121 = vld [vmem:[#allocation7 + $0x8] sm:$0xff]
    %v2122 = vld [vmem:[#allocation7 + $0x10] sm:$0xff]
    %v2123 = vld [vmem:[#allocation7 + $0x18] sm:$0xff]
    %v2124 = vld [vmem:[#allocation7 + $0x20] sm:$0xff]
    %v2125 = vld [vmem:[#allocation7 + $0x28] sm:$0xff]
    %v2126 = vld [vmem:[#allocation7 + $0x30] sm:$0xff]
    %v2127 = vld [vmem:[#allocation7 + $0x38] sm:$0xff]
    %v2128 = vld [vmem:[#allocation7 + $0x40] sm:$0xff]
    %v2129 = vld [vmem:[#allocation7 + $0x48] sm:$0xff]
    %v2130 = vld [vmem:[#allocation7 + $0x50] sm:$0xff]
    %v2131 = vld [vmem:[#allocation7 + $0x58] sm:$0xff]
    %v2132 = vld [vmem:[#allocation7 + $0x60] sm:$0xff]
    %v2133 = vld [vmem:[#allocation7 + $0x68] sm:$0xff]
    %v2134 = vld [vmem:[#allocation7 + $0x70] sm:$0xff]
    %v2135 = vld [vmem:[#allocation7 + $0x78] sm:$0xff]
    %v2136 = vld [vmem:[#allocation7 + $0x80] sm:$0xff]
    %v2137 = vld [vmem:[#allocation7 + $0x88] sm:$0xff]
    %v2138 = vld [vmem:[#allocation7 + $0x90] sm:$0xff]
    %v2139 = vld [vmem:[#allocation7 + $0x98] sm:$0xff]
    %v2140 = vld [vmem:[#allocation7 + $0xa0] sm:$0xff]
    %v2141 = vld [vmem:[#allocation7 + $0xa8] sm:$0xff]
    %v2142 = vld [vmem:[#allocation7 + $0xb0] sm:$0xff]
    %v2143 = vld [vmem:[#allocation7 + $0xb8] sm:$0xff]
    %v2144 = vld [vmem:[#allocation7 + $0xc0] sm:$0xff]
    %v2145 = vld [vmem:[#allocation7 + $0xc8] sm:$0xff]
    %v2146 = vld [vmem:[#allocation7 + $0xd0] sm:$0xff]
    %v2147 = vld [vmem:[#allocation7 + $0xd8] sm:$0xff]
    %v2148 = vld [vmem:[#allocation7 + $0xe0] sm:$0xff]
    %v2149 = vld [vmem:[#allocation7 + $0xe8] sm:$0xff]
    %v2150 = vld [vmem:[#allocation7 + $0xf0] sm:$0xff]
    %v2151 = vld [vmem:[#allocation7 + $0xf8] sm:$0xff]
    %v2152 = vld [vmem:[#allocation7 + $0x100] sm:$0xff]
    %v2153 = vld [vmem:[#allocation7 + $0x108] sm:$0xff]
    %v2154 = vld [vmem:[#allocation7 + $0x110] sm:$0xff]
    %v2155 = vld [vmem:[#allocation7 + $0x118] sm:$0xff]
    %v2156 = vld [vmem:[#allocation7 + $0x120] sm:$0xff]
    %v2157 = vld [vmem:[#allocation7 + $0x128] sm:$0xff]
    %v2158 = vld [vmem:[#allocation7 + $0x130] sm:$0xff]
    %v2159 = vld [vmem:[#allocation7 + $0x138] sm:$0xff]
    %v2160 = vld [vmem:[#allocation7 + $0x140] sm:$0xff]
    %v2161 = vld [vmem:[#allocation7 + $0x148] sm:$0xff]
    %v2162 = vld [vmem:[#allocation7 + $0x150] sm:$0xff]
    %v2163 = vld [vmem:[#allocation7 + $0x158] sm:$0xff]
    %v2164 = vld [vmem:[#allocation7 + $0x160] sm:$0xff]
    %v2165 = vld [vmem:[#allocation7 + $0x168] sm:$0xff]
    %v2166 = vld [vmem:[#allocation7 + $0x170] sm:$0xff]
    %v2167 = vld [vmem:[#allocation7 + $0x178] sm:$0xff]
    %v2168 = vld [vmem:[#allocation7 + $0x180] sm:$0xff]
    %v2169 = vld [vmem:[#allocation7 + $0x188] sm:$0xff]
    %v2170 = vld [vmem:[#allocation7 + $0x190] sm:$0xff]
    %v2171 = vld [vmem:[#allocation7 + $0x198] sm:$0xff]
    %v2172 = vld [vmem:[#allocation7 + $0x1a0] sm:$0xff]
    %v2173 = vld [vmem:[#allocation7 + $0x1a8] sm:$0xff]
    %v2174 = vld [vmem:[#allocation7 + $0x1b0] sm:$0xff]
    %v2175 = vld [vmem:[#allocation7 + $0x1b8] sm:$0xff]
    %v2176 = vld [vmem:[#allocation7 + $0x1c0] sm:$0xff]
    %v2177 = vld [vmem:[#allocation7 + $0x1c8] sm:$0xff]
    %v2178 = vld [vmem:[#allocation7 + $0x1d0] sm:$0xff]
    %v2179 = vld [vmem:[#allocation7 + $0x1d8] sm:$0xff]
    %v2180 = vld [vmem:[#allocation7 + $0x1e0] sm:$0xff]
    %v2181 = vld [vmem:[#allocation7 + $0x1e8] sm:$0xff]
    %v2182 = vld [vmem:[#allocation7 + $0x1f0] sm:$0xff]
    %v2183 = vld [vmem:[#allocation7 + $0x1f8] sm:$0xff]
    %2184 = vmatprep.subr.mxu0 %v2181
    %2185 = vmatpush1.msra.mxu0 %v2180
    %2186 = vmatprep.subr.mxu0 %v2177
    %2187 = vmatpush1.msra.mxu0 %v2176
    %2188 = vmatprep.subr.mxu0 %v2173
    %2189 = vmatpush1.msra.mxu0 %v2172
    %2190 = vmatprep.subr.mxu0 %v2169
    %2191 = vmatpush1.msra.mxu0 %v2168
    %2192 = vmatprep.subr.mxu0 %v2165
    %2193 = vmatpush1.msra.mxu0 %v2164
    %2194 = vmatprep.subr.mxu0 %v2161
    %2195 = vmatpush1.msra.mxu0 %v2160
    %2196 = vmatprep.subr.mxu0 %v2157
    %2197 = vmatpush1.msra.mxu0 %v2156
    %2198 = vmatprep.subr.mxu0 %v2153
    %2199 = vmatpush1.msra.mxu0 %v2152
    %2200 = vmatprep.subr.mxu0 %v2149
    %2201 = vmatpush1.msra.mxu0 %v2148
    %2202 = vmatprep.subr.mxu0 %v2145
    %2203 = vmatpush1.msra.mxu0 %v2144
    %2204 = vmatprep.subr.mxu0 %v2141
    %2205 = vmatpush1.msra.mxu0 %v2140
    %2206 = vmatprep.subr.mxu0 %v2137
    %2207 = vmatpush1.msra.mxu0 %v2136
    %2208 = vmatprep.subr.mxu0 %v2133
    %2209 = vmatpush1.msra.mxu0 %v2132
    %2210 = vmatprep.subr.mxu0 %v2129
    %2211 = vmatpush1.msra.mxu0 %v2128
    %2212 = vmatprep.subr.mxu0 %v2125
    %2213 = vmatpush1.msra.mxu0 %v2124
    %2214 = vmatprep.subr.mxu0 %v2121
    %2215 = vmatpush1.msra.mxu0 %v2120
    %2216 = vmatprep.subr.mxu0 0.0
    %2217 = vmatpush2.msra.mxu0 0.0
    %2218 = vmatprep.subr.mxu0 0.0
    %2219 = vmatpush2.msra.mxu0 0.0
    %2220 = vmatprep.subr.mxu0 0.0
    %2221 = vmatpush2.msra.mxu0 0.0
    %2222 = vmatprep.subr.mxu0 0.0
    %2223 = vmatpush2.msra.mxu0 0.0
    %2224 = vmatprep.subr.mxu0 0.0
    %2225 = vmatpush2.msra.mxu0 0.0
    %2226 = vmatprep.subr.mxu0 0.0
    %2227 = vmatpush2.msra.mxu0 0.0
    %2228 = vmatprep.subr.mxu0 0.0
    %2229 = vmatpush2.msra.mxu0 0.0
    %2230 = vmatprep.subr.mxu0 0.0
    %2231 = vmatpush2.msra.mxu0 0.0
    %2232 = vmatprep.subr.mxu0 0.0
    %2233 = vmatpush2.msra.mxu0 0.0
    %2234 = vmatprep.subr.mxu0 0.0
    %2235 = vmatpush2.msra.mxu0 0.0
    %2236 = vmatprep.subr.mxu0 0.0
    %2237 = vmatpush2.msra.mxu0 0.0
    %2238 = vmatprep.subr.mxu0 0.0
    %2239 = vmatpush2.msra.mxu0 0.0
    %2240 = vmatprep.subr.mxu0 0.0
    %2241 = vmatpush2.msra.mxu0 0.0
    %2242 = vmatprep.subr.mxu0 0.0
    %2243 = vmatpush2.msra.mxu0 0.0
    %2244 = vmatprep.subr.mxu0 0.0
    %2245 = vmatpush2.msra.mxu0 0.0
    %2246 = vmatprep.subr.mxu0 0.0
    %2247 = vmatpush2.msra.mxu0 0.0
    %2248 = vmatprep.mubr.f32.mxu0 0.0
    %2249 = vmatmul.mubr.f32.gmra.mxu0 %v2111
    %v2250 = vpop.f32.mrf.mxu0
    %v2251 = vadd.f32 0.0, %v2250
    %v2252 = vpop.f32.mrf.mxu0
    %v2253 = vadd.f32 0.0, %v2252
    %2254 = vdwg.mxu0
    %2255 = vmatprep.subr.mxu0 %v2183
    %2256 = vmatpush1.msra.mxu0 %v2182
    %2257 = vmatprep.subr.mxu0 %v2179
    %2258 = vmatpush1.msra.mxu0 %v2178
    %2259 = vmatprep.subr.mxu0 %v2175
    %2260 = vmatpush1.msra.mxu0 %v2174
    %2261 = vmatprep.subr.mxu0 %v2171
    %2262 = vmatpush1.msra.mxu0 %v2170
    %2263 = vmatprep.subr.mxu0 %v2167
    %2264 = vmatpush1.msra.mxu0 %v2166
    %2265 = vmatprep.subr.mxu0 %v2163
    %2266 = vmatpush1.msra.mxu0 %v2162
    %2267 = vmatprep.subr.mxu0 %v2159
    %2268 = vmatpush1.msra.mxu0 %v2158
    %2269 = vmatprep.subr.mxu0 %v2155
    %2270 = vmatpush1.msra.mxu0 %v2154
    %2271 = vmatprep.subr.mxu0 %v2151
    %2272 = vmatpush1.msra.mxu0 %v2150
    %2273 = vmatprep.subr.mxu0 %v2147
    %2274 = vmatpush1.msra.mxu0 %v2146
    %2275 = vmatprep.subr.mxu0 %v2143
    %2276 = vmatpush1.msra.mxu0 %v2142
    %2277 = vmatprep.subr.mxu0 %v2139
    %2278 = vmatpush1.msra.mxu0 %v2138
    %2279 = vmatprep.subr.mxu0 %v2135
    %2280 = vmatpush1.msra.mxu0 %v2134
    %2281 = vmatprep.subr.mxu0 %v2131
    %2282 = vmatpush1.msra.mxu0 %v2130
    %2283 = vmatprep.subr.mxu0 %v2127
    %2284 = vmatpush1.msra.mxu0 %v2126
    %2285 = vmatprep.subr.mxu0 %v2123
    %2286 = vmatpush1.msra.mxu0 %v2122
    %2287 = vmatprep.subr.mxu0 0.0
    %2288 = vmatpush2.msra.mxu0 0.0
    %2289 = vmatprep.subr.mxu0 0.0
    %2290 = vmatpush2.msra.mxu0 0.0
    %2291 = vmatprep.subr.mxu0 0.0
    %2292 = vmatpush2.msra.mxu0 0.0
    %2293 = vmatprep.subr.mxu0 0.0
    %2294 = vmatpush2.msra.mxu0 0.0
    %2295 = vmatprep.subr.mxu0 0.0
    %2296 = vmatpush2.msra.mxu0 0.0
    %2297 = vmatprep.subr.mxu0 0.0
    %2298 = vmatpush2.msra.mxu0 0.0
    %2299 = vmatprep.subr.mxu0 0.0
    %2300 = vmatpush2.msra.mxu0 0.0
    %2301 = vmatprep.subr.mxu0 0.0
    %2302 = vmatpush2.msra.mxu0 0.0
    %2303 = vmatprep.subr.mxu0 0.0
    %2304 = vmatpush2.msra.mxu0 0.0
    %2305 = vmatprep.subr.mxu0 0.0
    %2306 = vmatpush2.msra.mxu0 0.0
    %2307 = vmatprep.subr.mxu0 0.0
    %2308 = vmatpush2.msra.mxu0 0.0
    %2309 = vmatprep.subr.mxu0 0.0
    %2310 = vmatpush2.msra.mxu0 0.0
    %2311 = vmatprep.subr.mxu0 0.0
    %2312 = vmatpush2.msra.mxu0 0.0
    %2313 = vmatprep.subr.mxu0 0.0
    %2314 = vmatpush2.msra.mxu0 0.0
    %2315 = vmatprep.subr.mxu0 0.0
    %2316 = vmatpush2.msra.mxu0 0.0
    %2317 = vmatprep.subr.mxu0 0.0
    %2318 = vmatpush2.msra.mxu0 0.0
    %2319 = vmatprep.mubr.f32.mxu0 0.0
    %2320 = vmatmul.mubr.f32.gmra.mxu0 %v2111
    %v2321 = vpop.f32.mrf.mxu0
    %v2322 = vadd.f32 0.0, %v2321
    %v2323 = vpop.f32.mrf.mxu0
    %v2324 = vadd.f32 0.0, %v2323
    %2325 = vdwg.mxu0
    %v2326 = vadd.f32 %v2116, %v2251
    %v2327 = vadd.f32 %v2117, %v2253
    %v2328 = vadd.f32 %v2118, %v2322
    %v2329 = vadd.f32 %v2119, %v2324
    %v2330 = vxor.u32 %v2326, 2147483648
    %v2331 = vmul.f32 %v2330, 1.442695
    %v2332 = vpow.pop %v2331
    %v2333 = vadd.f32 %v2332, 1.0
    %v2334 = vrcp.pop %v2333
    %v2335 = vmul.f32 1.0, %v2334
    %v2336 = vxor.u32 %v2327, 2147483648
    %v2337 = vmul.f32 %v2336, 1.442695
    %v2338 = vpow.pop %v2337
    %v2339 = vadd.f32 %v2338, 1.0
    %v2340 = vrcp.pop %v2339
    %v2341 = vmul.f32 1.0, %v2340
    %v2342 = vtanh.pop %v2328
    %v2343 = vxor.u32 %v2329, 2147483648
    %v2344 = vmul.f32 %v2343, 1.442695
    %v2345 = vpow.pop %v2344
    %v2346 = vadd.f32 %v2345, 1.0
    %v2347 = vrcp.pop %v2346
    %v2348 = vmul.f32 1.0, %v2347
    %v2349 = vmul.f32 %v2341, %v2112
    %v2350 = vmul.f32 %v2335, %v2342
    %v2351 = vadd.f32 %v2349, %v2350
    %v2352 = vtanh.pop %v2351
    %v2353 = vmul.f32 %v2348, %v2352
    %2354 = vst [vmem:[#allocation3] sm:$0xff] %v2351
    %2355 = vst [vmem:[#allocation2] sm:$0xff] %v2353
    %s2356 = scalar_lea.vmem %s4, 56
    %2357 = vst [vmem:[%s2356] sm:$0xff] %v2353
    // Predicated region
    $region34: #{_forward_jit.3} parent=1 // pred_check
      _
    $region35: #{_forward_jit.3} parent=1 // pred_check_branch
      %2359 = sbr.rel (0) target = $region37
    $region36: #{_forward_jit.3} parent=1 // pred_region
      _
    $region37: #{_forward_jit.3} parent=1 // pred_fallthru
      _
    // Predicated region
    $region38: #{_forward_jit.3} parent=1 // pred_check
      _
    $region39: #{_forward_jit.3} parent=1 // pred_check_branch
      %2361 = sbr.rel (0) target = $region41
    $region40: #{_forward_jit.3} parent=1 // pred_region
      _
    $region41: #{_forward_jit.3} parent=1 // pred_fallthru
      _
    %2362 = vsyncpa [#allocation6], 1
    %2363 = vsyncpa [#allocation8], 1

</llo_original>
